<compile_context>
chip_gen: v5e
topology: v5e:2x2
jax: 0.10.0
libtpu: 0.0.40
codegen_flags: <defaults>
</compile_context>

<pallas_src>
import functools

import jax
import jax.numpy as jnp
from jax.experimental import pallas as pl
from jax.experimental.pallas import tpu as pltpu


# ----------------------------------------------------------------------------
# Fused ConvGRU kernel (one grid step = one batch element).
# ----------------------------------------------------------------------------
def _convgru_kernel(h_ref, x_ref, wzr_h_ref, wzr_x_ref, bzr_ref,
                    wq_h_ref, wq_x_ref, bq_ref, o_ref,
                    hpad, xpad, rhpad, *, H, W, Ch, Cx):
    M = H * W
    dot_dtype = hpad.dtype
    f32 = jnp.float32

    # Zero ONLY the 4 halo slabs (top/bottom rows, left/right columns), every
    # grid step: scratch persists across steps and a "parallel" axis may be
    # sharded across cores, so never rely on a step-0 init.  The interior is
    # fully overwritten below, so this covers the whole buffer.
    for pad in (hpad, xpad, rhpad):
        C = pad.shape[-1]
        pad[0:1, :, :] = jnp.zeros((1, W + 2, C), pad.dtype)
        pad[H + 1:H + 2, :, :] = jnp.zeros((1, W + 2, C), pad.dtype)
        pad[1:H + 1, 0:1, :] = jnp.zeros((H, 1, C), pad.dtype)
        pad[1:H + 1, W + 1:W + 2, :] = jnp.zeros((H, 1, C), pad.dtype)

    h_f32 = h_ref[0]                                       # (H, W, Ch) f32
    hpad[1:H + 1, 1:W + 1, :] = h_f32.astype(dot_dtype)
    xpad[1:H + 1, 1:W + 1, :] = x_ref[0]                   # already dot_dtype

    def conv3x3(pads_weights, Cout):
        """3x3 conv as 9-tap accumulation: sum_t dot(tap_t, w[t]), f32 acc.

        pads_weights: list of (padded_ref, weight_ref (9, Cin, Cout)); the
        channel-split inputs replace conv(cat(a, b)) with separate dots.
        """
        acc = jnp.zeros((M, Cout), f32)
        for i in range(3):
            for j in range(3):
                t = i * 3 + j                              # matches (3,3,Cin,Cout) pack
                for pad, w_ref in pads_weights:
                    Cin = pad.shape[-1]
                    tap = pad[i:i + H, j:j + W, :].reshape(M, Cin)
                    acc = acc + jnp.dot(tap, w_ref[t],
                                        preferred_element_type=f32)
        return acc

    # Fused z|r gates: one accumulator, Cout = 2*Ch, shared input taps.
    zr = conv3x3([(hpad, wzr_h_ref), (xpad, wzr_x_ref)], 2 * Ch) + bzr_ref[...]
    z = jax.nn.sigmoid(zr[:, :Ch])
    r = jax.nn.sigmoid(zr[:, Ch:])

    h_flat = h_f32.reshape(M, Ch)
    rh = (r * h_flat).astype(dot_dtype)                    # f32 math, bf16 operand
    rhpad[1:H + 1, 1:W + 1, :] = rh.reshape(H, W, Ch)

    q = jnp.tanh(
        conv3x3([(rhpad, wq_h_ref), (xpad, wq_x_ref)], Ch) + bq_ref[...])

    # GRU mix (f32) fused into the epilogue: the only HBM store is h'.
    h_new = (1.0 - z) * h_flat + z * q
    o_ref[0] = h_new.reshape(H, W, Ch).astype(o_ref.dtype)


# ----------------------------------------------------------------------------
# One-time weight packing (hoisted out of the recurrent GRU loop).
# ----------------------------------------------------------------------------
def _hwio(w_oihw):
    # PyTorch conv weight (Cout, Cin, kh, kw) -> (kh, kw, Cin, Cout)
    return jnp.transpose(w_oihw, (2, 3, 1, 0))


def pack_params(params, dot_dtype=jnp.bfloat16):
    """OIHW -> (9, Cin, Cout) tap-major weights; fuse z|r; split h|x; cast."""
    Ch = params["wz"].shape[0]
    wz, wr, wq = _hwio(params["wz"]), _hwio(params["wr"]), _hwio(params["wq"])
    wzr = jnp.concatenate([wz, wr], axis=-1)               # (3, 3, Ch+Cx, 2*Ch)
    Cx = wzr.shape[2] - Ch
    return dict(
        wzr_h=wzr[:, :, :Ch, :].reshape(9, Ch, 2 * Ch).astype(dot_dtype),
        wzr_x=wzr[:, :, Ch:, :].reshape(9, Cx, 2 * Ch).astype(dot_dtype),
        bzr=jnp.concatenate([params["bz"], params["br"]])
            .reshape(1, 2 * Ch).astype(jnp.float32),
        wq_h=wq[:, :, :Ch, :].reshape(9, Ch, Ch).astype(dot_dtype),
        wq_x=wq[:, :, Ch:, :].reshape(9, Cx, Ch).astype(dot_dtype),
        bq=params["bq"].reshape(1, Ch).astype(jnp.float32),
    )


def _vmem_limit_bytes(H, W, Ch, Cx, dot_dtype):
    """Scoped-VMEM limit from actual footprint, 2x headroom, <= 64 MiB."""
    db, f32b = jnp.dtype(dot_dtype).itemsize, 4
    M = H * W
    scratch = (H + 2) * (W + 2) * (2 * Ch + Cx) * db            # 3 padded bufs
    blocks = 2 * 2 * (M * Ch * f32b + M * Cx * db + M * Ch * f32b)  # dbl-buf i/o
    weights = 2 * 9 * (Ch + Cx) * 3 * Ch * db + 2 * 3 * Ch * f32b
    live = M * 3 * Ch * f32b + 2 * M * max(Ch, Cx) * db + 4 * M * Ch * f32b
    est = scratch + blocks + weights + live
    return int(min(max(2 * est, 32 << 20), 64 << 20))


# ----------------------------------------------------------------------------
# Wrapper: NHWC activations (keep NHWC across recurrent iterations).
# ----------------------------------------------------------------------------
@jax.jit
def conv_gru(packed, h_nhwc, x_nhwc):
    """One ConvGRU step. h: (N,H,W,Ch) f32, x: (N,H,W,Cx); returns (N,H,W,Ch)."""
    N, H, W, Ch = h_nhwc.shape
    Cx = x_nhwc.shape[-1]
    dot_dtype = packed["wzr_h"].dtype
    x_nhwc = x_nhwc.astype(dot_dtype)   # no-op if pre-cast outside the loop

    kernel = functools.partial(_convgru_kernel, H=H, W=W, Ch=Ch, Cx=Cx)
    batch4 = lambda n: (n, 0, 0, 0)
    const3 = lambda n: (0, 0, 0)        # weights resident: no re-DMA per step
    const2 = lambda n: (0, 0)

    return pl.pallas_call(
        kernel,
        out_shape=jax.ShapeDtypeStruct((N, H, W, Ch), h_nhwc.dtype),
        grid=(N,),
        in_specs=[
            pl.BlockSpec((1, H, W, Ch), batch4),                 # h (f32)
            pl.BlockSpec((1, H, W, Cx), batch4),                 # x (dot dtype)
            pl.BlockSpec((9, Ch, 2 * Ch), const3),               # wzr_h
            pl.BlockSpec((9, Cx, 2 * Ch), const3),               # wzr_x
            pl.BlockSpec((1, 2 * Ch), const2),                   # bzr
            pl.BlockSpec((9, Ch, Ch), const3),                   # wq_h
            pl.BlockSpec((9, Cx, Ch), const3),                   # wq_x
            pl.BlockSpec((1, Ch), const2),                       # bq
        ],
        out_specs=pl.BlockSpec((1, H, W, Ch), batch4),
        scratch_shapes=[
            pltpu.VMEM((H + 2, W + 2, Ch), dot_dtype),           # padded h
            pltpu.VMEM((H + 2, W + 2, Cx), dot_dtype),           # padded x
            pltpu.VMEM((H + 2, W + 2, Ch), dot_dtype),           # padded r*h
        ],
        input_output_aliases={0: 0},    # h' reuses h's buffer (recurrent state)
        compiler_params=pltpu.CompilerParams(
            dimension_semantics=("parallel",),
            vmem_limit_bytes=_vmem_limit_bytes(H, W, Ch, Cx, dot_dtype)),
    )(h_nhwc, x_nhwc, packed["wzr_h"], packed["wzr_x"], packed["bzr"],
      packed["wq_h"], packed["wq_x"], packed["bq"])


# ----------------------------------------------------------------------------
# Pure-JAX reference (NCHW, like PyTorch).  dot_dtype=None -> exact f32;
# dot_dtype=bf16 -> matched-quantization reference for the perf path.
# ----------------------------------------------------------------------------
def conv_gru_ref(params, h, x, dot_dtype=None):
    def conv(inp, w, b):
        if dot_dtype is not None:
            inp, w = inp.astype(dot_dtype), w.astype(dot_dtype)
        y = jax.lax.conv_general_dilated(
            inp, w, window_strides=(1, 1), padding=[(1, 1), (1, 1)],
            dimension_numbers=("NCHW", "OIHW", "NCHW"),
            preferred_element_type=jnp.float32)
        return y + b[None, :, None, None]

    hx = jnp.concatenate([h, x], axis=1)
    z = jax.nn.sigmoid(conv(hx, params["wz"], params["bz"]))
    r = jax.nn.sigmoid(conv(hx, params["wr"], params["br"]))
    q = jnp.tanh(conv(jnp.concatenate([r * h, x], axis=1),
                      params["wq"], params["bq"]))
    return (1.0 - z) * h + z * q


# ----------------------------------------------------------------------------
# Deterministic parameter init (PyTorch OIHW layout).
# ----------------------------------------------------------------------------
def init_params(key, hidden_dim, input_dim):
    sum_dim = hidden_dim + input_dim
    params = {}
    for name, k in zip(("z", "r", "q"), jax.random.split(key, 3)):
        kw_, kb_ = jax.random.split(k)
        params["w" + name] = jax.random.normal(
            kw_, (hidden_dim, sum_dim, 3, 3), jnp.float32) * 0.1
        params["b" + name] = jax.random.normal(
            kb_, (hidden_dim,), jnp.float32) * 0.01
    return params


if __name__ == "__main__":
    key = jax.random.PRNGKey(0)
    kp, kh, kx = jax.random.split(key, 3)

    N, Ch, Cx, Hs, Ws = 2, 32, 64, 16, 16
    params = init_params(kp, Ch, Cx)
    h = jax.random.normal(kh, (N, Ch, Hs, Ws), jnp.float32)   # hidden state
    x = jax.random.normal(kx, (N, Cx, Hs, Ws), jnp.float32)   # GRU input

    # Hoisted out of the recurrent loop: layout transposes + weight packing.
    h_nhwc = jnp.transpose(h, (0, 2, 3, 1))
    x_nhwc = jnp.transpose(x, (0, 2, 3, 1))

    # --- exact-parity path (f32 dot operands) ---
    out32 = jax.block_until_ready(
        conv_gru(pack_params(params, jnp.float32), h_nhwc, x_nhwc))
    out32 = jnp.transpose(out32, (0, 3, 1, 2))
    ref32 = conv_gru_ref(params, h, x)
    assert out32.shape == (N, Ch, Hs, Ws)
    err32 = float(jnp.max(jnp.abs(out32 - ref32)))
    assert jnp.allclose(out32, ref32, atol=2e-3, rtol=2e-3), err32

    # --- performance path (bf16 dot operands, f32 accumulation) ---
    out16 = jax.block_until_ready(
        conv_gru(pack_params(params, jnp.bfloat16), h_nhwc, x_nhwc))
    out16 = jnp.transpose(out16, (0, 3, 1, 2))
    ref16 = conv_gru_ref(params, h, x, dot_dtype=jnp.bfloat16)
    err16 = float(jnp.max(jnp.abs(out16 - ref16)))
    assert jnp.allclose(out16, ref16, atol=2e-2, rtol=2e-2), err16

    print("KERNEL_OK")
</pallas_src>

<mosaic_0001>
module attributes {stable_mosaic.version = 11 : i64} {
  func.func @_convgru_kernel(%arg0: i32, %arg1: memref<1x16x16x32xf32, #tpu.memory_space<vmem>>, %arg2: memref<1x16x16x64xf32, #tpu.memory_space<vmem>>, %arg3: memref<9x32x64xf32, #tpu.memory_space<vmem>>, %arg4: memref<9x64x64xf32, #tpu.memory_space<vmem>>, %arg5: memref<1x64xf32, #tpu.memory_space<vmem>>, %arg6: memref<9x32x32xf32, #tpu.memory_space<vmem>>, %arg7: memref<9x64x32xf32, #tpu.memory_space<vmem>>, %arg8: memref<1x32xf32, #tpu.memory_space<vmem>>, %arg9: memref<1x16x16x32xf32, #tpu.memory_space<vmem>>, %arg10: memref<18x18x32xf32, #tpu.memory_space<vmem>>, %arg11: memref<18x18x64xf32, #tpu.memory_space<vmem>>, %arg12: memref<18x18x32xf32, #tpu.memory_space<vmem>>) attributes {dimension_semantics = [#tpu.dimension_semantics<parallel>], iteration_bounds = array<i64: 2>, scalar_prefetch = 0 : i64, scratch_operands = 3 : i64, tpu.core_type = #tpu.core_type<tc>, window_params = [{transform_indices = @transform_0, window_bounds = array<i64: 1, 16, 16, 32>}, {transform_indices = @transform_1, window_bounds = array<i64: 1, 16, 16, 64>}, {pipeline_mode = #tpu.pipeline_mode<synchronous>, transform_indices = @transform_2, window_bounds = array<i64: 9, 32, 64>}, {pipeline_mode = #tpu.pipeline_mode<synchronous>, transform_indices = @transform_3, window_bounds = array<i64: 9, 64, 64>}, {pipeline_mode = #tpu.pipeline_mode<synchronous>, transform_indices = @transform_4, window_bounds = array<i64: 1, 64>}, {pipeline_mode = #tpu.pipeline_mode<synchronous>, transform_indices = @transform_5, window_bounds = array<i64: 9, 32, 32>}, {pipeline_mode = #tpu.pipeline_mode<synchronous>, transform_indices = @transform_6, window_bounds = array<i64: 9, 64, 32>}, {pipeline_mode = #tpu.pipeline_mode<synchronous>, transform_indices = @transform_7, window_bounds = array<i64: 1, 32>}, {transform_indices = @transform_8, window_bounds = array<i64: 1, 16, 16, 32>}]} {
    %cst = arith.constant 0.000000e+00 : f32
    %0 = vector.broadcast %cst : f32 to vector<1x18x32xf32>
    %c0 = arith.constant 0 : index
    %c0_0 = arith.constant 0 : index
    %c0_1 = arith.constant 0 : index
    %1 = vector.load %arg10[%c0, %c0_0, %c0_1] : memref<18x18x32xf32, #tpu.memory_space<vmem>>, vector<1x18x32xf32>
    tpu.vector_store %arg10[%c0, %c0_0, %c0_1], %0 {strides = array<i32>} : memref<18x18x32xf32, #tpu.memory_space<vmem>>, vector<1x18x32xf32>,
    %cst_2 = arith.constant 0.000000e+00 : f32
    %2 = vector.broadcast %cst_2 : f32 to vector<1x18x32xf32>
    %c17 = arith.constant 17 : index
    %c0_3 = arith.constant 0 : index
    %c0_4 = arith.constant 0 : index
    %3 = vector.load %arg10[%c17, %c0_3, %c0_4] : memref<18x18x32xf32, #tpu.memory_space<vmem>>, vector<1x18x32xf32>
    tpu.vector_store %arg10[%c17, %c0_3, %c0_4], %2 {strides = array<i32>} : memref<18x18x32xf32, #tpu.memory_space<vmem>>, vector<1x18x32xf32>,
    %cst_5 = arith.constant 0.000000e+00 : f32
    %4 = vector.broadcast %cst_5 : f32 to vector<16x1x32xf32>
    %c1 = arith.constant 1 : index
    %c0_6 = arith.constant 0 : index
    %c0_7 = arith.constant 0 : index
    %5 = vector.load %arg10[%c1, %c0_6, %c0_7] : memref<18x18x32xf32, #tpu.memory_space<vmem>>, vector<16x1x32xf32>
    tpu.vector_store %arg10[%c1, %c0_6, %c0_7], %4 {strides = array<i32>} : memref<18x18x32xf32, #tpu.memory_space<vmem>>, vector<16x1x32xf32>,
    %cst_8 = arith.constant 0.000000e+00 : f32
    %6 = vector.broadcast %cst_8 : f32 to vector<16x1x32xf32>
    %c1_9 = arith.constant 1 : index
    %c17_10 = arith.constant 17 : index
    %c0_11 = arith.constant 0 : index
    %7 = vector.load %arg10[%c1_9, %c17_10, %c0_11] : memref<18x18x32xf32, #tpu.memory_space<vmem>>, vector<16x1x32xf32>
    tpu.vector_store %arg10[%c1_9, %c17_10, %c0_11], %6 {strides = array<i32>} : memref<18x18x32xf32, #tpu.memory_space<vmem>>, vector<16x1x32xf32>,
    %cst_12 = arith.constant 0.000000e+00 : f32
    %8 = vector.broadcast %cst_12 : f32 to vector<1x18x64xf32>
    %c0_13 = arith.constant 0 : index
    %c0_14 = arith.constant 0 : index
    %c0_15 = arith.constant 0 : index
    %9 = vector.load %arg11[%c0_13, %c0_14, %c0_15] : memref<18x18x64xf32, #tpu.memory_space<vmem>>, vector<1x18x64xf32>
    tpu.vector_store %arg11[%c0_13, %c0_14, %c0_15], %8 {strides = array<i32>} : memref<18x18x64xf32, #tpu.memory_space<vmem>>, vector<1x18x64xf32>,
    %cst_16 = arith.constant 0.000000e+00 : f32
    %10 = vector.broadcast %cst_16 : f32 to vector<1x18x64xf32>
    %c17_17 = arith.constant 17 : index
    %c0_18 = arith.constant 0 : index
    %c0_19 = arith.constant 0 : index
    %11 = vector.load %arg11[%c17_17, %c0_18, %c0_19] : memref<18x18x64xf32, #tpu.memory_space<vmem>>, vector<1x18x64xf32>
    tpu.vector_store %arg11[%c17_17, %c0_18, %c0_19], %10 {strides = array<i32>} : memref<18x18x64xf32, #tpu.memory_space<vmem>>, vector<1x18x64xf32>,
    %cst_20 = arith.constant 0.000000e+00 : f32
    %12 = vector.broadcast %cst_20 : f32 to vector<16x1x64xf32>
    %c1_21 = arith.constant 1 : index
    %c0_22 = arith.constant 0 : index
    %c0_23 = arith.constant 0 : index
    %13 = vector.load %arg11[%c1_21, %c0_22, %c0_23] : memref<18x18x64xf32, #tpu.memory_space<vmem>>, vector<16x1x64xf32>
    tpu.vector_store %arg11[%c1_21, %c0_22, %c0_23], %12 {strides = array<i32>} : memref<18x18x64xf32, #tpu.memory_space<vmem>>, vector<16x1x64xf32>,
    %cst_24 = arith.constant 0.000000e+00 : f32
    %14 = vector.broadcast %cst_24 : f32 to vector<16x1x64xf32>
    %c1_25 = arith.constant 1 : index
    %c17_26 = arith.constant 17 : index
    %c0_27 = arith.constant 0 : index
    %15 = vector.load %arg11[%c1_25, %c17_26, %c0_27] : memref<18x18x64xf32, #tpu.memory_space<vmem>>, vector<16x1x64xf32>
    tpu.vector_store %arg11[%c1_25, %c17_26, %c0_27], %14 {strides = array<i32>} : memref<18x18x64xf32, #tpu.memory_space<vmem>>, vector<16x1x64xf32>,
    %cst_28 = arith.constant 0.000000e+00 : f32
    %16 = vector.broadcast %cst_28 : f32 to vector<1x18x32xf32>
    %c0_29 = arith.constant 0 : index
    %c0_30 = arith.constant 0 : index
    %c0_31 = arith.constant 0 : index
    %17 = vector.load %arg12[%c0_29, %c0_30, %c0_31] : memref<18x18x32xf32, #tpu.memory_space<vmem>>, vector<1x18x32xf32>
    tpu.vector_store %arg12[%c0_29, %c0_30, %c0_31], %16 {strides = array<i32>} : memref<18x18x32xf32, #tpu.memory_space<vmem>>, vector<1x18x32xf32>,
    %cst_32 = arith.constant 0.000000e+00 : f32
    %18 = vector.broadcast %cst_32 : f32 to vector<1x18x32xf32>
    %c17_33 = arith.constant 17 : index
    %c0_34 = arith.constant 0 : index
    %c0_35 = arith.constant 0 : index
    %19 = vector.load %arg12[%c17_33, %c0_34, %c0_35] : memref<18x18x32xf32, #tpu.memory_space<vmem>>, vector<1x18x32xf32>
    tpu.vector_store %arg12[%c17_33, %c0_34, %c0_35], %18 {strides = array<i32>} : memref<18x18x32xf32, #tpu.memory_space<vmem>>, vector<1x18x32xf32>,
    %cst_36 = arith.constant 0.000000e+00 : f32
    %20 = vector.broadcast %cst_36 : f32 to vector<16x1x32xf32>
    %c1_37 = arith.constant 1 : index
    %c0_38 = arith.constant 0 : index
    %c0_39 = arith.constant 0 : index
    %21 = vector.load %arg12[%c1_37, %c0_38, %c0_39] : memref<18x18x32xf32, #tpu.memory_space<vmem>>, vector<16x1x32xf32>
    tpu.vector_store %arg12[%c1_37, %c0_38, %c0_39], %20 {strides = array<i32>} : memref<18x18x32xf32, #tpu.memory_space<vmem>>, vector<16x1x32xf32>,
    %cst_40 = arith.constant 0.000000e+00 : f32
    %22 = vector.broadcast %cst_40 : f32 to vector<16x1x32xf32>
    %c1_41 = arith.constant 1 : index
    %c17_42 = arith.constant 17 : index
    %c0_43 = arith.constant 0 : index
    %23 = vector.load %arg12[%c1_41, %c17_42, %c0_43] : memref<18x18x32xf32, #tpu.memory_space<vmem>>, vector<16x1x32xf32>
    tpu.vector_store %arg12[%c1_41, %c17_42, %c0_43], %22 {strides = array<i32>} : memref<18x18x32xf32, #tpu.memory_space<vmem>>, vector<16x1x32xf32>,
    %c0_44 = arith.constant 0 : index
    %c0_45 = arith.constant 0 : index
    %c0_46 = arith.constant 0 : index
    %c0_47 = arith.constant 0 : index
    %24 = vector.load %arg1[%c0_44, %c0_45, %c0_46, %c0_47] : memref<1x16x16x32xf32, #tpu.memory_space<vmem>>, vector<1x16x16x32xf32>
    %25 = vector.shape_cast %24 : vector<1x16x16x32xf32> to vector<16x16x32xf32>
    %c1_48 = arith.constant 1 : index
    %c1_49 = arith.constant 1 : index
    %c0_50 = arith.constant 0 : index
    %26 = vector.load %arg10[%c1_48, %c1_49, %c0_50] : memref<18x18x32xf32, #tpu.memory_space<vmem>>, vector<16x16x32xf32>
    tpu.vector_store %arg10[%c1_48, %c1_49, %c0_50], %25 {strides = array<i32>} : memref<18x18x32xf32, #tpu.memory_space<vmem>>, vector<16x16x32xf32>,
    %c0_51 = arith.constant 0 : index
    %c0_52 = arith.constant 0 : index
    %c0_53 = arith.constant 0 : index
    %c0_54 = arith.constant 0 : index
    %27 = vector.load %arg2[%c0_51, %c0_52, %c0_53, %c0_54] : memref<1x16x16x64xf32, #tpu.memory_space<vmem>>, vector<1x16x16x64xf32>
    %28 = vector.shape_cast %27 : vector<1x16x16x64xf32> to vector<16x16x64xf32>
    %c1_55 = arith.constant 1 : index
    %c1_56 = arith.constant 1 : index
    %c0_57 = arith.constant 0 : index
    %29 = vector.load %arg11[%c1_55, %c1_56, %c0_57] : memref<18x18x64xf32, #tpu.memory_space<vmem>>, vector<16x16x64xf32>
    tpu.vector_store %arg11[%c1_55, %c1_56, %c0_57], %28 {strides = array<i32>} : memref<18x18x64xf32, #tpu.memory_space<vmem>>, vector<16x16x64xf32>,
    %cst_58 = arith.constant 0.000000e+00 : f32
    %30 = vector.broadcast %cst_58 : f32 to vector<256x64xf32>
    %c0_59 = arith.constant 0 : index
    %c0_60 = arith.constant 0 : index
    %c0_61 = arith.constant 0 : index
    %31 = vector.load %arg10[%c0_59, %c0_60, %c0_61] : memref<18x18x32xf32, #tpu.memory_space<vmem>>, vector<16x16x32xf32>
    %32 = vector.shape_cast %31 : vector<16x16x32xf32> to vector<256x32xf32>
    %c0_62 = arith.constant 0 : index
    %c0_63 = arith.constant 0 : index
    %c0_64 = arith.constant 0 : index
    %33 = vector.load %arg3[%c0_62, %c0_63, %c0_64] : memref<9x32x64xf32, #tpu.memory_space<vmem>>, vector<1x32x64xf32>
    %34 = vector.shape_cast %33 : vector<1x32x64xf32> to vector<32x64xf32>
    %cst_65 = arith.constant dense<0.000000e+00> : vector<256x64xf32>
    %35 = tpu.matmul %32, %34, %cst_65 {dimension_numbers = #tpu.dot_dimension_numbers<[1], [0], [0], [1], [0, 0, 1, 1], [], []>} : vector<256x32xf32>, vector<32x64xf32>, vector<256x64xf32> -> vector<256x64xf32>
    %36 = arith.addf %30, %35 : vector<256x64xf32>
    %c0_66 = arith.constant 0 : index
    %c0_67 = arith.constant 0 : index
    %c0_68 = arith.constant 0 : index
    %37 = vector.load %arg11[%c0_66, %c0_67, %c0_68] : memref<18x18x64xf32, #tpu.memory_space<vmem>>, vector<16x16x64xf32>
    %38 = vector.shape_cast %37 : vector<16x16x64xf32> to vector<256x64xf32>
    %c0_69 = arith.constant 0 : index
    %c0_70 = arith.constant 0 : index
    %c0_71 = arith.constant 0 : index
    %39 = vector.load %arg4[%c0_69, %c0_70, %c0_71] : memref<9x64x64xf32, #tpu.memory_space<vmem>>, vector<1x64x64xf32>
    %40 = vector.shape_cast %39 : vector<1x64x64xf32> to vector<64x64xf32>
    %cst_72 = arith.constant dense<0.000000e+00> : vector<256x64xf32>
    %41 = tpu.matmul %38, %40, %cst_72 {dimension_numbers = #tpu.dot_dimension_numbers<[1], [0], [0], [1], [0, 0, 1, 1], [], []>} : vector<256x64xf32>, vector<64x64xf32>, vector<256x64xf32> -> vector<256x64xf32>
    %42 = arith.addf %36, %41 : vector<256x64xf32>
    %c0_73 = arith.constant 0 : index
    %c1_74 = arith.constant 1 : index
    %c0_75 = arith.constant 0 : index
    %43 = vector.load %arg10[%c0_73, %c1_74, %c0_75] : memref<18x18x32xf32, #tpu.memory_space<vmem>>, vector<16x16x32xf32>
    %44 = vector.shape_cast %43 : vector<16x16x32xf32> to vector<256x32xf32>
    %c1_76 = arith.constant 1 : index
    %c0_77 = arith.constant 0 : index
    %c0_78 = arith.constant 0 : index
    %45 = vector.load %arg3[%c1_76, %c0_77, %c0_78] : memref<9x32x64xf32, #tpu.memory_space<vmem>>, vector<1x32x64xf32>
    %46 = vector.shape_cast %45 : vector<1x32x64xf32> to vector<32x64xf32>
    %cst_79 = arith.constant dense<0.000000e+00> : vector<256x64xf32>
    %47 = tpu.matmul %44, %46, %cst_79 {dimension_numbers = #tpu.dot_dimension_numbers<[1], [0], [0], [1], [0, 0, 1, 1], [], []>} : vector<256x32xf32>, vector<32x64xf32>, vector<256x64xf32> -> vector<256x64xf32>
    %48 = arith.addf %42, %47 : vector<256x64xf32>
    %c0_80 = arith.constant 0 : index
    %c1_81 = arith.constant 1 : index
    %c0_82 = arith.constant 0 : index
    %49 = vector.load %arg11[%c0_80, %c1_81, %c0_82] : memref<18x18x64xf32, #tpu.memory_space<vmem>>, vector<16x16x64xf32>
    %50 = vector.shape_cast %49 : vector<16x16x64xf32> to vector<256x64xf32>
    %c1_83 = arith.constant 1 : index
    %c0_84 = arith.constant 0 : index
    %c0_85 = arith.constant 0 : index
    %51 = vector.load %arg4[%c1_83, %c0_84, %c0_85] : memref<9x64x64xf32, #tpu.memory_space<vmem>>, vector<1x64x64xf32>
    %52 = vector.shape_cast %51 : vector<1x64x64xf32> to vector<64x64xf32>
    %cst_86 = arith.constant dense<0.000000e+00> : vector<256x64xf32>
    %53 = tpu.matmul %50, %52, %cst_86 {dimension_numbers = #tpu.dot_dimension_numbers<[1], [0], [0], [1], [0, 0, 1, 1], [], []>} : vector<256x64xf32>, vector<64x64xf32>, vector<256x64xf32> -> vector<256x64xf32>
    %54 = arith.addf %48, %53 : vector<256x64xf32>
    %c0_87 = arith.constant 0 : index
    %c2 = arith.constant 2 : index
    %c0_88 = arith.constant 0 : index
    %55 = vector.load %arg10[%c0_87, %c2, %c0_88] : memref<18x18x32xf32, #tpu.memory_space<vmem>>, vector<16x16x32xf32>
    %56 = vector.shape_cast %55 : vector<16x16x32xf32> to vector<256x32xf32>
    %c2_89 = arith.constant 2 : index
    %c0_90 = arith.constant 0 : index
    %c0_91 = arith.constant 0 : index
    %57 = vector.load %arg3[%c2_89, %c0_90, %c0_91] : memref<9x32x64xf32, #tpu.memory_space<vmem>>, vector<1x32x64xf32>
    %58 = vector.shape_cast %57 : vector<1x32x64xf32> to vector<32x64xf32>
    %cst_92 = arith.constant dense<0.000000e+00> : vector<256x64xf32>
    %59 = tpu.matmul %56, %58, %cst_92 {dimension_numbers = #tpu.dot_dimension_numbers<[1], [0], [0], [1], [0, 0, 1, 1], [], []>} : vector<256x32xf32>, vector<32x64xf32>, vector<256x64xf32> -> vector<256x64xf32>
    %60 = arith.addf %54, %59 : vector<256x64xf32>
    %c0_93 = arith.constant 0 : index
    %c2_94 = arith.constant 2 : index
    %c0_95 = arith.constant 0 : index
    %61 = vector.load %arg11[%c0_93, %c2_94, %c0_95] : memref<18x18x64xf32, #tpu.memory_space<vmem>>, vector<16x16x64xf32>
    %62 = vector.shape_cast %61 : vector<16x16x64xf32> to vector<256x64xf32>
    %c2_96 = arith.constant 2 : index
    %c0_97 = arith.constant 0 : index
    %c0_98 = arith.constant 0 : index
    %63 = vector.load %arg4[%c2_96, %c0_97, %c0_98] : memref<9x64x64xf32, #tpu.memory_space<vmem>>, vector<1x64x64xf32>
    %64 = vector.shape_cast %63 : vector<1x64x64xf32> to vector<64x64xf32>
    %cst_99 = arith.constant dense<0.000000e+00> : vector<256x64xf32>
    %65 = tpu.matmul %62, %64, %cst_99 {dimension_numbers = #tpu.dot_dimension_numbers<[1], [0], [0], [1], [0, 0, 1, 1], [], []>} : vector<256x64xf32>, vector<64x64xf32>, vector<256x64xf32> -> vector<256x64xf32>
    %66 = arith.addf %60, %65 : vector<256x64xf32>
    %c1_100 = arith.constant 1 : index
    %c0_101 = arith.constant 0 : index
    %c0_102 = arith.constant 0 : index
    %67 = vector.load %arg10[%c1_100, %c0_101, %c0_102] : memref<18x18x32xf32, #tpu.memory_space<vmem>>, vector<16x16x32xf32>
    %68 = vector.shape_cast %67 : vector<16x16x32xf32> to vector<256x32xf32>
    %c3 = arith.constant 3 : index
    %c0_103 = arith.constant 0 : index
    %c0_104 = arith.constant 0 : index
    %69 = vector.load %arg3[%c3, %c0_103, %c0_104] : memref<9x32x64xf32, #tpu.memory_space<vmem>>, vector<1x32x64xf32>
    %70 = vector.shape_cast %69 : vector<1x32x64xf32> to vector<32x64xf32>
    %cst_105 = arith.constant dense<0.000000e+00> : vector<256x64xf32>
    %71 = tpu.matmul %68, %70, %cst_105 {dimension_numbers = #tpu.dot_dimension_numbers<[1], [0], [0], [1], [0, 0, 1, 1], [], []>} : vector<256x32xf32>, vector<32x64xf32>, vector<256x64xf32> -> vector<256x64xf32>
    %72 = arith.addf %66, %71 : vector<256x64xf32>
    %c1_106 = arith.constant 1 : index
    %c0_107 = arith.constant 0 : index
    %c0_108 = arith.constant 0 : index
    %73 = vector.load %arg11[%c1_106, %c0_107, %c0_108] : memref<18x18x64xf32, #tpu.memory_space<vmem>>, vector<16x16x64xf32>
    %74 = vector.shape_cast %73 : vector<16x16x64xf32> to vector<256x64xf32>
    %c3_109 = arith.constant 3 : index
    %c0_110 = arith.constant 0 : index
    %c0_111 = arith.constant 0 : index
    %75 = vector.load %arg4[%c3_109, %c0_110, %c0_111] : memref<9x64x64xf32, #tpu.memory_space<vmem>>, vector<1x64x64xf32>
    %76 = vector.shape_cast %75 : vector<1x64x64xf32> to vector<64x64xf32>
    %cst_112 = arith.constant dense<0.000000e+00> : vector<256x64xf32>
    %77 = tpu.matmul %74, %76, %cst_112 {dimension_numbers = #tpu.dot_dimension_numbers<[1], [0], [0], [1], [0, 0, 1, 1], [], []>} : vector<256x64xf32>, vector<64x64xf32>, vector<256x64xf32> -> vector<256x64xf32>
    %78 = arith.addf %72, %77 : vector<256x64xf32>
    %c1_113 = arith.constant 1 : index
    %c1_114 = arith.constant 1 : index
    %c0_115 = arith.constant 0 : index
    %79 = vector.load %arg10[%c1_113, %c1_114, %c0_115] : memref<18x18x32xf32, #tpu.memory_space<vmem>>, vector<16x16x32xf32>
    %80 = vector.shape_cast %79 : vector<16x16x32xf32> to vector<256x32xf32>
    %c4 = arith.constant 4 : index
    %c0_116 = arith.constant 0 : index
    %c0_117 = arith.constant 0 : index
    %81 = vector.load %arg3[%c4, %c0_116, %c0_117] : memref<9x32x64xf32, #tpu.memory_space<vmem>>, vector<1x32x64xf32>
    %82 = vector.shape_cast %81 : vector<1x32x64xf32> to vector<32x64xf32>
    %cst_118 = arith.constant dense<0.000000e+00> : vector<256x64xf32>
    %83 = tpu.matmul %80, %82, %cst_118 {dimension_numbers = #tpu.dot_dimension_numbers<[1], [0], [0], [1], [0, 0, 1, 1], [], []>} : vector<256x32xf32>, vector<32x64xf32>, vector<256x64xf32> -> vector<256x64xf32>
    %84 = arith.addf %78, %83 : vector<256x64xf32>
    %c1_119 = arith.constant 1 : index
    %c1_120 = arith.constant 1 : index
    %c0_121 = arith.constant 0 : index
    %85 = vector.load %arg11[%c1_119, %c1_120, %c0_121] : memref<18x18x64xf32, #tpu.memory_space<vmem>>, vector<16x16x64xf32>
    %86 = vector.shape_cast %85 : vector<16x16x64xf32> to vector<256x64xf32>
    %c4_122 = arith.constant 4 : index
    %c0_123 = arith.constant 0 : index
    %c0_124 = arith.constant 0 : index
    %87 = vector.load %arg4[%c4_122, %c0_123, %c0_124] : memref<9x64x64xf32, #tpu.memory_space<vmem>>, vector<1x64x64xf32>
    %88 = vector.shape_cast %87 : vector<1x64x64xf32> to vector<64x64xf32>
    %cst_125 = arith.constant dense<0.000000e+00> : vector<256x64xf32>
    %89 = tpu.matmul %86, %88, %cst_125 {dimension_numbers = #tpu.dot_dimension_numbers<[1], [0], [0], [1], [0, 0, 1, 1], [], []>} : vector<256x64xf32>, vector<64x64xf32>, vector<256x64xf32> -> vector<256x64xf32>
    %90 = arith.addf %84, %89 : vector<256x64xf32>
    %c1_126 = arith.constant 1 : index
    %c2_127 = arith.constant 2 : index
    %c0_128 = arith.constant 0 : index
    %91 = vector.load %arg10[%c1_126, %c2_127, %c0_128] : memref<18x18x32xf32, #tpu.memory_space<vmem>>, vector<16x16x32xf32>
    %92 = vector.shape_cast %91 : vector<16x16x32xf32> to vector<256x32xf32>
    %c5 = arith.constant 5 : index
    %c0_129 = arith.constant 0 : index
    %c0_130 = arith.constant 0 : index
    %93 = vector.load %arg3[%c5, %c0_129, %c0_130] : memref<9x32x64xf32, #tpu.memory_space<vmem>>, vector<1x32x64xf32>
    %94 = vector.shape_cast %93 : vector<1x32x64xf32> to vector<32x64xf32>
    %cst_131 = arith.constant dense<0.000000e+00> : vector<256x64xf32>
    %95 = tpu.matmul %92, %94, %cst_131 {dimension_numbers = #tpu.dot_dimension_numbers<[1], [0], [0], [1], [0, 0, 1, 1], [], []>} : vector<256x32xf32>, vector<32x64xf32>, vector<256x64xf32> -> vector<256x64xf32>
    %96 = arith.addf %90, %95 : vector<256x64xf32>
    %c1_132 = arith.constant 1 : index
    %c2_133 = arith.constant 2 : index
    %c0_134 = arith.constant 0 : index
    %97 = vector.load %arg11[%c1_132, %c2_133, %c0_134] : memref<18x18x64xf32, #tpu.memory_space<vmem>>, vector<16x16x64xf32>
    %98 = vector.shape_cast %97 : vector<16x16x64xf32> to vector<256x64xf32>
    %c5_135 = arith.constant 5 : index
    %c0_136 = arith.constant 0 : index
    %c0_137 = arith.constant 0 : index
    %99 = vector.load %arg4[%c5_135, %c0_136, %c0_137] : memref<9x64x64xf32, #tpu.memory_space<vmem>>, vector<1x64x64xf32>
    %100 = vector.shape_cast %99 : vector<1x64x64xf32> to vector<64x64xf32>
    %cst_138 = arith.constant dense<0.000000e+00> : vector<256x64xf32>
    %101 = tpu.matmul %98, %100, %cst_138 {dimension_numbers = #tpu.dot_dimension_numbers<[1], [0], [0], [1], [0, 0, 1, 1], [], []>} : vector<256x64xf32>, vector<64x64xf32>, vector<256x64xf32> -> vector<256x64xf32>
    %102 = arith.addf %96, %101 : vector<256x64xf32>
    %c2_139 = arith.constant 2 : index
    %c0_140 = arith.constant 0 : index
    %c0_141 = arith.constant 0 : index
    %103 = vector.load %arg10[%c2_139, %c0_140, %c0_141] : memref<18x18x32xf32, #tpu.memory_space<vmem>>, vector<16x16x32xf32>
    %104 = vector.shape_cast %103 : vector<16x16x32xf32> to vector<256x32xf32>
    %c6 = arith.constant 6 : index
    %c0_142 = arith.constant 0 : index
    %c0_143 = arith.constant 0 : index
    %105 = vector.load %arg3[%c6, %c0_142, %c0_143] : memref<9x32x64xf32, #tpu.memory_space<vmem>>, vector<1x32x64xf32>
    %106 = vector.shape_cast %105 : vector<1x32x64xf32> to vector<32x64xf32>
    %cst_144 = arith.constant dense<0.000000e+00> : vector<256x64xf32>
    %107 = tpu.matmul %104, %106, %cst_144 {dimension_numbers = #tpu.dot_dimension_numbers<[1], [0], [0], [1], [0, 0, 1, 1], [], []>} : vector<256x32xf32>, vector<32x64xf32>, vector<256x64xf32> -> vector<256x64xf32>
    %108 = arith.addf %102, %107 : vector<256x64xf32>
    %c2_145 = arith.constant 2 : index
    %c0_146 = arith.constant 0 : index
    %c0_147 = arith.constant 0 : index
    %109 = vector.load %arg11[%c2_145, %c0_146, %c0_147] : memref<18x18x64xf32, #tpu.memory_space<vmem>>, vector<16x16x64xf32>
    %110 = vector.shape_cast %109 : vector<16x16x64xf32> to vector<256x64xf32>
    %c6_148 = arith.constant 6 : index
    %c0_149 = arith.constant 0 : index
    %c0_150 = arith.constant 0 : index
    %111 = vector.load %arg4[%c6_148, %c0_149, %c0_150] : memref<9x64x64xf32, #tpu.memory_space<vmem>>, vector<1x64x64xf32>
    %112 = vector.shape_cast %111 : vector<1x64x64xf32> to vector<64x64xf32>
    %cst_151 = arith.constant dense<0.000000e+00> : vector<256x64xf32>
    %113 = tpu.matmul %110, %112, %cst_151 {dimension_numbers = #tpu.dot_dimension_numbers<[1], [0], [0], [1], [0, 0, 1, 1], [], []>} : vector<256x64xf32>, vector<64x64xf32>, vector<256x64xf32> -> vector<256x64xf32>
    %114 = arith.addf %108, %113 : vector<256x64xf32>
    %c2_152 = arith.constant 2 : index
    %c1_153 = arith.constant 1 : index
    %c0_154 = arith.constant 0 : index
    %115 = vector.load %arg10[%c2_152, %c1_153, %c0_154] : memref<18x18x32xf32, #tpu.memory_space<vmem>>, vector<16x16x32xf32>
    %116 = vector.shape_cast %115 : vector<16x16x32xf32> to vector<256x32xf32>
    %c7 = arith.constant 7 : index
    %c0_155 = arith.constant 0 : index
    %c0_156 = arith.constant 0 : index
    %117 = vector.load %arg3[%c7, %c0_155, %c0_156] : memref<9x32x64xf32, #tpu.memory_space<vmem>>, vector<1x32x64xf32>
    %118 = vector.shape_cast %117 : vector<1x32x64xf32> to vector<32x64xf32>
    %cst_157 = arith.constant dense<0.000000e+00> : vector<256x64xf32>
    %119 = tpu.matmul %116, %118, %cst_157 {dimension_numbers = #tpu.dot_dimension_numbers<[1], [0], [0], [1], [0, 0, 1, 1], [], []>} : vector<256x32xf32>, vector<32x64xf32>, vector<256x64xf32> -> vector<256x64xf32>
    %120 = arith.addf %114, %119 : vector<256x64xf32>
    %c2_158 = arith.constant 2 : index
    %c1_159 = arith.constant 1 : index
    %c0_160 = arith.constant 0 : index
    %121 = vector.load %arg11[%c2_158, %c1_159, %c0_160] : memref<18x18x64xf32, #tpu.memory_space<vmem>>, vector<16x16x64xf32>
    %122 = vector.shape_cast %121 : vector<16x16x64xf32> to vector<256x64xf32>
    %c7_161 = arith.constant 7 : index
    %c0_162 = arith.constant 0 : index
    %c0_163 = arith.constant 0 : index
    %123 = vector.load %arg4[%c7_161, %c0_162, %c0_163] : memref<9x64x64xf32, #tpu.memory_space<vmem>>, vector<1x64x64xf32>
    %124 = vector.shape_cast %123 : vector<1x64x64xf32> to vector<64x64xf32>
    %cst_164 = arith.constant dense<0.000000e+00> : vector<256x64xf32>
    %125 = tpu.matmul %122, %124, %cst_164 {dimension_numbers = #tpu.dot_dimension_numbers<[1], [0], [0], [1], [0, 0, 1, 1], [], []>} : vector<256x64xf32>, vector<64x64xf32>, vector<256x64xf32> -> vector<256x64xf32>
    %126 = arith.addf %120, %125 : vector<256x64xf32>
    %c2_165 = arith.constant 2 : index
    %c2_166 = arith.constant 2 : index
    %c0_167 = arith.constant 0 : index
    %127 = vector.load %arg10[%c2_165, %c2_166, %c0_167] : memref<18x18x32xf32, #tpu.memory_space<vmem>>, vector<16x16x32xf32>
    %128 = vector.shape_cast %127 : vector<16x16x32xf32> to vector<256x32xf32>
    %c8 = arith.constant 8 : index
    %c0_168 = arith.constant 0 : index
    %c0_169 = arith.constant 0 : index
    %129 = vector.load %arg3[%c8, %c0_168, %c0_169] : memref<9x32x64xf32, #tpu.memory_space<vmem>>, vector<1x32x64xf32>
    %130 = vector.shape_cast %129 : vector<1x32x64xf32> to vector<32x64xf32>
    %cst_170 = arith.constant dense<0.000000e+00> : vector<256x64xf32>
    %131 = tpu.matmul %128, %130, %cst_170 {dimension_numbers = #tpu.dot_dimension_numbers<[1], [0], [0], [1], [0, 0, 1, 1], [], []>} : vector<256x32xf32>, vector<32x64xf32>, vector<256x64xf32> -> vector<256x64xf32>
    %132 = arith.addf %126, %131 : vector<256x64xf32>
    %c2_171 = arith.constant 2 : index
    %c2_172 = arith.constant 2 : index
    %c0_173 = arith.constant 0 : index
    %133 = vector.load %arg11[%c2_171, %c2_172, %c0_173] : memref<18x18x64xf32, #tpu.memory_space<vmem>>, vector<16x16x64xf32>
    %134 = vector.shape_cast %133 : vector<16x16x64xf32> to vector<256x64xf32>
    %c8_174 = arith.constant 8 : index
    %c0_175 = arith.constant 0 : index
    %c0_176 = arith.constant 0 : index
    %135 = vector.load %arg4[%c8_174, %c0_175, %c0_176] : memref<9x64x64xf32, #tpu.memory_space<vmem>>, vector<1x64x64xf32>
    %136 = vector.shape_cast %135 : vector<1x64x64xf32> to vector<64x64xf32>
    %cst_177 = arith.constant dense<0.000000e+00> : vector<256x64xf32>
    %137 = tpu.matmul %134, %136, %cst_177 {dimension_numbers = #tpu.dot_dimension_numbers<[1], [0], [0], [1], [0, 0, 1, 1], [], []>} : vector<256x64xf32>, vector<64x64xf32>, vector<256x64xf32> -> vector<256x64xf32>
    %138 = arith.addf %132, %137 : vector<256x64xf32>
    %c0_178 = arith.constant 0 : index
    %c0_179 = arith.constant 0 : index
    %139 = vector.load %arg5[%c0_178, %c0_179] : memref<1x64xf32, #tpu.memory_space<vmem>>, vector<1x64xf32>
    %140 = vector.broadcast %139 : vector<1x64xf32> to vector<256x64xf32>
    %141 = arith.addf %138, %140 : vector<256x64xf32>
    %142 = vector.extract_strided_slice %141 {offsets = [0, 0], sizes = [256, 32], strides = [1, 1]} : vector<256x64xf32> to vector<256x32xf32>
    %143 = arith.negf %142 : vector<256x32xf32>
    %144 = math.exp %143 : vector<256x32xf32>
    %cst_180 = arith.constant 1.000000e+00 : f32
    %145 = vector.broadcast %cst_180 : f32 to vector<256x32xf32>
    %146 = arith.addf %145, %144 : vector<256x32xf32>
    %147 = arith.divf %145, %146 : vector<256x32xf32>
    %148 = vector.extract_strided_slice %141 {offsets = [0, 32], sizes = [256, 32], strides = [1, 1]} : vector<256x64xf32> to vector<256x32xf32>
    %149 = arith.negf %148 : vector<256x32xf32>
    %150 = math.exp %149 : vector<256x32xf32>
    %cst_181 = arith.constant 1.000000e+00 : f32
    %151 = vector.broadcast %cst_181 : f32 to vector<256x32xf32>
    %152 = arith.addf %151, %150 : vector<256x32xf32>
    %153 = arith.divf %151, %152 : vector<256x32xf32>
    %154 = vector.shape_cast %25 : vector<16x16x32xf32> to vector<256x32xf32>
    %155 = arith.mulf %153, %154 : vector<256x32xf32>
    %156 = vector.shape_cast %155 : vector<256x32xf32> to vector<16x16x32xf32>
    %c1_182 = arith.constant 1 : index
    %c1_183 = arith.constant 1 : index
    %c0_184 = arith.constant 0 : index
    %157 = vector.load %arg12[%c1_182, %c1_183, %c0_184] : memref<18x18x32xf32, #tpu.memory_space<vmem>>, vector<16x16x32xf32>
    tpu.vector_store %arg12[%c1_182, %c1_183, %c0_184], %156 {strides = array<i32>} : memref<18x18x32xf32, #tpu.memory_space<vmem>>, vector<16x16x32xf32>,
    %cst_185 = arith.constant 0.000000e+00 : f32
    %158 = vector.broadcast %cst_185 : f32 to vector<256x32xf32>
    %c0_186 = arith.constant 0 : index
    %c0_187 = arith.constant 0 : index
    %c0_188 = arith.constant 0 : index
    %159 = vector.load %arg12[%c0_186, %c0_187, %c0_188] : memref<18x18x32xf32, #tpu.memory_space<vmem>>, vector<16x16x32xf32>
    %160 = vector.shape_cast %159 : vector<16x16x32xf32> to vector<256x32xf32>
    %c0_189 = arith.constant 0 : index
    %c0_190 = arith.constant 0 : index
    %c0_191 = arith.constant 0 : index
    %161 = vector.load %arg6[%c0_189, %c0_190, %c0_191] : memref<9x32x32xf32, #tpu.memory_space<vmem>>, vector<1x32x32xf32>
    %162 = vector.shape_cast %161 : vector<1x32x32xf32> to vector<32x32xf32>
    %cst_192 = arith.constant dense<0.000000e+00> : vector<256x32xf32>
    %163 = tpu.matmul %160, %162, %cst_192 {dimension_numbers = #tpu.dot_dimension_numbers<[1], [0], [0], [1], [0, 0, 1, 1], [], []>} : vector<256x32xf32>, vector<32x32xf32>, vector<256x32xf32> -> vector<256x32xf32>
    %164 = arith.addf %158, %163 : vector<256x32xf32>
    %c0_193 = arith.constant 0 : index
    %c0_194 = arith.constant 0 : index
    %c0_195 = arith.constant 0 : index
    %165 = vector.load %arg11[%c0_193, %c0_194, %c0_195] : memref<18x18x64xf32, #tpu.memory_space<vmem>>, vector<16x16x64xf32>
    %166 = vector.shape_cast %165 : vector<16x16x64xf32> to vector<256x64xf32>
    %c0_196 = arith.constant 0 : index
    %c0_197 = arith.constant 0 : index
    %c0_198 = arith.constant 0 : index
    %167 = vector.load %arg7[%c0_196, %c0_197, %c0_198] : memref<9x64x32xf32, #tpu.memory_space<vmem>>, vector<1x64x32xf32>
    %168 = vector.shape_cast %167 : vector<1x64x32xf32> to vector<64x32xf32>
    %cst_199 = arith.constant dense<0.000000e+00> : vector<256x32xf32>
    %169 = tpu.matmul %166, %168, %cst_199 {dimension_numbers = #tpu.dot_dimension_numbers<[1], [0], [0], [1], [0, 0, 1, 1], [], []>} : vector<256x64xf32>, vector<64x32xf32>, vector<256x32xf32> -> vector<256x32xf32>
    %170 = arith.addf %164, %169 : vector<256x32xf32>
    %c0_200 = arith.constant 0 : index
    %c1_201 = arith.constant 1 : index
    %c0_202 = arith.constant 0 : index
    %171 = vector.load %arg12[%c0_200, %c1_201, %c0_202] : memref<18x18x32xf32, #tpu.memory_space<vmem>>, vector<16x16x32xf32>
    %172 = vector.shape_cast %171 : vector<16x16x32xf32> to vector<256x32xf32>
    %c1_203 = arith.constant 1 : index
    %c0_204 = arith.constant 0 : index
    %c0_205 = arith.constant 0 : index
    %173 = vector.load %arg6[%c1_203, %c0_204, %c0_205] : memref<9x32x32xf32, #tpu.memory_space<vmem>>, vector<1x32x32xf32>
    %174 = vector.shape_cast %173 : vector<1x32x32xf32> to vector<32x32xf32>
    %cst_206 = arith.constant dense<0.000000e+00> : vector<256x32xf32>
    %175 = tpu.matmul %172, %174, %cst_206 {dimension_numbers = #tpu.dot_dimension_numbers<[1], [0], [0], [1], [0, 0, 1, 1], [], []>} : vector<256x32xf32>, vector<32x32xf32>, vector<256x32xf32> -> vector<256x32xf32>
    %176 = arith.addf %170, %175 : vector<256x32xf32>
    %c0_207 = arith.constant 0 : index
    %c1_208 = arith.constant 1 : index
    %c0_209 = arith.constant 0 : index
    %177 = vector.load %arg11[%c0_207, %c1_208, %c0_209] : memref<18x18x64xf32, #tpu.memory_space<vmem>>, vector<16x16x64xf32>
    %178 = vector.shape_cast %177 : vector<16x16x64xf32> to vector<256x64xf32>
    %c1_210 = arith.constant 1 : index
    %c0_211 = arith.constant 0 : index
    %c0_212 = arith.constant 0 : index
    %179 = vector.load %arg7[%c1_210, %c0_211, %c0_212] : memref<9x64x32xf32, #tpu.memory_space<vmem>>, vector<1x64x32xf32>
    %180 = vector.shape_cast %179 : vector<1x64x32xf32> to vector<64x32xf32>
    %cst_213 = arith.constant dense<0.000000e+00> : vector<256x32xf32>
    %181 = tpu.matmul %178, %180, %cst_213 {dimension_numbers = #tpu.dot_dimension_numbers<[1], [0], [0], [1], [0, 0, 1, 1], [], []>} : vector<256x64xf32>, vector<64x32xf32>, vector<256x32xf32> -> vector<256x32xf32>
    %182 = arith.addf %176, %181 : vector<256x32xf32>
    %c0_214 = arith.constant 0 : index
    %c2_215 = arith.constant 2 : index
    %c0_216 = arith.constant 0 : index
    %183 = vector.load %arg12[%c0_214, %c2_215, %c0_216] : memref<18x18x32xf32, #tpu.memory_space<vmem>>, vector<16x16x32xf32>
    %184 = vector.shape_cast %183 : vector<16x16x32xf32> to vector<256x32xf32>
    %c2_217 = arith.constant 2 : index
    %c0_218 = arith.constant 0 : index
    %c0_219 = arith.constant 0 : index
    %185 = vector.load %arg6[%c2_217, %c0_218, %c0_219] : memref<9x32x32xf32, #tpu.memory_space<vmem>>, vector<1x32x32xf32>
    %186 = vector.shape_cast %185 : vector<1x32x32xf32> to vector<32x32xf32>
    %cst_220 = arith.constant dense<0.000000e+00> : vector<256x32xf32>
    %187 = tpu.matmul %184, %186, %cst_220 {dimension_numbers = #tpu.dot_dimension_numbers<[1], [0], [0], [1], [0, 0, 1, 1], [], []>} : vector<256x32xf32>, vector<32x32xf32>, vector<256x32xf32> -> vector<256x32xf32>
    %188 = arith.addf %182, %187 : vector<256x32xf32>
    %c0_221 = arith.constant 0 : index
    %c2_222 = arith.constant 2 : index
    %c0_223 = arith.constant 0 : index
    %189 = vector.load %arg11[%c0_221, %c2_222, %c0_223] : memref<18x18x64xf32, #tpu.memory_space<vmem>>, vector<16x16x64xf32>
    %190 = vector.shape_cast %189 : vector<16x16x64xf32> to vector<256x64xf32>
    %c2_224 = arith.constant 2 : index
    %c0_225 = arith.constant 0 : index
    %c0_226 = arith.constant 0 : index
    %191 = vector.load %arg7[%c2_224, %c0_225, %c0_226] : memref<9x64x32xf32, #tpu.memory_space<vmem>>, vector<1x64x32xf32>
    %192 = vector.shape_cast %191 : vector<1x64x32xf32> to vector<64x32xf32>
    %cst_227 = arith.constant dense<0.000000e+00> : vector<256x32xf32>
    %193 = tpu.matmul %190, %192, %cst_227 {dimension_numbers = #tpu.dot_dimension_numbers<[1], [0], [0], [1], [0, 0, 1, 1], [], []>} : vector<256x64xf32>, vector<64x32xf32>, vector<256x32xf32> -> vector<256x32xf32>
    %194 = arith.addf %188, %193 : vector<256x32xf32>
    %c1_228 = arith.constant 1 : index
    %c0_229 = arith.constant 0 : index
    %c0_230 = arith.constant 0 : index
    %195 = vector.load %arg12[%c1_228, %c0_229, %c0_230] : memref<18x18x32xf32, #tpu.memory_space<vmem>>, vector<16x16x32xf32>
    %196 = vector.shape_cast %195 : vector<16x16x32xf32> to vector<256x32xf32>
    %c3_231 = arith.constant 3 : index
    %c0_232 = arith.constant 0 : index
    %c0_233 = arith.constant 0 : index
    %197 = vector.load %arg6[%c3_231, %c0_232, %c0_233] : memref<9x32x32xf32, #tpu.memory_space<vmem>>, vector<1x32x32xf32>
    %198 = vector.shape_cast %197 : vector<1x32x32xf32> to vector<32x32xf32>
    %cst_234 = arith.constant dense<0.000000e+00> : vector<256x32xf32>
    %199 = tpu.matmul %196, %198, %cst_234 {dimension_numbers = #tpu.dot_dimension_numbers<[1], [0], [0], [1], [0, 0, 1, 1], [], []>} : vector<256x32xf32>, vector<32x32xf32>, vector<256x32xf32> -> vector<256x32xf32>
    %200 = arith.addf %194, %199 : vector<256x32xf32>
    %c1_235 = arith.constant 1 : index
    %c0_236 = arith.constant 0 : index
    %c0_237 = arith.constant 0 : index
    %201 = vector.load %arg11[%c1_235, %c0_236, %c0_237] : memref<18x18x64xf32, #tpu.memory_space<vmem>>, vector<16x16x64xf32>
    %202 = vector.shape_cast %201 : vector<16x16x64xf32> to vector<256x64xf32>
    %c3_238 = arith.constant 3 : index
    %c0_239 = arith.constant 0 : index
    %c0_240 = arith.constant 0 : index
    %203 = vector.load %arg7[%c3_238, %c0_239, %c0_240] : memref<9x64x32xf32, #tpu.memory_space<vmem>>, vector<1x64x32xf32>
    %204 = vector.shape_cast %203 : vector<1x64x32xf32> to vector<64x32xf32>
    %cst_241 = arith.constant dense<0.000000e+00> : vector<256x32xf32>
    %205 = tpu.matmul %202, %204, %cst_241 {dimension_numbers = #tpu.dot_dimension_numbers<[1], [0], [0], [1], [0, 0, 1, 1], [], []>} : vector<256x64xf32>, vector<64x32xf32>, vector<256x32xf32> -> vector<256x32xf32>
    %206 = arith.addf %200, %205 : vector<256x32xf32>
    %c1_242 = arith.constant 1 : index
    %c1_243 = arith.constant 1 : index
    %c0_244 = arith.constant 0 : index
    %207 = vector.load %arg12[%c1_242, %c1_243, %c0_244] : memref<18x18x32xf32, #tpu.memory_space<vmem>>, vector<16x16x32xf32>
    %208 = vector.shape_cast %207 : vector<16x16x32xf32> to vector<256x32xf32>
    %c4_245 = arith.constant 4 : index
    %c0_246 = arith.constant 0 : index
    %c0_247 = arith.constant 0 : index
    %209 = vector.load %arg6[%c4_245, %c0_246, %c0_247] : memref<9x32x32xf32, #tpu.memory_space<vmem>>, vector<1x32x32xf32>
    %210 = vector.shape_cast %209 : vector<1x32x32xf32> to vector<32x32xf32>
    %cst_248 = arith.constant dense<0.000000e+00> : vector<256x32xf32>
    %211 = tpu.matmul %208, %210, %cst_248 {dimension_numbers = #tpu.dot_dimension_numbers<[1], [0], [0], [1], [0, 0, 1, 1], [], []>} : vector<256x32xf32>, vector<32x32xf32>, vector<256x32xf32> -> vector<256x32xf32>
    %212 = arith.addf %206, %211 : vector<256x32xf32>
    %c1_249 = arith.constant 1 : index
    %c1_250 = arith.constant 1 : index
    %c0_251 = arith.constant 0 : index
    %213 = vector.load %arg11[%c1_249, %c1_250, %c0_251] : memref<18x18x64xf32, #tpu.memory_space<vmem>>, vector<16x16x64xf32>
    %214 = vector.shape_cast %213 : vector<16x16x64xf32> to vector<256x64xf32>
    %c4_252 = arith.constant 4 : index
    %c0_253 = arith.constant 0 : index
    %c0_254 = arith.constant 0 : index
    %215 = vector.load %arg7[%c4_252, %c0_253, %c0_254] : memref<9x64x32xf32, #tpu.memory_space<vmem>>, vector<1x64x32xf32>
    %216 = vector.shape_cast %215 : vector<1x64x32xf32> to vector<64x32xf32>
    %cst_255 = arith.constant dense<0.000000e+00> : vector<256x32xf32>
    %217 = tpu.matmul %214, %216, %cst_255 {dimension_numbers = #tpu.dot_dimension_numbers<[1], [0], [0], [1], [0, 0, 1, 1], [], []>} : vector<256x64xf32>, vector<64x32xf32>, vector<256x32xf32> -> vector<256x32xf32>
    %218 = arith.addf %212, %217 : vector<256x32xf32>
    %c1_256 = arith.constant 1 : index
    %c2_257 = arith.constant 2 : index
    %c0_258 = arith.constant 0 : index
    %219 = vector.load %arg12[%c1_256, %c2_257, %c0_258] : memref<18x18x32xf32, #tpu.memory_space<vmem>>, vector<16x16x32xf32>
    %220 = vector.shape_cast %219 : vector<16x16x32xf32> to vector<256x32xf32>
    %c5_259 = arith.constant 5 : index
    %c0_260 = arith.constant 0 : index
    %c0_261 = arith.constant 0 : index
    %221 = vector.load %arg6[%c5_259, %c0_260, %c0_261] : memref<9x32x32xf32, #tpu.memory_space<vmem>>, vector<1x32x32xf32>
    %222 = vector.shape_cast %221 : vector<1x32x32xf32> to vector<32x32xf32>
    %cst_262 = arith.constant dense<0.000000e+00> : vector<256x32xf32>
    %223 = tpu.matmul %220, %222, %cst_262 {dimension_numbers = #tpu.dot_dimension_numbers<[1], [0], [0], [1], [0, 0, 1, 1], [], []>} : vector<256x32xf32>, vector<32x32xf32>, vector<256x32xf32> -> vector<256x32xf32>
    %224 = arith.addf %218, %223 : vector<256x32xf32>
    %c1_263 = arith.constant 1 : index
    %c2_264 = arith.constant 2 : index
    %c0_265 = arith.constant 0 : index
    %225 = vector.load %arg11[%c1_263, %c2_264, %c0_265] : memref<18x18x64xf32, #tpu.memory_space<vmem>>, vector<16x16x64xf32>
    %226 = vector.shape_cast %225 : vector<16x16x64xf32> to vector<256x64xf32>
    %c5_266 = arith.constant 5 : index
    %c0_267 = arith.constant 0 : index
    %c0_268 = arith.constant 0 : index
    %227 = vector.load %arg7[%c5_266, %c0_267, %c0_268] : memref<9x64x32xf32, #tpu.memory_space<vmem>>, vector<1x64x32xf32>
    %228 = vector.shape_cast %227 : vector<1x64x32xf32> to vector<64x32xf32>
    %cst_269 = arith.constant dense<0.000000e+00> : vector<256x32xf32>
    %229 = tpu.matmul %226, %228, %cst_269 {dimension_numbers = #tpu.dot_dimension_numbers<[1], [0], [0], [1], [0, 0, 1, 1], [], []>} : vector<256x64xf32>, vector<64x32xf32>, vector<256x32xf32> -> vector<256x32xf32>
    %230 = arith.addf %224, %229 : vector<256x32xf32>
    %c2_270 = arith.constant 2 : index
    %c0_271 = arith.constant 0 : index
    %c0_272 = arith.constant 0 : index
    %231 = vector.load %arg12[%c2_270, %c0_271, %c0_272] : memref<18x18x32xf32, #tpu.memory_space<vmem>>, vector<16x16x32xf32>
    %232 = vector.shape_cast %231 : vector<16x16x32xf32> to vector<256x32xf32>
    %c6_273 = arith.constant 6 : index
    %c0_274 = arith.constant 0 : index
    %c0_275 = arith.constant 0 : index
    %233 = vector.load %arg6[%c6_273, %c0_274, %c0_275] : memref<9x32x32xf32, #tpu.memory_space<vmem>>, vector<1x32x32xf32>
    %234 = vector.shape_cast %233 : vector<1x32x32xf32> to vector<32x32xf32>
    %cst_276 = arith.constant dense<0.000000e+00> : vector<256x32xf32>
    %235 = tpu.matmul %232, %234, %cst_276 {dimension_numbers = #tpu.dot_dimension_numbers<[1], [0], [0], [1], [0, 0, 1, 1], [], []>} : vector<256x32xf32>, vector<32x32xf32>, vector<256x32xf32> -> vector<256x32xf32>
    %236 = arith.addf %230, %235 : vector<256x32xf32>
    %c2_277 = arith.constant 2 : index
    %c0_278 = arith.constant 0 : index
    %c0_279 = arith.constant 0 : index
    %237 = vector.load %arg11[%c2_277, %c0_278, %c0_279] : memref<18x18x64xf32, #tpu.memory_space<vmem>>, vector<16x16x64xf32>
    %238 = vector.shape_cast %237 : vector<16x16x64xf32> to vector<256x64xf32>
    %c6_280 = arith.constant 6 : index
    %c0_281 = arith.constant 0 : index
    %c0_282 = arith.constant 0 : index
    %239 = vector.load %arg7[%c6_280, %c0_281, %c0_282] : memref<9x64x32xf32, #tpu.memory_space<vmem>>, vector<1x64x32xf32>
    %240 = vector.shape_cast %239 : vector<1x64x32xf32> to vector<64x32xf32>
    %cst_283 = arith.constant dense<0.000000e+00> : vector<256x32xf32>
    %241 = tpu.matmul %238, %240, %cst_283 {dimension_numbers = #tpu.dot_dimension_numbers<[1], [0], [0], [1], [0, 0, 1, 1], [], []>} : vector<256x64xf32>, vector<64x32xf32>, vector<256x32xf32> -> vector<256x32xf32>
    %242 = arith.addf %236, %241 : vector<256x32xf32>
    %c2_284 = arith.constant 2 : index
    %c1_285 = arith.constant 1 : index
    %c0_286 = arith.constant 0 : index
    %243 = vector.load %arg12[%c2_284, %c1_285, %c0_286] : memref<18x18x32xf32, #tpu.memory_space<vmem>>, vector<16x16x32xf32>
    %244 = vector.shape_cast %243 : vector<16x16x32xf32> to vector<256x32xf32>
    %c7_287 = arith.constant 7 : index
    %c0_288 = arith.constant 0 : index
    %c0_289 = arith.constant 0 : index
    %245 = vector.load %arg6[%c7_287, %c0_288, %c0_289] : memref<9x32x32xf32, #tpu.memory_space<vmem>>, vector<1x32x32xf32>
    %246 = vector.shape_cast %245 : vector<1x32x32xf32> to vector<32x32xf32>
    %cst_290 = arith.constant dense<0.000000e+00> : vector<256x32xf32>
    %247 = tpu.matmul %244, %246, %cst_290 {dimension_numbers = #tpu.dot_dimension_numbers<[1], [0], [0], [1], [0, 0, 1, 1], [], []>} : vector<256x32xf32>, vector<32x32xf32>, vector<256x32xf32> -> vector<256x32xf32>
    %248 = arith.addf %242, %247 : vector<256x32xf32>
    %c2_291 = arith.constant 2 : index
    %c1_292 = arith.constant 1 : index
    %c0_293 = arith.constant 0 : index
    %249 = vector.load %arg11[%c2_291, %c1_292, %c0_293] : memref<18x18x64xf32, #tpu.memory_space<vmem>>, vector<16x16x64xf32>
    %250 = vector.shape_cast %249 : vector<16x16x64xf32> to vector<256x64xf32>
    %c7_294 = arith.constant 7 : index
    %c0_295 = arith.constant 0 : index
    %c0_296 = arith.constant 0 : index
    %251 = vector.load %arg7[%c7_294, %c0_295, %c0_296] : memref<9x64x32xf32, #tpu.memory_space<vmem>>, vector<1x64x32xf32>
    %252 = vector.shape_cast %251 : vector<1x64x32xf32> to vector<64x32xf32>
    %cst_297 = arith.constant dense<0.000000e+00> : vector<256x32xf32>
    %253 = tpu.matmul %250, %252, %cst_297 {dimension_numbers = #tpu.dot_dimension_numbers<[1], [0], [0], [1], [0, 0, 1, 1], [], []>} : vector<256x64xf32>, vector<64x32xf32>, vector<256x32xf32> -> vector<256x32xf32>
    %254 = arith.addf %248, %253 : vector<256x32xf32>
    %c2_298 = arith.constant 2 : index
    %c2_299 = arith.constant 2 : index
    %c0_300 = arith.constant 0 : index
    %255 = vector.load %arg12[%c2_298, %c2_299, %c0_300] : memref<18x18x32xf32, #tpu.memory_space<vmem>>, vector<16x16x32xf32>
    %256 = vector.shape_cast %255 : vector<16x16x32xf32> to vector<256x32xf32>
    %c8_301 = arith.constant 8 : index
    %c0_302 = arith.constant 0 : index
    %c0_303 = arith.constant 0 : index
    %257 = vector.load %arg6[%c8_301, %c0_302, %c0_303] : memref<9x32x32xf32, #tpu.memory_space<vmem>>, vector<1x32x32xf32>
    %258 = vector.shape_cast %257 : vector<1x32x32xf32> to vector<32x32xf32>
    %cst_304 = arith.constant dense<0.000000e+00> : vector<256x32xf32>
    %259 = tpu.matmul %256, %258, %cst_304 {dimension_numbers = #tpu.dot_dimension_numbers<[1], [0], [0], [1], [0, 0, 1, 1], [], []>} : vector<256x32xf32>, vector<32x32xf32>, vector<256x32xf32> -> vector<256x32xf32>
    %260 = arith.addf %254, %259 : vector<256x32xf32>
    %c2_305 = arith.constant 2 : index
    %c2_306 = arith.constant 2 : index
    %c0_307 = arith.constant 0 : index
    %261 = vector.load %arg11[%c2_305, %c2_306, %c0_307] : memref<18x18x64xf32, #tpu.memory_space<vmem>>, vector<16x16x64xf32>
    %262 = vector.shape_cast %261 : vector<16x16x64xf32> to vector<256x64xf32>
    %c8_308 = arith.constant 8 : index
    %c0_309 = arith.constant 0 : index
    %c0_310 = arith.constant 0 : index
    %263 = vector.load %arg7[%c8_308, %c0_309, %c0_310] : memref<9x64x32xf32, #tpu.memory_space<vmem>>, vector<1x64x32xf32>
    %264 = vector.shape_cast %263 : vector<1x64x32xf32> to vector<64x32xf32>
    %cst_311 = arith.constant dense<0.000000e+00> : vector<256x32xf32>
    %265 = tpu.matmul %262, %264, %cst_311 {dimension_numbers = #tpu.dot_dimension_numbers<[1], [0], [0], [1], [0, 0, 1, 1], [], []>} : vector<256x64xf32>, vector<64x32xf32>, vector<256x32xf32> -> vector<256x32xf32>
    %266 = arith.addf %260, %265 : vector<256x32xf32>
    %c0_312 = arith.constant 0 : index
    %c0_313 = arith.constant 0 : index
    %267 = vector.load %arg8[%c0_312, %c0_313] : memref<1x32xf32, #tpu.memory_space<vmem>>, vector<1x32xf32>
    %268 = vector.broadcast %267 : vector<1x32xf32> to vector<256x32xf32>
    %269 = arith.addf %266, %268 : vector<256x32xf32>
    %270 = math.tanh %269 : vector<256x32xf32>
    %cst_314 = arith.constant 1.000000e+00 : f32
    %271 = vector.broadcast %cst_314 : f32 to vector<256x32xf32>
    %272 = arith.subf %271, %147 : vector<256x32xf32>
    %273 = arith.mulf %272, %154 : vector<256x32xf32>
    %274 = arith.mulf %147, %270 : vector<256x32xf32>
    %275 = arith.addf %273, %274 : vector<256x32xf32>
    %276 = vector.shape_cast %275 : vector<256x32xf32> to vector<16x16x32xf32>
    %c0_315 = arith.constant 0 : index
    %c0_316 = arith.constant 0 : index
    %c0_317 = arith.constant 0 : index
    %c0_318 = arith.constant 0 : index
    %277 = vector.load %arg9[%c0_315, %c0_316, %c0_317, %c0_318] : memref<1x16x16x32xf32, #tpu.memory_space<vmem>>, vector<1x16x16x32xf32>
    %278 = vector.shape_cast %277 : vector<1x16x16x32xf32> to vector<16x16x32xf32>
    %279 = vector.shape_cast %276 : vector<16x16x32xf32> to vector<1x16x16x32xf32>
    tpu.vector_store %arg9[%c0_315, %c0_316, %c0_317, %c0_318], %279 {strides = array<i32>} : memref<1x16x16x32xf32, #tpu.memory_space<vmem>>, vector<1x16x16x32xf32>,
    return
  }
  func.func @transform_0(%arg0: i32) -> (i32, i32, i32, i32) {
    %c0_i32 = arith.constant 0 : i32
    %c0_i32_0 = arith.constant 0 : i32
    %c0_i32_1 = arith.constant 0 : i32
    %c0_i32_2 = arith.constant 0 : i32
    return %arg0, %c0_i32, %c0_i32_0, %c0_i32_1 : i32, i32, i32, i32
  }
  func.func @transform_1(%arg0: i32) -> (i32, i32, i32, i32) {
    %c0_i32 = arith.constant 0 : i32
    %c0_i32_0 = arith.constant 0 : i32
    %c0_i32_1 = arith.constant 0 : i32
    %c0_i32_2 = arith.constant 0 : i32
    return %arg0, %c0_i32, %c0_i32_0, %c0_i32_1 : i32, i32, i32, i32
  }
  func.func @transform_2(%arg0: i32) -> (i32, i32, i32) {
    %c0_i32 = arith.constant 0 : i32
    %c0_i32_0 = arith.constant 0 : i32
    %c0_i32_1 = arith.constant 0 : i32
    %c0_i32_2 = arith.constant 0 : i32
    return %c0_i32, %c0_i32_0, %c0_i32_1 : i32, i32, i32
  }
  func.func @transform_3(%arg0: i32) -> (i32, i32, i32) {
    %c0_i32 = arith.constant 0 : i32
    %c0_i32_0 = arith.constant 0 : i32
    %c0_i32_1 = arith.constant 0 : i32
    %c0_i32_2 = arith.constant 0 : i32
    return %c0_i32, %c0_i32_0, %c0_i32_1 : i32, i32, i32
  }
  func.func @transform_4(%arg0: i32) -> (i32, i32) {
    %c0_i32 = arith.constant 0 : i32
    %c0_i32_0 = arith.constant 0 : i32
    %c0_i32_1 = arith.constant 0 : i32
    return %c0_i32, %c0_i32_0 : i32, i32
  }
  func.func @transform_5(%arg0: i32) -> (i32, i32, i32) {
    %c0_i32 = arith.constant 0 : i32
    %c0_i32_0 = arith.constant 0 : i32
    %c0_i32_1 = arith.constant 0 : i32
    %c0_i32_2 = arith.constant 0 : i32
    return %c0_i32, %c0_i32_0, %c0_i32_1 : i32, i32, i32
  }
  func.func @transform_6(%arg0: i32) -> (i32, i32, i32) {
    %c0_i32 = arith.constant 0 : i32
    %c0_i32_0 = arith.constant 0 : i32
    %c0_i32_1 = arith.constant 0 : i32
    %c0_i32_2 = arith.constant 0 : i32
    return %c0_i32, %c0_i32_0, %c0_i32_1 : i32, i32, i32
  }
  func.func @transform_7(%arg0: i32) -> (i32, i32) {
    %c0_i32 = arith.constant 0 : i32
    %c0_i32_0 = arith.constant 0 : i32
    %c0_i32_1 = arith.constant 0 : i32
    return %c0_i32, %c0_i32_0 : i32, i32
  }
  func.func @transform_8(%arg0: i32) -> (i32, i32, i32, i32) {
    %c0_i32 = arith.constant 0 : i32
    %c0_i32_0 = arith.constant 0 : i32
    %c0_i32_1 = arith.constant 0 : i32
    %c0_i32_2 = arith.constant 0 : i32
    return %arg0, %c0_i32, %c0_i32_0, %c0_i32_1 : i32, i32, i32, i32
  }
}

</mosaic_0001>

<llo_original>
// kernel: conv_gru.1
$region0: #{conv_gru.1}
  #allocation0 [shape = 'u32[]', space=smem, size = 0x4, offset = 0x4, fixed_abs, tag = 'smem constant byte address 0x4 - core index']
  #allocation1 [shape = 'u32[72,128]{1,0:T(1,128)}', space=vmem, size = 0x9000, scoped, tag = 'internal scratch']
  #allocation2 [shape = 'f32[18,18,32]{2,1,0:T(8,128)}', space=vmem, size = 0x36000, scoped, tag = 'scratch operand']
  #allocation3 [shape = 'f32[18,18,64]{2,1,0:T(8,128)}', space=vmem, size = 0x36000, scoped, tag = 'scratch operand']
  #allocation4 [shape = 'f32[18,18,32]{2,1,0:T(8,128)}', space=vmem, size = 0x36000, scoped, tag = 'scratch operand']
  %s0 = inlined_call_operand.hbm [shape: f32[2,16,16,32], index: 0, kind: input, shape index: {}, may-alias: {0,8}]
  %s1 = inlined_call_operand.vmem [shape: f32[2,16,16,64], index: 1, kind: input, shape index: {}]
  %s2 = inlined_call_operand.vmem [shape: f32[9,32,64], index: 2, kind: input, shape index: {}]
  %s3 = inlined_call_operand.vmem [shape: f32[9,64,64], index: 3, kind: input, shape index: {}]
  %s4 = inlined_call_operand.vmem [shape: f32[1,64], index: 4, kind: input, shape index: {}]
  %s5 = inlined_call_operand.hbm [shape: f32[9,32,32], index: 5, kind: input, shape index: {}]
  %s6 = inlined_call_operand.vmem [shape: f32[9,64,32], index: 6, kind: input, shape index: {}]
  %s7 = inlined_call_operand.vmem [shape: f32[1,32], index: 7, kind: input, shape index: {}]
  %s8 = inlined_call_operand.hbm [shape: f32[2,16,16,32], index: 8, kind: output, shape index: {}, may-alias: {0,8}]
  %s9 = sld [smem:[#allocation0]]
  $region73: #{conv_gru.1} parent=0
    _
  %s11 = ssub.s32 1, %s9
  %s12 = scalar_select 0, %s11, %s9
  $region1: #{conv_gru.1} parent=0
    #allocation5 [shape = 'u8[262144]{0}', space=vmem, size = 0x40000, scoped, tag = 'input window, operand 0']
    #allocation6 [shape = 's32[2]{0}', space=sflag, size = 0x8, scoped, tag = 'scoped memory for conv_gru.1']
    #allocation7 [shape = 's32[2]{0}', space=sflag, size = 0x8, scoped, tag = 'scoped memory for conv_gru.1']
    #allocation8 [shape = 'u8[147456]{0}', space=vmem, size = 0x24000, scoped, tag = 'input window, operand 5, single buffered']
    #allocation9 [shape = 's32[1]{0}', space=sflag, size = 0x4, scoped, tag = 'scoped memory for conv_gru.1']
    #allocation10 [shape = 'u8[262144]{0}', space=vmem, size = 0x40000, scoped, tag = 'output window, operand 0']
    %13 = vsyncpa [#allocation6], 0
    %s14 = scalar_lea.sflag [#allocation6], 1
    %15 = vsyncpa %s14, 0
    %16 = vsyncpa [#allocation9], 0
    %17 = vsyncpa [#allocation7], 0
    %s18 = scalar_lea.sflag [#allocation7], 1
    %19 = vsyncpa %s18, 0
    loop: start=0, step=1, limit=4
    $region2: #{conv_gru.1} parent=1 // loop_pre_header
      _
    $region3: #{conv_gru.1} parent=1 // loop_header
      %s21 = sphi 0, %s25
      %p22 = scmp.ge.s32.totalorder %s21, 4
      %s31 = sphi 0, %s33
      %s34 = sphi 0, %s31
      %s35 = sphi 0, %s34
      %s51 = sphi 0, %s35
      %s57 = sphi 0, %s59
      %s60 = sphi 0, %s57
      %s61 = sphi 0, %s60
      %s77 = sphi 0, %s61
      %s81 = sphi 0, %s81
      %s83 = sphi 0, %s81
      %s84 = sphi 0, %s83
      %s98 = sphi 0, %s84
      %s102 = sphi 0, %s102
      %s104 = sphi 0, %s102
      %s105 = sphi 0, %s104
      %s119 = sphi 0, %s105
      %s123 = sphi 0, %s123
      %s125 = sphi 0, %s123
      %s126 = sphi 0, %s125
      %s140 = sphi 0, %s126
      %s144 = sphi 0, %s144
      %s146 = sphi 0, %s144
      %s147 = sphi 0, %s146
      %s161 = sphi 0, %s147
      %s165 = sphi 0, %s165
      %s167 = sphi 0, %s165
      %s168 = sphi 0, %s167
      %s182 = sphi 0, %s168
      %s186 = sphi 0, %s186
      %s188 = sphi 0, %s186
      %s189 = sphi 0, %s188
      %s203 = sphi 0, %s189
      %s209 = sphi 0, %s211
      %s212 = sphi 0, %s209
      %s213 = sphi 0, %s212
      %s229 = sphi 0, %s213
    $region4: #{conv_gru.1} parent=1 // loop_header_branch
      %24 = sbr.rel (%p22) target = $region8
    $region5: #{conv_gru.1} parent=1 // loop_body
      %s26 = ssub.s32 %s21, 1
      %s27 = ssub.s32 %s21, 2
      %s28 = sadd.s32 %s21, 1
      %s29 = ssub.s32 %s21, %s28
      %p30 = scmp.eq.s32.totalorder %s29, 0
      %s32 = sadd.s32 %s31, 1
      %s33 = scalar_select %p30, %s31, %s32
      %p36 = pneg %p30
      %p37 = scmp.eq.s32.totalorder %s21, 1
      %p38 = por %p36, %p37
      %p39 = scmp.ne.s32.totalorder %s31, %s34
      %p40 = scmp.eq.s32.totalorder %s21, 0
      %p41 = por %p39, %p40
      %p42 = scmp.ne.s32.totalorder %s31, %s34
      %p43 = scmp.eq.s32.totalorder %s26, 1
      %p44 = por %p42, %p43
      %p45 = scmp.ne.s32.totalorder %s34, %s35
      %p46 = scmp.eq.s32.totalorder %s26, 0
      %p47 = por %p45, %p46
      %p48 = scmp.ne.s32.totalorder %s34, %s35
      %p49 = scmp.eq.s32.totalorder %s27, 1
      %p50 = por %p48, %p49
      %p52 = scmp.ne.s32.totalorder %s35, %s51
      %p53 = scmp.eq.s32.totalorder %s27, 0
      %p54 = por %p52, %p53
      %s55 = ssub.s32 %s21, %s28
      %p56 = scmp.eq.s32.totalorder %s55, 0
      %s58 = sadd.s32 %s57, 1
      %s59 = scalar_select %p56, %s57, %s58
      %p62 = pneg %p56
      %p63 = scmp.eq.s32.totalorder %s21, 1
      %p64 = por %p62, %p63
      %p65 = scmp.ne.s32.totalorder %s57, %s60
      %p66 = scmp.eq.s32.totalorder %s21, 0
      %p67 = por %p65, %p66
      %p68 = scmp.ne.s32.totalorder %s57, %s60
      %p69 = scmp.eq.s32.totalorder %s26, 1
      %p70 = por %p68, %p69
      %p71 = scmp.ne.s32.totalorder %s60, %s61
      %p72 = scmp.eq.s32.totalorder %s26, 0
      %p73 = por %p71, %p72
      %p74 = scmp.ne.s32.totalorder %s60, %s61
      %p75 = scmp.eq.s32.totalorder %s27, 1
      %p76 = por %p74, %p75
      %p78 = scmp.ne.s32.totalorder %s61, %s77
      %p79 = scmp.eq.s32.totalorder %s27, 0
      %p80 = por %p78, %p79
      %s82 = sadd.s32 %s81, 1
      %p85 = scmp.eq.s32.totalorder %s21, 1
      %p86 = scmp.ne.s32.totalorder %s81, %s83
      %p87 = scmp.eq.s32.totalorder %s21, 0
      %p88 = por %p86, %p87
      %p89 = scmp.ne.s32.totalorder %s81, %s83
      %p90 = scmp.eq.s32.totalorder %s26, 1
      %p91 = por %p89, %p90
      %p92 = scmp.ne.s32.totalorder %s83, %s84
      %p93 = scmp.eq.s32.totalorder %s26, 0
      %p94 = por %p92, %p93
      %p95 = scmp.ne.s32.totalorder %s83, %s84
      %p96 = scmp.eq.s32.totalorder %s27, 1
      %p97 = por %p95, %p96
      %p99 = scmp.ne.s32.totalorder %s84, %s98
      %p100 = scmp.eq.s32.totalorder %s27, 0
      %p101 = por %p99, %p100
      %s103 = sadd.s32 %s102, 1
      %p106 = scmp.eq.s32.totalorder %s21, 1
      %p107 = scmp.ne.s32.totalorder %s102, %s104
      %p108 = scmp.eq.s32.totalorder %s21, 0
      %p109 = por %p107, %p108
      %p110 = scmp.ne.s32.totalorder %s102, %s104
      %p111 = scmp.eq.s32.totalorder %s26, 1
      %p112 = por %p110, %p111
      %p113 = scmp.ne.s32.totalorder %s104, %s105
      %p114 = scmp.eq.s32.totalorder %s26, 0
      %p115 = por %p113, %p114
      %p116 = scmp.ne.s32.totalorder %s104, %s105
      %p117 = scmp.eq.s32.totalorder %s27, 1
      %p118 = por %p116, %p117
      %p120 = scmp.ne.s32.totalorder %s105, %s119
      %p121 = scmp.eq.s32.totalorder %s27, 0
      %p122 = por %p120, %p121
      %s124 = sadd.s32 %s123, 1
      %p127 = scmp.eq.s32.totalorder %s21, 1
      %p128 = scmp.ne.s32.totalorder %s123, %s125
      %p129 = scmp.eq.s32.totalorder %s21, 0
      %p130 = por %p128, %p129
      %p131 = scmp.ne.s32.totalorder %s123, %s125
      %p132 = scmp.eq.s32.totalorder %s26, 1
      %p133 = por %p131, %p132
      %p134 = scmp.ne.s32.totalorder %s125, %s126
      %p135 = scmp.eq.s32.totalorder %s26, 0
      %p136 = por %p134, %p135
      %p137 = scmp.ne.s32.totalorder %s125, %s126
      %p138 = scmp.eq.s32.totalorder %s27, 1
      %p139 = por %p137, %p138
      %p141 = scmp.ne.s32.totalorder %s126, %s140
      %p142 = scmp.eq.s32.totalorder %s27, 0
      %p143 = por %p141, %p142
      %s145 = sadd.s32 %s144, 1
      %p148 = scmp.eq.s32.totalorder %s21, 1
      %p149 = scmp.ne.s32.totalorder %s144, %s146
      %p150 = scmp.eq.s32.totalorder %s21, 0
      %p151 = por %p149, %p150
      %p152 = scmp.ne.s32.totalorder %s144, %s146
      %p153 = scmp.eq.s32.totalorder %s26, 1
      %p154 = por %p152, %p153
      %p155 = scmp.ne.s32.totalorder %s146, %s147
      %p156 = scmp.eq.s32.totalorder %s26, 0
      %p157 = por %p155, %p156
      %p158 = scmp.ne.s32.totalorder %s146, %s147
      %p159 = scmp.eq.s32.totalorder %s27, 1
      %p160 = por %p158, %p159
      %p162 = scmp.ne.s32.totalorder %s147, %s161
      %p163 = scmp.eq.s32.totalorder %s27, 0
      %p164 = por %p162, %p163
      %s166 = sadd.s32 %s165, 1
      %p169 = scmp.eq.s32.totalorder %s21, 1
      %p170 = scmp.ne.s32.totalorder %s165, %s167
      %p171 = scmp.eq.s32.totalorder %s21, 0
      %p172 = por %p170, %p171
      %p173 = scmp.ne.s32.totalorder %s165, %s167
      %p174 = scmp.eq.s32.totalorder %s26, 1
      %p175 = por %p173, %p174
      %p176 = scmp.ne.s32.totalorder %s167, %s168
      %p177 = scmp.eq.s32.totalorder %s26, 0
      %p178 = por %p176, %p177
      %p179 = scmp.ne.s32.totalorder %s167, %s168
      %p180 = scmp.eq.s32.totalorder %s27, 1
      %p181 = por %p179, %p180
      %p183 = scmp.ne.s32.totalorder %s168, %s182
      %p184 = scmp.eq.s32.totalorder %s27, 0
      %p185 = por %p183, %p184
      %s187 = sadd.s32 %s186, 1
      %p190 = scmp.eq.s32.totalorder %s21, 1
      %p191 = scmp.ne.s32.totalorder %s186, %s188
      %p192 = scmp.eq.s32.totalorder %s21, 0
      %p193 = por %p191, %p192
      %p194 = scmp.ne.s32.totalorder %s186, %s188
      %p195 = scmp.eq.s32.totalorder %s26, 1
      %p196 = por %p194, %p195
      %p197 = scmp.ne.s32.totalorder %s188, %s189
      %p198 = scmp.eq.s32.totalorder %s26, 0
      %p199 = por %p197, %p198
      %p200 = scmp.ne.s32.totalorder %s188, %s189
      %p201 = scmp.eq.s32.totalorder %s27, 1
      %p202 = por %p200, %p201
      %p204 = scmp.ne.s32.totalorder %s189, %s203
      %p205 = scmp.eq.s32.totalorder %s27, 0
      %p206 = por %p204, %p205
      %s207 = ssub.s32 %s21, %s28
      %p208 = scmp.eq.s32.totalorder %s207, 0
      %s210 = sadd.s32 %s209, 1
      %s211 = scalar_select %p208, %s209, %s210
      %p214 = pneg %p208
      %p215 = scmp.eq.s32.totalorder %s21, 1
      %p216 = por %p214, %p215
      %p217 = scmp.ne.s32.totalorder %s209, %s212
      %p218 = scmp.eq.s32.totalorder %s21, 0
      %p219 = por %p217, %p218
      %p220 = scmp.ne.s32.totalorder %s209, %s212
      %p221 = scmp.eq.s32.totalorder %s26, 1
      %p222 = por %p220, %p221
      %p223 = scmp.ne.s32.totalorder %s212, %s213
      %p224 = scmp.eq.s32.totalorder %s26, 0
      %p225 = por %p223, %p224
      %p226 = scmp.ne.s32.totalorder %s212, %s213
      %p227 = scmp.eq.s32.totalorder %s27, 1
      %p228 = por %p226, %p227
      %p230 = scmp.ne.s32.totalorder %s213, %s229
      %p231 = scmp.eq.s32.totalorder %s27, 0
      %p232 = por %p230, %p231
      %p233 = scmp.le.s32.totalorder 1, %s21
      %p234 = scmp.lt.s32.totalorder %s21, 3
      %p235 = pnand %p233, %p234
      %p236 = pneg %p235
      // Predicated region
      $region9: #{conv_gru.1} parent=5 // pred_check
        _
      $region10: #{conv_gru.1} parent=5 // pred_check_branch
        %238 = sbr.rel (%p235) target = $region12
      $region11: #{conv_gru.1} parent=5 // pred_region
        %s239 = ssub.s32 %s21, 1
        // Predicated region
        $region13: #{conv_gru.1} parent=11 // pred_check
          %p240 = pneg %p94
        $region14: #{conv_gru.1} parent=11 // pred_check_branch
          %242 = sbr.rel (%p240) target = $region16
        $region15: #{conv_gru.1} parent=11 // pred_region
          _
        $region16: #{conv_gru.1} parent=11 // pred_fallthru
          _
        // Predicated region
        $region17: #{conv_gru.1} parent=11 // pred_check
          %p243 = pneg %p115
        $region18: #{conv_gru.1} parent=11 // pred_check_branch
          %245 = sbr.rel (%p243) target = $region20
        $region19: #{conv_gru.1} parent=11 // pred_region
          _
        $region20: #{conv_gru.1} parent=11 // pred_fallthru
          _
        // Predicated region
        $region21: #{conv_gru.1} parent=11 // pred_check
          %p246 = pneg %p136
        $region22: #{conv_gru.1} parent=11 // pred_check_branch
          %248 = sbr.rel (%p246) target = $region24
        $region23: #{conv_gru.1} parent=11 // pred_region
          _
        $region24: #{conv_gru.1} parent=11 // pred_fallthru
          _
        // Predicated region
        $region25: #{conv_gru.1} parent=11 // pred_check
          %p249 = pneg %p157
        $region26: #{conv_gru.1} parent=11 // pred_check_branch
          %251 = sbr.rel (%p249) target = $region28
        $region27: #{conv_gru.1} parent=11 // pred_region
          %253 = vsyncadd [#allocation9], 0
          %s254 = sshll.u32 %s5, 4
          %s255 = int_to_ptr.hbm [resolvable:$true] %s254
          %s256 = sshll.u32 [#allocation8], 4
          %s257 = int_to_ptr.vmem [resolvable:$true] %s256
          %262 = dma.hbm_to_vmem [thread:$0]  %s255, 4608, %s257, [#allocation9], 128, 128, 8
        $region28: #{conv_gru.1} parent=11 // pred_fallthru
          _
        // Predicated region
        $region29: #{conv_gru.1} parent=11 // pred_check
          %p263 = pneg %p178
        $region30: #{conv_gru.1} parent=11 // pred_check_branch
          %265 = sbr.rel (%p263) target = $region32
        $region31: #{conv_gru.1} parent=11 // pred_region
          _
        $region32: #{conv_gru.1} parent=11 // pred_fallthru
          _
        // Predicated region
        $region33: #{conv_gru.1} parent=11 // pred_check
          %p266 = pneg %p199
        $region34: #{conv_gru.1} parent=11 // pred_check_branch
          %268 = sbr.rel (%p266) target = $region36
        $region35: #{conv_gru.1} parent=11 // pred_region
          _
        $region36: #{conv_gru.1} parent=11 // pred_fallthru
          _
      $region12: #{conv_gru.1} parent=5 // pred_fallthru
        _
      %p269 = scmp.lt.s32.totalorder %s21, 2
      // Predicated region
      $region37: #{conv_gru.1} parent=5 // pred_check
        %p270 = pneg %p269
      $region38: #{conv_gru.1} parent=5 // pred_check_branch
        %272 = sbr.rel (%p270) target = $region40
      $region39: #{conv_gru.1} parent=5 // pred_region
        // Predicated region
        $region41: #{conv_gru.1} parent=39 // pred_check
          %p273 = pneg %p41
        $region42: #{conv_gru.1} parent=39 // pred_check_branch
          %275 = sbr.rel (%p273) target = $region44
        $region43: #{conv_gru.1} parent=39 // pred_region
          %s276 = sand.u32 %s31, 1
          %s277 = scalar_lea.sflag [#allocation6], %s276
          %s278 = sand.u32 %s31, 1
          %s279 = smul.addr %s278, 256
          %s280 = scalar_lea.vmem [#allocation5], %s279
          %282 = vsyncadd %s277, 0
          %s283 = smul.addr %s21, 32
          %s284 = smul.addr %s283, 8
          %s285 = scalar_lea.hbm %s0, %s284
          %s286 = sshll.u32 %s285, 4
          %s287 = int_to_ptr.hbm [resolvable:$true] %s286
          %s288 = sshll.u32 %s280, 4
          %s289 = int_to_ptr.vmem [resolvable:$true] %s288
          %294 = dma.hbm_to_vmem [thread:$0]  %s287, 4096, %s289, %s277, 128, 128, 8
        $region44: #{conv_gru.1} parent=39 // pred_fallthru
          _
        // Predicated region
        $region45: #{conv_gru.1} parent=39 // pred_check
          %p295 = pneg %p67
        $region46: #{conv_gru.1} parent=39 // pred_check_branch
          %297 = sbr.rel (%p295) target = $region48
        $region47: #{conv_gru.1} parent=39 // pred_region
          %p298 = scmp.lt.s32.totalorder %s21, 1
          %s299 = scalar_select %p298, %s21, 1
          %s300 = smul.addr %s299, 32
          %s301 = smul.addr %s300, 8
          %s302 = scalar_lea.vmem %s1, %s301
        $region48: #{conv_gru.1} parent=39 // pred_fallthru
          _
      $region40: #{conv_gru.1} parent=5 // pred_fallthru
        _
      %p303 = scmp.le.s32.totalorder 1, %s21
      %p304 = scmp.lt.s32.totalorder %s21, 3
      %p305 = pnand %p303, %p304
      %p306 = pneg %p305
      // Predicated region
      $region49: #{conv_gru.1} parent=5 // pred_check
        _
      $region50: #{conv_gru.1} parent=5 // pred_check_branch
        %308 = sbr.rel (%p305) target = $region52
      $region51: #{conv_gru.1} parent=5 // pred_region
        %s309 = ssub.s32 %s21, 1
        %s310 = sand.u32 %s34, 1
        %s311 = scalar_lea.sflag [#allocation6], %s310
        %s312 = sand.u32 %s34, 1
        %s313 = smul.addr %s312, 256
        %s314 = scalar_lea.vmem [#allocation5], %s313
        // Predicated region
        $region53: #{conv_gru.1} parent=51 // pred_check
          %p315 = pneg %p47
        $region54: #{conv_gru.1} parent=51 // pred_check_branch
          %317 = sbr.rel (%p315) target = $region56
        $region55: #{conv_gru.1} parent=51 // pred_region
          %319 = dma.done %s311, 4096
        $region56: #{conv_gru.1} parent=51 // pred_fallthru
          _
        // Predicated region
        $region57: #{conv_gru.1} parent=51 // pred_check
          %p320 = pneg %p157
        $region58: #{conv_gru.1} parent=51 // pred_check_branch
          %322 = sbr.rel (%p320) target = $region60
        $region59: #{conv_gru.1} parent=51 // pred_region
          %324 = dma.done [#allocation9], 4608
        $region60: #{conv_gru.1} parent=51 // pred_fallthru
          _
        %s325 = sand.u32 %s34, 1
        %s326 = scalar_lea.sflag [#allocation6], %s325
        %s327 = sand.u32 %s34, 1
        %s328 = smul.addr %s327, 256
        %s329 = scalar_lea.vmem [#allocation5], %s328
        %p330 = pneg %p47
        %p331 = pneg %p44
        %p332 = scmp.lt.s32.totalorder %s26, 1
        %s333 = scalar_select %p332, %s26, 1
        %s334 = smul.addr %s333, 32
        %s335 = smul.addr %s334, 8
        %s336 = scalar_lea.vmem %s1, %s335
        %p337 = pneg %p73
        %p338 = pneg %p70
        %p339 = pneg %p94
        %p340 = pneg %p91
        %p341 = pneg %p115
        %p342 = pneg %p112
        %p343 = pneg %p136
        %p344 = pneg %p133
        %p345 = pneg %p157
        %p346 = pneg %p154
        %p347 = pneg %p178
        %p348 = pneg %p175
        %p349 = pneg %p199
        %p350 = pneg %p196
        %p351 = pneg %p225
        %p352 = pneg %p222
        %s353 = sand.u32 %s212, 1
        %s354 = scalar_lea.sflag [#allocation7], %s353
        %s355 = sand.u32 %s212, 1
        %s356 = smul.addr %s355, 256
        %s357 = scalar_lea.vmem [#allocation10], %s356
        %p358 = scmp.lt.s32.totalorder %s26, 1
        %s359 = scalar_select %p358, %s26, 1
        %s360 = smul.addr %s359, 32
        %s361 = smul.addr %s360, 8
        %s362 = scalar_lea.vmem %s1, %s361
        %vm363 = vcmask 261120
        %364 = vst.msk [vmem:[#allocation2] sm:$0xff] %vm363, 0.0
        %365 = vst.msk [vmem:[#allocation2 + $0x8] sm:$0xff] %vm363, 0.0
        %vm366 = vcmask 254976
        %367 = vst.msk [vmem:[#allocation2 + $0x10] sm:$0x3] %vm366, 0.0
        %s368 = scalar_lea.vmem [#allocation2], 408
        %369 = vst.msk [vmem:[%s368] sm:$0xff] %vm363, 0.0
        %370 = vst.msk [vmem:[%s368 + $0x8] sm:$0xff] %vm363, 0.0
        %371 = vst.msk [vmem:[%s368 + $0x10] sm:$0x3] %vm366, 0.0
        %s372 = scalar_lea.vmem [#allocation2], 24
        %vm373 = vcmask 253952
        %374 = vst.msk [vmem:[%s372] sm:$0x1] %vm373, 0.0
        %375 = vst.msk [vmem:[%s372 + $0x18] sm:$0x1] %vm373, 0.0
        %376 = vst.msk [vmem:[%s372 + $0x30] sm:$0x1] %vm373, 0.0
        %377 = vst.msk [vmem:[%s372 + $0x48] sm:$0x1] %vm373, 0.0
        %378 = vst.msk [vmem:[%s372 + $0x60] sm:$0x1] %vm373, 0.0
        %379 = vst.msk [vmem:[%s372 + $0x78] sm:$0x1] %vm373, 0.0
        %380 = vst.msk [vmem:[%s372 + $0x90] sm:$0x1] %vm373, 0.0
        %381 = vst.msk [vmem:[%s372 + $0xa8] sm:$0x1] %vm373, 0.0
        %382 = vst.msk [vmem:[%s372 + $0xc0] sm:$0x1] %vm373, 0.0
        %383 = vst.msk [vmem:[%s372 + $0xd8] sm:$0x1] %vm373, 0.0
        %384 = vst.msk [vmem:[%s372 + $0xf0] sm:$0x1] %vm373, 0.0
        %385 = vst.msk [vmem:[%s372 + $0x108] sm:$0x1] %vm373, 0.0
        %386 = vst.msk [vmem:[%s372 + $0x120] sm:$0x1] %vm373, 0.0
        %387 = vst.msk [vmem:[%s372 + $0x138] sm:$0x1] %vm373, 0.0
        %388 = vst.msk [vmem:[%s372 + $0x150] sm:$0x1] %vm373, 0.0
        %389 = vst.msk [vmem:[%s372 + $0x168] sm:$0x1] %vm373, 0.0
        %390 = vst.msk [vmem:[%s372 + $0x11] sm:$0x1] %vm373, 0.0
        %391 = vst.msk [vmem:[%s372 + $0x29] sm:$0x1] %vm373, 0.0
        %392 = vst.msk [vmem:[%s372 + $0x41] sm:$0x1] %vm373, 0.0
        %393 = vst.msk [vmem:[%s372 + $0x59] sm:$0x1] %vm373, 0.0
        %394 = vst.msk [vmem:[%s372 + $0x71] sm:$0x1] %vm373, 0.0
        %395 = vst.msk [vmem:[%s372 + $0x89] sm:$0x1] %vm373, 0.0
        %396 = vst.msk [vmem:[%s372 + $0xa1] sm:$0x1] %vm373, 0.0
        %397 = vst.msk [vmem:[%s372 + $0xb9] sm:$0x1] %vm373, 0.0
        %398 = vst.msk [vmem:[%s372 + $0xd1] sm:$0x1] %vm373, 0.0
        %399 = vst.msk [vmem:[%s372 + $0xe9] sm:$0x1] %vm373, 0.0
        %400 = vst.msk [vmem:[%s372 + $0x101] sm:$0x1] %vm373, 0.0
        %401 = vst.msk [vmem:[%s372 + $0x119] sm:$0x1] %vm373, 0.0
        %402 = vst.msk [vmem:[%s372 + $0x131] sm:$0x1] %vm373, 0.0
        %403 = vst.msk [vmem:[%s372 + $0x149] sm:$0x1] %vm373, 0.0
        %404 = vst.msk [vmem:[%s372 + $0x161] sm:$0x1] %vm373, 0.0
        %405 = vst.msk [vmem:[%s372 + $0x179] sm:$0x1] %vm373, 0.0
        %vm406 = vcmask 523264
        %407 = vst.msk [vmem:[#allocation3] sm:$0xff] %vm406, 0.0
        %408 = vst.msk [vmem:[#allocation3 + $0x8] sm:$0xff] %vm406, 0.0
        %vm409 = vcmask 517120
        %410 = vst.msk [vmem:[#allocation3 + $0x10] sm:$0x3] %vm409, 0.0
        %s411 = scalar_lea.vmem [#allocation3], 408
        %412 = vst.msk [vmem:[%s411] sm:$0xff] %vm406, 0.0
        %413 = vst.msk [vmem:[%s411 + $0x8] sm:$0xff] %vm406, 0.0
        %414 = vst.msk [vmem:[%s411 + $0x10] sm:$0x3] %vm409, 0.0
        %s415 = scalar_lea.vmem [#allocation3], 24
        %vm416 = vcmask 516096
        %417 = vst.msk [vmem:[%s415] sm:$0x1] %vm416, 0.0
        %418 = vst.msk [vmem:[%s415 + $0x18] sm:$0x1] %vm416, 0.0
        %419 = vst.msk [vmem:[%s415 + $0x30] sm:$0x1] %vm416, 0.0
        %420 = vst.msk [vmem:[%s415 + $0x48] sm:$0x1] %vm416, 0.0
        %421 = vst.msk [vmem:[%s415 + $0x60] sm:$0x1] %vm416, 0.0
        %422 = vst.msk [vmem:[%s415 + $0x78] sm:$0x1] %vm416, 0.0
        %423 = vst.msk [vmem:[%s415 + $0x90] sm:$0x1] %vm416, 0.0
        %424 = vst.msk [vmem:[%s415 + $0xa8] sm:$0x1] %vm416, 0.0
        %425 = vst.msk [vmem:[%s415 + $0xc0] sm:$0x1] %vm416, 0.0
        %426 = vst.msk [vmem:[%s415 + $0xd8] sm:$0x1] %vm416, 0.0
        %427 = vst.msk [vmem:[%s415 + $0xf0] sm:$0x1] %vm416, 0.0
        %428 = vst.msk [vmem:[%s415 + $0x108] sm:$0x1] %vm416, 0.0
        %429 = vst.msk [vmem:[%s415 + $0x120] sm:$0x1] %vm416, 0.0
        %430 = vst.msk [vmem:[%s415 + $0x138] sm:$0x1] %vm416, 0.0
        %431 = vst.msk [vmem:[%s415 + $0x150] sm:$0x1] %vm416, 0.0
        %432 = vst.msk [vmem:[%s415 + $0x168] sm:$0x1] %vm416, 0.0
        %433 = vst.msk [vmem:[%s415 + $0x11] sm:$0x1] %vm416, 0.0
        %434 = vst.msk [vmem:[%s415 + $0x29] sm:$0x1] %vm416, 0.0
        %435 = vst.msk [vmem:[%s415 + $0x41] sm:$0x1] %vm416, 0.0
        %436 = vst.msk [vmem:[%s415 + $0x59] sm:$0x1] %vm416, 0.0
        %437 = vst.msk [vmem:[%s415 + $0x71] sm:$0x1] %vm416, 0.0
        %438 = vst.msk [vmem:[%s415 + $0x89] sm:$0x1] %vm416, 0.0
        %439 = vst.msk [vmem:[%s415 + $0xa1] sm:$0x1] %vm416, 0.0
        %440 = vst.msk [vmem:[%s415 + $0xb9] sm:$0x1] %vm416, 0.0
        %441 = vst.msk [vmem:[%s415 + $0xd1] sm:$0x1] %vm416, 0.0
        %442 = vst.msk [vmem:[%s415 + $0xe9] sm:$0x1] %vm416, 0.0
        %443 = vst.msk [vmem:[%s415 + $0x101] sm:$0x1] %vm416, 0.0
        %444 = vst.msk [vmem:[%s415 + $0x119] sm:$0x1] %vm416, 0.0
        %445 = vst.msk [vmem:[%s415 + $0x131] sm:$0x1] %vm416, 0.0
        %446 = vst.msk [vmem:[%s415 + $0x149] sm:$0x1] %vm416, 0.0
        %447 = vst.msk [vmem:[%s415 + $0x161] sm:$0x1] %vm416, 0.0
        %448 = vst.msk [vmem:[%s415 + $0x179] sm:$0x1] %vm416, 0.0
        %449 = vst.msk [vmem:[#allocation4] sm:$0xff] %vm363, 0.0
        %450 = vst.msk [vmem:[#allocation4 + $0x8] sm:$0xff] %vm363, 0.0
        %451 = vst.msk [vmem:[#allocation4 + $0x10] sm:$0x3] %vm366, 0.0
        %s452 = scalar_lea.vmem [#allocation4], 408
        %453 = vst.msk [vmem:[%s452] sm:$0xff] %vm363, 0.0
        %454 = vst.msk [vmem:[%s452 + $0x8] sm:$0xff] %vm363, 0.0
        %455 = vst.msk [vmem:[%s452 + $0x10] sm:$0x3] %vm366, 0.0
        %s456 = scalar_lea.vmem [#allocation4], 24
        %457 = vst.msk [vmem:[%s456] sm:$0x1] %vm373, 0.0
        %458 = vst.msk [vmem:[%s456 + $0x18] sm:$0x1] %vm373, 0.0
        %459 = vst.msk [vmem:[%s456 + $0x30] sm:$0x1] %vm373, 0.0
        %460 = vst.msk [vmem:[%s456 + $0x48] sm:$0x1] %vm373, 0.0
        %461 = vst.msk [vmem:[%s456 + $0x60] sm:$0x1] %vm373, 0.0
        %462 = vst.msk [vmem:[%s456 + $0x78] sm:$0x1] %vm373, 0.0
        %463 = vst.msk [vmem:[%s456 + $0x90] sm:$0x1] %vm373, 0.0
        %464 = vst.msk [vmem:[%s456 + $0xa8] sm:$0x1] %vm373, 0.0
        %465 = vst.msk [vmem:[%s456 + $0xc0] sm:$0x1] %vm373, 0.0
        %466 = vst.msk [vmem:[%s456 + $0xd8] sm:$0x1] %vm373, 0.0
        %467 = vst.msk [vmem:[%s456 + $0xf0] sm:$0x1] %vm373, 0.0
        %468 = vst.msk [vmem:[%s456 + $0x108] sm:$0x1] %vm373, 0.0
        %469 = vst.msk [vmem:[%s456 + $0x120] sm:$0x1] %vm373, 0.0
        %470 = vst.msk [vmem:[%s456 + $0x138] sm:$0x1] %vm373, 0.0
        %471 = vst.msk [vmem:[%s456 + $0x150] sm:$0x1] %vm373, 0.0
        %472 = vst.msk [vmem:[%s456 + $0x168] sm:$0x1] %vm373, 0.0
        %473 = vst.msk [vmem:[%s456 + $0x11] sm:$0x1] %vm373, 0.0
        %474 = vst.msk [vmem:[%s456 + $0x29] sm:$0x1] %vm373, 0.0
        %475 = vst.msk [vmem:[%s456 + $0x41] sm:$0x1] %vm373, 0.0
        %476 = vst.msk [vmem:[%s456 + $0x59] sm:$0x1] %vm373, 0.0
        %477 = vst.msk [vmem:[%s456 + $0x71] sm:$0x1] %vm373, 0.0
        %478 = vst.msk [vmem:[%s456 + $0x89] sm:$0x1] %vm373, 0.0
        %479 = vst.msk [vmem:[%s456 + $0xa1] sm:$0x1] %vm373, 0.0
        %480 = vst.msk [vmem:[%s456 + $0xb9] sm:$0x1] %vm373, 0.0
        %481 = vst.msk [vmem:[%s456 + $0xd1] sm:$0x1] %vm373, 0.0
        %482 = vst.msk [vmem:[%s456 + $0xe9] sm:$0x1] %vm373, 0.0
        %483 = vst.msk [vmem:[%s456 + $0x101] sm:$0x1] %vm373, 0.0
        %484 = vst.msk [vmem:[%s456 + $0x119] sm:$0x1] %vm373, 0.0
        %485 = vst.msk [vmem:[%s456 + $0x131] sm:$0x1] %vm373, 0.0
        %486 = vst.msk [vmem:[%s456 + $0x149] sm:$0x1] %vm373, 0.0
        %487 = vst.msk [vmem:[%s456 + $0x161] sm:$0x1] %vm373, 0.0
        %488 = vst.msk [vmem:[%s456 + $0x179] sm:$0x1] %vm373, 0.0
        %v489 = vld [vmem:[%s314] sm:$0xff]
        %v490 = vld [vmem:[%s314 + $0x8] sm:$0xff]
        %v491 = vld [vmem:[%s314 + $0x10] sm:$0xff]
        %v492 = vld [vmem:[%s314 + $0x18] sm:$0xff]
        %v493 = vld [vmem:[%s314 + $0x20] sm:$0xff]
        %v494 = vld [vmem:[%s314 + $0x28] sm:$0xff]
        %v495 = vld [vmem:[%s314 + $0x30] sm:$0xff]
        %v496 = vld [vmem:[%s314 + $0x38] sm:$0xff]
        %v497 = vld [vmem:[%s314 + $0x40] sm:$0xff]
        %v498 = vld [vmem:[%s314 + $0x48] sm:$0xff]
        %v499 = vld [vmem:[%s314 + $0x50] sm:$0xff]
        %v500 = vld [vmem:[%s314 + $0x58] sm:$0xff]
        %v501 = vld [vmem:[%s314 + $0x60] sm:$0xff]
        %v502 = vld [vmem:[%s314 + $0x68] sm:$0xff]
        %v503 = vld [vmem:[%s314 + $0x70] sm:$0xff]
        %v504 = vld [vmem:[%s314 + $0x78] sm:$0xff]
        %v505 = vld [vmem:[%s314 + $0x80] sm:$0xff]
        %v506 = vld [vmem:[%s314 + $0x88] sm:$0xff]
        %v507 = vld [vmem:[%s314 + $0x90] sm:$0xff]
        %v508 = vld [vmem:[%s314 + $0x98] sm:$0xff]
        %v509 = vld [vmem:[%s314 + $0xa0] sm:$0xff]
        %v510 = vld [vmem:[%s314 + $0xa8] sm:$0xff]
        %v511 = vld [vmem:[%s314 + $0xb0] sm:$0xff]
        %v512 = vld [vmem:[%s314 + $0xb8] sm:$0xff]
        %v513 = vld [vmem:[%s314 + $0xc0] sm:$0xff]
        %v514 = vld [vmem:[%s314 + $0xc8] sm:$0xff]
        %v515 = vld [vmem:[%s314 + $0xd0] sm:$0xff]
        %v516 = vld [vmem:[%s314 + $0xd8] sm:$0xff]
        %v517 = vld [vmem:[%s314 + $0xe0] sm:$0xff]
        %v518 = vld [vmem:[%s314 + $0xe8] sm:$0xff]
        %v519 = vld [vmem:[%s314 + $0xf0] sm:$0xff]
        %v520 = vld [vmem:[%s314 + $0xf8] sm:$0xff]
        %521 = vst.msk [vmem:[%s372 + $0x1] sm:$0xff] %vm363, %v489
        %522 = vst.msk [vmem:[%s372 + $0x9] sm:$0xff] %vm363, %v490
        %523 = vst.msk [vmem:[%s372 + $0x19] sm:$0xff] %vm363, %v491
        %524 = vst.msk [vmem:[%s372 + $0x21] sm:$0xff] %vm363, %v492
        %525 = vst.msk [vmem:[%s372 + $0x31] sm:$0xff] %vm363, %v493
        %526 = vst.msk [vmem:[%s372 + $0x39] sm:$0xff] %vm363, %v494
        %527 = vst.msk [vmem:[%s372 + $0x49] sm:$0xff] %vm363, %v495
        %528 = vst.msk [vmem:[%s372 + $0x51] sm:$0xff] %vm363, %v496
        %529 = vst.msk [vmem:[%s372 + $0x61] sm:$0xff] %vm363, %v497
        %530 = vst.msk [vmem:[%s372 + $0x69] sm:$0xff] %vm363, %v498
        %531 = vst.msk [vmem:[%s372 + $0x79] sm:$0xff] %vm363, %v499
        %532 = vst.msk [vmem:[%s372 + $0x81] sm:$0xff] %vm363, %v500
        %533 = vst.msk [vmem:[%s372 + $0x91] sm:$0xff] %vm363, %v501
        %534 = vst.msk [vmem:[%s372 + $0x99] sm:$0xff] %vm363, %v502
        %535 = vst.msk [vmem:[%s372 + $0xa9] sm:$0xff] %vm363, %v503
        %536 = vst.msk [vmem:[%s372 + $0xb1] sm:$0xff] %vm363, %v504
        %537 = vst.msk [vmem:[%s372 + $0xc1] sm:$0xff] %vm363, %v505
        %538 = vst.msk [vmem:[%s372 + $0xc9] sm:$0xff] %vm363, %v506
        %539 = vst.msk [vmem:[%s372 + $0xd9] sm:$0xff] %vm363, %v507
        %540 = vst.msk [vmem:[%s372 + $0xe1] sm:$0xff] %vm363, %v508
        %541 = vst.msk [vmem:[%s372 + $0xf1] sm:$0xff] %vm363, %v509
        %542 = vst.msk [vmem:[%s372 + $0xf9] sm:$0xff] %vm363, %v510
        %543 = vst.msk [vmem:[%s372 + $0x109] sm:$0xff] %vm363, %v511
        %544 = vst.msk [vmem:[%s372 + $0x111] sm:$0xff] %vm363, %v512
        %545 = vst.msk [vmem:[%s372 + $0x121] sm:$0xff] %vm363, %v513
        %546 = vst.msk [vmem:[%s372 + $0x129] sm:$0xff] %vm363, %v514
        %547 = vst.msk [vmem:[%s372 + $0x139] sm:$0xff] %vm363, %v515
        %548 = vst.msk [vmem:[%s372 + $0x141] sm:$0xff] %vm363, %v516
        %549 = vst.msk [vmem:[%s372 + $0x151] sm:$0xff] %vm363, %v517
        %550 = vst.msk [vmem:[%s372 + $0x159] sm:$0xff] %vm363, %v518
        %551 = vst.msk [vmem:[%s372 + $0x169] sm:$0xff] %vm363, %v519
        %552 = vst.msk [vmem:[%s372 + $0x171] sm:$0xff] %vm363, %v520
        %v553 = vld [vmem:[%s362] sm:$0xff]
        %v554 = vld [vmem:[%s362 + $0x8] sm:$0xff]
        %v555 = vld [vmem:[%s362 + $0x10] sm:$0xff]
        %v556 = vld [vmem:[%s362 + $0x18] sm:$0xff]
        %v557 = vld [vmem:[%s362 + $0x20] sm:$0xff]
        %v558 = vld [vmem:[%s362 + $0x28] sm:$0xff]
        %v559 = vld [vmem:[%s362 + $0x30] sm:$0xff]
        %v560 = vld [vmem:[%s362 + $0x38] sm:$0xff]
        %v561 = vld [vmem:[%s362 + $0x40] sm:$0xff]
        %v562 = vld [vmem:[%s362 + $0x48] sm:$0xff]
        %v563 = vld [vmem:[%s362 + $0x50] sm:$0xff]
        %v564 = vld [vmem:[%s362 + $0x58] sm:$0xff]
        %v565 = vld [vmem:[%s362 + $0x60] sm:$0xff]
        %v566 = vld [vmem:[%s362 + $0x68] sm:$0xff]
        %v567 = vld [vmem:[%s362 + $0x70] sm:$0xff]
        %v568 = vld [vmem:[%s362 + $0x78] sm:$0xff]
        %v569 = vld [vmem:[%s362 + $0x80] sm:$0xff]
        %v570 = vld [vmem:[%s362 + $0x88] sm:$0xff]
        %v571 = vld [vmem:[%s362 + $0x90] sm:$0xff]
        %v572 = vld [vmem:[%s362 + $0x98] sm:$0xff]
        %v573 = vld [vmem:[%s362 + $0xa0] sm:$0xff]
        %v574 = vld [vmem:[%s362 + $0xa8] sm:$0xff]
        %v575 = vld [vmem:[%s362 + $0xb0] sm:$0xff]
        %v576 = vld [vmem:[%s362 + $0xb8] sm:$0xff]
        %v577 = vld [vmem:[%s362 + $0xc0] sm:$0xff]
        %v578 = vld [vmem:[%s362 + $0xc8] sm:$0xff]
        %v579 = vld [vmem:[%s362 + $0xd0] sm:$0xff]
        %v580 = vld [vmem:[%s362 + $0xd8] sm:$0xff]
        %v581 = vld [vmem:[%s362 + $0xe0] sm:$0xff]
        %v582 = vld [vmem:[%s362 + $0xe8] sm:$0xff]
        %v583 = vld [vmem:[%s362 + $0xf0] sm:$0xff]
        %v584 = vld [vmem:[%s362 + $0xf8] sm:$0xff]
        %585 = vst.msk [vmem:[%s415 + $0x1] sm:$0xff] %vm406, %v553
        %586 = vst.msk [vmem:[%s415 + $0x9] sm:$0xff] %vm406, %v554
        %587 = vst.msk [vmem:[%s415 + $0x19] sm:$0xff] %vm406, %v555
        %588 = vst.msk [vmem:[%s415 + $0x21] sm:$0xff] %vm406, %v556
        %589 = vst.msk [vmem:[%s415 + $0x31] sm:$0xff] %vm406, %v557
        %590 = vst.msk [vmem:[%s415 + $0x39] sm:$0xff] %vm406, %v558
        %591 = vst.msk [vmem:[%s415 + $0x49] sm:$0xff] %vm406, %v559
        %592 = vst.msk [vmem:[%s415 + $0x51] sm:$0xff] %vm406, %v560
        %593 = vst.msk [vmem:[%s415 + $0x61] sm:$0xff] %vm406, %v561
        %594 = vst.msk [vmem:[%s415 + $0x69] sm:$0xff] %vm406, %v562
        %595 = vst.msk [vmem:[%s415 + $0x79] sm:$0xff] %vm406, %v563
        %596 = vst.msk [vmem:[%s415 + $0x81] sm:$0xff] %vm406, %v564
        %597 = vst.msk [vmem:[%s415 + $0x91] sm:$0xff] %vm406, %v565
        %598 = vst.msk [vmem:[%s415 + $0x99] sm:$0xff] %vm406, %v566
        %599 = vst.msk [vmem:[%s415 + $0xa9] sm:$0xff] %vm406, %v567
        %600 = vst.msk [vmem:[%s415 + $0xb1] sm:$0xff] %vm406, %v568
        %601 = vst.msk [vmem:[%s415 + $0xc1] sm:$0xff] %vm406, %v569
        %602 = vst.msk [vmem:[%s415 + $0xc9] sm:$0xff] %vm406, %v570
        %603 = vst.msk [vmem:[%s415 + $0xd9] sm:$0xff] %vm406, %v571
        %604 = vst.msk [vmem:[%s415 + $0xe1] sm:$0xff] %vm406, %v572
        %605 = vst.msk [vmem:[%s415 + $0xf1] sm:$0xff] %vm406, %v573
        %606 = vst.msk [vmem:[%s415 + $0xf9] sm:$0xff] %vm406, %v574
        %607 = vst.msk [vmem:[%s415 + $0x109] sm:$0xff] %vm406, %v575
        %608 = vst.msk [vmem:[%s415 + $0x111] sm:$0xff] %vm406, %v576
        %609 = vst.msk [vmem:[%s415 + $0x121] sm:$0xff] %vm406, %v577
        %610 = vst.msk [vmem:[%s415 + $0x129] sm:$0xff] %vm406, %v578
        %611 = vst.msk [vmem:[%s415 + $0x139] sm:$0xff] %vm406, %v579
        %612 = vst.msk [vmem:[%s415 + $0x141] sm:$0xff] %vm406, %v580
        %613 = vst.msk [vmem:[%s415 + $0x151] sm:$0xff] %vm406, %v581
        %614 = vst.msk [vmem:[%s415 + $0x159] sm:$0xff] %vm406, %v582
        %615 = vst.msk [vmem:[%s415 + $0x169] sm:$0xff] %vm406, %v583
        %616 = vst.msk [vmem:[%s415 + $0x171] sm:$0xff] %vm406, %v584
        %v617 = vld [vmem:[#allocation2] sm:$0xff]
        %v618 = vld [vmem:[#allocation2 + $0x8] sm:$0xff]
        %v619 = vld [vmem:[#allocation2 + $0x18] sm:$0xff]
        %v620 = vld [vmem:[#allocation2 + $0x20] sm:$0xff]
        %v621 = vld [vmem:[#allocation2 + $0x30] sm:$0xff]
        %v622 = vld [vmem:[#allocation2 + $0x38] sm:$0xff]
        %v623 = vld [vmem:[#allocation2 + $0x48] sm:$0xff]
        %v624 = vld [vmem:[#allocation2 + $0x50] sm:$0xff]
        %v625 = vld [vmem:[#allocation2 + $0x60] sm:$0xff]
        %v626 = vld [vmem:[#allocation2 + $0x68] sm:$0xff]
        %v627 = vld [vmem:[#allocation2 + $0x78] sm:$0xff]
        %v628 = vld [vmem:[#allocation2 + $0x80] sm:$0xff]
        %v629 = vld [vmem:[#allocation2 + $0x90] sm:$0xff]
        %v630 = vld [vmem:[#allocation2 + $0x98] sm:$0xff]
        %v631 = vld [vmem:[#allocation2 + $0xa8] sm:$0xff]
        %v632 = vld [vmem:[#allocation2 + $0xb0] sm:$0xff]
        %v633 = vld [vmem:[#allocation2 + $0xc0] sm:$0xff]
        %v634 = vld [vmem:[#allocation2 + $0xc8] sm:$0xff]
        %v635 = vld [vmem:[#allocation2 + $0xd8] sm:$0xff]
        %v636 = vld [vmem:[#allocation2 + $0xe0] sm:$0xff]
        %v637 = vld [vmem:[#allocation2 + $0xf0] sm:$0xff]
        %v638 = vld [vmem:[#allocation2 + $0xf8] sm:$0xff]
        %v639 = vld [vmem:[#allocation2 + $0x108] sm:$0xff]
        %v640 = vld [vmem:[#allocation2 + $0x110] sm:$0xff]
        %v641 = vld [vmem:[#allocation2 + $0x120] sm:$0xff]
        %v642 = vld [vmem:[#allocation2 + $0x128] sm:$0xff]
        %v643 = vld [vmem:[#allocation2 + $0x138] sm:$0xff]
        %v644 = vld [vmem:[#allocation2 + $0x140] sm:$0xff]
        %v645 = vld [vmem:[#allocation2 + $0x150] sm:$0xff]
        %v646 = vld [vmem:[#allocation2 + $0x158] sm:$0xff]
        %v647 = vld [vmem:[#allocation2 + $0x168] sm:$0xff]
        %v648 = vld [vmem:[#allocation2 + $0x170] sm:$0xff]
        %v649 = vld [vmem:[%s2] sm:$0xff]
        %v650 = vld [vmem:[%s2 + $0x8] sm:$0xff]
        %v651 = vld [vmem:[%s2 + $0x10] sm:$0xff]
        %v652 = vld [vmem:[%s2 + $0x18] sm:$0xff]
        %v653 = vld [vmem:[#allocation3] sm:$0xff]
        %v654 = vld [vmem:[#allocation3 + $0x8] sm:$0xff]
        %v655 = vld [vmem:[#allocation3 + $0x18] sm:$0xff]
        %v656 = vld [vmem:[#allocation3 + $0x20] sm:$0xff]
        %v657 = vld [vmem:[#allocation3 + $0x30] sm:$0xff]
        %v658 = vld [vmem:[#allocation3 + $0x38] sm:$0xff]
        %v659 = vld [vmem:[#allocation3 + $0x48] sm:$0xff]
        %v660 = vld [vmem:[#allocation3 + $0x50] sm:$0xff]
        %v661 = vld [vmem:[#allocation3 + $0x60] sm:$0xff]
        %v662 = vld [vmem:[#allocation3 + $0x68] sm:$0xff]
        %v663 = vld [vmem:[#allocation3 + $0x78] sm:$0xff]
        %v664 = vld [vmem:[#allocation3 + $0x80] sm:$0xff]
        %v665 = vld [vmem:[#allocation3 + $0x90] sm:$0xff]
        %v666 = vld [vmem:[#allocation3 + $0x98] sm:$0xff]
        %v667 = vld [vmem:[#allocation3 + $0xa8] sm:$0xff]
        %v668 = vld [vmem:[#allocation3 + $0xb0] sm:$0xff]
        %v669 = vld [vmem:[#allocation3 + $0xc0] sm:$0xff]
        %v670 = vld [vmem:[#allocation3 + $0xc8] sm:$0xff]
        %v671 = vld [vmem:[#allocation3 + $0xd8] sm:$0xff]
        %v672 = vld [vmem:[#allocation3 + $0xe0] sm:$0xff]
        %v673 = vld [vmem:[#allocation3 + $0xf0] sm:$0xff]
        %v674 = vld [vmem:[#allocation3 + $0xf8] sm:$0xff]
        %v675 = vld [vmem:[#allocation3 + $0x108] sm:$0xff]
        %v676 = vld [vmem:[#allocation3 + $0x110] sm:$0xff]
        %v677 = vld [vmem:[#allocation3 + $0x120] sm:$0xff]
        %v678 = vld [vmem:[#allocation3 + $0x128] sm:$0xff]
        %v679 = vld [vmem:[#allocation3 + $0x138] sm:$0xff]
        %v680 = vld [vmem:[#allocation3 + $0x140] sm:$0xff]
        %v681 = vld [vmem:[#allocation3 + $0x150] sm:$0xff]
        %v682 = vld [vmem:[#allocation3 + $0x158] sm:$0xff]
        %v683 = vld [vmem:[#allocation3 + $0x168] sm:$0xff]
        %v684 = vld [vmem:[#allocation3 + $0x170] sm:$0xff]
        %v685 = vld [vmem:[%s3] sm:$0xff]
        %v686 = vld [vmem:[%s3 + $0x8] sm:$0xff]
        %v687 = vld [vmem:[%s3 + $0x10] sm:$0xff]
        %v688 = vld [vmem:[%s3 + $0x18] sm:$0xff]
        %v689 = vld [vmem:[%s3 + $0x20] sm:$0xff]
        %v690 = vld [vmem:[%s3 + $0x28] sm:$0xff]
        %v691 = vld [vmem:[%s3 + $0x30] sm:$0xff]
        %v692 = vld [vmem:[%s3 + $0x38] sm:$0xff]
        %v694 = vsel %vm406, %v653, 0
        %v697 = vsel %vm406, %v654, 0
        %v700 = vsel %vm406, %v655, 0
        %v703 = vsel %vm406, %v656, 0
        %v706 = vsel %vm406, %v657, 0
        %v709 = vsel %vm406, %v658, 0
        %v712 = vsel %vm406, %v659, 0
        %v715 = vsel %vm406, %v660, 0
        %v718 = vsel %vm406, %v661, 0
        %v721 = vsel %vm406, %v662, 0
        %v724 = vsel %vm406, %v663, 0
        %v727 = vsel %vm406, %v664, 0
        %v730 = vsel %vm406, %v665, 0
        %v733 = vsel %vm406, %v666, 0
        %v736 = vsel %vm406, %v667, 0
        %v739 = vsel %vm406, %v668, 0
        %v742 = vsel %vm406, %v669, 0
        %v745 = vsel %vm406, %v670, 0
        %v748 = vsel %vm406, %v671, 0
        %v751 = vsel %vm406, %v672, 0
        %v754 = vsel %vm406, %v673, 0
        %v757 = vsel %vm406, %v674, 0
        %v760 = vsel %vm406, %v675, 0
        %v763 = vsel %vm406, %v676, 0
        %v766 = vsel %vm406, %v677, 0
        %v769 = vsel %vm406, %v678, 0
        %v772 = vsel %vm406, %v679, 0
        %v775 = vsel %vm406, %v680, 0
        %v778 = vsel %vm406, %v681, 0
        %v781 = vsel %vm406, %v682, 0
        %v784 = vsel %vm406, %v683, 0
        %v787 = vsel %vm406, %v684, 0
        %789 = vmatpush.msra.mxu0 0.0
        %790 = vmatpush.msra.mxu0 0.0
        %791 = vmatpush.msra.mxu0 0.0
        %792 = vmatpush.msra.mxu0 0.0
        %793 = vmatpush.msra.mxu0 0.0
        %794 = vmatpush.msra.mxu0 0.0
        %795 = vmatpush.msra.mxu0 0.0
        %796 = vmatpush.msra.mxu0 0.0
        %797 = vmatpush.msra.mxu0 %v692
        %798 = vmatpush.msra.mxu0 %v691
        %799 = vmatpush.msra.mxu0 %v690
        %800 = vmatpush.msra.mxu0 %v689
        %801 = vmatpush.msra.mxu0 %v688
        %802 = vmatpush.msra.mxu0 %v687
        %803 = vmatpush.msra.mxu0 %v686
        %804 = vmatpush.msra.mxu0 %v685
        %805 = vmatmul.f32.gmra.mxu0 %v694
        %v806 = vpop.f32.mrf.mxu0
        %v807 = vadd.f32 0.0, %v806
        %808 = vmatmul.f32.gmra.mxu0 %v697
        %v809 = vpop.f32.mrf.mxu0
        %v810 = vadd.f32 0.0, %v809
        %811 = vmatmul.f32.gmra.mxu0 %v700
        %v812 = vpop.f32.mrf.mxu0
        %v813 = vadd.f32 0.0, %v812
        %814 = vmatmul.f32.gmra.mxu0 %v703
        %v815 = vpop.f32.mrf.mxu0
        %v816 = vadd.f32 0.0, %v815
        %817 = vmatmul.f32.gmra.mxu0 %v706
        %v818 = vpop.f32.mrf.mxu0
        %v819 = vadd.f32 0.0, %v818
        %820 = vmatmul.f32.gmra.mxu0 %v709
        %v821 = vpop.f32.mrf.mxu0
        %v822 = vadd.f32 0.0, %v821
        %823 = vmatmul.f32.gmra.mxu0 %v712
        %v824 = vpop.f32.mrf.mxu0
        %v825 = vadd.f32 0.0, %v824
        %826 = vmatmul.f32.gmra.mxu0 %v715
        %v827 = vpop.f32.mrf.mxu0
        %v828 = vadd.f32 0.0, %v827
        %829 = vmatmul.f32.gmra.mxu0 %v718
        %v830 = vpop.f32.mrf.mxu0
        %v831 = vadd.f32 0.0, %v830
        %832 = vmatmul.f32.gmra.mxu0 %v721
        %v833 = vpop.f32.mrf.mxu0
        %v834 = vadd.f32 0.0, %v833
        %835 = vmatmul.f32.gmra.mxu0 %v724
        %v836 = vpop.f32.mrf.mxu0
        %v837 = vadd.f32 0.0, %v836
        %838 = vmatmul.f32.gmra.mxu0 %v727
        %v839 = vpop.f32.mrf.mxu0
        %v840 = vadd.f32 0.0, %v839
        %841 = vmatmul.f32.gmra.mxu0 %v730
        %v842 = vpop.f32.mrf.mxu0
        %v843 = vadd.f32 0.0, %v842
        %844 = vmatmul.f32.gmra.mxu0 %v733
        %v845 = vpop.f32.mrf.mxu0
        %v846 = vadd.f32 0.0, %v845
        %847 = vmatmul.f32.gmra.mxu0 %v736
        %v848 = vpop.f32.mrf.mxu0
        %v849 = vadd.f32 0.0, %v848
        %850 = vmatmul.f32.gmra.mxu0 %v739
        %v851 = vpop.f32.mrf.mxu0
        %v852 = vadd.f32 0.0, %v851
        %853 = vmatmul.f32.gmra.mxu0 %v742
        %v854 = vpop.f32.mrf.mxu0
        %v855 = vadd.f32 0.0, %v854
        %856 = vmatmul.f32.gmra.mxu0 %v745
        %v857 = vpop.f32.mrf.mxu0
        %v858 = vadd.f32 0.0, %v857
        %859 = vmatmul.f32.gmra.mxu0 %v748
        %v860 = vpop.f32.mrf.mxu0
        %v861 = vadd.f32 0.0, %v860
        %862 = vmatmul.f32.gmra.mxu0 %v751
        %v863 = vpop.f32.mrf.mxu0
        %v864 = vadd.f32 0.0, %v863
        %865 = vmatmul.f32.gmra.mxu0 %v754
        %v866 = vpop.f32.mrf.mxu0
        %v867 = vadd.f32 0.0, %v866
        %868 = vmatmul.f32.gmra.mxu0 %v757
        %v869 = vpop.f32.mrf.mxu0
        %v870 = vadd.f32 0.0, %v869
        %871 = vmatmul.f32.gmra.mxu0 %v760
        %v872 = vpop.f32.mrf.mxu0
        %v873 = vadd.f32 0.0, %v872
        %874 = vmatmul.f32.gmra.mxu0 %v763
        %v875 = vpop.f32.mrf.mxu0
        %v876 = vadd.f32 0.0, %v875
        %877 = vmatmul.f32.gmra.mxu0 %v766
        %v878 = vpop.f32.mrf.mxu0
        %v879 = vadd.f32 0.0, %v878
        %880 = vmatmul.f32.gmra.mxu0 %v769
        %v881 = vpop.f32.mrf.mxu0
        %v882 = vadd.f32 0.0, %v881
        %883 = vmatmul.f32.gmra.mxu0 %v772
        %v884 = vpop.f32.mrf.mxu0
        %v885 = vadd.f32 0.0, %v884
        %886 = vmatmul.f32.gmra.mxu0 %v775
        %v887 = vpop.f32.mrf.mxu0
        %v888 = vadd.f32 0.0, %v887
        %889 = vmatmul.f32.gmra.mxu0 %v778
        %v890 = vpop.f32.mrf.mxu0
        %v891 = vadd.f32 0.0, %v890
        %892 = vmatmul.f32.gmra.mxu0 %v781
        %v893 = vpop.f32.mrf.mxu0
        %v894 = vadd.f32 0.0, %v893
        %895 = vmatmul.f32.gmra.mxu0 %v784
        %v896 = vpop.f32.mrf.mxu0
        %v897 = vadd.f32 0.0, %v896
        %898 = vmatmul.f32.gmra.mxu0 %v787
        %v899 = vpop.f32.mrf.mxu0
        %v900 = vadd.f32 0.0, %v899
        %901 = vdwg.mxu0
        %v903 = vsel %vm363, %v617, 0
        %v906 = vsel %vm363, %v618, 0
        %v909 = vsel %vm363, %v619, 0
        %v912 = vsel %vm363, %v620, 0
        %v915 = vsel %vm363, %v621, 0
        %v918 = vsel %vm363, %v622, 0
        %v921 = vsel %vm363, %v623, 0
        %v924 = vsel %vm363, %v624, 0
        %v927 = vsel %vm363, %v625, 0
        %v930 = vsel %vm363, %v626, 0
        %v933 = vsel %vm363, %v627, 0
        %v936 = vsel %vm363, %v628, 0
        %v939 = vsel %vm363, %v629, 0
        %v942 = vsel %vm363, %v630, 0
        %v945 = vsel %vm363, %v631, 0
        %v948 = vsel %vm363, %v632, 0
        %v951 = vsel %vm363, %v633, 0
        %v954 = vsel %vm363, %v634, 0
        %v957 = vsel %vm363, %v635, 0
        %v960 = vsel %vm363, %v636, 0
        %v963 = vsel %vm363, %v637, 0
        %v966 = vsel %vm363, %v638, 0
        %v969 = vsel %vm363, %v639, 0
        %v972 = vsel %vm363, %v640, 0
        %v975 = vsel %vm363, %v641, 0
        %v978 = vsel %vm363, %v642, 0
        %v981 = vsel %vm363, %v643, 0
        %v984 = vsel %vm363, %v644, 0
        %v987 = vsel %vm363, %v645, 0
        %v990 = vsel %vm363, %v646, 0
        %v993 = vsel %vm363, %v647, 0
        %v996 = vsel %vm363, %v648, 0
        %998 = vmatpush.msra.mxu0 0.0
        %999 = vmatpush.msra.mxu0 0.0
        %1000 = vmatpush.msra.mxu0 0.0
        %1001 = vmatpush.msra.mxu0 0.0
        %1002 = vmatpush.msra.mxu0 0.0
        %1003 = vmatpush.msra.mxu0 0.0
        %1004 = vmatpush.msra.mxu0 0.0
        %1005 = vmatpush.msra.mxu0 0.0
        %1006 = vmatpush.msra.mxu0 0.0
        %1007 = vmatpush.msra.mxu0 0.0
        %1008 = vmatpush.msra.mxu0 0.0
        %1009 = vmatpush.msra.mxu0 0.0
        %1010 = vmatpush.msra.mxu0 %v652
        %1011 = vmatpush.msra.mxu0 %v651
        %1012 = vmatpush.msra.mxu0 %v650
        %1013 = vmatpush.msra.mxu0 %v649
        %1014 = vmatmul.f32.gmra.mxu0 %v903
        %v1015 = vpop.f32.mrf.mxu0
        %v1016 = vadd.f32 %v807, %v1015
        %1017 = vmatmul.f32.gmra.mxu0 %v906
        %v1018 = vpop.f32.mrf.mxu0
        %v1019 = vadd.f32 %v810, %v1018
        %1020 = vmatmul.f32.gmra.mxu0 %v909
        %v1021 = vpop.f32.mrf.mxu0
        %v1022 = vadd.f32 %v813, %v1021
        %1023 = vmatmul.f32.gmra.mxu0 %v912
        %v1024 = vpop.f32.mrf.mxu0
        %v1025 = vadd.f32 %v816, %v1024
        %1026 = vmatmul.f32.gmra.mxu0 %v915
        %v1027 = vpop.f32.mrf.mxu0
        %v1028 = vadd.f32 %v819, %v1027
        %1029 = vmatmul.f32.gmra.mxu0 %v918
        %v1030 = vpop.f32.mrf.mxu0
        %v1031 = vadd.f32 %v822, %v1030
        %1032 = vmatmul.f32.gmra.mxu0 %v921
        %v1033 = vpop.f32.mrf.mxu0
        %v1034 = vadd.f32 %v825, %v1033
        %1035 = vmatmul.f32.gmra.mxu0 %v924
        %v1036 = vpop.f32.mrf.mxu0
        %v1037 = vadd.f32 %v828, %v1036
        %1038 = vmatmul.f32.gmra.mxu0 %v927
        %v1039 = vpop.f32.mrf.mxu0
        %v1040 = vadd.f32 %v831, %v1039
        %1041 = vmatmul.f32.gmra.mxu0 %v930
        %v1042 = vpop.f32.mrf.mxu0
        %v1043 = vadd.f32 %v834, %v1042
        %1044 = vmatmul.f32.gmra.mxu0 %v933
        %v1045 = vpop.f32.mrf.mxu0
        %v1046 = vadd.f32 %v837, %v1045
        %1047 = vmatmul.f32.gmra.mxu0 %v936
        %v1048 = vpop.f32.mrf.mxu0
        %v1049 = vadd.f32 %v840, %v1048
        %1050 = vmatmul.f32.gmra.mxu0 %v939
        %v1051 = vpop.f32.mrf.mxu0
        %v1052 = vadd.f32 %v843, %v1051
        %1053 = vmatmul.f32.gmra.mxu0 %v942
        %v1054 = vpop.f32.mrf.mxu0
        %v1055 = vadd.f32 %v846, %v1054
        %1056 = vmatmul.f32.gmra.mxu0 %v945
        %v1057 = vpop.f32.mrf.mxu0
        %v1058 = vadd.f32 %v849, %v1057
        %1059 = vmatmul.f32.gmra.mxu0 %v948
        %v1060 = vpop.f32.mrf.mxu0
        %v1061 = vadd.f32 %v852, %v1060
        %1062 = vmatmul.f32.gmra.mxu0 %v951
        %v1063 = vpop.f32.mrf.mxu0
        %v1064 = vadd.f32 %v855, %v1063
        %1065 = vmatmul.f32.gmra.mxu0 %v954
        %v1066 = vpop.f32.mrf.mxu0
        %v1067 = vadd.f32 %v858, %v1066
        %1068 = vmatmul.f32.gmra.mxu0 %v957
        %v1069 = vpop.f32.mrf.mxu0
        %v1070 = vadd.f32 %v861, %v1069
        %1071 = vmatmul.f32.gmra.mxu0 %v960
        %v1072 = vpop.f32.mrf.mxu0
        %v1073 = vadd.f32 %v864, %v1072
        %1074 = vmatmul.f32.gmra.mxu0 %v963
        %v1075 = vpop.f32.mrf.mxu0
        %v1076 = vadd.f32 %v867, %v1075
        %1077 = vmatmul.f32.gmra.mxu0 %v966
        %v1078 = vpop.f32.mrf.mxu0
        %v1079 = vadd.f32 %v870, %v1078
        %1080 = vmatmul.f32.gmra.mxu0 %v969
        %v1081 = vpop.f32.mrf.mxu0
        %v1082 = vadd.f32 %v873, %v1081
        %1083 = vmatmul.f32.gmra.mxu0 %v972
        %v1084 = vpop.f32.mrf.mxu0
        %v1085 = vadd.f32 %v876, %v1084
        %1086 = vmatmul.f32.gmra.mxu0 %v975
        %v1087 = vpop.f32.mrf.mxu0
        %v1088 = vadd.f32 %v879, %v1087
        %1089 = vmatmul.f32.gmra.mxu0 %v978
        %v1090 = vpop.f32.mrf.mxu0
        %v1091 = vadd.f32 %v882, %v1090
        %1092 = vmatmul.f32.gmra.mxu0 %v981
        %v1093 = vpop.f32.mrf.mxu0
        %v1094 = vadd.f32 %v885, %v1093
        %1095 = vmatmul.f32.gmra.mxu0 %v984
        %v1096 = vpop.f32.mrf.mxu0
        %v1097 = vadd.f32 %v888, %v1096
        %1098 = vmatmul.f32.gmra.mxu0 %v987
        %v1099 = vpop.f32.mrf.mxu0
        %v1100 = vadd.f32 %v891, %v1099
        %1101 = vmatmul.f32.gmra.mxu0 %v990
        %v1102 = vpop.f32.mrf.mxu0
        %v1103 = vadd.f32 %v894, %v1102
        %1104 = vmatmul.f32.gmra.mxu0 %v993
        %v1105 = vpop.f32.mrf.mxu0
        %v1106 = vadd.f32 %v897, %v1105
        %1107 = vmatmul.f32.gmra.mxu0 %v996
        %v1108 = vpop.f32.mrf.mxu0
        %v1109 = vadd.f32 %v900, %v1108
        %1110 = vdwg.mxu0
        %v1111 = vld [vmem:[#allocation2 + $0x1] sm:$0xff]
        %v1112 = vld [vmem:[#allocation2 + $0x9] sm:$0xff]
        %v1113 = vld [vmem:[#allocation2 + $0x19] sm:$0xff]
        %v1114 = vld [vmem:[#allocation2 + $0x21] sm:$0xff]
        %v1115 = vld [vmem:[#allocation2 + $0x31] sm:$0xff]
        %v1116 = vld [vmem:[#allocation2 + $0x39] sm:$0xff]
        %v1117 = vld [vmem:[#allocation2 + $0x49] sm:$0xff]
        %v1118 = vld [vmem:[#allocation2 + $0x51] sm:$0xff]
        %v1119 = vld [vmem:[#allocation2 + $0x61] sm:$0xff]
        %v1120 = vld [vmem:[#allocation2 + $0x69] sm:$0xff]
        %v1121 = vld [vmem:[#allocation2 + $0x79] sm:$0xff]
        %v1122 = vld [vmem:[#allocation2 + $0x81] sm:$0xff]
        %v1123 = vld [vmem:[#allocation2 + $0x91] sm:$0xff]
        %v1124 = vld [vmem:[#allocation2 + $0x99] sm:$0xff]
        %v1125 = vld [vmem:[#allocation2 + $0xa9] sm:$0xff]
        %v1126 = vld [vmem:[#allocation2 + $0xb1] sm:$0xff]
        %v1127 = vld [vmem:[#allocation2 + $0xc1] sm:$0xff]
        %v1128 = vld [vmem:[#allocation2 + $0xc9] sm:$0xff]
        %v1129 = vld [vmem:[#allocation2 + $0xd9] sm:$0xff]
        %v1130 = vld [vmem:[#allocation2 + $0xe1] sm:$0xff]
        %v1131 = vld [vmem:[#allocation2 + $0xf1] sm:$0xff]
        %v1132 = vld [vmem:[#allocation2 + $0xf9] sm:$0xff]
        %v1133 = vld [vmem:[#allocation2 + $0x109] sm:$0xff]
        %v1134 = vld [vmem:[#allocation2 + $0x111] sm:$0xff]
        %v1135 = vld [vmem:[#allocation2 + $0x121] sm:$0xff]
        %v1136 = vld [vmem:[#allocation2 + $0x129] sm:$0xff]
        %v1137 = vld [vmem:[#allocation2 + $0x139] sm:$0xff]
        %v1138 = vld [vmem:[#allocation2 + $0x141] sm:$0xff]
        %v1139 = vld [vmem:[#allocation2 + $0x151] sm:$0xff]
        %v1140 = vld [vmem:[#allocation2 + $0x159] sm:$0xff]
        %v1141 = vld [vmem:[#allocation2 + $0x169] sm:$0xff]
        %v1142 = vld [vmem:[#allocation2 + $0x171] sm:$0xff]
        %s1143 = scalar_lea.vmem %s2, 32
        %v1144 = vld [vmem:[%s1143] sm:$0xff]
        %v1145 = vld [vmem:[%s1143 + $0x8] sm:$0xff]
        %v1146 = vld [vmem:[%s1143 + $0x10] sm:$0xff]
        %v1147 = vld [vmem:[%s1143 + $0x18] sm:$0xff]
        %v1149 = vsel %vm363, %v1111, 0
        %v1152 = vsel %vm363, %v1112, 0
        %v1155 = vsel %vm363, %v1113, 0
        %v1158 = vsel %vm363, %v1114, 0
        %v1161 = vsel %vm363, %v1115, 0
        %v1164 = vsel %vm363, %v1116, 0
        %v1167 = vsel %vm363, %v1117, 0
        %v1170 = vsel %vm363, %v1118, 0
        %v1173 = vsel %vm363, %v1119, 0
        %v1176 = vsel %vm363, %v1120, 0
        %v1179 = vsel %vm363, %v1121, 0
        %v1182 = vsel %vm363, %v1122, 0
        %v1185 = vsel %vm363, %v1123, 0
        %v1188 = vsel %vm363, %v1124, 0
        %v1191 = vsel %vm363, %v1125, 0
        %v1194 = vsel %vm363, %v1126, 0
        %v1197 = vsel %vm363, %v1127, 0
        %v1200 = vsel %vm363, %v1128, 0
        %v1203 = vsel %vm363, %v1129, 0
        %v1206 = vsel %vm363, %v1130, 0
        %v1209 = vsel %vm363, %v1131, 0
        %v1212 = vsel %vm363, %v1132, 0
        %v1215 = vsel %vm363, %v1133, 0
        %v1218 = vsel %vm363, %v1134, 0
        %v1221 = vsel %vm363, %v1135, 0
        %v1224 = vsel %vm363, %v1136, 0
        %v1227 = vsel %vm363, %v1137, 0
        %v1230 = vsel %vm363, %v1138, 0
        %v1233 = vsel %vm363, %v1139, 0
        %v1236 = vsel %vm363, %v1140, 0
        %v1239 = vsel %vm363, %v1141, 0
        %v1242 = vsel %vm363, %v1142, 0
        %1244 = vmatpush.msra.mxu0 0.0
        %1245 = vmatpush.msra.mxu0 0.0
        %1246 = vmatpush.msra.mxu0 0.0
        %1247 = vmatpush.msra.mxu0 0.0
        %1248 = vmatpush.msra.mxu0 0.0
        %1249 = vmatpush.msra.mxu0 0.0
        %1250 = vmatpush.msra.mxu0 0.0
        %1251 = vmatpush.msra.mxu0 0.0
        %1252 = vmatpush.msra.mxu0 0.0
        %1253 = vmatpush.msra.mxu0 0.0
        %1254 = vmatpush.msra.mxu0 0.0
        %1255 = vmatpush.msra.mxu0 0.0
        %1256 = vmatpush.msra.mxu0 %v1147
        %1257 = vmatpush.msra.mxu0 %v1146
        %1258 = vmatpush.msra.mxu0 %v1145
        %1259 = vmatpush.msra.mxu0 %v1144
        %1260 = vmatmul.f32.gmra.mxu0 %v1149
        %v1261 = vpop.f32.mrf.mxu0
        %v1262 = vadd.f32 0.0, %v1261
        %1263 = vmatmul.f32.gmra.mxu0 %v1152
        %v1264 = vpop.f32.mrf.mxu0
        %v1265 = vadd.f32 0.0, %v1264
        %1266 = vmatmul.f32.gmra.mxu0 %v1155
        %v1267 = vpop.f32.mrf.mxu0
        %v1268 = vadd.f32 0.0, %v1267
        %1269 = vmatmul.f32.gmra.mxu0 %v1158
        %v1270 = vpop.f32.mrf.mxu0
        %v1271 = vadd.f32 0.0, %v1270
        %1272 = vmatmul.f32.gmra.mxu0 %v1161
        %v1273 = vpop.f32.mrf.mxu0
        %v1274 = vadd.f32 0.0, %v1273
        %1275 = vmatmul.f32.gmra.mxu0 %v1164
        %v1276 = vpop.f32.mrf.mxu0
        %v1277 = vadd.f32 0.0, %v1276
        %1278 = vmatmul.f32.gmra.mxu0 %v1167
        %v1279 = vpop.f32.mrf.mxu0
        %v1280 = vadd.f32 0.0, %v1279
        %1281 = vmatmul.f32.gmra.mxu0 %v1170
        %v1282 = vpop.f32.mrf.mxu0
        %v1283 = vadd.f32 0.0, %v1282
        %1284 = vmatmul.f32.gmra.mxu0 %v1173
        %v1285 = vpop.f32.mrf.mxu0
        %v1286 = vadd.f32 0.0, %v1285
        %1287 = vmatmul.f32.gmra.mxu0 %v1176
        %v1288 = vpop.f32.mrf.mxu0
        %v1289 = vadd.f32 0.0, %v1288
        %1290 = vmatmul.f32.gmra.mxu0 %v1179
        %v1291 = vpop.f32.mrf.mxu0
        %v1292 = vadd.f32 0.0, %v1291
        %1293 = vmatmul.f32.gmra.mxu0 %v1182
        %v1294 = vpop.f32.mrf.mxu0
        %v1295 = vadd.f32 0.0, %v1294
        %1296 = vmatmul.f32.gmra.mxu0 %v1185
        %v1297 = vpop.f32.mrf.mxu0
        %v1298 = vadd.f32 0.0, %v1297
        %1299 = vmatmul.f32.gmra.mxu0 %v1188
        %v1300 = vpop.f32.mrf.mxu0
        %v1301 = vadd.f32 0.0, %v1300
        %1302 = vmatmul.f32.gmra.mxu0 %v1191
        %v1303 = vpop.f32.mrf.mxu0
        %v1304 = vadd.f32 0.0, %v1303
        %1305 = vmatmul.f32.gmra.mxu0 %v1194
        %v1306 = vpop.f32.mrf.mxu0
        %v1307 = vadd.f32 0.0, %v1306
        %1308 = vmatmul.f32.gmra.mxu0 %v1197
        %v1309 = vpop.f32.mrf.mxu0
        %v1310 = vadd.f32 0.0, %v1309
        %1311 = vmatmul.f32.gmra.mxu0 %v1200
        %v1312 = vpop.f32.mrf.mxu0
        %v1313 = vadd.f32 0.0, %v1312
        %1314 = vmatmul.f32.gmra.mxu0 %v1203
        %v1315 = vpop.f32.mrf.mxu0
        %v1316 = vadd.f32 0.0, %v1315
        %1317 = vmatmul.f32.gmra.mxu0 %v1206
        %v1318 = vpop.f32.mrf.mxu0
        %v1319 = vadd.f32 0.0, %v1318
        %1320 = vmatmul.f32.gmra.mxu0 %v1209
        %v1321 = vpop.f32.mrf.mxu0
        %v1322 = vadd.f32 0.0, %v1321
        %1323 = vmatmul.f32.gmra.mxu0 %v1212
        %v1324 = vpop.f32.mrf.mxu0
        %v1325 = vadd.f32 0.0, %v1324
        %1326 = vmatmul.f32.gmra.mxu0 %v1215
        %v1327 = vpop.f32.mrf.mxu0
        %v1328 = vadd.f32 0.0, %v1327
        %1329 = vmatmul.f32.gmra.mxu0 %v1218
        %v1330 = vpop.f32.mrf.mxu0
        %v1331 = vadd.f32 0.0, %v1330
        %1332 = vmatmul.f32.gmra.mxu0 %v1221
        %v1333 = vpop.f32.mrf.mxu0
        %v1334 = vadd.f32 0.0, %v1333
        %1335 = vmatmul.f32.gmra.mxu0 %v1224
        %v1336 = vpop.f32.mrf.mxu0
        %v1337 = vadd.f32 0.0, %v1336
        %1338 = vmatmul.f32.gmra.mxu0 %v1227
        %v1339 = vpop.f32.mrf.mxu0
        %v1340 = vadd.f32 0.0, %v1339
        %1341 = vmatmul.f32.gmra.mxu0 %v1230
        %v1342 = vpop.f32.mrf.mxu0
        %v1343 = vadd.f32 0.0, %v1342
        %1344 = vmatmul.f32.gmra.mxu0 %v1233
        %v1345 = vpop.f32.mrf.mxu0
        %v1346 = vadd.f32 0.0, %v1345
        %1347 = vmatmul.f32.gmra.mxu0 %v1236
        %v1348 = vpop.f32.mrf.mxu0
        %v1349 = vadd.f32 0.0, %v1348
        %1350 = vmatmul.f32.gmra.mxu0 %v1239
        %v1351 = vpop.f32.mrf.mxu0
        %v1352 = vadd.f32 0.0, %v1351
        %1353 = vmatmul.f32.gmra.mxu0 %v1242
        %v1354 = vpop.f32.mrf.mxu0
        %v1355 = vadd.f32 0.0, %v1354
        %1356 = vdwg.mxu0
        %v1357 = vadd.f32 %v1016, %v1262
        %v1358 = vadd.f32 %v1019, %v1265
        %v1359 = vadd.f32 %v1022, %v1268
        %v1360 = vadd.f32 %v1025, %v1271
        %v1361 = vadd.f32 %v1028, %v1274
        %v1362 = vadd.f32 %v1031, %v1277
        %v1363 = vadd.f32 %v1034, %v1280
        %v1364 = vadd.f32 %v1037, %v1283
        %v1365 = vadd.f32 %v1040, %v1286
        %v1366 = vadd.f32 %v1043, %v1289
        %v1367 = vadd.f32 %v1046, %v1292
        %v1368 = vadd.f32 %v1049, %v1295
        %v1369 = vadd.f32 %v1052, %v1298
        %v1370 = vadd.f32 %v1055, %v1301
        %v1371 = vadd.f32 %v1058, %v1304
        %v1372 = vadd.f32 %v1061, %v1307
        %v1373 = vadd.f32 %v1064, %v1310
        %v1374 = vadd.f32 %v1067, %v1313
        %v1375 = vadd.f32 %v1070, %v1316
        %v1376 = vadd.f32 %v1073, %v1319
        %v1377 = vadd.f32 %v1076, %v1322
        %v1378 = vadd.f32 %v1079, %v1325
        %v1379 = vadd.f32 %v1082, %v1328
        %v1380 = vadd.f32 %v1085, %v1331
        %v1381 = vadd.f32 %v1088, %v1334
        %v1382 = vadd.f32 %v1091, %v1337
        %v1383 = vadd.f32 %v1094, %v1340
        %v1384 = vadd.f32 %v1097, %v1343
        %v1385 = vadd.f32 %v1100, %v1346
        %v1386 = vadd.f32 %v1103, %v1349
        %v1387 = vadd.f32 %v1106, %v1352
        %v1388 = vadd.f32 %v1109, %v1355
        %v1389 = vld [vmem:[#allocation3 + $0x1] sm:$0xff]
        %v1390 = vld [vmem:[#allocation3 + $0x9] sm:$0xff]
        %v1391 = vld [vmem:[#allocation3 + $0x19] sm:$0xff]
        %v1392 = vld [vmem:[#allocation3 + $0x21] sm:$0xff]
        %v1393 = vld [vmem:[#allocation3 + $0x31] sm:$0xff]
        %v1394 = vld [vmem:[#allocation3 + $0x39] sm:$0xff]
        %v1395 = vld [vmem:[#allocation3 + $0x49] sm:$0xff]
        %v1396 = vld [vmem:[#allocation3 + $0x51] sm:$0xff]
        %v1397 = vld [vmem:[#allocation3 + $0x61] sm:$0xff]
        %v1398 = vld [vmem:[#allocation3 + $0x69] sm:$0xff]
        %v1399 = vld [vmem:[#allocation3 + $0x79] sm:$0xff]
        %v1400 = vld [vmem:[#allocation3 + $0x81] sm:$0xff]
        %v1401 = vld [vmem:[#allocation3 + $0x91] sm:$0xff]
        %v1402 = vld [vmem:[#allocation3 + $0x99] sm:$0xff]
        %v1403 = vld [vmem:[#allocation3 + $0xa9] sm:$0xff]
        %v1404 = vld [vmem:[#allocation3 + $0xb1] sm:$0xff]
        %v1405 = vld [vmem:[#allocation3 + $0xc1] sm:$0xff]
        %v1406 = vld [vmem:[#allocation3 + $0xc9] sm:$0xff]
        %v1407 = vld [vmem:[#allocation3 + $0xd9] sm:$0xff]
        %v1408 = vld [vmem:[#allocation3 + $0xe1] sm:$0xff]
        %v1409 = vld [vmem:[#allocation3 + $0xf1] sm:$0xff]
        %v1410 = vld [vmem:[#allocation3 + $0xf9] sm:$0xff]
        %v1411 = vld [vmem:[#allocation3 + $0x109] sm:$0xff]
        %v1412 = vld [vmem:[#allocation3 + $0x111] sm:$0xff]
        %v1413 = vld [vmem:[#allocation3 + $0x121] sm:$0xff]
        %v1414 = vld [vmem:[#allocation3 + $0x129] sm:$0xff]
        %v1415 = vld [vmem:[#allocation3 + $0x139] sm:$0xff]
        %v1416 = vld [vmem:[#allocation3 + $0x141] sm:$0xff]
        %v1417 = vld [vmem:[#allocation3 + $0x151] sm:$0xff]
        %v1418 = vld [vmem:[#allocation3 + $0x159] sm:$0xff]
        %v1419 = vld [vmem:[#allocation3 + $0x169] sm:$0xff]
        %v1420 = vld [vmem:[#allocation3 + $0x171] sm:$0xff]
        %s1421 = scalar_lea.vmem %s3, 64
        %v1422 = vld [vmem:[%s1421] sm:$0xff]
        %v1423 = vld [vmem:[%s1421 + $0x8] sm:$0xff]
        %v1424 = vld [vmem:[%s1421 + $0x10] sm:$0xff]
        %v1425 = vld [vmem:[%s1421 + $0x18] sm:$0xff]
        %v1426 = vld [vmem:[%s1421 + $0x20] sm:$0xff]
        %v1427 = vld [vmem:[%s1421 + $0x28] sm:$0xff]
        %v1428 = vld [vmem:[%s1421 + $0x30] sm:$0xff]
        %v1429 = vld [vmem:[%s1421 + $0x38] sm:$0xff]
        %v1431 = vsel %vm406, %v1389, 0
        %v1434 = vsel %vm406, %v1390, 0
        %v1437 = vsel %vm406, %v1391, 0
        %v1440 = vsel %vm406, %v1392, 0
        %v1443 = vsel %vm406, %v1393, 0
        %v1446 = vsel %vm406, %v1394, 0
        %v1449 = vsel %vm406, %v1395, 0
        %v1452 = vsel %vm406, %v1396, 0
        %v1455 = vsel %vm406, %v1397, 0
        %v1458 = vsel %vm406, %v1398, 0
        %v1461 = vsel %vm406, %v1399, 0
        %v1464 = vsel %vm406, %v1400, 0
        %v1467 = vsel %vm406, %v1401, 0
        %v1470 = vsel %vm406, %v1402, 0
        %v1473 = vsel %vm406, %v1403, 0
        %v1476 = vsel %vm406, %v1404, 0
        %v1479 = vsel %vm406, %v1405, 0
        %v1482 = vsel %vm406, %v1406, 0
        %v1485 = vsel %vm406, %v1407, 0
        %v1488 = vsel %vm406, %v1408, 0
        %v1491 = vsel %vm406, %v1409, 0
        %v1494 = vsel %vm406, %v1410, 0
        %v1497 = vsel %vm406, %v1411, 0
        %v1500 = vsel %vm406, %v1412, 0
        %v1503 = vsel %vm406, %v1413, 0
        %v1506 = vsel %vm406, %v1414, 0
        %v1509 = vsel %vm406, %v1415, 0
        %v1512 = vsel %vm406, %v1416, 0
        %v1515 = vsel %vm406, %v1417, 0
        %v1518 = vsel %vm406, %v1418, 0
        %v1521 = vsel %vm406, %v1419, 0
        %v1524 = vsel %vm406, %v1420, 0
        %1526 = vmatpush.msra.mxu0 0.0
        %1527 = vmatpush.msra.mxu0 0.0
        %1528 = vmatpush.msra.mxu0 0.0
        %1529 = vmatpush.msra.mxu0 0.0
        %1530 = vmatpush.msra.mxu0 0.0
        %1531 = vmatpush.msra.mxu0 0.0
        %1532 = vmatpush.msra.mxu0 0.0
        %1533 = vmatpush.msra.mxu0 0.0
        %1534 = vmatpush.msra.mxu0 %v1429
        %1535 = vmatpush.msra.mxu0 %v1428
        %1536 = vmatpush.msra.mxu0 %v1427
        %1537 = vmatpush.msra.mxu0 %v1426
        %1538 = vmatpush.msra.mxu0 %v1425
        %1539 = vmatpush.msra.mxu0 %v1424
        %1540 = vmatpush.msra.mxu0 %v1423
        %1541 = vmatpush.msra.mxu0 %v1422
        %1542 = vmatmul.f32.gmra.mxu0 %v1431
        %v1543 = vpop.f32.mrf.mxu0
        %v1544 = vadd.f32 0.0, %v1543
        %1545 = vmatmul.f32.gmra.mxu0 %v1434
        %v1546 = vpop.f32.mrf.mxu0
        %v1547 = vadd.f32 0.0, %v1546
        %1548 = vmatmul.f32.gmra.mxu0 %v1437
        %v1549 = vpop.f32.mrf.mxu0
        %v1550 = vadd.f32 0.0, %v1549
        %1551 = vmatmul.f32.gmra.mxu0 %v1440
        %v1552 = vpop.f32.mrf.mxu0
        %v1553 = vadd.f32 0.0, %v1552
        %1554 = vmatmul.f32.gmra.mxu0 %v1443
        %v1555 = vpop.f32.mrf.mxu0
        %v1556 = vadd.f32 0.0, %v1555
        %1557 = vmatmul.f32.gmra.mxu0 %v1446
        %v1558 = vpop.f32.mrf.mxu0
        %v1559 = vadd.f32 0.0, %v1558
        %1560 = vmatmul.f32.gmra.mxu0 %v1449
        %v1561 = vpop.f32.mrf.mxu0
        %v1562 = vadd.f32 0.0, %v1561
        %1563 = vmatmul.f32.gmra.mxu0 %v1452
        %v1564 = vpop.f32.mrf.mxu0
        %v1565 = vadd.f32 0.0, %v1564
        %1566 = vmatmul.f32.gmra.mxu0 %v1455
        %v1567 = vpop.f32.mrf.mxu0
        %v1568 = vadd.f32 0.0, %v1567
        %1569 = vmatmul.f32.gmra.mxu0 %v1458
        %v1570 = vpop.f32.mrf.mxu0
        %v1571 = vadd.f32 0.0, %v1570
        %1572 = vmatmul.f32.gmra.mxu0 %v1461
        %v1573 = vpop.f32.mrf.mxu0
        %v1574 = vadd.f32 0.0, %v1573
        %1575 = vmatmul.f32.gmra.mxu0 %v1464
        %v1576 = vpop.f32.mrf.mxu0
        %v1577 = vadd.f32 0.0, %v1576
        %1578 = vmatmul.f32.gmra.mxu0 %v1467
        %v1579 = vpop.f32.mrf.mxu0
        %v1580 = vadd.f32 0.0, %v1579
        %1581 = vmatmul.f32.gmra.mxu0 %v1470
        %v1582 = vpop.f32.mrf.mxu0
        %v1583 = vadd.f32 0.0, %v1582
        %1584 = vmatmul.f32.gmra.mxu0 %v1473
        %v1585 = vpop.f32.mrf.mxu0
        %v1586 = vadd.f32 0.0, %v1585
        %1587 = vmatmul.f32.gmra.mxu0 %v1476
        %v1588 = vpop.f32.mrf.mxu0
        %v1589 = vadd.f32 0.0, %v1588
        %1590 = vmatmul.f32.gmra.mxu0 %v1479
        %v1591 = vpop.f32.mrf.mxu0
        %v1592 = vadd.f32 0.0, %v1591
        %1593 = vmatmul.f32.gmra.mxu0 %v1482
        %v1594 = vpop.f32.mrf.mxu0
        %v1595 = vadd.f32 0.0, %v1594
        %1596 = vmatmul.f32.gmra.mxu0 %v1485
        %v1597 = vpop.f32.mrf.mxu0
        %v1598 = vadd.f32 0.0, %v1597
        %1599 = vmatmul.f32.gmra.mxu0 %v1488
        %v1600 = vpop.f32.mrf.mxu0
        %v1601 = vadd.f32 0.0, %v1600
        %1602 = vmatmul.f32.gmra.mxu0 %v1491
        %v1603 = vpop.f32.mrf.mxu0
        %v1604 = vadd.f32 0.0, %v1603
        %1605 = vmatmul.f32.gmra.mxu0 %v1494
        %v1606 = vpop.f32.mrf.mxu0
        %v1607 = vadd.f32 0.0, %v1606
        %1608 = vmatmul.f32.gmra.mxu0 %v1497
        %v1609 = vpop.f32.mrf.mxu0
        %v1610 = vadd.f32 0.0, %v1609
        %1611 = vmatmul.f32.gmra.mxu0 %v1500
        %v1612 = vpop.f32.mrf.mxu0
        %v1613 = vadd.f32 0.0, %v1612
        %1614 = vmatmul.f32.gmra.mxu0 %v1503
        %v1615 = vpop.f32.mrf.mxu0
        %v1616 = vadd.f32 0.0, %v1615
        %1617 = vmatmul.f32.gmra.mxu0 %v1506
        %v1618 = vpop.f32.mrf.mxu0
        %v1619 = vadd.f32 0.0, %v1618
        %1620 = vmatmul.f32.gmra.mxu0 %v1509
        %v1621 = vpop.f32.mrf.mxu0
        %v1622 = vadd.f32 0.0, %v1621
        %1623 = vmatmul.f32.gmra.mxu0 %v1512
        %v1624 = vpop.f32.mrf.mxu0
        %v1625 = vadd.f32 0.0, %v1624
        %1626 = vmatmul.f32.gmra.mxu0 %v1515
        %v1627 = vpop.f32.mrf.mxu0
        %v1628 = vadd.f32 0.0, %v1627
        %1629 = vmatmul.f32.gmra.mxu0 %v1518
        %v1630 = vpop.f32.mrf.mxu0
        %v1631 = vadd.f32 0.0, %v1630
        %1632 = vmatmul.f32.gmra.mxu0 %v1521
        %v1633 = vpop.f32.mrf.mxu0
        %v1634 = vadd.f32 0.0, %v1633
        %1635 = vmatmul.f32.gmra.mxu0 %v1524
        %v1636 = vpop.f32.mrf.mxu0
        %v1637 = vadd.f32 0.0, %v1636
        %1638 = vdwg.mxu0
        %v1639 = vadd.f32 %v1357, %v1544
        %v1640 = vadd.f32 %v1358, %v1547
        %v1641 = vadd.f32 %v1359, %v1550
        %v1642 = vadd.f32 %v1360, %v1553
        %v1643 = vadd.f32 %v1361, %v1556
        %v1644 = vadd.f32 %v1362, %v1559
        %v1645 = vadd.f32 %v1363, %v1562
        %v1646 = vadd.f32 %v1364, %v1565
        %v1647 = vadd.f32 %v1365, %v1568
        %v1648 = vadd.f32 %v1366, %v1571
        %v1649 = vadd.f32 %v1367, %v1574
        %v1650 = vadd.f32 %v1368, %v1577
        %v1651 = vadd.f32 %v1369, %v1580
        %v1652 = vadd.f32 %v1370, %v1583
        %v1653 = vadd.f32 %v1371, %v1586
        %v1654 = vadd.f32 %v1372, %v1589
        %v1655 = vadd.f32 %v1373, %v1592
        %v1656 = vadd.f32 %v1374, %v1595
        %v1657 = vadd.f32 %v1375, %v1598
        %v1658 = vadd.f32 %v1376, %v1601
        %v1659 = vadd.f32 %v1377, %v1604
        %v1660 = vadd.f32 %v1378, %v1607
        %v1661 = vadd.f32 %v1379, %v1610
        %v1662 = vadd.f32 %v1380, %v1613
        %v1663 = vadd.f32 %v1381, %v1616
        %v1664 = vadd.f32 %v1382, %v1619
        %v1665 = vadd.f32 %v1383, %v1622
        %v1666 = vadd.f32 %v1384, %v1625
        %v1667 = vadd.f32 %v1385, %v1628
        %v1668 = vadd.f32 %v1386, %v1631
        %v1669 = vadd.f32 %v1387, %v1634
        %v1670 = vadd.f32 %v1388, %v1637
        %v1671 = vld [vmem:[#allocation2 + $0x2] sm:$0xff]
        %v1672 = vld [vmem:[#allocation2 + $0xa] sm:$0xff]
        %v1673 = vld [vmem:[#allocation2 + $0x1a] sm:$0xff]
        %v1674 = vld [vmem:[#allocation2 + $0x22] sm:$0xff]
        %v1675 = vld [vmem:[#allocation2 + $0x32] sm:$0xff]
        %v1676 = vld [vmem:[#allocation2 + $0x3a] sm:$0xff]
        %v1677 = vld [vmem:[#allocation2 + $0x4a] sm:$0xff]
        %v1678 = vld [vmem:[#allocation2 + $0x52] sm:$0xff]
        %v1679 = vld [vmem:[#allocation2 + $0x62] sm:$0xff]
        %v1680 = vld [vmem:[#allocation2 + $0x6a] sm:$0xff]
        %v1681 = vld [vmem:[#allocation2 + $0x7a] sm:$0xff]
        %v1682 = vld [vmem:[#allocation2 + $0x82] sm:$0xff]
        %v1683 = vld [vmem:[#allocation2 + $0x92] sm:$0xff]
        %v1684 = vld [vmem:[#allocation2 + $0x9a] sm:$0xff]
        %v1685 = vld [vmem:[#allocation2 + $0xaa] sm:$0xff]
        %v1686 = vld [vmem:[#allocation2 + $0xb2] sm:$0xff]
        %v1687 = vld [vmem:[#allocation2 + $0xc2] sm:$0xff]
        %v1688 = vld [vmem:[#allocation2 + $0xca] sm:$0xff]
        %v1689 = vld [vmem:[#allocation2 + $0xda] sm:$0xff]
        %v1690 = vld [vmem:[#allocation2 + $0xe2] sm:$0xff]
        %v1691 = vld [vmem:[#allocation2 + $0xf2] sm:$0xff]
        %v1692 = vld [vmem:[#allocation2 + $0xfa] sm:$0xff]
        %v1693 = vld [vmem:[#allocation2 + $0x10a] sm:$0xff]
        %v1694 = vld [vmem:[#allocation2 + $0x112] sm:$0xff]
        %v1695 = vld [vmem:[#allocation2 + $0x122] sm:$0xff]
        %v1696 = vld [vmem:[#allocation2 + $0x12a] sm:$0xff]
        %v1697 = vld [vmem:[#allocation2 + $0x13a] sm:$0xff]
        %v1698 = vld [vmem:[#allocation2 + $0x142] sm:$0xff]
        %v1699 = vld [vmem:[#allocation2 + $0x152] sm:$0xff]
        %v1700 = vld [vmem:[#allocation2 + $0x15a] sm:$0xff]
        %v1701 = vld [vmem:[#allocation2 + $0x16a] sm:$0xff]
        %v1702 = vld [vmem:[#allocation2 + $0x172] sm:$0xff]
        %s1703 = scalar_lea.vmem %s2, 64
        %v1704 = vld [vmem:[%s1703] sm:$0xff]
        %v1705 = vld [vmem:[%s1703 + $0x8] sm:$0xff]
        %v1706 = vld [vmem:[%s1703 + $0x10] sm:$0xff]
        %v1707 = vld [vmem:[%s1703 + $0x18] sm:$0xff]
        %v1709 = vsel %vm363, %v1671, 0
        %v1712 = vsel %vm363, %v1672, 0
        %v1715 = vsel %vm363, %v1673, 0
        %v1718 = vsel %vm363, %v1674, 0
        %v1721 = vsel %vm363, %v1675, 0
        %v1724 = vsel %vm363, %v1676, 0
        %v1727 = vsel %vm363, %v1677, 0
        %v1730 = vsel %vm363, %v1678, 0
        %v1733 = vsel %vm363, %v1679, 0
        %v1736 = vsel %vm363, %v1680, 0
        %v1739 = vsel %vm363, %v1681, 0
        %v1742 = vsel %vm363, %v1682, 0
        %v1745 = vsel %vm363, %v1683, 0
        %v1748 = vsel %vm363, %v1684, 0
        %v1751 = vsel %vm363, %v1685, 0
        %v1754 = vsel %vm363, %v1686, 0
        %v1757 = vsel %vm363, %v1687, 0
        %v1760 = vsel %vm363, %v1688, 0
        %v1763 = vsel %vm363, %v1689, 0
        %v1766 = vsel %vm363, %v1690, 0
        %v1769 = vsel %vm363, %v1691, 0
        %v1772 = vsel %vm363, %v1692, 0
        %v1775 = vsel %vm363, %v1693, 0
        %v1778 = vsel %vm363, %v1694, 0
        %v1781 = vsel %vm363, %v1695, 0
        %v1784 = vsel %vm363, %v1696, 0
        %v1787 = vsel %vm363, %v1697, 0
        %v1790 = vsel %vm363, %v1698, 0
        %v1793 = vsel %vm363, %v1699, 0
        %v1796 = vsel %vm363, %v1700, 0
        %v1799 = vsel %vm363, %v1701, 0
        %v1802 = vsel %vm363, %v1702, 0
        %1804 = vmatpush.msra.mxu0 0.0
        %1805 = vmatpush.msra.mxu0 0.0
        %1806 = vmatpush.msra.mxu0 0.0
        %1807 = vmatpush.msra.mxu0 0.0
        %1808 = vmatpush.msra.mxu0 0.0
        %1809 = vmatpush.msra.mxu0 0.0
        %1810 = vmatpush.msra.mxu0 0.0
        %1811 = vmatpush.msra.mxu0 0.0
        %1812 = vmatpush.msra.mxu0 0.0
        %1813 = vmatpush.msra.mxu0 0.0
        %1814 = vmatpush.msra.mxu0 0.0
        %1815 = vmatpush.msra.mxu0 0.0
        %1816 = vmatpush.msra.mxu0 %v1707
        %1817 = vmatpush.msra.mxu0 %v1706
        %1818 = vmatpush.msra.mxu0 %v1705
        %1819 = vmatpush.msra.mxu0 %v1704
        %1820 = vmatmul.f32.gmra.mxu0 %v1709
        %v1821 = vpop.f32.mrf.mxu0
        %v1822 = vadd.f32 0.0, %v1821
        %1823 = vmatmul.f32.gmra.mxu0 %v1712
        %v1824 = vpop.f32.mrf.mxu0
        %v1825 = vadd.f32 0.0, %v1824
        %1826 = vmatmul.f32.gmra.mxu0 %v1715
        %v1827 = vpop.f32.mrf.mxu0
        %v1828 = vadd.f32 0.0, %v1827
        %1829 = vmatmul.f32.gmra.mxu0 %v1718
        %v1830 = vpop.f32.mrf.mxu0
        %v1831 = vadd.f32 0.0, %v1830
        %1832 = vmatmul.f32.gmra.mxu0 %v1721
        %v1833 = vpop.f32.mrf.mxu0
        %v1834 = vadd.f32 0.0, %v1833
        %1835 = vmatmul.f32.gmra.mxu0 %v1724
        %v1836 = vpop.f32.mrf.mxu0
        %v1837 = vadd.f32 0.0, %v1836
        %1838 = vmatmul.f32.gmra.mxu0 %v1727
        %v1839 = vpop.f32.mrf.mxu0
        %v1840 = vadd.f32 0.0, %v1839
        %1841 = vmatmul.f32.gmra.mxu0 %v1730
        %v1842 = vpop.f32.mrf.mxu0
        %v1843 = vadd.f32 0.0, %v1842
        %1844 = vmatmul.f32.gmra.mxu0 %v1733
        %v1845 = vpop.f32.mrf.mxu0
        %v1846 = vadd.f32 0.0, %v1845
        %1847 = vmatmul.f32.gmra.mxu0 %v1736
        %v1848 = vpop.f32.mrf.mxu0
        %v1849 = vadd.f32 0.0, %v1848
        %1850 = vmatmul.f32.gmra.mxu0 %v1739
        %v1851 = vpop.f32.mrf.mxu0
        %v1852 = vadd.f32 0.0, %v1851
        %1853 = vmatmul.f32.gmra.mxu0 %v1742
        %v1854 = vpop.f32.mrf.mxu0
        %v1855 = vadd.f32 0.0, %v1854
        %1856 = vmatmul.f32.gmra.mxu0 %v1745
        %v1857 = vpop.f32.mrf.mxu0
        %v1858 = vadd.f32 0.0, %v1857
        %1859 = vmatmul.f32.gmra.mxu0 %v1748
        %v1860 = vpop.f32.mrf.mxu0
        %v1861 = vadd.f32 0.0, %v1860
        %1862 = vmatmul.f32.gmra.mxu0 %v1751
        %v1863 = vpop.f32.mrf.mxu0
        %v1864 = vadd.f32 0.0, %v1863
        %1865 = vmatmul.f32.gmra.mxu0 %v1754
        %v1866 = vpop.f32.mrf.mxu0
        %v1867 = vadd.f32 0.0, %v1866
        %1868 = vmatmul.f32.gmra.mxu0 %v1757
        %v1869 = vpop.f32.mrf.mxu0
        %v1870 = vadd.f32 0.0, %v1869
        %1871 = vmatmul.f32.gmra.mxu0 %v1760
        %v1872 = vpop.f32.mrf.mxu0
        %v1873 = vadd.f32 0.0, %v1872
        %1874 = vmatmul.f32.gmra.mxu0 %v1763
        %v1875 = vpop.f32.mrf.mxu0
        %v1876 = vadd.f32 0.0, %v1875
        %1877 = vmatmul.f32.gmra.mxu0 %v1766
        %v1878 = vpop.f32.mrf.mxu0
        %v1879 = vadd.f32 0.0, %v1878
        %1880 = vmatmul.f32.gmra.mxu0 %v1769
        %v1881 = vpop.f32.mrf.mxu0
        %v1882 = vadd.f32 0.0, %v1881
        %1883 = vmatmul.f32.gmra.mxu0 %v1772
        %v1884 = vpop.f32.mrf.mxu0
        %v1885 = vadd.f32 0.0, %v1884
        %1886 = vmatmul.f32.gmra.mxu0 %v1775
        %v1887 = vpop.f32.mrf.mxu0
        %v1888 = vadd.f32 0.0, %v1887
        %1889 = vmatmul.f32.gmra.mxu0 %v1778
        %v1890 = vpop.f32.mrf.mxu0
        %v1891 = vadd.f32 0.0, %v1890
        %1892 = vmatmul.f32.gmra.mxu0 %v1781
        %v1893 = vpop.f32.mrf.mxu0
        %v1894 = vadd.f32 0.0, %v1893
        %1895 = vmatmul.f32.gmra.mxu0 %v1784
        %v1896 = vpop.f32.mrf.mxu0
        %v1897 = vadd.f32 0.0, %v1896
        %1898 = vmatmul.f32.gmra.mxu0 %v1787
        %v1899 = vpop.f32.mrf.mxu0
        %v1900 = vadd.f32 0.0, %v1899
        %1901 = vmatmul.f32.gmra.mxu0 %v1790
        %v1902 = vpop.f32.mrf.mxu0
        %v1903 = vadd.f32 0.0, %v1902
        %1904 = vmatmul.f32.gmra.mxu0 %v1793
        %v1905 = vpop.f32.mrf.mxu0
        %v1906 = vadd.f32 0.0, %v1905
        %1907 = vmatmul.f32.gmra.mxu0 %v1796
        %v1908 = vpop.f32.mrf.mxu0
        %v1909 = vadd.f32 0.0, %v1908
        %1910 = vmatmul.f32.gmra.mxu0 %v1799
        %v1911 = vpop.f32.mrf.mxu0
        %v1912 = vadd.f32 0.0, %v1911
        %1913 = vmatmul.f32.gmra.mxu0 %v1802
        %v1914 = vpop.f32.mrf.mxu0
        %v1915 = vadd.f32 0.0, %v1914
        %1916 = vdwg.mxu0
        %v1917 = vadd.f32 %v1639, %v1822
        %v1918 = vadd.f32 %v1640, %v1825
        %v1919 = vadd.f32 %v1641, %v1828
        %v1920 = vadd.f32 %v1642, %v1831
        %v1921 = vadd.f32 %v1643, %v1834
        %v1922 = vadd.f32 %v1644, %v1837
        %v1923 = vadd.f32 %v1645, %v1840
        %v1924 = vadd.f32 %v1646, %v1843
        %v1925 = vadd.f32 %v1647, %v1846
        %v1926 = vadd.f32 %v1648, %v1849
        %v1927 = vadd.f32 %v1649, %v1852
        %v1928 = vadd.f32 %v1650, %v1855
        %v1929 = vadd.f32 %v1651, %v1858
        %v1930 = vadd.f32 %v1652, %v1861
        %v1931 = vadd.f32 %v1653, %v1864
        %v1932 = vadd.f32 %v1654, %v1867
        %v1933 = vadd.f32 %v1655, %v1870
        %v1934 = vadd.f32 %v1656, %v1873
        %v1935 = vadd.f32 %v1657, %v1876
        %v1936 = vadd.f32 %v1658, %v1879
        %v1937 = vadd.f32 %v1659, %v1882
        %v1938 = vadd.f32 %v1660, %v1885
        %v1939 = vadd.f32 %v1661, %v1888
        %v1940 = vadd.f32 %v1662, %v1891
        %v1941 = vadd.f32 %v1663, %v1894
        %v1942 = vadd.f32 %v1664, %v1897
        %v1943 = vadd.f32 %v1665, %v1900
        %v1944 = vadd.f32 %v1666, %v1903
        %v1945 = vadd.f32 %v1667, %v1906
        %v1946 = vadd.f32 %v1668, %v1909
        %v1947 = vadd.f32 %v1669, %v1912
        %v1948 = vadd.f32 %v1670, %v1915
        %v1949 = vld [vmem:[#allocation3 + $0x2] sm:$0xff]
        %v1950 = vld [vmem:[#allocation3 + $0xa] sm:$0xff]
        %v1951 = vld [vmem:[#allocation3 + $0x1a] sm:$0xff]
        %v1952 = vld [vmem:[#allocation3 + $0x22] sm:$0xff]
        %v1953 = vld [vmem:[#allocation3 + $0x32] sm:$0xff]
        %v1954 = vld [vmem:[#allocation3 + $0x3a] sm:$0xff]
        %v1955 = vld [vmem:[#allocation3 + $0x4a] sm:$0xff]
        %v1956 = vld [vmem:[#allocation3 + $0x52] sm:$0xff]
        %v1957 = vld [vmem:[#allocation3 + $0x62] sm:$0xff]
        %v1958 = vld [vmem:[#allocation3 + $0x6a] sm:$0xff]
        %v1959 = vld [vmem:[#allocation3 + $0x7a] sm:$0xff]
        %v1960 = vld [vmem:[#allocation3 + $0x82] sm:$0xff]
        %v1961 = vld [vmem:[#allocation3 + $0x92] sm:$0xff]
        %v1962 = vld [vmem:[#allocation3 + $0x9a] sm:$0xff]
        %v1963 = vld [vmem:[#allocation3 + $0xaa] sm:$0xff]
        %v1964 = vld [vmem:[#allocation3 + $0xb2] sm:$0xff]
        %v1965 = vld [vmem:[#allocation3 + $0xc2] sm:$0xff]
        %v1966 = vld [vmem:[#allocation3 + $0xca] sm:$0xff]
        %v1967 = vld [vmem:[#allocation3 + $0xda] sm:$0xff]
        %v1968 = vld [vmem:[#allocation3 + $0xe2] sm:$0xff]
        %v1969 = vld [vmem:[#allocation3 + $0xf2] sm:$0xff]
        %v1970 = vld [vmem:[#allocation3 + $0xfa] sm:$0xff]
        %v1971 = vld [vmem:[#allocation3 + $0x10a] sm:$0xff]
        %v1972 = vld [vmem:[#allocation3 + $0x112] sm:$0xff]
        %v1973 = vld [vmem:[#allocation3 + $0x122] sm:$0xff]
        %v1974 = vld [vmem:[#allocation3 + $0x12a] sm:$0xff]
        %v1975 = vld [vmem:[#allocation3 + $0x13a] sm:$0xff]
        %v1976 = vld [vmem:[#allocation3 + $0x142] sm:$0xff]
        %v1977 = vld [vmem:[#allocation3 + $0x152] sm:$0xff]
        %v1978 = vld [vmem:[#allocation3 + $0x15a] sm:$0xff]
        %v1979 = vld [vmem:[#allocation3 + $0x16a] sm:$0xff]
        %v1980 = vld [vmem:[#allocation3 + $0x172] sm:$0xff]
        %s1981 = scalar_lea.vmem %s3, 128
        %v1982 = vld [vmem:[%s1981] sm:$0xff]
        %v1983 = vld [vmem:[%s1981 + $0x8] sm:$0xff]
        %v1984 = vld [vmem:[%s1981 + $0x10] sm:$0xff]
        %v1985 = vld [vmem:[%s1981 + $0x18] sm:$0xff]
        %v1986 = vld [vmem:[%s1981 + $0x20] sm:$0xff]
        %v1987 = vld [vmem:[%s1981 + $0x28] sm:$0xff]
        %v1988 = vld [vmem:[%s1981 + $0x30] sm:$0xff]
        %v1989 = vld [vmem:[%s1981 + $0x38] sm:$0xff]
        %v1991 = vsel %vm406, %v1949, 0
        %v1994 = vsel %vm406, %v1950, 0
        %v1997 = vsel %vm406, %v1951, 0
        %v2000 = vsel %vm406, %v1952, 0
        %v2003 = vsel %vm406, %v1953, 0
        %v2006 = vsel %vm406, %v1954, 0
        %v2009 = vsel %vm406, %v1955, 0
        %v2012 = vsel %vm406, %v1956, 0
        %v2015 = vsel %vm406, %v1957, 0
        %v2018 = vsel %vm406, %v1958, 0
        %v2021 = vsel %vm406, %v1959, 0
        %v2024 = vsel %vm406, %v1960, 0
        %v2027 = vsel %vm406, %v1961, 0
        %v2030 = vsel %vm406, %v1962, 0
        %v2033 = vsel %vm406, %v1963, 0
        %v2036 = vsel %vm406, %v1964, 0
        %v2039 = vsel %vm406, %v1965, 0
        %v2042 = vsel %vm406, %v1966, 0
        %v2045 = vsel %vm406, %v1967, 0
        %v2048 = vsel %vm406, %v1968, 0
        %v2051 = vsel %vm406, %v1969, 0
        %v2054 = vsel %vm406, %v1970, 0
        %v2057 = vsel %vm406, %v1971, 0
        %v2060 = vsel %vm406, %v1972, 0
        %v2063 = vsel %vm406, %v1973, 0
        %v2066 = vsel %vm406, %v1974, 0
        %v2069 = vsel %vm406, %v1975, 0
        %v2072 = vsel %vm406, %v1976, 0
        %v2075 = vsel %vm406, %v1977, 0
        %v2078 = vsel %vm406, %v1978, 0
        %v2081 = vsel %vm406, %v1979, 0
        %v2084 = vsel %vm406, %v1980, 0
        %2086 = vmatpush.msra.mxu0 0.0
        %2087 = vmatpush.msra.mxu0 0.0
        %2088 = vmatpush.msra.mxu0 0.0
        %2089 = vmatpush.msra.mxu0 0.0
        %2090 = vmatpush.msra.mxu0 0.0
        %2091 = vmatpush.msra.mxu0 0.0
        %2092 = vmatpush.msra.mxu0 0.0
        %2093 = vmatpush.msra.mxu0 0.0
        %2094 = vmatpush.msra.mxu0 %v1989
        %2095 = vmatpush.msra.mxu0 %v1988
        %2096 = vmatpush.msra.mxu0 %v1987
        %2097 = vmatpush.msra.mxu0 %v1986
        %2098 = vmatpush.msra.mxu0 %v1985
        %2099 = vmatpush.msra.mxu0 %v1984
        %2100 = vmatpush.msra.mxu0 %v1983
        %2101 = vmatpush.msra.mxu0 %v1982
        %2102 = vmatmul.f32.gmra.mxu0 %v1991
        %v2103 = vpop.f32.mrf.mxu0
        %v2104 = vadd.f32 0.0, %v2103
        %2105 = vmatmul.f32.gmra.mxu0 %v1994
        %v2106 = vpop.f32.mrf.mxu0
        %v2107 = vadd.f32 0.0, %v2106
        %2108 = vmatmul.f32.gmra.mxu0 %v1997
        %v2109 = vpop.f32.mrf.mxu0
        %v2110 = vadd.f32 0.0, %v2109
        %2111 = vmatmul.f32.gmra.mxu0 %v2000
        %v2112 = vpop.f32.mrf.mxu0
        %v2113 = vadd.f32 0.0, %v2112
        %2114 = vmatmul.f32.gmra.mxu0 %v2003
        %v2115 = vpop.f32.mrf.mxu0
        %v2116 = vadd.f32 0.0, %v2115
        %2117 = vmatmul.f32.gmra.mxu0 %v2006
        %v2118 = vpop.f32.mrf.mxu0
        %v2119 = vadd.f32 0.0, %v2118
        %2120 = vmatmul.f32.gmra.mxu0 %v2009
        %v2121 = vpop.f32.mrf.mxu0
        %v2122 = vadd.f32 0.0, %v2121
        %2123 = vmatmul.f32.gmra.mxu0 %v2012
        %v2124 = vpop.f32.mrf.mxu0
        %v2125 = vadd.f32 0.0, %v2124
        %2126 = vmatmul.f32.gmra.mxu0 %v2015
        %v2127 = vpop.f32.mrf.mxu0
        %v2128 = vadd.f32 0.0, %v2127
        %2129 = vmatmul.f32.gmra.mxu0 %v2018
        %v2130 = vpop.f32.mrf.mxu0
        %v2131 = vadd.f32 0.0, %v2130
        %2132 = vmatmul.f32.gmra.mxu0 %v2021
        %v2133 = vpop.f32.mrf.mxu0
        %v2134 = vadd.f32 0.0, %v2133
        %2135 = vmatmul.f32.gmra.mxu0 %v2024
        %v2136 = vpop.f32.mrf.mxu0
        %v2137 = vadd.f32 0.0, %v2136
        %2138 = vmatmul.f32.gmra.mxu0 %v2027
        %v2139 = vpop.f32.mrf.mxu0
        %v2140 = vadd.f32 0.0, %v2139
        %2141 = vmatmul.f32.gmra.mxu0 %v2030
        %v2142 = vpop.f32.mrf.mxu0
        %v2143 = vadd.f32 0.0, %v2142
        %2144 = vmatmul.f32.gmra.mxu0 %v2033
        %v2145 = vpop.f32.mrf.mxu0
        %v2146 = vadd.f32 0.0, %v2145
        %2147 = vmatmul.f32.gmra.mxu0 %v2036
        %v2148 = vpop.f32.mrf.mxu0
        %v2149 = vadd.f32 0.0, %v2148
        %2150 = vmatmul.f32.gmra.mxu0 %v2039
        %v2151 = vpop.f32.mrf.mxu0
        %v2152 = vadd.f32 0.0, %v2151
        %2153 = vmatmul.f32.gmra.mxu0 %v2042
        %v2154 = vpop.f32.mrf.mxu0
        %v2155 = vadd.f32 0.0, %v2154
        %2156 = vmatmul.f32.gmra.mxu0 %v2045
        %v2157 = vpop.f32.mrf.mxu0
        %v2158 = vadd.f32 0.0, %v2157
        %2159 = vmatmul.f32.gmra.mxu0 %v2048
        %v2160 = vpop.f32.mrf.mxu0
        %v2161 = vadd.f32 0.0, %v2160
        %2162 = vmatmul.f32.gmra.mxu0 %v2051
        %v2163 = vpop.f32.mrf.mxu0
        %v2164 = vadd.f32 0.0, %v2163
        %2165 = vmatmul.f32.gmra.mxu0 %v2054
        %v2166 = vpop.f32.mrf.mxu0
        %v2167 = vadd.f32 0.0, %v2166
        %2168 = vmatmul.f32.gmra.mxu0 %v2057
        %v2169 = vpop.f32.mrf.mxu0
        %v2170 = vadd.f32 0.0, %v2169
        %2171 = vmatmul.f32.gmra.mxu0 %v2060
        %v2172 = vpop.f32.mrf.mxu0
        %v2173 = vadd.f32 0.0, %v2172
        %2174 = vmatmul.f32.gmra.mxu0 %v2063
        %v2175 = vpop.f32.mrf.mxu0
        %v2176 = vadd.f32 0.0, %v2175
        %2177 = vmatmul.f32.gmra.mxu0 %v2066
        %v2178 = vpop.f32.mrf.mxu0
        %v2179 = vadd.f32 0.0, %v2178
        %2180 = vmatmul.f32.gmra.mxu0 %v2069
        %v2181 = vpop.f32.mrf.mxu0
        %v2182 = vadd.f32 0.0, %v2181
        %2183 = vmatmul.f32.gmra.mxu0 %v2072
        %v2184 = vpop.f32.mrf.mxu0
        %v2185 = vadd.f32 0.0, %v2184
        %2186 = vmatmul.f32.gmra.mxu0 %v2075
        %v2187 = vpop.f32.mrf.mxu0
        %v2188 = vadd.f32 0.0, %v2187
        %2189 = vmatmul.f32.gmra.mxu0 %v2078
        %v2190 = vpop.f32.mrf.mxu0
        %v2191 = vadd.f32 0.0, %v2190
        %2192 = vmatmul.f32.gmra.mxu0 %v2081
        %v2193 = vpop.f32.mrf.mxu0
        %v2194 = vadd.f32 0.0, %v2193
        %2195 = vmatmul.f32.gmra.mxu0 %v2084
        %v2196 = vpop.f32.mrf.mxu0
        %v2197 = vadd.f32 0.0, %v2196
        %2198 = vdwg.mxu0
        %v2199 = vadd.f32 %v1917, %v2104
        %v2200 = vadd.f32 %v1918, %v2107
        %v2201 = vadd.f32 %v1919, %v2110
        %v2202 = vadd.f32 %v1920, %v2113
        %v2203 = vadd.f32 %v1921, %v2116
        %v2204 = vadd.f32 %v1922, %v2119
        %v2205 = vadd.f32 %v1923, %v2122
        %v2206 = vadd.f32 %v1924, %v2125
        %v2207 = vadd.f32 %v1925, %v2128
        %v2208 = vadd.f32 %v1926, %v2131
        %v2209 = vadd.f32 %v1927, %v2134
        %v2210 = vadd.f32 %v1928, %v2137
        %v2211 = vadd.f32 %v1929, %v2140
        %v2212 = vadd.f32 %v1930, %v2143
        %v2213 = vadd.f32 %v1931, %v2146
        %v2214 = vadd.f32 %v1932, %v2149
        %v2215 = vadd.f32 %v1933, %v2152
        %v2216 = vadd.f32 %v1934, %v2155
        %v2217 = vadd.f32 %v1935, %v2158
        %v2218 = vadd.f32 %v1936, %v2161
        %v2219 = vadd.f32 %v1937, %v2164
        %v2220 = vadd.f32 %v1938, %v2167
        %v2221 = vadd.f32 %v1939, %v2170
        %v2222 = vadd.f32 %v1940, %v2173
        %v2223 = vadd.f32 %v1941, %v2176
        %v2224 = vadd.f32 %v1942, %v2179
        %v2225 = vadd.f32 %v1943, %v2182
        %v2226 = vadd.f32 %v1944, %v2185
        %v2227 = vadd.f32 %v1945, %v2188
        %v2228 = vadd.f32 %v1946, %v2191
        %v2229 = vadd.f32 %v1947, %v2194
        %v2230 = vadd.f32 %v1948, %v2197
        %v2231 = vld [vmem:[%s372] sm:$0xff]
        %v2232 = vld [vmem:[%s372 + $0x8] sm:$0xff]
        %v2233 = vld [vmem:[%s372 + $0x18] sm:$0xff]
        %v2234 = vld [vmem:[%s372 + $0x20] sm:$0xff]
        %v2235 = vld [vmem:[%s372 + $0x30] sm:$0xff]
        %v2236 = vld [vmem:[%s372 + $0x38] sm:$0xff]
        %v2237 = vld [vmem:[%s372 + $0x48] sm:$0xff]
        %v2238 = vld [vmem:[%s372 + $0x50] sm:$0xff]
        %v2239 = vld [vmem:[%s372 + $0x60] sm:$0xff]
        %v2240 = vld [vmem:[%s372 + $0x68] sm:$0xff]
        %v2241 = vld [vmem:[%s372 + $0x78] sm:$0xff]
        %v2242 = vld [vmem:[%s372 + $0x80] sm:$0xff]
        %v2243 = vld [vmem:[%s372 + $0x90] sm:$0xff]
        %v2244 = vld [vmem:[%s372 + $0x98] sm:$0xff]
        %v2245 = vld [vmem:[%s372 + $0xa8] sm:$0xff]
        %v2246 = vld [vmem:[%s372 + $0xb0] sm:$0xff]
        %v2247 = vld [vmem:[%s372 + $0xc0] sm:$0xff]
        %v2248 = vld [vmem:[%s372 + $0xc8] sm:$0xff]
        %v2249 = vld [vmem:[%s372 + $0xd8] sm:$0xff]
        %v2250 = vld [vmem:[%s372 + $0xe0] sm:$0xff]
        %v2251 = vld [vmem:[%s372 + $0xf0] sm:$0xff]
        %v2252 = vld [vmem:[%s372 + $0xf8] sm:$0xff]
        %v2253 = vld [vmem:[%s372 + $0x108] sm:$0xff]
        %v2254 = vld [vmem:[%s372 + $0x110] sm:$0xff]
        %v2255 = vld [vmem:[%s372 + $0x120] sm:$0xff]
        %v2256 = vld [vmem:[%s372 + $0x128] sm:$0xff]
        %v2257 = vld [vmem:[%s372 + $0x138] sm:$0xff]
        %v2258 = vld [vmem:[%s372 + $0x140] sm:$0xff]
        %v2259 = vld [vmem:[%s372 + $0x150] sm:$0xff]
        %v2260 = vld [vmem:[%s372 + $0x158] sm:$0xff]
        %v2261 = vld [vmem:[%s372 + $0x168] sm:$0xff]
        %v2262 = vld [vmem:[%s372 + $0x170] sm:$0xff]
        %s2263 = scalar_lea.vmem %s2, 96
        %v2264 = vld [vmem:[%s2263] sm:$0xff]
        %v2265 = vld [vmem:[%s2263 + $0x8] sm:$0xff]
        %v2266 = vld [vmem:[%s2263 + $0x10] sm:$0xff]
        %v2267 = vld [vmem:[%s2263 + $0x18] sm:$0xff]
        %v2269 = vsel %vm363, %v2231, 0
        %v2272 = vsel %vm363, %v2232, 0
        %v2275 = vsel %vm363, %v2233, 0
        %v2278 = vsel %vm363, %v2234, 0
        %v2281 = vsel %vm363, %v2235, 0
        %v2284 = vsel %vm363, %v2236, 0
        %v2287 = vsel %vm363, %v2237, 0
        %v2290 = vsel %vm363, %v2238, 0
        %v2293 = vsel %vm363, %v2239, 0
        %v2296 = vsel %vm363, %v2240, 0
        %v2299 = vsel %vm363, %v2241, 0
        %v2302 = vsel %vm363, %v2242, 0
        %v2305 = vsel %vm363, %v2243, 0
        %v2308 = vsel %vm363, %v2244, 0
        %v2311 = vsel %vm363, %v2245, 0
        %v2314 = vsel %vm363, %v2246, 0
        %v2317 = vsel %vm363, %v2247, 0
        %v2320 = vsel %vm363, %v2248, 0
        %v2323 = vsel %vm363, %v2249, 0
        %v2326 = vsel %vm363, %v2250, 0
        %v2329 = vsel %vm363, %v2251, 0
        %v2332 = vsel %vm363, %v2252, 0
        %v2335 = vsel %vm363, %v2253, 0
        %v2338 = vsel %vm363, %v2254, 0
        %v2341 = vsel %vm363, %v2255, 0
        %v2344 = vsel %vm363, %v2256, 0
        %v2347 = vsel %vm363, %v2257, 0
        %v2350 = vsel %vm363, %v2258, 0
        %v2353 = vsel %vm363, %v2259, 0
        %v2356 = vsel %vm363, %v2260, 0
        %v2359 = vsel %vm363, %v2261, 0
        %v2362 = vsel %vm363, %v2262, 0
        %2364 = vmatpush.msra.mxu0 0.0
        %2365 = vmatpush.msra.mxu0 0.0
        %2366 = vmatpush.msra.mxu0 0.0
        %2367 = vmatpush.msra.mxu0 0.0
        %2368 = vmatpush.msra.mxu0 0.0
        %2369 = vmatpush.msra.mxu0 0.0
        %2370 = vmatpush.msra.mxu0 0.0
        %2371 = vmatpush.msra.mxu0 0.0
        %2372 = vmatpush.msra.mxu0 0.0
        %2373 = vmatpush.msra.mxu0 0.0
        %2374 = vmatpush.msra.mxu0 0.0
        %2375 = vmatpush.msra.mxu0 0.0
        %2376 = vmatpush.msra.mxu0 %v2267
        %2377 = vmatpush.msra.mxu0 %v2266
        %2378 = vmatpush.msra.mxu0 %v2265
        %2379 = vmatpush.msra.mxu0 %v2264
        %2380 = vmatmul.f32.gmra.mxu0 %v2269
        %v2381 = vpop.f32.mrf.mxu0
        %v2382 = vadd.f32 0.0, %v2381
        %2383 = vmatmul.f32.gmra.mxu0 %v2272
        %v2384 = vpop.f32.mrf.mxu0
        %v2385 = vadd.f32 0.0, %v2384
        %2386 = vmatmul.f32.gmra.mxu0 %v2275
        %v2387 = vpop.f32.mrf.mxu0
        %v2388 = vadd.f32 0.0, %v2387
        %2389 = vmatmul.f32.gmra.mxu0 %v2278
        %v2390 = vpop.f32.mrf.mxu0
        %v2391 = vadd.f32 0.0, %v2390
        %2392 = vmatmul.f32.gmra.mxu0 %v2281
        %v2393 = vpop.f32.mrf.mxu0
        %v2394 = vadd.f32 0.0, %v2393
        %2395 = vmatmul.f32.gmra.mxu0 %v2284
        %v2396 = vpop.f32.mrf.mxu0
        %v2397 = vadd.f32 0.0, %v2396
        %2398 = vmatmul.f32.gmra.mxu0 %v2287
        %v2399 = vpop.f32.mrf.mxu0
        %v2400 = vadd.f32 0.0, %v2399
        %2401 = vmatmul.f32.gmra.mxu0 %v2290
        %v2402 = vpop.f32.mrf.mxu0
        %v2403 = vadd.f32 0.0, %v2402
        %2404 = vmatmul.f32.gmra.mxu0 %v2293
        %v2405 = vpop.f32.mrf.mxu0
        %v2406 = vadd.f32 0.0, %v2405
        %2407 = vmatmul.f32.gmra.mxu0 %v2296
        %v2408 = vpop.f32.mrf.mxu0
        %v2409 = vadd.f32 0.0, %v2408
        %2410 = vmatmul.f32.gmra.mxu0 %v2299
        %v2411 = vpop.f32.mrf.mxu0
        %v2412 = vadd.f32 0.0, %v2411
        %2413 = vmatmul.f32.gmra.mxu0 %v2302
        %v2414 = vpop.f32.mrf.mxu0
        %v2415 = vadd.f32 0.0, %v2414
        %2416 = vmatmul.f32.gmra.mxu0 %v2305
        %v2417 = vpop.f32.mrf.mxu0
        %v2418 = vadd.f32 0.0, %v2417
        %2419 = vmatmul.f32.gmra.mxu0 %v2308
        %v2420 = vpop.f32.mrf.mxu0
        %v2421 = vadd.f32 0.0, %v2420
        %2422 = vmatmul.f32.gmra.mxu0 %v2311
        %v2423 = vpop.f32.mrf.mxu0
        %v2424 = vadd.f32 0.0, %v2423
        %2425 = vmatmul.f32.gmra.mxu0 %v2314
        %v2426 = vpop.f32.mrf.mxu0
        %v2427 = vadd.f32 0.0, %v2426
        %2428 = vmatmul.f32.gmra.mxu0 %v2317
        %v2429 = vpop.f32.mrf.mxu0
        %v2430 = vadd.f32 0.0, %v2429
        %2431 = vmatmul.f32.gmra.mxu0 %v2320
        %v2432 = vpop.f32.mrf.mxu0
        %v2433 = vadd.f32 0.0, %v2432
        %2434 = vmatmul.f32.gmra.mxu0 %v2323
        %v2435 = vpop.f32.mrf.mxu0
        %v2436 = vadd.f32 0.0, %v2435
        %2437 = vmatmul.f32.gmra.mxu0 %v2326
        %v2438 = vpop.f32.mrf.mxu0
        %v2439 = vadd.f32 0.0, %v2438
        %2440 = vmatmul.f32.gmra.mxu0 %v2329
        %v2441 = vpop.f32.mrf.mxu0
        %v2442 = vadd.f32 0.0, %v2441
        %2443 = vmatmul.f32.gmra.mxu0 %v2332
        %v2444 = vpop.f32.mrf.mxu0
        %v2445 = vadd.f32 0.0, %v2444
        %2446 = vmatmul.f32.gmra.mxu0 %v2335
        %v2447 = vpop.f32.mrf.mxu0
        %v2448 = vadd.f32 0.0, %v2447
        %2449 = vmatmul.f32.gmra.mxu0 %v2338
        %v2450 = vpop.f32.mrf.mxu0
        %v2451 = vadd.f32 0.0, %v2450
        %2452 = vmatmul.f32.gmra.mxu0 %v2341
        %v2453 = vpop.f32.mrf.mxu0
        %v2454 = vadd.f32 0.0, %v2453
        %2455 = vmatmul.f32.gmra.mxu0 %v2344
        %v2456 = vpop.f32.mrf.mxu0
        %v2457 = vadd.f32 0.0, %v2456
        %2458 = vmatmul.f32.gmra.mxu0 %v2347
        %v2459 = vpop.f32.mrf.mxu0
        %v2460 = vadd.f32 0.0, %v2459
        %2461 = vmatmul.f32.gmra.mxu0 %v2350
        %v2462 = vpop.f32.mrf.mxu0
        %v2463 = vadd.f32 0.0, %v2462
        %2464 = vmatmul.f32.gmra.mxu0 %v2353
        %v2465 = vpop.f32.mrf.mxu0
        %v2466 = vadd.f32 0.0, %v2465
        %2467 = vmatmul.f32.gmra.mxu0 %v2356
        %v2468 = vpop.f32.mrf.mxu0
        %v2469 = vadd.f32 0.0, %v2468
        %2470 = vmatmul.f32.gmra.mxu0 %v2359
        %v2471 = vpop.f32.mrf.mxu0
        %v2472 = vadd.f32 0.0, %v2471
        %2473 = vmatmul.f32.gmra.mxu0 %v2362
        %v2474 = vpop.f32.mrf.mxu0
        %v2475 = vadd.f32 0.0, %v2474
        %2476 = vdwg.mxu0
        %v2477 = vadd.f32 %v2199, %v2382
        %v2478 = vadd.f32 %v2200, %v2385
        %v2479 = vadd.f32 %v2201, %v2388
        %v2480 = vadd.f32 %v2202, %v2391
        %v2481 = vadd.f32 %v2203, %v2394
        %v2482 = vadd.f32 %v2204, %v2397
        %v2483 = vadd.f32 %v2205, %v2400
        %v2484 = vadd.f32 %v2206, %v2403
        %v2485 = vadd.f32 %v2207, %v2406
        %v2486 = vadd.f32 %v2208, %v2409
        %v2487 = vadd.f32 %v2209, %v2412
        %v2488 = vadd.f32 %v2210, %v2415
        %v2489 = vadd.f32 %v2211, %v2418
        %v2490 = vadd.f32 %v2212, %v2421
        %v2491 = vadd.f32 %v2213, %v2424
        %v2492 = vadd.f32 %v2214, %v2427
        %v2493 = vadd.f32 %v2215, %v2430
        %v2494 = vadd.f32 %v2216, %v2433
        %v2495 = vadd.f32 %v2217, %v2436
        %v2496 = vadd.f32 %v2218, %v2439
        %v2497 = vadd.f32 %v2219, %v2442
        %v2498 = vadd.f32 %v2220, %v2445
        %v2499 = vadd.f32 %v2221, %v2448
        %v2500 = vadd.f32 %v2222, %v2451
        %v2501 = vadd.f32 %v2223, %v2454
        %v2502 = vadd.f32 %v2224, %v2457
        %v2503 = vadd.f32 %v2225, %v2460
        %v2504 = vadd.f32 %v2226, %v2463
        %v2505 = vadd.f32 %v2227, %v2466
        %v2506 = vadd.f32 %v2228, %v2469
        %v2507 = vadd.f32 %v2229, %v2472
        %v2508 = vadd.f32 %v2230, %v2475
        %v2509 = vld [vmem:[%s415] sm:$0xff]
        %v2510 = vld [vmem:[%s415 + $0x8] sm:$0xff]
        %v2511 = vld [vmem:[%s415 + $0x18] sm:$0xff]
        %v2512 = vld [vmem:[%s415 + $0x20] sm:$0xff]
        %v2513 = vld [vmem:[%s415 + $0x30] sm:$0xff]
        %v2514 = vld [vmem:[%s415 + $0x38] sm:$0xff]
        %v2515 = vld [vmem:[%s415 + $0x48] sm:$0xff]
        %v2516 = vld [vmem:[%s415 + $0x50] sm:$0xff]
        %v2517 = vld [vmem:[%s415 + $0x60] sm:$0xff]
        %v2518 = vld [vmem:[%s415 + $0x68] sm:$0xff]
        %v2519 = vld [vmem:[%s415 + $0x78] sm:$0xff]
        %v2520 = vld [vmem:[%s415 + $0x80] sm:$0xff]
        %v2521 = vld [vmem:[%s415 + $0x90] sm:$0xff]
        %v2522 = vld [vmem:[%s415 + $0x98] sm:$0xff]
        %v2523 = vld [vmem:[%s415 + $0xa8] sm:$0xff]
        %v2524 = vld [vmem:[%s415 + $0xb0] sm:$0xff]
        %v2525 = vld [vmem:[%s415 + $0xc0] sm:$0xff]
        %v2526 = vld [vmem:[%s415 + $0xc8] sm:$0xff]
        %v2527 = vld [vmem:[%s415 + $0xd8] sm:$0xff]
        %v2528 = vld [vmem:[%s415 + $0xe0] sm:$0xff]
        %v2529 = vld [vmem:[%s415 + $0xf0] sm:$0xff]
        %v2530 = vld [vmem:[%s415 + $0xf8] sm:$0xff]
        %v2531 = vld [vmem:[%s415 + $0x108] sm:$0xff]
        %v2532 = vld [vmem:[%s415 + $0x110] sm:$0xff]
        %v2533 = vld [vmem:[%s415 + $0x120] sm:$0xff]
        %v2534 = vld [vmem:[%s415 + $0x128] sm:$0xff]
        %v2535 = vld [vmem:[%s415 + $0x138] sm:$0xff]
        %v2536 = vld [vmem:[%s415 + $0x140] sm:$0xff]
        %v2537 = vld [vmem:[%s415 + $0x150] sm:$0xff]
        %v2538 = vld [vmem:[%s415 + $0x158] sm:$0xff]
        %v2539 = vld [vmem:[%s415 + $0x168] sm:$0xff]
        %v2540 = vld [vmem:[%s415 + $0x170] sm:$0xff]
        %s2541 = scalar_lea.vmem %s3, 192
        %v2542 = vld [vmem:[%s2541] sm:$0xff]
        %v2543 = vld [vmem:[%s2541 + $0x8] sm:$0xff]
        %v2544 = vld [vmem:[%s2541 + $0x10] sm:$0xff]
        %v2545 = vld [vmem:[%s2541 + $0x18] sm:$0xff]
        %v2546 = vld [vmem:[%s2541 + $0x20] sm:$0xff]
        %v2547 = vld [vmem:[%s2541 + $0x28] sm:$0xff]
        %v2548 = vld [vmem:[%s2541 + $0x30] sm:$0xff]
        %v2549 = vld [vmem:[%s2541 + $0x38] sm:$0xff]
        %v2551 = vsel %vm406, %v2509, 0
        %v2554 = vsel %vm406, %v2510, 0
        %v2557 = vsel %vm406, %v2511, 0
        %v2560 = vsel %vm406, %v2512, 0
        %v2563 = vsel %vm406, %v2513, 0
        %v2566 = vsel %vm406, %v2514, 0
        %v2569 = vsel %vm406, %v2515, 0
        %v2572 = vsel %vm406, %v2516, 0
        %v2575 = vsel %vm406, %v2517, 0
        %v2578 = vsel %vm406, %v2518, 0
        %v2581 = vsel %vm406, %v2519, 0
        %v2584 = vsel %vm406, %v2520, 0
        %v2587 = vsel %vm406, %v2521, 0
        %v2590 = vsel %vm406, %v2522, 0
        %v2593 = vsel %vm406, %v2523, 0
        %v2596 = vsel %vm406, %v2524, 0
        %v2599 = vsel %vm406, %v2525, 0
        %v2602 = vsel %vm406, %v2526, 0
        %v2605 = vsel %vm406, %v2527, 0
        %v2608 = vsel %vm406, %v2528, 0
        %v2611 = vsel %vm406, %v2529, 0
        %v2614 = vsel %vm406, %v2530, 0
        %v2617 = vsel %vm406, %v2531, 0
        %v2620 = vsel %vm406, %v2532, 0
        %v2623 = vsel %vm406, %v2533, 0
        %v2626 = vsel %vm406, %v2534, 0
        %v2629 = vsel %vm406, %v2535, 0
        %v2632 = vsel %vm406, %v2536, 0
        %v2635 = vsel %vm406, %v2537, 0
        %v2638 = vsel %vm406, %v2538, 0
        %v2641 = vsel %vm406, %v2539, 0
        %v2644 = vsel %vm406, %v2540, 0
        %2646 = vmatpush.msra.mxu0 0.0
        %2647 = vmatpush.msra.mxu0 0.0
        %2648 = vmatpush.msra.mxu0 0.0
        %2649 = vmatpush.msra.mxu0 0.0
        %2650 = vmatpush.msra.mxu0 0.0
        %2651 = vmatpush.msra.mxu0 0.0
        %2652 = vmatpush.msra.mxu0 0.0
        %2653 = vmatpush.msra.mxu0 0.0
        %2654 = vmatpush.msra.mxu0 %v2549
        %2655 = vmatpush.msra.mxu0 %v2548
        %2656 = vmatpush.msra.mxu0 %v2547
        %2657 = vmatpush.msra.mxu0 %v2546
        %2658 = vmatpush.msra.mxu0 %v2545
        %2659 = vmatpush.msra.mxu0 %v2544
        %2660 = vmatpush.msra.mxu0 %v2543
        %2661 = vmatpush.msra.mxu0 %v2542
        %2662 = vmatmul.f32.gmra.mxu0 %v2551
        %v2663 = vpop.f32.mrf.mxu0
        %v2664 = vadd.f32 0.0, %v2663
        %2665 = vmatmul.f32.gmra.mxu0 %v2554
        %v2666 = vpop.f32.mrf.mxu0
        %v2667 = vadd.f32 0.0, %v2666
        %2668 = vmatmul.f32.gmra.mxu0 %v2557
        %v2669 = vpop.f32.mrf.mxu0
        %v2670 = vadd.f32 0.0, %v2669
        %2671 = vmatmul.f32.gmra.mxu0 %v2560
        %v2672 = vpop.f32.mrf.mxu0
        %v2673 = vadd.f32 0.0, %v2672
        %2674 = vmatmul.f32.gmra.mxu0 %v2563
        %v2675 = vpop.f32.mrf.mxu0
        %v2676 = vadd.f32 0.0, %v2675
        %2677 = vmatmul.f32.gmra.mxu0 %v2566
        %v2678 = vpop.f32.mrf.mxu0
        %v2679 = vadd.f32 0.0, %v2678
        %2680 = vmatmul.f32.gmra.mxu0 %v2569
        %v2681 = vpop.f32.mrf.mxu0
        %v2682 = vadd.f32 0.0, %v2681
        %2683 = vmatmul.f32.gmra.mxu0 %v2572
        %v2684 = vpop.f32.mrf.mxu0
        %v2685 = vadd.f32 0.0, %v2684
        %2686 = vmatmul.f32.gmra.mxu0 %v2575
        %v2687 = vpop.f32.mrf.mxu0
        %v2688 = vadd.f32 0.0, %v2687
        %2689 = vmatmul.f32.gmra.mxu0 %v2578
        %v2690 = vpop.f32.mrf.mxu0
        %v2691 = vadd.f32 0.0, %v2690
        %2692 = vmatmul.f32.gmra.mxu0 %v2581
        %v2693 = vpop.f32.mrf.mxu0
        %v2694 = vadd.f32 0.0, %v2693
        %2695 = vmatmul.f32.gmra.mxu0 %v2584
        %v2696 = vpop.f32.mrf.mxu0
        %v2697 = vadd.f32 0.0, %v2696
        %2698 = vmatmul.f32.gmra.mxu0 %v2587
        %v2699 = vpop.f32.mrf.mxu0
        %v2700 = vadd.f32 0.0, %v2699
        %2701 = vmatmul.f32.gmra.mxu0 %v2590
        %v2702 = vpop.f32.mrf.mxu0
        %v2703 = vadd.f32 0.0, %v2702
        %2704 = vmatmul.f32.gmra.mxu0 %v2593
        %v2705 = vpop.f32.mrf.mxu0
        %v2706 = vadd.f32 0.0, %v2705
        %2707 = vmatmul.f32.gmra.mxu0 %v2596
        %v2708 = vpop.f32.mrf.mxu0
        %v2709 = vadd.f32 0.0, %v2708
        %2710 = vmatmul.f32.gmra.mxu0 %v2599
        %v2711 = vpop.f32.mrf.mxu0
        %v2712 = vadd.f32 0.0, %v2711
        %2713 = vmatmul.f32.gmra.mxu0 %v2602
        %v2714 = vpop.f32.mrf.mxu0
        %v2715 = vadd.f32 0.0, %v2714
        %2716 = vmatmul.f32.gmra.mxu0 %v2605
        %v2717 = vpop.f32.mrf.mxu0
        %v2718 = vadd.f32 0.0, %v2717
        %2719 = vmatmul.f32.gmra.mxu0 %v2608
        %v2720 = vpop.f32.mrf.mxu0
        %v2721 = vadd.f32 0.0, %v2720
        %2722 = vmatmul.f32.gmra.mxu0 %v2611
        %v2723 = vpop.f32.mrf.mxu0
        %v2724 = vadd.f32 0.0, %v2723
        %2725 = vmatmul.f32.gmra.mxu0 %v2614
        %v2726 = vpop.f32.mrf.mxu0
        %v2727 = vadd.f32 0.0, %v2726
        %2728 = vmatmul.f32.gmra.mxu0 %v2617
        %v2729 = vpop.f32.mrf.mxu0
        %v2730 = vadd.f32 0.0, %v2729
        %2731 = vmatmul.f32.gmra.mxu0 %v2620
        %v2732 = vpop.f32.mrf.mxu0
        %v2733 = vadd.f32 0.0, %v2732
        %2734 = vmatmul.f32.gmra.mxu0 %v2623
        %v2735 = vpop.f32.mrf.mxu0
        %v2736 = vadd.f32 0.0, %v2735
        %2737 = vmatmul.f32.gmra.mxu0 %v2626
        %v2738 = vpop.f32.mrf.mxu0
        %v2739 = vadd.f32 0.0, %v2738
        %2740 = vmatmul.f32.gmra.mxu0 %v2629
        %v2741 = vpop.f32.mrf.mxu0
        %v2742 = vadd.f32 0.0, %v2741
        %2743 = vmatmul.f32.gmra.mxu0 %v2632
        %v2744 = vpop.f32.mrf.mxu0
        %v2745 = vadd.f32 0.0, %v2744
        %2746 = vmatmul.f32.gmra.mxu0 %v2635
        %v2747 = vpop.f32.mrf.mxu0
        %v2748 = vadd.f32 0.0, %v2747
        %2749 = vmatmul.f32.gmra.mxu0 %v2638
        %v2750 = vpop.f32.mrf.mxu0
        %v2751 = vadd.f32 0.0, %v2750
        %2752 = vmatmul.f32.gmra.mxu0 %v2641
        %v2753 = vpop.f32.mrf.mxu0
        %v2754 = vadd.f32 0.0, %v2753
        %2755 = vmatmul.f32.gmra.mxu0 %v2644
        %v2756 = vpop.f32.mrf.mxu0
        %v2757 = vadd.f32 0.0, %v2756
        %2758 = vdwg.mxu0
        %v2759 = vadd.f32 %v2477, %v2664
        %v2760 = vadd.f32 %v2478, %v2667
        %v2761 = vadd.f32 %v2479, %v2670
        %v2762 = vadd.f32 %v2480, %v2673
        %v2763 = vadd.f32 %v2481, %v2676
        %v2764 = vadd.f32 %v2482, %v2679
        %v2765 = vadd.f32 %v2483, %v2682
        %v2766 = vadd.f32 %v2484, %v2685
        %v2767 = vadd.f32 %v2485, %v2688
        %v2768 = vadd.f32 %v2486, %v2691
        %v2769 = vadd.f32 %v2487, %v2694
        %v2770 = vadd.f32 %v2488, %v2697
        %v2771 = vadd.f32 %v2489, %v2700
        %v2772 = vadd.f32 %v2490, %v2703
        %v2773 = vadd.f32 %v2491, %v2706
        %v2774 = vadd.f32 %v2492, %v2709
        %v2775 = vadd.f32 %v2493, %v2712
        %v2776 = vadd.f32 %v2494, %v2715
        %v2777 = vadd.f32 %v2495, %v2718
        %v2778 = vadd.f32 %v2496, %v2721
        %v2779 = vadd.f32 %v2497, %v2724
        %v2780 = vadd.f32 %v2498, %v2727
        %v2781 = vadd.f32 %v2499, %v2730
        %v2782 = vadd.f32 %v2500, %v2733
        %v2783 = vadd.f32 %v2501, %v2736
        %v2784 = vadd.f32 %v2502, %v2739
        %v2785 = vadd.f32 %v2503, %v2742
        %v2786 = vadd.f32 %v2504, %v2745
        %v2787 = vadd.f32 %v2505, %v2748
        %v2788 = vadd.f32 %v2506, %v2751
        %v2789 = vadd.f32 %v2507, %v2754
        %v2790 = vadd.f32 %v2508, %v2757
        %v2791 = vld [vmem:[%s372 + $0x1] sm:$0xff]
        %v2792 = vld [vmem:[%s372 + $0x9] sm:$0xff]
        %v2793 = vld [vmem:[%s372 + $0x19] sm:$0xff]
        %v2794 = vld [vmem:[%s372 + $0x21] sm:$0xff]
        %v2795 = vld [vmem:[%s372 + $0x31] sm:$0xff]
        %v2796 = vld [vmem:[%s372 + $0x39] sm:$0xff]
        %v2797 = vld [vmem:[%s372 + $0x49] sm:$0xff]
        %v2798 = vld [vmem:[%s372 + $0x51] sm:$0xff]
        %v2799 = vld [vmem:[%s372 + $0x61] sm:$0xff]
        %v2800 = vld [vmem:[%s372 + $0x69] sm:$0xff]
        %v2801 = vld [vmem:[%s372 + $0x79] sm:$0xff]
        %v2802 = vld [vmem:[%s372 + $0x81] sm:$0xff]
        %v2803 = vld [vmem:[%s372 + $0x91] sm:$0xff]
        %v2804 = vld [vmem:[%s372 + $0x99] sm:$0xff]
        %v2805 = vld [vmem:[%s372 + $0xa9] sm:$0xff]
        %v2806 = vld [vmem:[%s372 + $0xb1] sm:$0xff]
        %v2807 = vld [vmem:[%s372 + $0xc1] sm:$0xff]
        %v2808 = vld [vmem:[%s372 + $0xc9] sm:$0xff]
        %v2809 = vld [vmem:[%s372 + $0xd9] sm:$0xff]
        %v2810 = vld [vmem:[%s372 + $0xe1] sm:$0xff]
        %v2811 = vld [vmem:[%s372 + $0xf1] sm:$0xff]
        %v2812 = vld [vmem:[%s372 + $0xf9] sm:$0xff]
        %v2813 = vld [vmem:[%s372 + $0x109] sm:$0xff]
        %v2814 = vld [vmem:[%s372 + $0x111] sm:$0xff]
        %v2815 = vld [vmem:[%s372 + $0x121] sm:$0xff]
        %v2816 = vld [vmem:[%s372 + $0x129] sm:$0xff]
        %v2817 = vld [vmem:[%s372 + $0x139] sm:$0xff]
        %v2818 = vld [vmem:[%s372 + $0x141] sm:$0xff]
        %v2819 = vld [vmem:[%s372 + $0x151] sm:$0xff]
        %v2820 = vld [vmem:[%s372 + $0x159] sm:$0xff]
        %v2821 = vld [vmem:[%s372 + $0x169] sm:$0xff]
        %v2822 = vld [vmem:[%s372 + $0x171] sm:$0xff]
        %s2823 = scalar_lea.vmem %s2, 128
        %v2824 = vld [vmem:[%s2823] sm:$0xff]
        %v2825 = vld [vmem:[%s2823 + $0x8] sm:$0xff]
        %v2826 = vld [vmem:[%s2823 + $0x10] sm:$0xff]
        %v2827 = vld [vmem:[%s2823 + $0x18] sm:$0xff]
        %v2829 = vsel %vm363, %v2791, 0
        %v2832 = vsel %vm363, %v2792, 0
        %v2835 = vsel %vm363, %v2793, 0
        %v2838 = vsel %vm363, %v2794, 0
        %v2841 = vsel %vm363, %v2795, 0
        %v2844 = vsel %vm363, %v2796, 0
        %v2847 = vsel %vm363, %v2797, 0
        %v2850 = vsel %vm363, %v2798, 0
        %v2853 = vsel %vm363, %v2799, 0
        %v2856 = vsel %vm363, %v2800, 0
        %v2859 = vsel %vm363, %v2801, 0
        %v2862 = vsel %vm363, %v2802, 0
        %v2865 = vsel %vm363, %v2803, 0
        %v2868 = vsel %vm363, %v2804, 0
        %v2871 = vsel %vm363, %v2805, 0
        %v2874 = vsel %vm363, %v2806, 0
        %v2877 = vsel %vm363, %v2807, 0
        %v2880 = vsel %vm363, %v2808, 0
        %v2883 = vsel %vm363, %v2809, 0
        %v2886 = vsel %vm363, %v2810, 0
        %v2889 = vsel %vm363, %v2811, 0
        %v2892 = vsel %vm363, %v2812, 0
        %v2895 = vsel %vm363, %v2813, 0
        %v2898 = vsel %vm363, %v2814, 0
        %v2901 = vsel %vm363, %v2815, 0
        %v2904 = vsel %vm363, %v2816, 0
        %v2907 = vsel %vm363, %v2817, 0
        %v2910 = vsel %vm363, %v2818, 0
        %v2913 = vsel %vm363, %v2819, 0
        %v2916 = vsel %vm363, %v2820, 0
        %v2919 = vsel %vm363, %v2821, 0
        %v2922 = vsel %vm363, %v2822, 0
        %2924 = vmatpush.msra.mxu0 0.0
        %2925 = vmatpush.msra.mxu0 0.0
        %2926 = vmatpush.msra.mxu0 0.0
        %2927 = vmatpush.msra.mxu0 0.0
        %2928 = vmatpush.msra.mxu0 0.0
        %2929 = vmatpush.msra.mxu0 0.0
        %2930 = vmatpush.msra.mxu0 0.0
        %2931 = vmatpush.msra.mxu0 0.0
        %2932 = vmatpush.msra.mxu0 0.0
        %2933 = vmatpush.msra.mxu0 0.0
        %2934 = vmatpush.msra.mxu0 0.0
        %2935 = vmatpush.msra.mxu0 0.0
        %2936 = vmatpush.msra.mxu0 %v2827
        %2937 = vmatpush.msra.mxu0 %v2826
        %2938 = vmatpush.msra.mxu0 %v2825
        %2939 = vmatpush.msra.mxu0 %v2824
        %2940 = vmatmul.f32.gmra.mxu0 %v2829
        %v2941 = vpop.f32.mrf.mxu0
        %v2942 = vadd.f32 0.0, %v2941
        %2943 = vmatmul.f32.gmra.mxu0 %v2832
        %v2944 = vpop.f32.mrf.mxu0
        %v2945 = vadd.f32 0.0, %v2944
        %2946 = vmatmul.f32.gmra.mxu0 %v2835
        %v2947 = vpop.f32.mrf.mxu0
        %v2948 = vadd.f32 0.0, %v2947
        %2949 = vmatmul.f32.gmra.mxu0 %v2838
        %v2950 = vpop.f32.mrf.mxu0
        %v2951 = vadd.f32 0.0, %v2950
        %2952 = vmatmul.f32.gmra.mxu0 %v2841
        %v2953 = vpop.f32.mrf.mxu0
        %v2954 = vadd.f32 0.0, %v2953
        %2955 = vmatmul.f32.gmra.mxu0 %v2844
        %v2956 = vpop.f32.mrf.mxu0
        %v2957 = vadd.f32 0.0, %v2956
        %2958 = vmatmul.f32.gmra.mxu0 %v2847
        %v2959 = vpop.f32.mrf.mxu0
        %v2960 = vadd.f32 0.0, %v2959
        %2961 = vmatmul.f32.gmra.mxu0 %v2850
        %v2962 = vpop.f32.mrf.mxu0
        %v2963 = vadd.f32 0.0, %v2962
        %2964 = vmatmul.f32.gmra.mxu0 %v2853
        %v2965 = vpop.f32.mrf.mxu0
        %v2966 = vadd.f32 0.0, %v2965
        %2967 = vmatmul.f32.gmra.mxu0 %v2856
        %v2968 = vpop.f32.mrf.mxu0
        %v2969 = vadd.f32 0.0, %v2968
        %2970 = vmatmul.f32.gmra.mxu0 %v2859
        %v2971 = vpop.f32.mrf.mxu0
        %v2972 = vadd.f32 0.0, %v2971
        %2973 = vmatmul.f32.gmra.mxu0 %v2862
        %v2974 = vpop.f32.mrf.mxu0
        %v2975 = vadd.f32 0.0, %v2974
        %2976 = vmatmul.f32.gmra.mxu0 %v2865
        %v2977 = vpop.f32.mrf.mxu0
        %v2978 = vadd.f32 0.0, %v2977
        %2979 = vmatmul.f32.gmra.mxu0 %v2868
        %v2980 = vpop.f32.mrf.mxu0
        %v2981 = vadd.f32 0.0, %v2980
        %2982 = vmatmul.f32.gmra.mxu0 %v2871
        %v2983 = vpop.f32.mrf.mxu0
        %v2984 = vadd.f32 0.0, %v2983
        %2985 = vmatmul.f32.gmra.mxu0 %v2874
        %v2986 = vpop.f32.mrf.mxu0
        %v2987 = vadd.f32 0.0, %v2986
        %2988 = vmatmul.f32.gmra.mxu0 %v2877
        %v2989 = vpop.f32.mrf.mxu0
        %v2990 = vadd.f32 0.0, %v2989
        %2991 = vmatmul.f32.gmra.mxu0 %v2880
        %v2992 = vpop.f32.mrf.mxu0
        %v2993 = vadd.f32 0.0, %v2992
        %2994 = vmatmul.f32.gmra.mxu0 %v2883
        %v2995 = vpop.f32.mrf.mxu0
        %v2996 = vadd.f32 0.0, %v2995
        %2997 = vmatmul.f32.gmra.mxu0 %v2886
        %v2998 = vpop.f32.mrf.mxu0
        %v2999 = vadd.f32 0.0, %v2998
        %3000 = vmatmul.f32.gmra.mxu0 %v2889
        %v3001 = vpop.f32.mrf.mxu0
        %v3002 = vadd.f32 0.0, %v3001
        %3003 = vmatmul.f32.gmra.mxu0 %v2892
        %v3004 = vpop.f32.mrf.mxu0
        %v3005 = vadd.f32 0.0, %v3004
        %3006 = vmatmul.f32.gmra.mxu0 %v2895
        %v3007 = vpop.f32.mrf.mxu0
        %v3008 = vadd.f32 0.0, %v3007
        %3009 = vmatmul.f32.gmra.mxu0 %v2898
        %v3010 = vpop.f32.mrf.mxu0
        %v3011 = vadd.f32 0.0, %v3010
        %3012 = vmatmul.f32.gmra.mxu0 %v2901
        %v3013 = vpop.f32.mrf.mxu0
        %v3014 = vadd.f32 0.0, %v3013
        %3015 = vmatmul.f32.gmra.mxu0 %v2904
        %v3016 = vpop.f32.mrf.mxu0
        %v3017 = vadd.f32 0.0, %v3016
        %3018 = vmatmul.f32.gmra.mxu0 %v2907
        %v3019 = vpop.f32.mrf.mxu0
        %v3020 = vadd.f32 0.0, %v3019
        %3021 = vmatmul.f32.gmra.mxu0 %v2910
        %v3022 = vpop.f32.mrf.mxu0
        %v3023 = vadd.f32 0.0, %v3022
        %3024 = vmatmul.f32.gmra.mxu0 %v2913
        %v3025 = vpop.f32.mrf.mxu0
        %v3026 = vadd.f32 0.0, %v3025
        %3027 = vmatmul.f32.gmra.mxu0 %v2916
        %v3028 = vpop.f32.mrf.mxu0
        %v3029 = vadd.f32 0.0, %v3028
        %3030 = vmatmul.f32.gmra.mxu0 %v2919
        %v3031 = vpop.f32.mrf.mxu0
        %v3032 = vadd.f32 0.0, %v3031
        %3033 = vmatmul.f32.gmra.mxu0 %v2922
        %v3034 = vpop.f32.mrf.mxu0
        %v3035 = vadd.f32 0.0, %v3034
        %3036 = vdwg.mxu0
        %v3037 = vadd.f32 %v2759, %v2942
        %v3038 = vadd.f32 %v2760, %v2945
        %v3039 = vadd.f32 %v2761, %v2948
        %v3040 = vadd.f32 %v2762, %v2951
        %v3041 = vadd.f32 %v2763, %v2954
        %v3042 = vadd.f32 %v2764, %v2957
        %v3043 = vadd.f32 %v2765, %v2960
        %v3044 = vadd.f32 %v2766, %v2963
        %v3045 = vadd.f32 %v2767, %v2966
        %v3046 = vadd.f32 %v2768, %v2969
        %v3047 = vadd.f32 %v2769, %v2972
        %v3048 = vadd.f32 %v2770, %v2975
        %v3049 = vadd.f32 %v2771, %v2978
        %v3050 = vadd.f32 %v2772, %v2981
        %v3051 = vadd.f32 %v2773, %v2984
        %v3052 = vadd.f32 %v2774, %v2987
        %v3053 = vadd.f32 %v2775, %v2990
        %v3054 = vadd.f32 %v2776, %v2993
        %v3055 = vadd.f32 %v2777, %v2996
        %v3056 = vadd.f32 %v2778, %v2999
        %v3057 = vadd.f32 %v2779, %v3002
        %v3058 = vadd.f32 %v2780, %v3005
        %v3059 = vadd.f32 %v2781, %v3008
        %v3060 = vadd.f32 %v2782, %v3011
        %v3061 = vadd.f32 %v2783, %v3014
        %v3062 = vadd.f32 %v2784, %v3017
        %v3063 = vadd.f32 %v2785, %v3020
        %v3064 = vadd.f32 %v2786, %v3023
        %v3065 = vadd.f32 %v2787, %v3026
        %v3066 = vadd.f32 %v2788, %v3029
        %v3067 = vadd.f32 %v2789, %v3032
        %v3068 = vadd.f32 %v2790, %v3035
        %v3069 = vld [vmem:[%s415 + $0x1] sm:$0xff]
        %v3070 = vld [vmem:[%s415 + $0x9] sm:$0xff]
        %v3071 = vld [vmem:[%s415 + $0x19] sm:$0xff]
        %v3072 = vld [vmem:[%s415 + $0x21] sm:$0xff]
        %v3073 = vld [vmem:[%s415 + $0x31] sm:$0xff]
        %v3074 = vld [vmem:[%s415 + $0x39] sm:$0xff]
        %v3075 = vld [vmem:[%s415 + $0x49] sm:$0xff]
        %v3076 = vld [vmem:[%s415 + $0x51] sm:$0xff]
        %v3077 = vld [vmem:[%s415 + $0x61] sm:$0xff]
        %v3078 = vld [vmem:[%s415 + $0x69] sm:$0xff]
        %v3079 = vld [vmem:[%s415 + $0x79] sm:$0xff]
        %v3080 = vld [vmem:[%s415 + $0x81] sm:$0xff]
        %v3081 = vld [vmem:[%s415 + $0x91] sm:$0xff]
        %v3082 = vld [vmem:[%s415 + $0x99] sm:$0xff]
        %v3083 = vld [vmem:[%s415 + $0xa9] sm:$0xff]
        %v3084 = vld [vmem:[%s415 + $0xb1] sm:$0xff]
        %v3085 = vld [vmem:[%s415 + $0xc1] sm:$0xff]
        %v3086 = vld [vmem:[%s415 + $0xc9] sm:$0xff]
        %v3087 = vld [vmem:[%s415 + $0xd9] sm:$0xff]
        %v3088 = vld [vmem:[%s415 + $0xe1] sm:$0xff]
        %v3089 = vld [vmem:[%s415 + $0xf1] sm:$0xff]
        %v3090 = vld [vmem:[%s415 + $0xf9] sm:$0xff]
        %v3091 = vld [vmem:[%s415 + $0x109] sm:$0xff]
        %v3092 = vld [vmem:[%s415 + $0x111] sm:$0xff]
        %v3093 = vld [vmem:[%s415 + $0x121] sm:$0xff]
        %v3094 = vld [vmem:[%s415 + $0x129] sm:$0xff]
        %v3095 = vld [vmem:[%s415 + $0x139] sm:$0xff]
        %v3096 = vld [vmem:[%s415 + $0x141] sm:$0xff]
        %v3097 = vld [vmem:[%s415 + $0x151] sm:$0xff]
        %v3098 = vld [vmem:[%s415 + $0x159] sm:$0xff]
        %v3099 = vld [vmem:[%s415 + $0x169] sm:$0xff]
        %v3100 = vld [vmem:[%s415 + $0x171] sm:$0xff]
        %s3101 = scalar_lea.vmem %s3, 256
        %v3102 = vld [vmem:[%s3101] sm:$0xff]
        %v3103 = vld [vmem:[%s3101 + $0x8] sm:$0xff]
        %v3104 = vld [vmem:[%s3101 + $0x10] sm:$0xff]
        %v3105 = vld [vmem:[%s3101 + $0x18] sm:$0xff]
        %v3106 = vld [vmem:[%s3101 + $0x20] sm:$0xff]
        %v3107 = vld [vmem:[%s3101 + $0x28] sm:$0xff]
        %v3108 = vld [vmem:[%s3101 + $0x30] sm:$0xff]
        %v3109 = vld [vmem:[%s3101 + $0x38] sm:$0xff]
        %v3111 = vsel %vm406, %v3069, 0
        %v3114 = vsel %vm406, %v3070, 0
        %v3117 = vsel %vm406, %v3071, 0
        %v3120 = vsel %vm406, %v3072, 0
        %v3123 = vsel %vm406, %v3073, 0
        %v3126 = vsel %vm406, %v3074, 0
        %v3129 = vsel %vm406, %v3075, 0
        %v3132 = vsel %vm406, %v3076, 0
        %v3135 = vsel %vm406, %v3077, 0
        %v3138 = vsel %vm406, %v3078, 0
        %v3141 = vsel %vm406, %v3079, 0
        %v3144 = vsel %vm406, %v3080, 0
        %v3147 = vsel %vm406, %v3081, 0
        %v3150 = vsel %vm406, %v3082, 0
        %v3153 = vsel %vm406, %v3083, 0
        %v3156 = vsel %vm406, %v3084, 0
        %v3159 = vsel %vm406, %v3085, 0
        %v3162 = vsel %vm406, %v3086, 0
        %v3165 = vsel %vm406, %v3087, 0
        %v3168 = vsel %vm406, %v3088, 0
        %v3171 = vsel %vm406, %v3089, 0
        %v3174 = vsel %vm406, %v3090, 0
        %v3177 = vsel %vm406, %v3091, 0
        %v3180 = vsel %vm406, %v3092, 0
        %v3183 = vsel %vm406, %v3093, 0
        %v3186 = vsel %vm406, %v3094, 0
        %v3189 = vsel %vm406, %v3095, 0
        %v3192 = vsel %vm406, %v3096, 0
        %v3195 = vsel %vm406, %v3097, 0
        %v3198 = vsel %vm406, %v3098, 0
        %v3201 = vsel %vm406, %v3099, 0
        %v3204 = vsel %vm406, %v3100, 0
        %3206 = vmatpush.msra.mxu0 0.0
        %3207 = vmatpush.msra.mxu0 0.0
        %3208 = vmatpush.msra.mxu0 0.0
        %3209 = vmatpush.msra.mxu0 0.0
        %3210 = vmatpush.msra.mxu0 0.0
        %3211 = vmatpush.msra.mxu0 0.0
        %3212 = vmatpush.msra.mxu0 0.0
        %3213 = vmatpush.msra.mxu0 0.0
        %3214 = vmatpush.msra.mxu0 %v3109
        %3215 = vmatpush.msra.mxu0 %v3108
        %3216 = vmatpush.msra.mxu0 %v3107
        %3217 = vmatpush.msra.mxu0 %v3106
        %3218 = vmatpush.msra.mxu0 %v3105
        %3219 = vmatpush.msra.mxu0 %v3104
        %3220 = vmatpush.msra.mxu0 %v3103
        %3221 = vmatpush.msra.mxu0 %v3102
        %3222 = vmatmul.f32.gmra.mxu0 %v3111
        %v3223 = vpop.f32.mrf.mxu0
        %v3224 = vadd.f32 0.0, %v3223
        %3225 = vmatmul.f32.gmra.mxu0 %v3114
        %v3226 = vpop.f32.mrf.mxu0
        %v3227 = vadd.f32 0.0, %v3226
        %3228 = vmatmul.f32.gmra.mxu0 %v3117
        %v3229 = vpop.f32.mrf.mxu0
        %v3230 = vadd.f32 0.0, %v3229
        %3231 = vmatmul.f32.gmra.mxu0 %v3120
        %v3232 = vpop.f32.mrf.mxu0
        %v3233 = vadd.f32 0.0, %v3232
        %3234 = vmatmul.f32.gmra.mxu0 %v3123
        %v3235 = vpop.f32.mrf.mxu0
        %v3236 = vadd.f32 0.0, %v3235
        %3237 = vmatmul.f32.gmra.mxu0 %v3126
        %v3238 = vpop.f32.mrf.mxu0
        %v3239 = vadd.f32 0.0, %v3238
        %3240 = vmatmul.f32.gmra.mxu0 %v3129
        %v3241 = vpop.f32.mrf.mxu0
        %v3242 = vadd.f32 0.0, %v3241
        %3243 = vmatmul.f32.gmra.mxu0 %v3132
        %v3244 = vpop.f32.mrf.mxu0
        %v3245 = vadd.f32 0.0, %v3244
        %3246 = vmatmul.f32.gmra.mxu0 %v3135
        %v3247 = vpop.f32.mrf.mxu0
        %v3248 = vadd.f32 0.0, %v3247
        %3249 = vmatmul.f32.gmra.mxu0 %v3138
        %v3250 = vpop.f32.mrf.mxu0
        %v3251 = vadd.f32 0.0, %v3250
        %3252 = vmatmul.f32.gmra.mxu0 %v3141
        %v3253 = vpop.f32.mrf.mxu0
        %v3254 = vadd.f32 0.0, %v3253
        %3255 = vmatmul.f32.gmra.mxu0 %v3144
        %v3256 = vpop.f32.mrf.mxu0
        %v3257 = vadd.f32 0.0, %v3256
        %3258 = vmatmul.f32.gmra.mxu0 %v3147
        %v3259 = vpop.f32.mrf.mxu0
        %v3260 = vadd.f32 0.0, %v3259
        %3261 = vmatmul.f32.gmra.mxu0 %v3150
        %v3262 = vpop.f32.mrf.mxu0
        %v3263 = vadd.f32 0.0, %v3262
        %3264 = vmatmul.f32.gmra.mxu0 %v3153
        %v3265 = vpop.f32.mrf.mxu0
        %v3266 = vadd.f32 0.0, %v3265
        %3267 = vmatmul.f32.gmra.mxu0 %v3156
        %v3268 = vpop.f32.mrf.mxu0
        %v3269 = vadd.f32 0.0, %v3268
        %3270 = vmatmul.f32.gmra.mxu0 %v3159
        %v3271 = vpop.f32.mrf.mxu0
        %v3272 = vadd.f32 0.0, %v3271
        %3273 = vmatmul.f32.gmra.mxu0 %v3162
        %v3274 = vpop.f32.mrf.mxu0
        %v3275 = vadd.f32 0.0, %v3274
        %3276 = vmatmul.f32.gmra.mxu0 %v3165
        %v3277 = vpop.f32.mrf.mxu0
        %v3278 = vadd.f32 0.0, %v3277
        %3279 = vmatmul.f32.gmra.mxu0 %v3168
        %v3280 = vpop.f32.mrf.mxu0
        %v3281 = vadd.f32 0.0, %v3280
        %3282 = vmatmul.f32.gmra.mxu0 %v3171
        %v3283 = vpop.f32.mrf.mxu0
        %v3284 = vadd.f32 0.0, %v3283
        %3285 = vmatmul.f32.gmra.mxu0 %v3174
        %v3286 = vpop.f32.mrf.mxu0
        %v3287 = vadd.f32 0.0, %v3286
        %3288 = vmatmul.f32.gmra.mxu0 %v3177
        %v3289 = vpop.f32.mrf.mxu0
        %v3290 = vadd.f32 0.0, %v3289
        %3291 = vmatmul.f32.gmra.mxu0 %v3180
        %v3292 = vpop.f32.mrf.mxu0
        %v3293 = vadd.f32 0.0, %v3292
        %3294 = vmatmul.f32.gmra.mxu0 %v3183
        %v3295 = vpop.f32.mrf.mxu0
        %v3296 = vadd.f32 0.0, %v3295
        %3297 = vmatmul.f32.gmra.mxu0 %v3186
        %v3298 = vpop.f32.mrf.mxu0
        %v3299 = vadd.f32 0.0, %v3298
        %3300 = vmatmul.f32.gmra.mxu0 %v3189
        %v3301 = vpop.f32.mrf.mxu0
        %v3302 = vadd.f32 0.0, %v3301
        %3303 = vmatmul.f32.gmra.mxu0 %v3192
        %v3304 = vpop.f32.mrf.mxu0
        %v3305 = vadd.f32 0.0, %v3304
        %3306 = vmatmul.f32.gmra.mxu0 %v3195
        %v3307 = vpop.f32.mrf.mxu0
        %v3308 = vadd.f32 0.0, %v3307
        %3309 = vmatmul.f32.gmra.mxu0 %v3198
        %v3310 = vpop.f32.mrf.mxu0
        %v3311 = vadd.f32 0.0, %v3310
        %3312 = vmatmul.f32.gmra.mxu0 %v3201
        %v3313 = vpop.f32.mrf.mxu0
        %v3314 = vadd.f32 0.0, %v3313
        %3315 = vmatmul.f32.gmra.mxu0 %v3204
        %v3316 = vpop.f32.mrf.mxu0
        %v3317 = vadd.f32 0.0, %v3316
        %3318 = vdwg.mxu0
        %v3319 = vadd.f32 %v3037, %v3224
        %v3320 = vadd.f32 %v3038, %v3227
        %v3321 = vadd.f32 %v3039, %v3230
        %v3322 = vadd.f32 %v3040, %v3233
        %v3323 = vadd.f32 %v3041, %v3236
        %v3324 = vadd.f32 %v3042, %v3239
        %v3325 = vadd.f32 %v3043, %v3242
        %v3326 = vadd.f32 %v3044, %v3245
        %v3327 = vadd.f32 %v3045, %v3248
        %v3328 = vadd.f32 %v3046, %v3251
        %v3329 = vadd.f32 %v3047, %v3254
        %v3330 = vadd.f32 %v3048, %v3257
        %v3331 = vadd.f32 %v3049, %v3260
        %v3332 = vadd.f32 %v3050, %v3263
        %v3333 = vadd.f32 %v3051, %v3266
        %v3334 = vadd.f32 %v3052, %v3269
        %v3335 = vadd.f32 %v3053, %v3272
        %v3336 = vadd.f32 %v3054, %v3275
        %v3337 = vadd.f32 %v3055, %v3278
        %v3338 = vadd.f32 %v3056, %v3281
        %v3339 = vadd.f32 %v3057, %v3284
        %v3340 = vadd.f32 %v3058, %v3287
        %v3341 = vadd.f32 %v3059, %v3290
        %v3342 = vadd.f32 %v3060, %v3293
        %v3343 = vadd.f32 %v3061, %v3296
        %v3344 = vadd.f32 %v3062, %v3299
        %v3345 = vadd.f32 %v3063, %v3302
        %v3346 = vadd.f32 %v3064, %v3305
        %v3347 = vadd.f32 %v3065, %v3308
        %v3348 = vadd.f32 %v3066, %v3311
        %v3349 = vadd.f32 %v3067, %v3314
        %v3350 = vadd.f32 %v3068, %v3317
        %v3351 = vld [vmem:[%s372 + $0x2] sm:$0xff]
        %v3352 = vld [vmem:[%s372 + $0xa] sm:$0xff]
        %v3353 = vld [vmem:[%s372 + $0x1a] sm:$0xff]
        %v3354 = vld [vmem:[%s372 + $0x22] sm:$0xff]
        %v3355 = vld [vmem:[%s372 + $0x32] sm:$0xff]
        %v3356 = vld [vmem:[%s372 + $0x3a] sm:$0xff]
        %v3357 = vld [vmem:[%s372 + $0x4a] sm:$0xff]
        %v3358 = vld [vmem:[%s372 + $0x52] sm:$0xff]
        %v3359 = vld [vmem:[%s372 + $0x62] sm:$0xff]
        %v3360 = vld [vmem:[%s372 + $0x6a] sm:$0xff]
        %v3361 = vld [vmem:[%s372 + $0x7a] sm:$0xff]
        %v3362 = vld [vmem:[%s372 + $0x82] sm:$0xff]
        %v3363 = vld [vmem:[%s372 + $0x92] sm:$0xff]
        %v3364 = vld [vmem:[%s372 + $0x9a] sm:$0xff]
        %v3365 = vld [vmem:[%s372 + $0xaa] sm:$0xff]
        %v3366 = vld [vmem:[%s372 + $0xb2] sm:$0xff]
        %v3367 = vld [vmem:[%s372 + $0xc2] sm:$0xff]
        %v3368 = vld [vmem:[%s372 + $0xca] sm:$0xff]
        %v3369 = vld [vmem:[%s372 + $0xda] sm:$0xff]
        %v3370 = vld [vmem:[%s372 + $0xe2] sm:$0xff]
        %v3371 = vld [vmem:[%s372 + $0xf2] sm:$0xff]
        %v3372 = vld [vmem:[%s372 + $0xfa] sm:$0xff]
        %v3373 = vld [vmem:[%s372 + $0x10a] sm:$0xff]
        %v3374 = vld [vmem:[%s372 + $0x112] sm:$0xff]
        %v3375 = vld [vmem:[%s372 + $0x122] sm:$0xff]
        %v3376 = vld [vmem:[%s372 + $0x12a] sm:$0xff]
        %v3377 = vld [vmem:[%s372 + $0x13a] sm:$0xff]
        %v3378 = vld [vmem:[%s372 + $0x142] sm:$0xff]
        %v3379 = vld [vmem:[%s372 + $0x152] sm:$0xff]
        %v3380 = vld [vmem:[%s372 + $0x15a] sm:$0xff]
        %v3381 = vld [vmem:[%s372 + $0x16a] sm:$0xff]
        %v3382 = vld [vmem:[%s372 + $0x172] sm:$0xff]
        %s3383 = scalar_lea.vmem %s2, 160
        %v3384 = vld [vmem:[%s3383] sm:$0xff]
        %v3385 = vld [vmem:[%s3383 + $0x8] sm:$0xff]
        %v3386 = vld [vmem:[%s3383 + $0x10] sm:$0xff]
        %v3387 = vld [vmem:[%s3383 + $0x18] sm:$0xff]
        %v3389 = vsel %vm363, %v3351, 0
        %v3392 = vsel %vm363, %v3352, 0
        %v3395 = vsel %vm363, %v3353, 0
        %v3398 = vsel %vm363, %v3354, 0
        %v3401 = vsel %vm363, %v3355, 0
        %v3404 = vsel %vm363, %v3356, 0
        %v3407 = vsel %vm363, %v3357, 0
        %v3410 = vsel %vm363, %v3358, 0
        %v3413 = vsel %vm363, %v3359, 0
        %v3416 = vsel %vm363, %v3360, 0
        %v3419 = vsel %vm363, %v3361, 0
        %v3422 = vsel %vm363, %v3362, 0
        %v3425 = vsel %vm363, %v3363, 0
        %v3428 = vsel %vm363, %v3364, 0
        %v3431 = vsel %vm363, %v3365, 0
        %v3434 = vsel %vm363, %v3366, 0
        %v3437 = vsel %vm363, %v3367, 0
        %v3440 = vsel %vm363, %v3368, 0
        %v3443 = vsel %vm363, %v3369, 0
        %v3446 = vsel %vm363, %v3370, 0
        %v3449 = vsel %vm363, %v3371, 0
        %v3452 = vsel %vm363, %v3372, 0
        %v3455 = vsel %vm363, %v3373, 0
        %v3458 = vsel %vm363, %v3374, 0
        %v3461 = vsel %vm363, %v3375, 0
        %v3464 = vsel %vm363, %v3376, 0
        %v3467 = vsel %vm363, %v3377, 0
        %v3470 = vsel %vm363, %v3378, 0
        %v3473 = vsel %vm363, %v3379, 0
        %v3476 = vsel %vm363, %v3380, 0
        %v3479 = vsel %vm363, %v3381, 0
        %v3482 = vsel %vm363, %v3382, 0
        %3484 = vmatpush.msra.mxu0 0.0
        %3485 = vmatpush.msra.mxu0 0.0
        %3486 = vmatpush.msra.mxu0 0.0
        %3487 = vmatpush.msra.mxu0 0.0
        %3488 = vmatpush.msra.mxu0 0.0
        %3489 = vmatpush.msra.mxu0 0.0
        %3490 = vmatpush.msra.mxu0 0.0
        %3491 = vmatpush.msra.mxu0 0.0
        %3492 = vmatpush.msra.mxu0 0.0
        %3493 = vmatpush.msra.mxu0 0.0
        %3494 = vmatpush.msra.mxu0 0.0
        %3495 = vmatpush.msra.mxu0 0.0
        %3496 = vmatpush.msra.mxu0 %v3387
        %3497 = vmatpush.msra.mxu0 %v3386
        %3498 = vmatpush.msra.mxu0 %v3385
        %3499 = vmatpush.msra.mxu0 %v3384
        %3500 = vmatmul.f32.gmra.mxu0 %v3389
        %v3501 = vpop.f32.mrf.mxu0
        %v3502 = vadd.f32 0.0, %v3501
        %3503 = vmatmul.f32.gmra.mxu0 %v3392
        %v3504 = vpop.f32.mrf.mxu0
        %v3505 = vadd.f32 0.0, %v3504
        %3506 = vmatmul.f32.gmra.mxu0 %v3395
        %v3507 = vpop.f32.mrf.mxu0
        %v3508 = vadd.f32 0.0, %v3507
        %3509 = vmatmul.f32.gmra.mxu0 %v3398
        %v3510 = vpop.f32.mrf.mxu0
        %v3511 = vadd.f32 0.0, %v3510
        %3512 = vmatmul.f32.gmra.mxu0 %v3401
        %v3513 = vpop.f32.mrf.mxu0
        %v3514 = vadd.f32 0.0, %v3513
        %3515 = vmatmul.f32.gmra.mxu0 %v3404
        %v3516 = vpop.f32.mrf.mxu0
        %v3517 = vadd.f32 0.0, %v3516
        %3518 = vmatmul.f32.gmra.mxu0 %v3407
        %v3519 = vpop.f32.mrf.mxu0
        %v3520 = vadd.f32 0.0, %v3519
        %3521 = vmatmul.f32.gmra.mxu0 %v3410
        %v3522 = vpop.f32.mrf.mxu0
        %v3523 = vadd.f32 0.0, %v3522
        %3524 = vmatmul.f32.gmra.mxu0 %v3413
        %v3525 = vpop.f32.mrf.mxu0
        %v3526 = vadd.f32 0.0, %v3525
        %3527 = vmatmul.f32.gmra.mxu0 %v3416
        %v3528 = vpop.f32.mrf.mxu0
        %v3529 = vadd.f32 0.0, %v3528
        %3530 = vmatmul.f32.gmra.mxu0 %v3419
        %v3531 = vpop.f32.mrf.mxu0
        %v3532 = vadd.f32 0.0, %v3531
        %3533 = vmatmul.f32.gmra.mxu0 %v3422
        %v3534 = vpop.f32.mrf.mxu0
        %v3535 = vadd.f32 0.0, %v3534
        %3536 = vmatmul.f32.gmra.mxu0 %v3425
        %v3537 = vpop.f32.mrf.mxu0
        %v3538 = vadd.f32 0.0, %v3537
        %3539 = vmatmul.f32.gmra.mxu0 %v3428
        %v3540 = vpop.f32.mrf.mxu0
        %v3541 = vadd.f32 0.0, %v3540
        %3542 = vmatmul.f32.gmra.mxu0 %v3431
        %v3543 = vpop.f32.mrf.mxu0
        %v3544 = vadd.f32 0.0, %v3543
        %3545 = vmatmul.f32.gmra.mxu0 %v3434
        %v3546 = vpop.f32.mrf.mxu0
        %v3547 = vadd.f32 0.0, %v3546
        %3548 = vmatmul.f32.gmra.mxu0 %v3437
        %v3549 = vpop.f32.mrf.mxu0
        %v3550 = vadd.f32 0.0, %v3549
        %3551 = vmatmul.f32.gmra.mxu0 %v3440
        %v3552 = vpop.f32.mrf.mxu0
        %v3553 = vadd.f32 0.0, %v3552
        %3554 = vmatmul.f32.gmra.mxu0 %v3443
        %v3555 = vpop.f32.mrf.mxu0
        %v3556 = vadd.f32 0.0, %v3555
        %3557 = vmatmul.f32.gmra.mxu0 %v3446
        %v3558 = vpop.f32.mrf.mxu0
        %v3559 = vadd.f32 0.0, %v3558
        %3560 = vmatmul.f32.gmra.mxu0 %v3449
        %v3561 = vpop.f32.mrf.mxu0
        %v3562 = vadd.f32 0.0, %v3561
        %3563 = vmatmul.f32.gmra.mxu0 %v3452
        %v3564 = vpop.f32.mrf.mxu0
        %v3565 = vadd.f32 0.0, %v3564
        %3566 = vmatmul.f32.gmra.mxu0 %v3455
        %v3567 = vpop.f32.mrf.mxu0
        %v3568 = vadd.f32 0.0, %v3567
        %3569 = vmatmul.f32.gmra.mxu0 %v3458
        %v3570 = vpop.f32.mrf.mxu0
        %v3571 = vadd.f32 0.0, %v3570
        %3572 = vmatmul.f32.gmra.mxu0 %v3461
        %v3573 = vpop.f32.mrf.mxu0
        %v3574 = vadd.f32 0.0, %v3573
        %3575 = vmatmul.f32.gmra.mxu0 %v3464
        %v3576 = vpop.f32.mrf.mxu0
        %v3577 = vadd.f32 0.0, %v3576
        %3578 = vmatmul.f32.gmra.mxu0 %v3467
        %v3579 = vpop.f32.mrf.mxu0
        %v3580 = vadd.f32 0.0, %v3579
        %3581 = vmatmul.f32.gmra.mxu0 %v3470
        %v3582 = vpop.f32.mrf.mxu0
        %v3583 = vadd.f32 0.0, %v3582
        %3584 = vmatmul.f32.gmra.mxu0 %v3473
        %v3585 = vpop.f32.mrf.mxu0
        %v3586 = vadd.f32 0.0, %v3585
        %3587 = vmatmul.f32.gmra.mxu0 %v3476
        %v3588 = vpop.f32.mrf.mxu0
        %v3589 = vadd.f32 0.0, %v3588
        %3590 = vmatmul.f32.gmra.mxu0 %v3479
        %v3591 = vpop.f32.mrf.mxu0
        %v3592 = vadd.f32 0.0, %v3591
        %3593 = vmatmul.f32.gmra.mxu0 %v3482
        %v3594 = vpop.f32.mrf.mxu0
        %v3595 = vadd.f32 0.0, %v3594
        %3596 = vdwg.mxu0
        %v3597 = vadd.f32 %v3319, %v3502
        %v3598 = vadd.f32 %v3320, %v3505
        %v3599 = vadd.f32 %v3321, %v3508
        %v3600 = vadd.f32 %v3322, %v3511
        %v3601 = vadd.f32 %v3323, %v3514
        %v3602 = vadd.f32 %v3324, %v3517
        %v3603 = vadd.f32 %v3325, %v3520
        %v3604 = vadd.f32 %v3326, %v3523
        %v3605 = vadd.f32 %v3327, %v3526
        %v3606 = vadd.f32 %v3328, %v3529
        %v3607 = vadd.f32 %v3329, %v3532
        %v3608 = vadd.f32 %v3330, %v3535
        %v3609 = vadd.f32 %v3331, %v3538
        %v3610 = vadd.f32 %v3332, %v3541
        %v3611 = vadd.f32 %v3333, %v3544
        %v3612 = vadd.f32 %v3334, %v3547
        %v3613 = vadd.f32 %v3335, %v3550
        %v3614 = vadd.f32 %v3336, %v3553
        %v3615 = vadd.f32 %v3337, %v3556
        %v3616 = vadd.f32 %v3338, %v3559
        %v3617 = vadd.f32 %v3339, %v3562
        %v3618 = vadd.f32 %v3340, %v3565
        %v3619 = vadd.f32 %v3341, %v3568
        %v3620 = vadd.f32 %v3342, %v3571
        %v3621 = vadd.f32 %v3343, %v3574
        %v3622 = vadd.f32 %v3344, %v3577
        %v3623 = vadd.f32 %v3345, %v3580
        %v3624 = vadd.f32 %v3346, %v3583
        %v3625 = vadd.f32 %v3347, %v3586
        %v3626 = vadd.f32 %v3348, %v3589
        %v3627 = vadd.f32 %v3349, %v3592
        %v3628 = vadd.f32 %v3350, %v3595
        %v3629 = vld [vmem:[%s415 + $0x2] sm:$0xff]
        %v3630 = vld [vmem:[%s415 + $0xa] sm:$0xff]
        %v3631 = vld [vmem:[%s415 + $0x1a] sm:$0xff]
        %v3632 = vld [vmem:[%s415 + $0x22] sm:$0xff]
        %v3633 = vld [vmem:[%s415 + $0x32] sm:$0xff]
        %v3634 = vld [vmem:[%s415 + $0x3a] sm:$0xff]
        %v3635 = vld [vmem:[%s415 + $0x4a] sm:$0xff]
        %v3636 = vld [vmem:[%s415 + $0x52] sm:$0xff]
        %v3637 = vld [vmem:[%s415 + $0x62] sm:$0xff]
        %v3638 = vld [vmem:[%s415 + $0x6a] sm:$0xff]
        %v3639 = vld [vmem:[%s415 + $0x7a] sm:$0xff]
        %v3640 = vld [vmem:[%s415 + $0x82] sm:$0xff]
        %v3641 = vld [vmem:[%s415 + $0x92] sm:$0xff]
        %v3642 = vld [vmem:[%s415 + $0x9a] sm:$0xff]
        %v3643 = vld [vmem:[%s415 + $0xaa] sm:$0xff]
        %v3644 = vld [vmem:[%s415 + $0xb2] sm:$0xff]
        %v3645 = vld [vmem:[%s415 + $0xc2] sm:$0xff]
        %v3646 = vld [vmem:[%s415 + $0xca] sm:$0xff]
        %v3647 = vld [vmem:[%s415 + $0xda] sm:$0xff]
        %v3648 = vld [vmem:[%s415 + $0xe2] sm:$0xff]
        %v3649 = vld [vmem:[%s415 + $0xf2] sm:$0xff]
        %v3650 = vld [vmem:[%s415 + $0xfa] sm:$0xff]
        %v3651 = vld [vmem:[%s415 + $0x10a] sm:$0xff]
        %v3652 = vld [vmem:[%s415 + $0x112] sm:$0xff]
        %v3653 = vld [vmem:[%s415 + $0x122] sm:$0xff]
        %v3654 = vld [vmem:[%s415 + $0x12a] sm:$0xff]
        %v3655 = vld [vmem:[%s415 + $0x13a] sm:$0xff]
        %v3656 = vld [vmem:[%s415 + $0x142] sm:$0xff]
        %v3657 = vld [vmem:[%s415 + $0x152] sm:$0xff]
        %v3658 = vld [vmem:[%s415 + $0x15a] sm:$0xff]
        %v3659 = vld [vmem:[%s415 + $0x16a] sm:$0xff]
        %v3660 = vld [vmem:[%s415 + $0x172] sm:$0xff]
        %s3661 = scalar_lea.vmem %s3, 320
        %v3662 = vld [vmem:[%s3661] sm:$0xff]
        %v3663 = vld [vmem:[%s3661 + $0x8] sm:$0xff]
        %v3664 = vld [vmem:[%s3661 + $0x10] sm:$0xff]
        %v3665 = vld [vmem:[%s3661 + $0x18] sm:$0xff]
        %v3666 = vld [vmem:[%s3661 + $0x20] sm:$0xff]
        %v3667 = vld [vmem:[%s3661 + $0x28] sm:$0xff]
        %v3668 = vld [vmem:[%s3661 + $0x30] sm:$0xff]
        %v3669 = vld [vmem:[%s3661 + $0x38] sm:$0xff]
        %v3671 = vsel %vm406, %v3629, 0
        %v3674 = vsel %vm406, %v3630, 0
        %v3677 = vsel %vm406, %v3631, 0
        %v3680 = vsel %vm406, %v3632, 0
        %v3683 = vsel %vm406, %v3633, 0
        %v3686 = vsel %vm406, %v3634, 0
        %v3689 = vsel %vm406, %v3635, 0
        %v3692 = vsel %vm406, %v3636, 0
        %v3695 = vsel %vm406, %v3637, 0
        %v3698 = vsel %vm406, %v3638, 0
        %v3701 = vsel %vm406, %v3639, 0
        %v3704 = vsel %vm406, %v3640, 0
        %v3707 = vsel %vm406, %v3641, 0
        %v3710 = vsel %vm406, %v3642, 0
        %v3713 = vsel %vm406, %v3643, 0
        %v3716 = vsel %vm406, %v3644, 0
        %v3719 = vsel %vm406, %v3645, 0
        %v3722 = vsel %vm406, %v3646, 0
        %v3725 = vsel %vm406, %v3647, 0
        %v3728 = vsel %vm406, %v3648, 0
        %v3731 = vsel %vm406, %v3649, 0
        %v3734 = vsel %vm406, %v3650, 0
        %v3737 = vsel %vm406, %v3651, 0
        %v3740 = vsel %vm406, %v3652, 0
        %v3743 = vsel %vm406, %v3653, 0
        %v3746 = vsel %vm406, %v3654, 0
        %v3749 = vsel %vm406, %v3655, 0
        %v3752 = vsel %vm406, %v3656, 0
        %v3755 = vsel %vm406, %v3657, 0
        %v3758 = vsel %vm406, %v3658, 0
        %v3761 = vsel %vm406, %v3659, 0
        %v3764 = vsel %vm406, %v3660, 0
        %3766 = vmatpush.msra.mxu0 0.0
        %3767 = vmatpush.msra.mxu0 0.0
        %3768 = vmatpush.msra.mxu0 0.0
        %3769 = vmatpush.msra.mxu0 0.0
        %3770 = vmatpush.msra.mxu0 0.0
        %3771 = vmatpush.msra.mxu0 0.0
        %3772 = vmatpush.msra.mxu0 0.0
        %3773 = vmatpush.msra.mxu0 0.0
        %3774 = vmatpush.msra.mxu0 %v3669
        %3775 = vmatpush.msra.mxu0 %v3668
        %3776 = vmatpush.msra.mxu0 %v3667
        %3777 = vmatpush.msra.mxu0 %v3666
        %3778 = vmatpush.msra.mxu0 %v3665
        %3779 = vmatpush.msra.mxu0 %v3664
        %3780 = vmatpush.msra.mxu0 %v3663
        %3781 = vmatpush.msra.mxu0 %v3662
        %3782 = vmatmul.f32.gmra.mxu0 %v3671
        %v3783 = vpop.f32.mrf.mxu0
        %v3784 = vadd.f32 0.0, %v3783
        %3785 = vmatmul.f32.gmra.mxu0 %v3674
        %v3786 = vpop.f32.mrf.mxu0
        %v3787 = vadd.f32 0.0, %v3786
        %3788 = vmatmul.f32.gmra.mxu0 %v3677
        %v3789 = vpop.f32.mrf.mxu0
        %v3790 = vadd.f32 0.0, %v3789
        %3791 = vmatmul.f32.gmra.mxu0 %v3680
        %v3792 = vpop.f32.mrf.mxu0
        %v3793 = vadd.f32 0.0, %v3792
        %3794 = vmatmul.f32.gmra.mxu0 %v3683
        %v3795 = vpop.f32.mrf.mxu0
        %v3796 = vadd.f32 0.0, %v3795
        %3797 = vmatmul.f32.gmra.mxu0 %v3686
        %v3798 = vpop.f32.mrf.mxu0
        %v3799 = vadd.f32 0.0, %v3798
        %3800 = vmatmul.f32.gmra.mxu0 %v3689
        %v3801 = vpop.f32.mrf.mxu0
        %v3802 = vadd.f32 0.0, %v3801
        %3803 = vmatmul.f32.gmra.mxu0 %v3692
        %v3804 = vpop.f32.mrf.mxu0
        %v3805 = vadd.f32 0.0, %v3804
        %3806 = vmatmul.f32.gmra.mxu0 %v3695
        %v3807 = vpop.f32.mrf.mxu0
        %v3808 = vadd.f32 0.0, %v3807
        %3809 = vmatmul.f32.gmra.mxu0 %v3698
        %v3810 = vpop.f32.mrf.mxu0
        %v3811 = vadd.f32 0.0, %v3810
        %3812 = vmatmul.f32.gmra.mxu0 %v3701
        %v3813 = vpop.f32.mrf.mxu0
        %v3814 = vadd.f32 0.0, %v3813
        %3815 = vmatmul.f32.gmra.mxu0 %v3704
        %v3816 = vpop.f32.mrf.mxu0
        %v3817 = vadd.f32 0.0, %v3816
        %3818 = vmatmul.f32.gmra.mxu0 %v3707
        %v3819 = vpop.f32.mrf.mxu0
        %v3820 = vadd.f32 0.0, %v3819
        %3821 = vmatmul.f32.gmra.mxu0 %v3710
        %v3822 = vpop.f32.mrf.mxu0
        %v3823 = vadd.f32 0.0, %v3822
        %3824 = vmatmul.f32.gmra.mxu0 %v3713
        %v3825 = vpop.f32.mrf.mxu0
        %v3826 = vadd.f32 0.0, %v3825
        %3827 = vmatmul.f32.gmra.mxu0 %v3716
        %v3828 = vpop.f32.mrf.mxu0
        %v3829 = vadd.f32 0.0, %v3828
        %3830 = vmatmul.f32.gmra.mxu0 %v3719
        %v3831 = vpop.f32.mrf.mxu0
        %v3832 = vadd.f32 0.0, %v3831
        %3833 = vmatmul.f32.gmra.mxu0 %v3722
        %v3834 = vpop.f32.mrf.mxu0
        %v3835 = vadd.f32 0.0, %v3834
        %3836 = vmatmul.f32.gmra.mxu0 %v3725
        %v3837 = vpop.f32.mrf.mxu0
        %v3838 = vadd.f32 0.0, %v3837
        %3839 = vmatmul.f32.gmra.mxu0 %v3728
        %v3840 = vpop.f32.mrf.mxu0
        %v3841 = vadd.f32 0.0, %v3840
        %3842 = vmatmul.f32.gmra.mxu0 %v3731
        %v3843 = vpop.f32.mrf.mxu0
        %v3844 = vadd.f32 0.0, %v3843
        %3845 = vmatmul.f32.gmra.mxu0 %v3734
        %v3846 = vpop.f32.mrf.mxu0
        %v3847 = vadd.f32 0.0, %v3846
        %3848 = vmatmul.f32.gmra.mxu0 %v3737
        %v3849 = vpop.f32.mrf.mxu0
        %v3850 = vadd.f32 0.0, %v3849
        %3851 = vmatmul.f32.gmra.mxu0 %v3740
        %v3852 = vpop.f32.mrf.mxu0
        %v3853 = vadd.f32 0.0, %v3852
        %3854 = vmatmul.f32.gmra.mxu0 %v3743
        %v3855 = vpop.f32.mrf.mxu0
        %v3856 = vadd.f32 0.0, %v3855
        %3857 = vmatmul.f32.gmra.mxu0 %v3746
        %v3858 = vpop.f32.mrf.mxu0
        %v3859 = vadd.f32 0.0, %v3858
        %3860 = vmatmul.f32.gmra.mxu0 %v3749
        %v3861 = vpop.f32.mrf.mxu0
        %v3862 = vadd.f32 0.0, %v3861
        %3863 = vmatmul.f32.gmra.mxu0 %v3752
        %v3864 = vpop.f32.mrf.mxu0
        %v3865 = vadd.f32 0.0, %v3864
        %3866 = vmatmul.f32.gmra.mxu0 %v3755
        %v3867 = vpop.f32.mrf.mxu0
        %v3868 = vadd.f32 0.0, %v3867
        %3869 = vmatmul.f32.gmra.mxu0 %v3758
        %v3870 = vpop.f32.mrf.mxu0
        %v3871 = vadd.f32 0.0, %v3870
        %3872 = vmatmul.f32.gmra.mxu0 %v3761
        %v3873 = vpop.f32.mrf.mxu0
        %v3874 = vadd.f32 0.0, %v3873
        %3875 = vmatmul.f32.gmra.mxu0 %v3764
        %v3876 = vpop.f32.mrf.mxu0
        %v3877 = vadd.f32 0.0, %v3876
        %3878 = vdwg.mxu0
        %v3879 = vadd.f32 %v3597, %v3784
        %v3880 = vadd.f32 %v3598, %v3787
        %v3881 = vadd.f32 %v3599, %v3790
        %v3882 = vadd.f32 %v3600, %v3793
        %v3883 = vadd.f32 %v3601, %v3796
        %v3884 = vadd.f32 %v3602, %v3799
        %v3885 = vadd.f32 %v3603, %v3802
        %v3886 = vadd.f32 %v3604, %v3805
        %v3887 = vadd.f32 %v3605, %v3808
        %v3888 = vadd.f32 %v3606, %v3811
        %v3889 = vadd.f32 %v3607, %v3814
        %v3890 = vadd.f32 %v3608, %v3817
        %v3891 = vadd.f32 %v3609, %v3820
        %v3892 = vadd.f32 %v3610, %v3823
        %v3893 = vadd.f32 %v3611, %v3826
        %v3894 = vadd.f32 %v3612, %v3829
        %v3895 = vadd.f32 %v3613, %v3832
        %v3896 = vadd.f32 %v3614, %v3835
        %v3897 = vadd.f32 %v3615, %v3838
        %v3898 = vadd.f32 %v3616, %v3841
        %v3899 = vadd.f32 %v3617, %v3844
        %v3900 = vadd.f32 %v3618, %v3847
        %v3901 = vadd.f32 %v3619, %v3850
        %v3902 = vadd.f32 %v3620, %v3853
        %v3903 = vadd.f32 %v3621, %v3856
        %v3904 = vadd.f32 %v3622, %v3859
        %v3905 = vadd.f32 %v3623, %v3862
        %v3906 = vadd.f32 %v3624, %v3865
        %v3907 = vadd.f32 %v3625, %v3868
        %v3908 = vadd.f32 %v3626, %v3871
        %v3909 = vadd.f32 %v3627, %v3874
        %v3910 = vadd.f32 %v3628, %v3877
        %s3911 = scalar_lea.vmem [#allocation2], 48
        %v3912 = vld [vmem:[%s3911] sm:$0xff]
        %v3913 = vld [vmem:[%s3911 + $0x8] sm:$0xff]
        %v3914 = vld [vmem:[%s3911 + $0x18] sm:$0xff]
        %v3915 = vld [vmem:[%s3911 + $0x20] sm:$0xff]
        %v3916 = vld [vmem:[%s3911 + $0x30] sm:$0xff]
        %v3917 = vld [vmem:[%s3911 + $0x38] sm:$0xff]
        %v3918 = vld [vmem:[%s3911 + $0x48] sm:$0xff]
        %v3919 = vld [vmem:[%s3911 + $0x50] sm:$0xff]
        %v3920 = vld [vmem:[%s3911 + $0x60] sm:$0xff]
        %v3921 = vld [vmem:[%s3911 + $0x68] sm:$0xff]
        %v3922 = vld [vmem:[%s3911 + $0x78] sm:$0xff]
        %v3923 = vld [vmem:[%s3911 + $0x80] sm:$0xff]
        %v3924 = vld [vmem:[%s3911 + $0x90] sm:$0xff]
        %v3925 = vld [vmem:[%s3911 + $0x98] sm:$0xff]
        %v3926 = vld [vmem:[%s3911 + $0xa8] sm:$0xff]
        %v3927 = vld [vmem:[%s3911 + $0xb0] sm:$0xff]
        %v3928 = vld [vmem:[%s3911 + $0xc0] sm:$0xff]
        %v3929 = vld [vmem:[%s3911 + $0xc8] sm:$0xff]
        %v3930 = vld [vmem:[%s3911 + $0xd8] sm:$0xff]
        %v3931 = vld [vmem:[%s3911 + $0xe0] sm:$0xff]
        %v3932 = vld [vmem:[%s3911 + $0xf0] sm:$0xff]
        %v3933 = vld [vmem:[%s3911 + $0xf8] sm:$0xff]
        %v3934 = vld [vmem:[%s3911 + $0x108] sm:$0xff]
        %v3935 = vld [vmem:[%s3911 + $0x110] sm:$0xff]
        %v3936 = vld [vmem:[%s3911 + $0x120] sm:$0xff]
        %v3937 = vld [vmem:[%s3911 + $0x128] sm:$0xff]
        %v3938 = vld [vmem:[%s3911 + $0x138] sm:$0xff]
        %v3939 = vld [vmem:[%s3911 + $0x140] sm:$0xff]
        %v3940 = vld [vmem:[%s3911 + $0x150] sm:$0xff]
        %v3941 = vld [vmem:[%s3911 + $0x158] sm:$0xff]
        %v3942 = vld [vmem:[%s3911 + $0x168] sm:$0xff]
        %v3943 = vld [vmem:[%s3911 + $0x170] sm:$0xff]
        %s3944 = scalar_lea.vmem %s2, 192
        %v3945 = vld [vmem:[%s3944] sm:$0xff]
        %v3946 = vld [vmem:[%s3944 + $0x8] sm:$0xff]
        %v3947 = vld [vmem:[%s3944 + $0x10] sm:$0xff]
        %v3948 = vld [vmem:[%s3944 + $0x18] sm:$0xff]
        %v3950 = vsel %vm363, %v3912, 0
        %v3953 = vsel %vm363, %v3913, 0
        %v3956 = vsel %vm363, %v3914, 0
        %v3959 = vsel %vm363, %v3915, 0
        %v3962 = vsel %vm363, %v3916, 0
        %v3965 = vsel %vm363, %v3917, 0
        %v3968 = vsel %vm363, %v3918, 0
        %v3971 = vsel %vm363, %v3919, 0
        %v3974 = vsel %vm363, %v3920, 0
        %v3977 = vsel %vm363, %v3921, 0
        %v3980 = vsel %vm363, %v3922, 0
        %v3983 = vsel %vm363, %v3923, 0
        %v3986 = vsel %vm363, %v3924, 0
        %v3989 = vsel %vm363, %v3925, 0
        %v3992 = vsel %vm363, %v3926, 0
        %v3995 = vsel %vm363, %v3927, 0
        %v3998 = vsel %vm363, %v3928, 0
        %v4001 = vsel %vm363, %v3929, 0
        %v4004 = vsel %vm363, %v3930, 0
        %v4007 = vsel %vm363, %v3931, 0
        %v4010 = vsel %vm363, %v3932, 0
        %v4013 = vsel %vm363, %v3933, 0
        %v4016 = vsel %vm363, %v3934, 0
        %v4019 = vsel %vm363, %v3935, 0
        %v4022 = vsel %vm363, %v3936, 0
        %v4025 = vsel %vm363, %v3937, 0
        %v4028 = vsel %vm363, %v3938, 0
        %v4031 = vsel %vm363, %v3939, 0
        %v4034 = vsel %vm363, %v3940, 0
        %v4037 = vsel %vm363, %v3941, 0
        %v4040 = vsel %vm363, %v3942, 0
        %v4043 = vsel %vm363, %v3943, 0
        %4045 = vmatpush.msra.mxu0 0.0
        %4046 = vmatpush.msra.mxu0 0.0
        %4047 = vmatpush.msra.mxu0 0.0
        %4048 = vmatpush.msra.mxu0 0.0
        %4049 = vmatpush.msra.mxu0 0.0
        %4050 = vmatpush.msra.mxu0 0.0
        %4051 = vmatpush.msra.mxu0 0.0
        %4052 = vmatpush.msra.mxu0 0.0
        %4053 = vmatpush.msra.mxu0 0.0
        %4054 = vmatpush.msra.mxu0 0.0
        %4055 = vmatpush.msra.mxu0 0.0
        %4056 = vmatpush.msra.mxu0 0.0
        %4057 = vmatpush.msra.mxu0 %v3948
        %4058 = vmatpush.msra.mxu0 %v3947
        %4059 = vmatpush.msra.mxu0 %v3946
        %4060 = vmatpush.msra.mxu0 %v3945
        %4061 = vmatmul.f32.gmra.mxu0 %v3950
        %v4062 = vpop.f32.mrf.mxu0
        %v4063 = vadd.f32 0.0, %v4062
        %4064 = vmatmul.f32.gmra.mxu0 %v3953
        %v4065 = vpop.f32.mrf.mxu0
        %v4066 = vadd.f32 0.0, %v4065
        %4067 = vmatmul.f32.gmra.mxu0 %v3956
        %v4068 = vpop.f32.mrf.mxu0
        %v4069 = vadd.f32 0.0, %v4068
        %4070 = vmatmul.f32.gmra.mxu0 %v3959
        %v4071 = vpop.f32.mrf.mxu0
        %v4072 = vadd.f32 0.0, %v4071
        %4073 = vmatmul.f32.gmra.mxu0 %v3962
        %v4074 = vpop.f32.mrf.mxu0
        %v4075 = vadd.f32 0.0, %v4074
        %4076 = vmatmul.f32.gmra.mxu0 %v3965
        %v4077 = vpop.f32.mrf.mxu0
        %v4078 = vadd.f32 0.0, %v4077
        %4079 = vmatmul.f32.gmra.mxu0 %v3968
        %v4080 = vpop.f32.mrf.mxu0
        %v4081 = vadd.f32 0.0, %v4080
        %4082 = vmatmul.f32.gmra.mxu0 %v3971
        %v4083 = vpop.f32.mrf.mxu0
        %v4084 = vadd.f32 0.0, %v4083
        %4085 = vmatmul.f32.gmra.mxu0 %v3974
        %v4086 = vpop.f32.mrf.mxu0
        %v4087 = vadd.f32 0.0, %v4086
        %4088 = vmatmul.f32.gmra.mxu0 %v3977
        %v4089 = vpop.f32.mrf.mxu0
        %v4090 = vadd.f32 0.0, %v4089
        %4091 = vmatmul.f32.gmra.mxu0 %v3980
        %v4092 = vpop.f32.mrf.mxu0
        %v4093 = vadd.f32 0.0, %v4092
        %4094 = vmatmul.f32.gmra.mxu0 %v3983
        %v4095 = vpop.f32.mrf.mxu0
        %v4096 = vadd.f32 0.0, %v4095
        %4097 = vmatmul.f32.gmra.mxu0 %v3986
        %v4098 = vpop.f32.mrf.mxu0
        %v4099 = vadd.f32 0.0, %v4098
        %4100 = vmatmul.f32.gmra.mxu0 %v3989
        %v4101 = vpop.f32.mrf.mxu0
        %v4102 = vadd.f32 0.0, %v4101
        %4103 = vmatmul.f32.gmra.mxu0 %v3992
        %v4104 = vpop.f32.mrf.mxu0
        %v4105 = vadd.f32 0.0, %v4104
        %4106 = vmatmul.f32.gmra.mxu0 %v3995
        %v4107 = vpop.f32.mrf.mxu0
        %v4108 = vadd.f32 0.0, %v4107
        %4109 = vmatmul.f32.gmra.mxu0 %v3998
        %v4110 = vpop.f32.mrf.mxu0
        %v4111 = vadd.f32 0.0, %v4110
        %4112 = vmatmul.f32.gmra.mxu0 %v4001
        %v4113 = vpop.f32.mrf.mxu0
        %v4114 = vadd.f32 0.0, %v4113
        %4115 = vmatmul.f32.gmra.mxu0 %v4004
        %v4116 = vpop.f32.mrf.mxu0
        %v4117 = vadd.f32 0.0, %v4116
        %4118 = vmatmul.f32.gmra.mxu0 %v4007
        %v4119 = vpop.f32.mrf.mxu0
        %v4120 = vadd.f32 0.0, %v4119
        %4121 = vmatmul.f32.gmra.mxu0 %v4010
        %v4122 = vpop.f32.mrf.mxu0
        %v4123 = vadd.f32 0.0, %v4122
        %4124 = vmatmul.f32.gmra.mxu0 %v4013
        %v4125 = vpop.f32.mrf.mxu0
        %v4126 = vadd.f32 0.0, %v4125
        %4127 = vmatmul.f32.gmra.mxu0 %v4016
        %v4128 = vpop.f32.mrf.mxu0
        %v4129 = vadd.f32 0.0, %v4128
        %4130 = vmatmul.f32.gmra.mxu0 %v4019
        %v4131 = vpop.f32.mrf.mxu0
        %v4132 = vadd.f32 0.0, %v4131
        %4133 = vmatmul.f32.gmra.mxu0 %v4022
        %v4134 = vpop.f32.mrf.mxu0
        %v4135 = vadd.f32 0.0, %v4134
        %4136 = vmatmul.f32.gmra.mxu0 %v4025
        %v4137 = vpop.f32.mrf.mxu0
        %v4138 = vadd.f32 0.0, %v4137
        %4139 = vmatmul.f32.gmra.mxu0 %v4028
        %v4140 = vpop.f32.mrf.mxu0
        %v4141 = vadd.f32 0.0, %v4140
        %4142 = vmatmul.f32.gmra.mxu0 %v4031
        %v4143 = vpop.f32.mrf.mxu0
        %v4144 = vadd.f32 0.0, %v4143
        %4145 = vmatmul.f32.gmra.mxu0 %v4034
        %v4146 = vpop.f32.mrf.mxu0
        %v4147 = vadd.f32 0.0, %v4146
        %4148 = vmatmul.f32.gmra.mxu0 %v4037
        %v4149 = vpop.f32.mrf.mxu0
        %v4150 = vadd.f32 0.0, %v4149
        %4151 = vmatmul.f32.gmra.mxu0 %v4040
        %v4152 = vpop.f32.mrf.mxu0
        %v4153 = vadd.f32 0.0, %v4152
        %4154 = vmatmul.f32.gmra.mxu0 %v4043
        %v4155 = vpop.f32.mrf.mxu0
        %v4156 = vadd.f32 0.0, %v4155
        %4157 = vdwg.mxu0
        %v4158 = vadd.f32 %v3879, %v4063
        %v4159 = vadd.f32 %v3880, %v4066
        %v4160 = vadd.f32 %v3881, %v4069
        %v4161 = vadd.f32 %v3882, %v4072
        %v4162 = vadd.f32 %v3883, %v4075
        %v4163 = vadd.f32 %v3884, %v4078
        %v4164 = vadd.f32 %v3885, %v4081
        %v4165 = vadd.f32 %v3886, %v4084
        %v4166 = vadd.f32 %v3887, %v4087
        %v4167 = vadd.f32 %v3888, %v4090
        %v4168 = vadd.f32 %v3889, %v4093
        %v4169 = vadd.f32 %v3890, %v4096
        %v4170 = vadd.f32 %v3891, %v4099
        %v4171 = vadd.f32 %v3892, %v4102
        %v4172 = vadd.f32 %v3893, %v4105
        %v4173 = vadd.f32 %v3894, %v4108
        %v4174 = vadd.f32 %v3895, %v4111
        %v4175 = vadd.f32 %v3896, %v4114
        %v4176 = vadd.f32 %v3897, %v4117
        %v4177 = vadd.f32 %v3898, %v4120
        %v4178 = vadd.f32 %v3899, %v4123
        %v4179 = vadd.f32 %v3900, %v4126
        %v4180 = vadd.f32 %v3901, %v4129
        %v4181 = vadd.f32 %v3902, %v4132
        %v4182 = vadd.f32 %v3903, %v4135
        %v4183 = vadd.f32 %v3904, %v4138
        %v4184 = vadd.f32 %v3905, %v4141
        %v4185 = vadd.f32 %v3906, %v4144
        %v4186 = vadd.f32 %v3907, %v4147
        %v4187 = vadd.f32 %v3908, %v4150
        %v4188 = vadd.f32 %v3909, %v4153
        %v4189 = vadd.f32 %v3910, %v4156
        %s4190 = scalar_lea.vmem [#allocation3], 48
        %v4191 = vld [vmem:[%s4190] sm:$0xff]
        %v4192 = vld [vmem:[%s4190 + $0x8] sm:$0xff]
        %v4193 = vld [vmem:[%s4190 + $0x18] sm:$0xff]
        %v4194 = vld [vmem:[%s4190 + $0x20] sm:$0xff]
        %v4195 = vld [vmem:[%s4190 + $0x30] sm:$0xff]
        %v4196 = vld [vmem:[%s4190 + $0x38] sm:$0xff]
        %v4197 = vld [vmem:[%s4190 + $0x48] sm:$0xff]
        %v4198 = vld [vmem:[%s4190 + $0x50] sm:$0xff]
        %v4199 = vld [vmem:[%s4190 + $0x60] sm:$0xff]
        %v4200 = vld [vmem:[%s4190 + $0x68] sm:$0xff]
        %v4201 = vld [vmem:[%s4190 + $0x78] sm:$0xff]
        %v4202 = vld [vmem:[%s4190 + $0x80] sm:$0xff]
        %v4203 = vld [vmem:[%s4190 + $0x90] sm:$0xff]
        %v4204 = vld [vmem:[%s4190 + $0x98] sm:$0xff]
        %v4205 = vld [vmem:[%s4190 + $0xa8] sm:$0xff]
        %v4206 = vld [vmem:[%s4190 + $0xb0] sm:$0xff]
        %v4207 = vld [vmem:[%s4190 + $0xc0] sm:$0xff]
        %v4208 = vld [vmem:[%s4190 + $0xc8] sm:$0xff]
        %v4209 = vld [vmem:[%s4190 + $0xd8] sm:$0xff]
        %v4210 = vld [vmem:[%s4190 + $0xe0] sm:$0xff]
        %v4211 = vld [vmem:[%s4190 + $0xf0] sm:$0xff]
        %v4212 = vld [vmem:[%s4190 + $0xf8] sm:$0xff]
        %v4213 = vld [vmem:[%s4190 + $0x108] sm:$0xff]
        %v4214 = vld [vmem:[%s4190 + $0x110] sm:$0xff]
        %v4215 = vld [vmem:[%s4190 + $0x120] sm:$0xff]
        %v4216 = vld [vmem:[%s4190 + $0x128] sm:$0xff]
        %v4217 = vld [vmem:[%s4190 + $0x138] sm:$0xff]
        %v4218 = vld [vmem:[%s4190 + $0x140] sm:$0xff]
        %v4219 = vld [vmem:[%s4190 + $0x150] sm:$0xff]
        %v4220 = vld [vmem:[%s4190 + $0x158] sm:$0xff]
        %v4221 = vld [vmem:[%s4190 + $0x168] sm:$0xff]
        %v4222 = vld [vmem:[%s4190 + $0x170] sm:$0xff]
        %s4223 = scalar_lea.vmem %s3, 384
        %v4224 = vld [vmem:[%s4223] sm:$0xff]
        %v4225 = vld [vmem:[%s4223 + $0x8] sm:$0xff]
        %v4226 = vld [vmem:[%s4223 + $0x10] sm:$0xff]
        %v4227 = vld [vmem:[%s4223 + $0x18] sm:$0xff]
        %v4228 = vld [vmem:[%s4223 + $0x20] sm:$0xff]
        %v4229 = vld [vmem:[%s4223 + $0x28] sm:$0xff]
        %v4230 = vld [vmem:[%s4223 + $0x30] sm:$0xff]
        %v4231 = vld [vmem:[%s4223 + $0x38] sm:$0xff]
        %v4233 = vsel %vm406, %v4191, 0
        %v4236 = vsel %vm406, %v4192, 0
        %v4239 = vsel %vm406, %v4193, 0
        %v4242 = vsel %vm406, %v4194, 0
        %v4245 = vsel %vm406, %v4195, 0
        %v4248 = vsel %vm406, %v4196, 0
        %v4251 = vsel %vm406, %v4197, 0
        %v4254 = vsel %vm406, %v4198, 0
        %v4257 = vsel %vm406, %v4199, 0
        %v4260 = vsel %vm406, %v4200, 0
        %v4263 = vsel %vm406, %v4201, 0
        %v4266 = vsel %vm406, %v4202, 0
        %v4269 = vsel %vm406, %v4203, 0
        %v4272 = vsel %vm406, %v4204, 0
        %v4275 = vsel %vm406, %v4205, 0
        %v4278 = vsel %vm406, %v4206, 0
        %v4281 = vsel %vm406, %v4207, 0
        %v4284 = vsel %vm406, %v4208, 0
        %v4287 = vsel %vm406, %v4209, 0
        %v4290 = vsel %vm406, %v4210, 0
        %v4293 = vsel %vm406, %v4211, 0
        %v4296 = vsel %vm406, %v4212, 0
        %v4299 = vsel %vm406, %v4213, 0
        %v4302 = vsel %vm406, %v4214, 0
        %v4305 = vsel %vm406, %v4215, 0
        %v4308 = vsel %vm406, %v4216, 0
        %v4311 = vsel %vm406, %v4217, 0
        %v4314 = vsel %vm406, %v4218, 0
        %v4317 = vsel %vm406, %v4219, 0
        %v4320 = vsel %vm406, %v4220, 0
        %v4323 = vsel %vm406, %v4221, 0
        %v4326 = vsel %vm406, %v4222, 0
        %4328 = vmatpush.msra.mxu0 0.0
        %4329 = vmatpush.msra.mxu0 0.0
        %4330 = vmatpush.msra.mxu0 0.0
        %4331 = vmatpush.msra.mxu0 0.0
        %4332 = vmatpush.msra.mxu0 0.0
        %4333 = vmatpush.msra.mxu0 0.0
        %4334 = vmatpush.msra.mxu0 0.0
        %4335 = vmatpush.msra.mxu0 0.0
        %4336 = vmatpush.msra.mxu0 %v4231
        %4337 = vmatpush.msra.mxu0 %v4230
        %4338 = vmatpush.msra.mxu0 %v4229
        %4339 = vmatpush.msra.mxu0 %v4228
        %4340 = vmatpush.msra.mxu0 %v4227
        %4341 = vmatpush.msra.mxu0 %v4226
        %4342 = vmatpush.msra.mxu0 %v4225
        %4343 = vmatpush.msra.mxu0 %v4224
        %4344 = vmatmul.f32.gmra.mxu0 %v4233
        %v4345 = vpop.f32.mrf.mxu0
        %v4346 = vadd.f32 0.0, %v4345
        %4347 = vmatmul.f32.gmra.mxu0 %v4236
        %v4348 = vpop.f32.mrf.mxu0
        %v4349 = vadd.f32 0.0, %v4348
        %4350 = vmatmul.f32.gmra.mxu0 %v4239
        %v4351 = vpop.f32.mrf.mxu0
        %v4352 = vadd.f32 0.0, %v4351
        %4353 = vmatmul.f32.gmra.mxu0 %v4242
        %v4354 = vpop.f32.mrf.mxu0
        %v4355 = vadd.f32 0.0, %v4354
        %4356 = vmatmul.f32.gmra.mxu0 %v4245
        %v4357 = vpop.f32.mrf.mxu0
        %v4358 = vadd.f32 0.0, %v4357
        %4359 = vmatmul.f32.gmra.mxu0 %v4248
        %v4360 = vpop.f32.mrf.mxu0
        %v4361 = vadd.f32 0.0, %v4360
        %4362 = vmatmul.f32.gmra.mxu0 %v4251
        %v4363 = vpop.f32.mrf.mxu0
        %v4364 = vadd.f32 0.0, %v4363
        %4365 = vmatmul.f32.gmra.mxu0 %v4254
        %v4366 = vpop.f32.mrf.mxu0
        %v4367 = vadd.f32 0.0, %v4366
        %4368 = vmatmul.f32.gmra.mxu0 %v4257
        %v4369 = vpop.f32.mrf.mxu0
        %v4370 = vadd.f32 0.0, %v4369
        %4371 = vmatmul.f32.gmra.mxu0 %v4260
        %v4372 = vpop.f32.mrf.mxu0
        %v4373 = vadd.f32 0.0, %v4372
        %4374 = vmatmul.f32.gmra.mxu0 %v4263
        %v4375 = vpop.f32.mrf.mxu0
        %v4376 = vadd.f32 0.0, %v4375
        %4377 = vmatmul.f32.gmra.mxu0 %v4266
        %v4378 = vpop.f32.mrf.mxu0
        %v4379 = vadd.f32 0.0, %v4378
        %4380 = vmatmul.f32.gmra.mxu0 %v4269
        %v4381 = vpop.f32.mrf.mxu0
        %v4382 = vadd.f32 0.0, %v4381
        %4383 = vmatmul.f32.gmra.mxu0 %v4272
        %v4384 = vpop.f32.mrf.mxu0
        %v4385 = vadd.f32 0.0, %v4384
        %4386 = vmatmul.f32.gmra.mxu0 %v4275
        %v4387 = vpop.f32.mrf.mxu0
        %v4388 = vadd.f32 0.0, %v4387
        %4389 = vmatmul.f32.gmra.mxu0 %v4278
        %v4390 = vpop.f32.mrf.mxu0
        %v4391 = vadd.f32 0.0, %v4390
        %4392 = vmatmul.f32.gmra.mxu0 %v4281
        %v4393 = vpop.f32.mrf.mxu0
        %v4394 = vadd.f32 0.0, %v4393
        %4395 = vmatmul.f32.gmra.mxu0 %v4284
        %v4396 = vpop.f32.mrf.mxu0
        %v4397 = vadd.f32 0.0, %v4396
        %4398 = vmatmul.f32.gmra.mxu0 %v4287
        %v4399 = vpop.f32.mrf.mxu0
        %v4400 = vadd.f32 0.0, %v4399
        %4401 = vmatmul.f32.gmra.mxu0 %v4290
        %v4402 = vpop.f32.mrf.mxu0
        %v4403 = vadd.f32 0.0, %v4402
        %4404 = vmatmul.f32.gmra.mxu0 %v4293
        %v4405 = vpop.f32.mrf.mxu0
        %v4406 = vadd.f32 0.0, %v4405
        %4407 = vmatmul.f32.gmra.mxu0 %v4296
        %v4408 = vpop.f32.mrf.mxu0
        %v4409 = vadd.f32 0.0, %v4408
        %4410 = vmatmul.f32.gmra.mxu0 %v4299
        %v4411 = vpop.f32.mrf.mxu0
        %v4412 = vadd.f32 0.0, %v4411
        %4413 = vmatmul.f32.gmra.mxu0 %v4302
        %v4414 = vpop.f32.mrf.mxu0
        %v4415 = vadd.f32 0.0, %v4414
        %4416 = vmatmul.f32.gmra.mxu0 %v4305
        %v4417 = vpop.f32.mrf.mxu0
        %v4418 = vadd.f32 0.0, %v4417
        %4419 = vmatmul.f32.gmra.mxu0 %v4308
        %v4420 = vpop.f32.mrf.mxu0
        %v4421 = vadd.f32 0.0, %v4420
        %4422 = vmatmul.f32.gmra.mxu0 %v4311
        %v4423 = vpop.f32.mrf.mxu0
        %v4424 = vadd.f32 0.0, %v4423
        %4425 = vmatmul.f32.gmra.mxu0 %v4314
        %v4426 = vpop.f32.mrf.mxu0
        %v4427 = vadd.f32 0.0, %v4426
        %4428 = vmatmul.f32.gmra.mxu0 %v4317
        %v4429 = vpop.f32.mrf.mxu0
        %v4430 = vadd.f32 0.0, %v4429
        %4431 = vmatmul.f32.gmra.mxu0 %v4320
        %v4432 = vpop.f32.mrf.mxu0
        %v4433 = vadd.f32 0.0, %v4432
        %4434 = vmatmul.f32.gmra.mxu0 %v4323
        %v4435 = vpop.f32.mrf.mxu0
        %v4436 = vadd.f32 0.0, %v4435
        %4437 = vmatmul.f32.gmra.mxu0 %v4326
        %v4438 = vpop.f32.mrf.mxu0
        %v4439 = vadd.f32 0.0, %v4438
        %4440 = vdwg.mxu0
        %v4441 = vadd.f32 %v4158, %v4346
        %v4442 = vadd.f32 %v4159, %v4349
        %v4443 = vadd.f32 %v4160, %v4352
        %v4444 = vadd.f32 %v4161, %v4355
        %v4445 = vadd.f32 %v4162, %v4358
        %v4446 = vadd.f32 %v4163, %v4361
        %v4447 = vadd.f32 %v4164, %v4364
        %v4448 = vadd.f32 %v4165, %v4367
        %v4449 = vadd.f32 %v4166, %v4370
        %v4450 = vadd.f32 %v4167, %v4373
        %v4451 = vadd.f32 %v4168, %v4376
        %v4452 = vadd.f32 %v4169, %v4379
        %v4453 = vadd.f32 %v4170, %v4382
        %v4454 = vadd.f32 %v4171, %v4385
        %v4455 = vadd.f32 %v4172, %v4388
        %v4456 = vadd.f32 %v4173, %v4391
        %v4457 = vadd.f32 %v4174, %v4394
        %v4458 = vadd.f32 %v4175, %v4397
        %v4459 = vadd.f32 %v4176, %v4400
        %v4460 = vadd.f32 %v4177, %v4403
        %v4461 = vadd.f32 %v4178, %v4406
        %v4462 = vadd.f32 %v4179, %v4409
        %v4463 = vadd.f32 %v4180, %v4412
        %v4464 = vadd.f32 %v4181, %v4415
        %v4465 = vadd.f32 %v4182, %v4418
        %v4466 = vadd.f32 %v4183, %v4421
        %v4467 = vadd.f32 %v4184, %v4424
        %v4468 = vadd.f32 %v4185, %v4427
        %v4469 = vadd.f32 %v4186, %v4430
        %v4470 = vadd.f32 %v4187, %v4433
        %v4471 = vadd.f32 %v4188, %v4436
        %v4472 = vadd.f32 %v4189, %v4439
        %v4473 = vld [vmem:[%s3911 + $0x1] sm:$0xff]
        %v4474 = vld [vmem:[%s3911 + $0x9] sm:$0xff]
        %v4475 = vld [vmem:[%s3911 + $0x19] sm:$0xff]
        %v4476 = vld [vmem:[%s3911 + $0x21] sm:$0xff]
        %v4477 = vld [vmem:[%s3911 + $0x31] sm:$0xff]
        %v4478 = vld [vmem:[%s3911 + $0x39] sm:$0xff]
        %v4479 = vld [vmem:[%s3911 + $0x49] sm:$0xff]
        %v4480 = vld [vmem:[%s3911 + $0x51] sm:$0xff]
        %v4481 = vld [vmem:[%s3911 + $0x61] sm:$0xff]
        %v4482 = vld [vmem:[%s3911 + $0x69] sm:$0xff]
        %v4483 = vld [vmem:[%s3911 + $0x79] sm:$0xff]
        %v4484 = vld [vmem:[%s3911 + $0x81] sm:$0xff]
        %v4485 = vld [vmem:[%s3911 + $0x91] sm:$0xff]
        %v4486 = vld [vmem:[%s3911 + $0x99] sm:$0xff]
        %v4487 = vld [vmem:[%s3911 + $0xa9] sm:$0xff]
        %v4488 = vld [vmem:[%s3911 + $0xb1] sm:$0xff]
        %v4489 = vld [vmem:[%s3911 + $0xc1] sm:$0xff]
        %v4490 = vld [vmem:[%s3911 + $0xc9] sm:$0xff]
        %v4491 = vld [vmem:[%s3911 + $0xd9] sm:$0xff]
        %v4492 = vld [vmem:[%s3911 + $0xe1] sm:$0xff]
        %v4493 = vld [vmem:[%s3911 + $0xf1] sm:$0xff]
        %v4494 = vld [vmem:[%s3911 + $0xf9] sm:$0xff]
        %v4495 = vld [vmem:[%s3911 + $0x109] sm:$0xff]
        %v4496 = vld [vmem:[%s3911 + $0x111] sm:$0xff]
        %v4497 = vld [vmem:[%s3911 + $0x121] sm:$0xff]
        %v4498 = vld [vmem:[%s3911 + $0x129] sm:$0xff]
        %v4499 = vld [vmem:[%s3911 + $0x139] sm:$0xff]
        %v4500 = vld [vmem:[%s3911 + $0x141] sm:$0xff]
        %v4501 = vld [vmem:[%s3911 + $0x151] sm:$0xff]
        %v4502 = vld [vmem:[%s3911 + $0x159] sm:$0xff]
        %v4503 = vld [vmem:[%s3911 + $0x169] sm:$0xff]
        %v4504 = vld [vmem:[%s3911 + $0x171] sm:$0xff]
        %s4505 = scalar_lea.vmem %s2, 224
        %v4506 = vld [vmem:[%s4505] sm:$0xff]
        %v4507 = vld [vmem:[%s4505 + $0x8] sm:$0xff]
        %v4508 = vld [vmem:[%s4505 + $0x10] sm:$0xff]
        %v4509 = vld [vmem:[%s4505 + $0x18] sm:$0xff]
        %v4511 = vsel %vm363, %v4473, 0
        %v4514 = vsel %vm363, %v4474, 0
        %v4517 = vsel %vm363, %v4475, 0
        %v4520 = vsel %vm363, %v4476, 0
        %v4523 = vsel %vm363, %v4477, 0
        %v4526 = vsel %vm363, %v4478, 0
        %v4529 = vsel %vm363, %v4479, 0
        %v4532 = vsel %vm363, %v4480, 0
        %v4535 = vsel %vm363, %v4481, 0
        %v4538 = vsel %vm363, %v4482, 0
        %v4541 = vsel %vm363, %v4483, 0
        %v4544 = vsel %vm363, %v4484, 0
        %v4547 = vsel %vm363, %v4485, 0
        %v4550 = vsel %vm363, %v4486, 0
        %v4553 = vsel %vm363, %v4487, 0
        %v4556 = vsel %vm363, %v4488, 0
        %v4559 = vsel %vm363, %v4489, 0
        %v4562 = vsel %vm363, %v4490, 0
        %v4565 = vsel %vm363, %v4491, 0
        %v4568 = vsel %vm363, %v4492, 0
        %v4571 = vsel %vm363, %v4493, 0
        %v4574 = vsel %vm363, %v4494, 0
        %v4577 = vsel %vm363, %v4495, 0
        %v4580 = vsel %vm363, %v4496, 0
        %v4583 = vsel %vm363, %v4497, 0
        %v4586 = vsel %vm363, %v4498, 0
        %v4589 = vsel %vm363, %v4499, 0
        %v4592 = vsel %vm363, %v4500, 0
        %v4595 = vsel %vm363, %v4501, 0
        %v4598 = vsel %vm363, %v4502, 0
        %v4601 = vsel %vm363, %v4503, 0
        %v4604 = vsel %vm363, %v4504, 0
        %4606 = vmatpush.msra.mxu0 0.0
        %4607 = vmatpush.msra.mxu0 0.0
        %4608 = vmatpush.msra.mxu0 0.0
        %4609 = vmatpush.msra.mxu0 0.0
        %4610 = vmatpush.msra.mxu0 0.0
        %4611 = vmatpush.msra.mxu0 0.0
        %4612 = vmatpush.msra.mxu0 0.0
        %4613 = vmatpush.msra.mxu0 0.0
        %4614 = vmatpush.msra.mxu0 0.0
        %4615 = vmatpush.msra.mxu0 0.0
        %4616 = vmatpush.msra.mxu0 0.0
        %4617 = vmatpush.msra.mxu0 0.0
        %4618 = vmatpush.msra.mxu0 %v4509
        %4619 = vmatpush.msra.mxu0 %v4508
        %4620 = vmatpush.msra.mxu0 %v4507
        %4621 = vmatpush.msra.mxu0 %v4506
        %4622 = vmatmul.f32.gmra.mxu0 %v4511
        %v4623 = vpop.f32.mrf.mxu0
        %v4624 = vadd.f32 0.0, %v4623
        %4625 = vmatmul.f32.gmra.mxu0 %v4514
        %v4626 = vpop.f32.mrf.mxu0
        %v4627 = vadd.f32 0.0, %v4626
        %4628 = vmatmul.f32.gmra.mxu0 %v4517
        %v4629 = vpop.f32.mrf.mxu0
        %v4630 = vadd.f32 0.0, %v4629
        %4631 = vmatmul.f32.gmra.mxu0 %v4520
        %v4632 = vpop.f32.mrf.mxu0
        %v4633 = vadd.f32 0.0, %v4632
        %4634 = vmatmul.f32.gmra.mxu0 %v4523
        %v4635 = vpop.f32.mrf.mxu0
        %v4636 = vadd.f32 0.0, %v4635
        %4637 = vmatmul.f32.gmra.mxu0 %v4526
        %v4638 = vpop.f32.mrf.mxu0
        %v4639 = vadd.f32 0.0, %v4638
        %4640 = vmatmul.f32.gmra.mxu0 %v4529
        %v4641 = vpop.f32.mrf.mxu0
        %v4642 = vadd.f32 0.0, %v4641
        %4643 = vmatmul.f32.gmra.mxu0 %v4532
        %v4644 = vpop.f32.mrf.mxu0
        %v4645 = vadd.f32 0.0, %v4644
        %4646 = vmatmul.f32.gmra.mxu0 %v4535
        %v4647 = vpop.f32.mrf.mxu0
        %v4648 = vadd.f32 0.0, %v4647
        %4649 = vmatmul.f32.gmra.mxu0 %v4538
        %v4650 = vpop.f32.mrf.mxu0
        %v4651 = vadd.f32 0.0, %v4650
        %4652 = vmatmul.f32.gmra.mxu0 %v4541
        %v4653 = vpop.f32.mrf.mxu0
        %v4654 = vadd.f32 0.0, %v4653
        %4655 = vmatmul.f32.gmra.mxu0 %v4544
        %v4656 = vpop.f32.mrf.mxu0
        %v4657 = vadd.f32 0.0, %v4656
        %4658 = vmatmul.f32.gmra.mxu0 %v4547
        %v4659 = vpop.f32.mrf.mxu0
        %v4660 = vadd.f32 0.0, %v4659
        %4661 = vmatmul.f32.gmra.mxu0 %v4550
        %v4662 = vpop.f32.mrf.mxu0
        %v4663 = vadd.f32 0.0, %v4662
        %4664 = vmatmul.f32.gmra.mxu0 %v4553
        %v4665 = vpop.f32.mrf.mxu0
        %v4666 = vadd.f32 0.0, %v4665
        %4667 = vmatmul.f32.gmra.mxu0 %v4556
        %v4668 = vpop.f32.mrf.mxu0
        %v4669 = vadd.f32 0.0, %v4668
        %4670 = vmatmul.f32.gmra.mxu0 %v4559
        %v4671 = vpop.f32.mrf.mxu0
        %v4672 = vadd.f32 0.0, %v4671
        %4673 = vmatmul.f32.gmra.mxu0 %v4562
        %v4674 = vpop.f32.mrf.mxu0
        %v4675 = vadd.f32 0.0, %v4674
        %4676 = vmatmul.f32.gmra.mxu0 %v4565
        %v4677 = vpop.f32.mrf.mxu0
        %v4678 = vadd.f32 0.0, %v4677
        %4679 = vmatmul.f32.gmra.mxu0 %v4568
        %v4680 = vpop.f32.mrf.mxu0
        %v4681 = vadd.f32 0.0, %v4680
        %4682 = vmatmul.f32.gmra.mxu0 %v4571
        %v4683 = vpop.f32.mrf.mxu0
        %v4684 = vadd.f32 0.0, %v4683
        %4685 = vmatmul.f32.gmra.mxu0 %v4574
        %v4686 = vpop.f32.mrf.mxu0
        %v4687 = vadd.f32 0.0, %v4686
        %4688 = vmatmul.f32.gmra.mxu0 %v4577
        %v4689 = vpop.f32.mrf.mxu0
        %v4690 = vadd.f32 0.0, %v4689
        %4691 = vmatmul.f32.gmra.mxu0 %v4580
        %v4692 = vpop.f32.mrf.mxu0
        %v4693 = vadd.f32 0.0, %v4692
        %4694 = vmatmul.f32.gmra.mxu0 %v4583
        %v4695 = vpop.f32.mrf.mxu0
        %v4696 = vadd.f32 0.0, %v4695
        %4697 = vmatmul.f32.gmra.mxu0 %v4586
        %v4698 = vpop.f32.mrf.mxu0
        %v4699 = vadd.f32 0.0, %v4698
        %4700 = vmatmul.f32.gmra.mxu0 %v4589
        %v4701 = vpop.f32.mrf.mxu0
        %v4702 = vadd.f32 0.0, %v4701
        %4703 = vmatmul.f32.gmra.mxu0 %v4592
        %v4704 = vpop.f32.mrf.mxu0
        %v4705 = vadd.f32 0.0, %v4704
        %4706 = vmatmul.f32.gmra.mxu0 %v4595
        %v4707 = vpop.f32.mrf.mxu0
        %v4708 = vadd.f32 0.0, %v4707
        %4709 = vmatmul.f32.gmra.mxu0 %v4598
        %v4710 = vpop.f32.mrf.mxu0
        %v4711 = vadd.f32 0.0, %v4710
        %4712 = vmatmul.f32.gmra.mxu0 %v4601
        %v4713 = vpop.f32.mrf.mxu0
        %v4714 = vadd.f32 0.0, %v4713
        %4715 = vmatmul.f32.gmra.mxu0 %v4604
        %v4716 = vpop.f32.mrf.mxu0
        %v4717 = vadd.f32 0.0, %v4716
        %4718 = vdwg.mxu0
        %v4719 = vadd.f32 %v4441, %v4624
        %v4720 = vadd.f32 %v4442, %v4627
        %v4721 = vadd.f32 %v4443, %v4630
        %v4722 = vadd.f32 %v4444, %v4633
        %v4723 = vadd.f32 %v4445, %v4636
        %v4724 = vadd.f32 %v4446, %v4639
        %v4725 = vadd.f32 %v4447, %v4642
        %v4726 = vadd.f32 %v4448, %v4645
        %v4727 = vadd.f32 %v4449, %v4648
        %v4728 = vadd.f32 %v4450, %v4651
        %v4729 = vadd.f32 %v4451, %v4654
        %v4730 = vadd.f32 %v4452, %v4657
        %v4731 = vadd.f32 %v4453, %v4660
        %v4732 = vadd.f32 %v4454, %v4663
        %v4733 = vadd.f32 %v4455, %v4666
        %v4734 = vadd.f32 %v4456, %v4669
        %v4735 = vadd.f32 %v4457, %v4672
        %v4736 = vadd.f32 %v4458, %v4675
        %v4737 = vadd.f32 %v4459, %v4678
        %v4738 = vadd.f32 %v4460, %v4681
        %v4739 = vadd.f32 %v4461, %v4684
        %v4740 = vadd.f32 %v4462, %v4687
        %v4741 = vadd.f32 %v4463, %v4690
        %v4742 = vadd.f32 %v4464, %v4693
        %v4743 = vadd.f32 %v4465, %v4696
        %v4744 = vadd.f32 %v4466, %v4699
        %v4745 = vadd.f32 %v4467, %v4702
        %v4746 = vadd.f32 %v4468, %v4705
        %v4747 = vadd.f32 %v4469, %v4708
        %v4748 = vadd.f32 %v4470, %v4711
        %v4749 = vadd.f32 %v4471, %v4714
        %v4750 = vadd.f32 %v4472, %v4717
        %v4751 = vld [vmem:[%s4190 + $0x1] sm:$0xff]
        %v4752 = vld [vmem:[%s4190 + $0x9] sm:$0xff]
        %v4753 = vld [vmem:[%s4190 + $0x19] sm:$0xff]
        %v4754 = vld [vmem:[%s4190 + $0x21] sm:$0xff]
        %v4755 = vld [vmem:[%s4190 + $0x31] sm:$0xff]
        %v4756 = vld [vmem:[%s4190 + $0x39] sm:$0xff]
        %v4757 = vld [vmem:[%s4190 + $0x49] sm:$0xff]
        %v4758 = vld [vmem:[%s4190 + $0x51] sm:$0xff]
        %v4759 = vld [vmem:[%s4190 + $0x61] sm:$0xff]
        %v4760 = vld [vmem:[%s4190 + $0x69] sm:$0xff]
        %v4761 = vld [vmem:[%s4190 + $0x79] sm:$0xff]
        %v4762 = vld [vmem:[%s4190 + $0x81] sm:$0xff]
        %v4763 = vld [vmem:[%s4190 + $0x91] sm:$0xff]
        %v4764 = vld [vmem:[%s4190 + $0x99] sm:$0xff]
        %v4765 = vld [vmem:[%s4190 + $0xa9] sm:$0xff]
        %v4766 = vld [vmem:[%s4190 + $0xb1] sm:$0xff]
        %v4767 = vld [vmem:[%s4190 + $0xc1] sm:$0xff]
        %v4768 = vld [vmem:[%s4190 + $0xc9] sm:$0xff]
        %v4769 = vld [vmem:[%s4190 + $0xd9] sm:$0xff]
        %v4770 = vld [vmem:[%s4190 + $0xe1] sm:$0xff]
        %v4771 = vld [vmem:[%s4190 + $0xf1] sm:$0xff]
        %v4772 = vld [vmem:[%s4190 + $0xf9] sm:$0xff]
        %v4773 = vld [vmem:[%s4190 + $0x109] sm:$0xff]
        %v4774 = vld [vmem:[%s4190 + $0x111] sm:$0xff]
        %v4775 = vld [vmem:[%s4190 + $0x121] sm:$0xff]
        %v4776 = vld [vmem:[%s4190 + $0x129] sm:$0xff]
        %v4777 = vld [vmem:[%s4190 + $0x139] sm:$0xff]
        %v4778 = vld [vmem:[%s4190 + $0x141] sm:$0xff]
        %v4779 = vld [vmem:[%s4190 + $0x151] sm:$0xff]
        %v4780 = vld [vmem:[%s4190 + $0x159] sm:$0xff]
        %v4781 = vld [vmem:[%s4190 + $0x169] sm:$0xff]
        %v4782 = vld [vmem:[%s4190 + $0x171] sm:$0xff]
        %s4783 = scalar_lea.vmem %s3, 448
        %v4784 = vld [vmem:[%s4783] sm:$0xff]
        %v4785 = vld [vmem:[%s4783 + $0x8] sm:$0xff]
        %v4786 = vld [vmem:[%s4783 + $0x10] sm:$0xff]
        %v4787 = vld [vmem:[%s4783 + $0x18] sm:$0xff]
        %v4788 = vld [vmem:[%s4783 + $0x20] sm:$0xff]
        %v4789 = vld [vmem:[%s4783 + $0x28] sm:$0xff]
        %v4790 = vld [vmem:[%s4783 + $0x30] sm:$0xff]
        %v4791 = vld [vmem:[%s4783 + $0x38] sm:$0xff]
        %v4793 = vsel %vm406, %v4751, 0
        %v4796 = vsel %vm406, %v4752, 0
        %v4799 = vsel %vm406, %v4753, 0
        %v4802 = vsel %vm406, %v4754, 0
        %v4805 = vsel %vm406, %v4755, 0
        %v4808 = vsel %vm406, %v4756, 0
        %v4811 = vsel %vm406, %v4757, 0
        %v4814 = vsel %vm406, %v4758, 0
        %v4817 = vsel %vm406, %v4759, 0
        %v4820 = vsel %vm406, %v4760, 0
        %v4823 = vsel %vm406, %v4761, 0
        %v4826 = vsel %vm406, %v4762, 0
        %v4829 = vsel %vm406, %v4763, 0
        %v4832 = vsel %vm406, %v4764, 0
        %v4835 = vsel %vm406, %v4765, 0
        %v4838 = vsel %vm406, %v4766, 0
        %v4841 = vsel %vm406, %v4767, 0
        %v4844 = vsel %vm406, %v4768, 0
        %v4847 = vsel %vm406, %v4769, 0
        %v4850 = vsel %vm406, %v4770, 0
        %v4853 = vsel %vm406, %v4771, 0
        %v4856 = vsel %vm406, %v4772, 0
        %v4859 = vsel %vm406, %v4773, 0
        %v4862 = vsel %vm406, %v4774, 0
        %v4865 = vsel %vm406, %v4775, 0
        %v4868 = vsel %vm406, %v4776, 0
        %v4871 = vsel %vm406, %v4777, 0
        %v4874 = vsel %vm406, %v4778, 0
        %v4877 = vsel %vm406, %v4779, 0
        %v4880 = vsel %vm406, %v4780, 0
        %v4883 = vsel %vm406, %v4781, 0
        %v4886 = vsel %vm406, %v4782, 0
        %4888 = vmatpush.msra.mxu0 0.0
        %4889 = vmatpush.msra.mxu0 0.0
        %4890 = vmatpush.msra.mxu0 0.0
        %4891 = vmatpush.msra.mxu0 0.0
        %4892 = vmatpush.msra.mxu0 0.0
        %4893 = vmatpush.msra.mxu0 0.0
        %4894 = vmatpush.msra.mxu0 0.0
        %4895 = vmatpush.msra.mxu0 0.0
        %4896 = vmatpush.msra.mxu0 %v4791
        %4897 = vmatpush.msra.mxu0 %v4790
        %4898 = vmatpush.msra.mxu0 %v4789
        %4899 = vmatpush.msra.mxu0 %v4788
        %4900 = vmatpush.msra.mxu0 %v4787
        %4901 = vmatpush.msra.mxu0 %v4786
        %4902 = vmatpush.msra.mxu0 %v4785
        %4903 = vmatpush.msra.mxu0 %v4784
        %4904 = vmatmul.f32.gmra.mxu0 %v4793
        %v4905 = vpop.f32.mrf.mxu0
        %v4906 = vadd.f32 0.0, %v4905
        %4907 = vmatmul.f32.gmra.mxu0 %v4796
        %v4908 = vpop.f32.mrf.mxu0
        %v4909 = vadd.f32 0.0, %v4908
        %4910 = vmatmul.f32.gmra.mxu0 %v4799
        %v4911 = vpop.f32.mrf.mxu0
        %v4912 = vadd.f32 0.0, %v4911
        %4913 = vmatmul.f32.gmra.mxu0 %v4802
        %v4914 = vpop.f32.mrf.mxu0
        %v4915 = vadd.f32 0.0, %v4914
        %4916 = vmatmul.f32.gmra.mxu0 %v4805
        %v4917 = vpop.f32.mrf.mxu0
        %v4918 = vadd.f32 0.0, %v4917
        %4919 = vmatmul.f32.gmra.mxu0 %v4808
        %v4920 = vpop.f32.mrf.mxu0
        %v4921 = vadd.f32 0.0, %v4920
        %4922 = vmatmul.f32.gmra.mxu0 %v4811
        %v4923 = vpop.f32.mrf.mxu0
        %v4924 = vadd.f32 0.0, %v4923
        %4925 = vmatmul.f32.gmra.mxu0 %v4814
        %v4926 = vpop.f32.mrf.mxu0
        %v4927 = vadd.f32 0.0, %v4926
        %4928 = vmatmul.f32.gmra.mxu0 %v4817
        %v4929 = vpop.f32.mrf.mxu0
        %v4930 = vadd.f32 0.0, %v4929
        %4931 = vmatmul.f32.gmra.mxu0 %v4820
        %v4932 = vpop.f32.mrf.mxu0
        %v4933 = vadd.f32 0.0, %v4932
        %4934 = vmatmul.f32.gmra.mxu0 %v4823
        %v4935 = vpop.f32.mrf.mxu0
        %v4936 = vadd.f32 0.0, %v4935
        %4937 = vmatmul.f32.gmra.mxu0 %v4826
        %v4938 = vpop.f32.mrf.mxu0
        %v4939 = vadd.f32 0.0, %v4938
        %4940 = vmatmul.f32.gmra.mxu0 %v4829
        %v4941 = vpop.f32.mrf.mxu0
        %v4942 = vadd.f32 0.0, %v4941
        %4943 = vmatmul.f32.gmra.mxu0 %v4832
        %v4944 = vpop.f32.mrf.mxu0
        %v4945 = vadd.f32 0.0, %v4944
        %4946 = vmatmul.f32.gmra.mxu0 %v4835
        %v4947 = vpop.f32.mrf.mxu0
        %v4948 = vadd.f32 0.0, %v4947
        %4949 = vmatmul.f32.gmra.mxu0 %v4838
        %v4950 = vpop.f32.mrf.mxu0
        %v4951 = vadd.f32 0.0, %v4950
        %4952 = vmatmul.f32.gmra.mxu0 %v4841
        %v4953 = vpop.f32.mrf.mxu0
        %v4954 = vadd.f32 0.0, %v4953
        %4955 = vmatmul.f32.gmra.mxu0 %v4844
        %v4956 = vpop.f32.mrf.mxu0
        %v4957 = vadd.f32 0.0, %v4956
        %4958 = vmatmul.f32.gmra.mxu0 %v4847
        %v4959 = vpop.f32.mrf.mxu0
        %v4960 = vadd.f32 0.0, %v4959
        %4961 = vmatmul.f32.gmra.mxu0 %v4850
        %v4962 = vpop.f32.mrf.mxu0
        %v4963 = vadd.f32 0.0, %v4962
        %4964 = vmatmul.f32.gmra.mxu0 %v4853
        %v4965 = vpop.f32.mrf.mxu0
        %v4966 = vadd.f32 0.0, %v4965
        %4967 = vmatmul.f32.gmra.mxu0 %v4856
        %v4968 = vpop.f32.mrf.mxu0
        %v4969 = vadd.f32 0.0, %v4968
        %4970 = vmatmul.f32.gmra.mxu0 %v4859
        %v4971 = vpop.f32.mrf.mxu0
        %v4972 = vadd.f32 0.0, %v4971
        %4973 = vmatmul.f32.gmra.mxu0 %v4862
        %v4974 = vpop.f32.mrf.mxu0
        %v4975 = vadd.f32 0.0, %v4974
        %4976 = vmatmul.f32.gmra.mxu0 %v4865
        %v4977 = vpop.f32.mrf.mxu0
        %v4978 = vadd.f32 0.0, %v4977
        %4979 = vmatmul.f32.gmra.mxu0 %v4868
        %v4980 = vpop.f32.mrf.mxu0
        %v4981 = vadd.f32 0.0, %v4980
        %4982 = vmatmul.f32.gmra.mxu0 %v4871
        %v4983 = vpop.f32.mrf.mxu0
        %v4984 = vadd.f32 0.0, %v4983
        %4985 = vmatmul.f32.gmra.mxu0 %v4874
        %v4986 = vpop.f32.mrf.mxu0
        %v4987 = vadd.f32 0.0, %v4986
        %4988 = vmatmul.f32.gmra.mxu0 %v4877
        %v4989 = vpop.f32.mrf.mxu0
        %v4990 = vadd.f32 0.0, %v4989
        %4991 = vmatmul.f32.gmra.mxu0 %v4880
        %v4992 = vpop.f32.mrf.mxu0
        %v4993 = vadd.f32 0.0, %v4992
        %4994 = vmatmul.f32.gmra.mxu0 %v4883
        %v4995 = vpop.f32.mrf.mxu0
        %v4996 = vadd.f32 0.0, %v4995
        %4997 = vmatmul.f32.gmra.mxu0 %v4886
        %v4998 = vpop.f32.mrf.mxu0
        %v4999 = vadd.f32 0.0, %v4998
        %5000 = vdwg.mxu0
        %v5001 = vadd.f32 %v4719, %v4906
        %v5002 = vadd.f32 %v4720, %v4909
        %v5003 = vadd.f32 %v4721, %v4912
        %v5004 = vadd.f32 %v4722, %v4915
        %v5005 = vadd.f32 %v4723, %v4918
        %v5006 = vadd.f32 %v4724, %v4921
        %v5007 = vadd.f32 %v4725, %v4924
        %v5008 = vadd.f32 %v4726, %v4927
        %v5009 = vadd.f32 %v4727, %v4930
        %v5010 = vadd.f32 %v4728, %v4933
        %v5011 = vadd.f32 %v4729, %v4936
        %v5012 = vadd.f32 %v4730, %v4939
        %v5013 = vadd.f32 %v4731, %v4942
        %v5014 = vadd.f32 %v4732, %v4945
        %v5015 = vadd.f32 %v4733, %v4948
        %v5016 = vadd.f32 %v4734, %v4951
        %v5017 = vadd.f32 %v4735, %v4954
        %v5018 = vadd.f32 %v4736, %v4957
        %v5019 = vadd.f32 %v4737, %v4960
        %v5020 = vadd.f32 %v4738, %v4963
        %v5021 = vadd.f32 %v4739, %v4966
        %v5022 = vadd.f32 %v4740, %v4969
        %v5023 = vadd.f32 %v4741, %v4972
        %v5024 = vadd.f32 %v4742, %v4975
        %v5025 = vadd.f32 %v4743, %v4978
        %v5026 = vadd.f32 %v4744, %v4981
        %v5027 = vadd.f32 %v4745, %v4984
        %v5028 = vadd.f32 %v4746, %v4987
        %v5029 = vadd.f32 %v4747, %v4990
        %v5030 = vadd.f32 %v4748, %v4993
        %v5031 = vadd.f32 %v4749, %v4996
        %v5032 = vadd.f32 %v4750, %v4999
        %v5033 = vld [vmem:[%s3911 + $0x2] sm:$0xff]
        %v5034 = vld [vmem:[%s3911 + $0xa] sm:$0xff]
        %v5035 = vld [vmem:[%s3911 + $0x1a] sm:$0xff]
        %v5036 = vld [vmem:[%s3911 + $0x22] sm:$0xff]
        %v5037 = vld [vmem:[%s3911 + $0x32] sm:$0xff]
        %v5038 = vld [vmem:[%s3911 + $0x3a] sm:$0xff]
        %v5039 = vld [vmem:[%s3911 + $0x4a] sm:$0xff]
        %v5040 = vld [vmem:[%s3911 + $0x52] sm:$0xff]
        %v5041 = vld [vmem:[%s3911 + $0x62] sm:$0xff]
        %v5042 = vld [vmem:[%s3911 + $0x6a] sm:$0xff]
        %v5043 = vld [vmem:[%s3911 + $0x7a] sm:$0xff]
        %v5044 = vld [vmem:[%s3911 + $0x82] sm:$0xff]
        %v5045 = vld [vmem:[%s3911 + $0x92] sm:$0xff]
        %v5046 = vld [vmem:[%s3911 + $0x9a] sm:$0xff]
        %v5047 = vld [vmem:[%s3911 + $0xaa] sm:$0xff]
        %v5048 = vld [vmem:[%s3911 + $0xb2] sm:$0xff]
        %v5049 = vld [vmem:[%s3911 + $0xc2] sm:$0xff]
        %v5050 = vld [vmem:[%s3911 + $0xca] sm:$0xff]
        %v5051 = vld [vmem:[%s3911 + $0xda] sm:$0xff]
        %v5052 = vld [vmem:[%s3911 + $0xe2] sm:$0xff]
        %v5053 = vld [vmem:[%s3911 + $0xf2] sm:$0xff]
        %v5054 = vld [vmem:[%s3911 + $0xfa] sm:$0xff]
        %v5055 = vld [vmem:[%s3911 + $0x10a] sm:$0xff]
        %v5056 = vld [vmem:[%s3911 + $0x112] sm:$0xff]
        %v5057 = vld [vmem:[%s3911 + $0x122] sm:$0xff]
        %v5058 = vld [vmem:[%s3911 + $0x12a] sm:$0xff]
        %v5059 = vld [vmem:[%s3911 + $0x13a] sm:$0xff]
        %v5060 = vld [vmem:[%s3911 + $0x142] sm:$0xff]
        %v5061 = vld [vmem:[%s3911 + $0x152] sm:$0xff]
        %v5062 = vld [vmem:[%s3911 + $0x15a] sm:$0xff]
        %v5063 = vld [vmem:[%s3911 + $0x16a] sm:$0xff]
        %v5064 = vld [vmem:[%s3911 + $0x172] sm:$0xff]
        %s5065 = scalar_lea.vmem %s2, 256
        %v5066 = vld [vmem:[%s5065] sm:$0xff]
        %v5067 = vld [vmem:[%s5065 + $0x8] sm:$0xff]
        %v5068 = vld [vmem:[%s5065 + $0x10] sm:$0xff]
        %v5069 = vld [vmem:[%s5065 + $0x18] sm:$0xff]
        %v5071 = vsel %vm363, %v5033, 0
        %v5074 = vsel %vm363, %v5034, 0
        %v5077 = vsel %vm363, %v5035, 0
        %v5080 = vsel %vm363, %v5036, 0
        %v5083 = vsel %vm363, %v5037, 0
        %v5086 = vsel %vm363, %v5038, 0
        %v5089 = vsel %vm363, %v5039, 0
        %v5092 = vsel %vm363, %v5040, 0
        %v5095 = vsel %vm363, %v5041, 0
        %v5098 = vsel %vm363, %v5042, 0
        %v5101 = vsel %vm363, %v5043, 0
        %v5104 = vsel %vm363, %v5044, 0
        %v5107 = vsel %vm363, %v5045, 0
        %v5110 = vsel %vm363, %v5046, 0
        %v5113 = vsel %vm363, %v5047, 0
        %v5116 = vsel %vm363, %v5048, 0
        %v5119 = vsel %vm363, %v5049, 0
        %v5122 = vsel %vm363, %v5050, 0
        %v5125 = vsel %vm363, %v5051, 0
        %v5128 = vsel %vm363, %v5052, 0
        %v5131 = vsel %vm363, %v5053, 0
        %v5134 = vsel %vm363, %v5054, 0
        %v5137 = vsel %vm363, %v5055, 0
        %v5140 = vsel %vm363, %v5056, 0
        %v5143 = vsel %vm363, %v5057, 0
        %v5146 = vsel %vm363, %v5058, 0
        %v5149 = vsel %vm363, %v5059, 0
        %v5152 = vsel %vm363, %v5060, 0
        %v5155 = vsel %vm363, %v5061, 0
        %v5158 = vsel %vm363, %v5062, 0
        %v5161 = vsel %vm363, %v5063, 0
        %v5164 = vsel %vm363, %v5064, 0
        %5166 = vmatpush.msra.mxu0 0.0
        %5167 = vmatpush.msra.mxu0 0.0
        %5168 = vmatpush.msra.mxu0 0.0
        %5169 = vmatpush.msra.mxu0 0.0
        %5170 = vmatpush.msra.mxu0 0.0
        %5171 = vmatpush.msra.mxu0 0.0
        %5172 = vmatpush.msra.mxu0 0.0
        %5173 = vmatpush.msra.mxu0 0.0
        %5174 = vmatpush.msra.mxu0 0.0
        %5175 = vmatpush.msra.mxu0 0.0
        %5176 = vmatpush.msra.mxu0 0.0
        %5177 = vmatpush.msra.mxu0 0.0
        %5178 = vmatpush.msra.mxu0 %v5069
        %5179 = vmatpush.msra.mxu0 %v5068
        %5180 = vmatpush.msra.mxu0 %v5067
        %5181 = vmatpush.msra.mxu0 %v5066
        %5182 = vmatmul.f32.gmra.mxu0 %v5071
        %v5183 = vpop.f32.mrf.mxu0
        %v5184 = vadd.f32 0.0, %v5183
        %5185 = vmatmul.f32.gmra.mxu0 %v5074
        %v5186 = vpop.f32.mrf.mxu0
        %v5187 = vadd.f32 0.0, %v5186
        %5188 = vmatmul.f32.gmra.mxu0 %v5077
        %v5189 = vpop.f32.mrf.mxu0
        %v5190 = vadd.f32 0.0, %v5189
        %5191 = vmatmul.f32.gmra.mxu0 %v5080
        %v5192 = vpop.f32.mrf.mxu0
        %v5193 = vadd.f32 0.0, %v5192
        %5194 = vmatmul.f32.gmra.mxu0 %v5083
        %v5195 = vpop.f32.mrf.mxu0
        %v5196 = vadd.f32 0.0, %v5195
        %5197 = vmatmul.f32.gmra.mxu0 %v5086
        %v5198 = vpop.f32.mrf.mxu0
        %v5199 = vadd.f32 0.0, %v5198
        %5200 = vmatmul.f32.gmra.mxu0 %v5089
        %v5201 = vpop.f32.mrf.mxu0
        %v5202 = vadd.f32 0.0, %v5201
        %5203 = vmatmul.f32.gmra.mxu0 %v5092
        %v5204 = vpop.f32.mrf.mxu0
        %v5205 = vadd.f32 0.0, %v5204
        %5206 = vmatmul.f32.gmra.mxu0 %v5095
        %v5207 = vpop.f32.mrf.mxu0
        %v5208 = vadd.f32 0.0, %v5207
        %5209 = vmatmul.f32.gmra.mxu0 %v5098
        %v5210 = vpop.f32.mrf.mxu0
        %v5211 = vadd.f32 0.0, %v5210
        %5212 = vmatmul.f32.gmra.mxu0 %v5101
        %v5213 = vpop.f32.mrf.mxu0
        %v5214 = vadd.f32 0.0, %v5213
        %5215 = vmatmul.f32.gmra.mxu0 %v5104
        %v5216 = vpop.f32.mrf.mxu0
        %v5217 = vadd.f32 0.0, %v5216
        %5218 = vmatmul.f32.gmra.mxu0 %v5107
        %v5219 = vpop.f32.mrf.mxu0
        %v5220 = vadd.f32 0.0, %v5219
        %5221 = vmatmul.f32.gmra.mxu0 %v5110
        %v5222 = vpop.f32.mrf.mxu0
        %v5223 = vadd.f32 0.0, %v5222
        %5224 = vmatmul.f32.gmra.mxu0 %v5113
        %v5225 = vpop.f32.mrf.mxu0
        %v5226 = vadd.f32 0.0, %v5225
        %5227 = vmatmul.f32.gmra.mxu0 %v5116
        %v5228 = vpop.f32.mrf.mxu0
        %v5229 = vadd.f32 0.0, %v5228
        %5230 = vmatmul.f32.gmra.mxu0 %v5119
        %v5231 = vpop.f32.mrf.mxu0
        %v5232 = vadd.f32 0.0, %v5231
        %5233 = vmatmul.f32.gmra.mxu0 %v5122
        %v5234 = vpop.f32.mrf.mxu0
        %v5235 = vadd.f32 0.0, %v5234
        %5236 = vmatmul.f32.gmra.mxu0 %v5125
        %v5237 = vpop.f32.mrf.mxu0
        %v5238 = vadd.f32 0.0, %v5237
        %5239 = vmatmul.f32.gmra.mxu0 %v5128
        %v5240 = vpop.f32.mrf.mxu0
        %v5241 = vadd.f32 0.0, %v5240
        %5242 = vmatmul.f32.gmra.mxu0 %v5131
        %v5243 = vpop.f32.mrf.mxu0
        %v5244 = vadd.f32 0.0, %v5243
        %5245 = vmatmul.f32.gmra.mxu0 %v5134
        %v5246 = vpop.f32.mrf.mxu0
        %v5247 = vadd.f32 0.0, %v5246
        %5248 = vmatmul.f32.gmra.mxu0 %v5137
        %v5249 = vpop.f32.mrf.mxu0
        %v5250 = vadd.f32 0.0, %v5249
        %5251 = vmatmul.f32.gmra.mxu0 %v5140
        %v5252 = vpop.f32.mrf.mxu0
        %v5253 = vadd.f32 0.0, %v5252
        %5254 = vmatmul.f32.gmra.mxu0 %v5143
        %v5255 = vpop.f32.mrf.mxu0
        %v5256 = vadd.f32 0.0, %v5255
        %5257 = vmatmul.f32.gmra.mxu0 %v5146
        %v5258 = vpop.f32.mrf.mxu0
        %v5259 = vadd.f32 0.0, %v5258
        %5260 = vmatmul.f32.gmra.mxu0 %v5149
        %v5261 = vpop.f32.mrf.mxu0
        %v5262 = vadd.f32 0.0, %v5261
        %5263 = vmatmul.f32.gmra.mxu0 %v5152
        %v5264 = vpop.f32.mrf.mxu0
        %v5265 = vadd.f32 0.0, %v5264
        %5266 = vmatmul.f32.gmra.mxu0 %v5155
        %v5267 = vpop.f32.mrf.mxu0
        %v5268 = vadd.f32 0.0, %v5267
        %5269 = vmatmul.f32.gmra.mxu0 %v5158
        %v5270 = vpop.f32.mrf.mxu0
        %v5271 = vadd.f32 0.0, %v5270
        %5272 = vmatmul.f32.gmra.mxu0 %v5161
        %v5273 = vpop.f32.mrf.mxu0
        %v5274 = vadd.f32 0.0, %v5273
        %5275 = vmatmul.f32.gmra.mxu0 %v5164
        %v5276 = vpop.f32.mrf.mxu0
        %v5277 = vadd.f32 0.0, %v5276
        %5278 = vdwg.mxu0
        %v5279 = vadd.f32 %v5001, %v5184
        %v5280 = vadd.f32 %v5002, %v5187
        %v5281 = vadd.f32 %v5003, %v5190
        %v5282 = vadd.f32 %v5004, %v5193
        %v5283 = vadd.f32 %v5005, %v5196
        %v5284 = vadd.f32 %v5006, %v5199
        %v5285 = vadd.f32 %v5007, %v5202
        %v5286 = vadd.f32 %v5008, %v5205
        %v5287 = vadd.f32 %v5009, %v5208
        %v5288 = vadd.f32 %v5010, %v5211
        %v5289 = vadd.f32 %v5011, %v5214
        %v5290 = vadd.f32 %v5012, %v5217
        %v5291 = vadd.f32 %v5013, %v5220
        %v5292 = vadd.f32 %v5014, %v5223
        %v5293 = vadd.f32 %v5015, %v5226
        %v5294 = vadd.f32 %v5016, %v5229
        %v5295 = vadd.f32 %v5017, %v5232
        %v5296 = vadd.f32 %v5018, %v5235
        %v5297 = vadd.f32 %v5019, %v5238
        %v5298 = vadd.f32 %v5020, %v5241
        %v5299 = vadd.f32 %v5021, %v5244
        %v5300 = vadd.f32 %v5022, %v5247
        %v5301 = vadd.f32 %v5023, %v5250
        %v5302 = vadd.f32 %v5024, %v5253
        %v5303 = vadd.f32 %v5025, %v5256
        %v5304 = vadd.f32 %v5026, %v5259
        %v5305 = vadd.f32 %v5027, %v5262
        %v5306 = vadd.f32 %v5028, %v5265
        %v5307 = vadd.f32 %v5029, %v5268
        %v5308 = vadd.f32 %v5030, %v5271
        %v5309 = vadd.f32 %v5031, %v5274
        %v5310 = vadd.f32 %v5032, %v5277
        %v5311 = vld [vmem:[%s4190 + $0x2] sm:$0xff]
        %v5312 = vld [vmem:[%s4190 + $0xa] sm:$0xff]
        %v5313 = vld [vmem:[%s4190 + $0x1a] sm:$0xff]
        %v5314 = vld [vmem:[%s4190 + $0x22] sm:$0xff]
        %v5315 = vld [vmem:[%s4190 + $0x32] sm:$0xff]
        %v5316 = vld [vmem:[%s4190 + $0x3a] sm:$0xff]
        %v5317 = vld [vmem:[%s4190 + $0x4a] sm:$0xff]
        %v5318 = vld [vmem:[%s4190 + $0x52] sm:$0xff]
        %v5319 = vld [vmem:[%s4190 + $0x62] sm:$0xff]
        %v5320 = vld [vmem:[%s4190 + $0x6a] sm:$0xff]
        %v5321 = vld [vmem:[%s4190 + $0x7a] sm:$0xff]
        %v5322 = vld [vmem:[%s4190 + $0x82] sm:$0xff]
        %v5323 = vld [vmem:[%s4190 + $0x92] sm:$0xff]
        %v5324 = vld [vmem:[%s4190 + $0x9a] sm:$0xff]
        %v5325 = vld [vmem:[%s4190 + $0xaa] sm:$0xff]
        %v5326 = vld [vmem:[%s4190 + $0xb2] sm:$0xff]
        %v5327 = vld [vmem:[%s4190 + $0xc2] sm:$0xff]
        %v5328 = vld [vmem:[%s4190 + $0xca] sm:$0xff]
        %v5329 = vld [vmem:[%s4190 + $0xda] sm:$0xff]
        %v5330 = vld [vmem:[%s4190 + $0xe2] sm:$0xff]
        %v5331 = vld [vmem:[%s4190 + $0xf2] sm:$0xff]
        %v5332 = vld [vmem:[%s4190 + $0xfa] sm:$0xff]
        %v5333 = vld [vmem:[%s4190 + $0x10a] sm:$0xff]
        %v5334 = vld [vmem:[%s4190 + $0x112] sm:$0xff]
        %v5335 = vld [vmem:[%s4190 + $0x122] sm:$0xff]
        %v5336 = vld [vmem:[%s4190 + $0x12a] sm:$0xff]
        %v5337 = vld [vmem:[%s4190 + $0x13a] sm:$0xff]
        %v5338 = vld [vmem:[%s4190 + $0x142] sm:$0xff]
        %v5339 = vld [vmem:[%s4190 + $0x152] sm:$0xff]
        %v5340 = vld [vmem:[%s4190 + $0x15a] sm:$0xff]
        %v5341 = vld [vmem:[%s4190 + $0x16a] sm:$0xff]
        %v5342 = vld [vmem:[%s4190 + $0x172] sm:$0xff]
        %s5343 = scalar_lea.vmem %s3, 512
        %v5344 = vld [vmem:[%s5343] sm:$0xff]
        %v5345 = vld [vmem:[%s5343 + $0x8] sm:$0xff]
        %v5346 = vld [vmem:[%s5343 + $0x10] sm:$0xff]
        %v5347 = vld [vmem:[%s5343 + $0x18] sm:$0xff]
        %v5348 = vld [vmem:[%s5343 + $0x20] sm:$0xff]
        %v5349 = vld [vmem:[%s5343 + $0x28] sm:$0xff]
        %v5350 = vld [vmem:[%s5343 + $0x30] sm:$0xff]
        %v5351 = vld [vmem:[%s5343 + $0x38] sm:$0xff]
        %v5353 = vsel %vm406, %v5311, 0
        %v5356 = vsel %vm406, %v5312, 0
        %v5359 = vsel %vm406, %v5313, 0
        %v5362 = vsel %vm406, %v5314, 0
        %v5365 = vsel %vm406, %v5315, 0
        %v5368 = vsel %vm406, %v5316, 0
        %v5371 = vsel %vm406, %v5317, 0
        %v5374 = vsel %vm406, %v5318, 0
        %v5377 = vsel %vm406, %v5319, 0
        %v5380 = vsel %vm406, %v5320, 0
        %v5383 = vsel %vm406, %v5321, 0
        %v5386 = vsel %vm406, %v5322, 0
        %v5389 = vsel %vm406, %v5323, 0
        %v5392 = vsel %vm406, %v5324, 0
        %v5395 = vsel %vm406, %v5325, 0
        %v5398 = vsel %vm406, %v5326, 0
        %v5401 = vsel %vm406, %v5327, 0
        %v5404 = vsel %vm406, %v5328, 0
        %v5407 = vsel %vm406, %v5329, 0
        %v5410 = vsel %vm406, %v5330, 0
        %v5413 = vsel %vm406, %v5331, 0
        %v5416 = vsel %vm406, %v5332, 0
        %v5419 = vsel %vm406, %v5333, 0
        %v5422 = vsel %vm406, %v5334, 0
        %v5425 = vsel %vm406, %v5335, 0
        %v5428 = vsel %vm406, %v5336, 0
        %v5431 = vsel %vm406, %v5337, 0
        %v5434 = vsel %vm406, %v5338, 0
        %v5437 = vsel %vm406, %v5339, 0
        %v5440 = vsel %vm406, %v5340, 0
        %v5443 = vsel %vm406, %v5341, 0
        %v5446 = vsel %vm406, %v5342, 0
        %5448 = vmatpush.msra.mxu0 0.0
        %5449 = vmatpush.msra.mxu0 0.0
        %5450 = vmatpush.msra.mxu0 0.0
        %5451 = vmatpush.msra.mxu0 0.0
        %5452 = vmatpush.msra.mxu0 0.0
        %5453 = vmatpush.msra.mxu0 0.0
        %5454 = vmatpush.msra.mxu0 0.0
        %5455 = vmatpush.msra.mxu0 0.0
        %5456 = vmatpush.msra.mxu0 %v5351
        %5457 = vmatpush.msra.mxu0 %v5350
        %5458 = vmatpush.msra.mxu0 %v5349
        %5459 = vmatpush.msra.mxu0 %v5348
        %5460 = vmatpush.msra.mxu0 %v5347
        %5461 = vmatpush.msra.mxu0 %v5346
        %5462 = vmatpush.msra.mxu0 %v5345
        %5463 = vmatpush.msra.mxu0 %v5344
        %5464 = vmatmul.f32.gmra.mxu0 %v5353
        %v5465 = vpop.f32.mrf.mxu0
        %v5466 = vadd.f32 0.0, %v5465
        %5467 = vmatmul.f32.gmra.mxu0 %v5356
        %v5468 = vpop.f32.mrf.mxu0
        %v5469 = vadd.f32 0.0, %v5468
        %5470 = vmatmul.f32.gmra.mxu0 %v5359
        %v5471 = vpop.f32.mrf.mxu0
        %v5472 = vadd.f32 0.0, %v5471
        %5473 = vmatmul.f32.gmra.mxu0 %v5362
        %v5474 = vpop.f32.mrf.mxu0
        %v5475 = vadd.f32 0.0, %v5474
        %5476 = vmatmul.f32.gmra.mxu0 %v5365
        %v5477 = vpop.f32.mrf.mxu0
        %v5478 = vadd.f32 0.0, %v5477
        %5479 = vmatmul.f32.gmra.mxu0 %v5368
        %v5480 = vpop.f32.mrf.mxu0
        %v5481 = vadd.f32 0.0, %v5480
        %5482 = vmatmul.f32.gmra.mxu0 %v5371
        %v5483 = vpop.f32.mrf.mxu0
        %v5484 = vadd.f32 0.0, %v5483
        %5485 = vmatmul.f32.gmra.mxu0 %v5374
        %v5486 = vpop.f32.mrf.mxu0
        %v5487 = vadd.f32 0.0, %v5486
        %5488 = vmatmul.f32.gmra.mxu0 %v5377
        %v5489 = vpop.f32.mrf.mxu0
        %v5490 = vadd.f32 0.0, %v5489
        %5491 = vmatmul.f32.gmra.mxu0 %v5380
        %v5492 = vpop.f32.mrf.mxu0
        %v5493 = vadd.f32 0.0, %v5492
        %5494 = vmatmul.f32.gmra.mxu0 %v5383
        %v5495 = vpop.f32.mrf.mxu0
        %v5496 = vadd.f32 0.0, %v5495
        %5497 = vmatmul.f32.gmra.mxu0 %v5386
        %v5498 = vpop.f32.mrf.mxu0
        %v5499 = vadd.f32 0.0, %v5498
        %5500 = vmatmul.f32.gmra.mxu0 %v5389
        %v5501 = vpop.f32.mrf.mxu0
        %v5502 = vadd.f32 0.0, %v5501
        %5503 = vmatmul.f32.gmra.mxu0 %v5392
        %v5504 = vpop.f32.mrf.mxu0
        %v5505 = vadd.f32 0.0, %v5504
        %5506 = vmatmul.f32.gmra.mxu0 %v5395
        %v5507 = vpop.f32.mrf.mxu0
        %v5508 = vadd.f32 0.0, %v5507
        %5509 = vmatmul.f32.gmra.mxu0 %v5398
        %v5510 = vpop.f32.mrf.mxu0
        %v5511 = vadd.f32 0.0, %v5510
        %5512 = vmatmul.f32.gmra.mxu0 %v5401
        %v5513 = vpop.f32.mrf.mxu0
        %v5514 = vadd.f32 0.0, %v5513
        %5515 = vmatmul.f32.gmra.mxu0 %v5404
        %v5516 = vpop.f32.mrf.mxu0
        %v5517 = vadd.f32 0.0, %v5516
        %5518 = vmatmul.f32.gmra.mxu0 %v5407
        %v5519 = vpop.f32.mrf.mxu0
        %v5520 = vadd.f32 0.0, %v5519
        %5521 = vmatmul.f32.gmra.mxu0 %v5410
        %v5522 = vpop.f32.mrf.mxu0
        %v5523 = vadd.f32 0.0, %v5522
        %5524 = vmatmul.f32.gmra.mxu0 %v5413
        %v5525 = vpop.f32.mrf.mxu0
        %v5526 = vadd.f32 0.0, %v5525
        %5527 = vmatmul.f32.gmra.mxu0 %v5416
        %v5528 = vpop.f32.mrf.mxu0
        %v5529 = vadd.f32 0.0, %v5528
        %5530 = vmatmul.f32.gmra.mxu0 %v5419
        %v5531 = vpop.f32.mrf.mxu0
        %v5532 = vadd.f32 0.0, %v5531
        %5533 = vmatmul.f32.gmra.mxu0 %v5422
        %v5534 = vpop.f32.mrf.mxu0
        %v5535 = vadd.f32 0.0, %v5534
        %5536 = vmatmul.f32.gmra.mxu0 %v5425
        %v5537 = vpop.f32.mrf.mxu0
        %v5538 = vadd.f32 0.0, %v5537
        %5539 = vmatmul.f32.gmra.mxu0 %v5428
        %v5540 = vpop.f32.mrf.mxu0
        %v5541 = vadd.f32 0.0, %v5540
        %5542 = vmatmul.f32.gmra.mxu0 %v5431
        %v5543 = vpop.f32.mrf.mxu0
        %v5544 = vadd.f32 0.0, %v5543
        %5545 = vmatmul.f32.gmra.mxu0 %v5434
        %v5546 = vpop.f32.mrf.mxu0
        %v5547 = vadd.f32 0.0, %v5546
        %5548 = vmatmul.f32.gmra.mxu0 %v5437
        %v5549 = vpop.f32.mrf.mxu0
        %v5550 = vadd.f32 0.0, %v5549
        %5551 = vmatmul.f32.gmra.mxu0 %v5440
        %v5552 = vpop.f32.mrf.mxu0
        %v5553 = vadd.f32 0.0, %v5552
        %5554 = vmatmul.f32.gmra.mxu0 %v5443
        %v5555 = vpop.f32.mrf.mxu0
        %v5556 = vadd.f32 0.0, %v5555
        %5557 = vmatmul.f32.gmra.mxu0 %v5446
        %v5558 = vpop.f32.mrf.mxu0
        %v5559 = vadd.f32 0.0, %v5558
        %5560 = vdwg.mxu0
        %v5561 = vadd.f32 %v5279, %v5466
        %v5562 = vadd.f32 %v5280, %v5469
        %v5563 = vadd.f32 %v5281, %v5472
        %v5564 = vadd.f32 %v5282, %v5475
        %v5565 = vadd.f32 %v5283, %v5478
        %v5566 = vadd.f32 %v5284, %v5481
        %v5567 = vadd.f32 %v5285, %v5484
        %v5568 = vadd.f32 %v5286, %v5487
        %v5569 = vadd.f32 %v5287, %v5490
        %v5570 = vadd.f32 %v5288, %v5493
        %v5571 = vadd.f32 %v5289, %v5496
        %v5572 = vadd.f32 %v5290, %v5499
        %v5573 = vadd.f32 %v5291, %v5502
        %v5574 = vadd.f32 %v5292, %v5505
        %v5575 = vadd.f32 %v5293, %v5508
        %v5576 = vadd.f32 %v5294, %v5511
        %v5577 = vadd.f32 %v5295, %v5514
        %v5578 = vadd.f32 %v5296, %v5517
        %v5579 = vadd.f32 %v5297, %v5520
        %v5580 = vadd.f32 %v5298, %v5523
        %v5581 = vadd.f32 %v5299, %v5526
        %v5582 = vadd.f32 %v5300, %v5529
        %v5583 = vadd.f32 %v5301, %v5532
        %v5584 = vadd.f32 %v5302, %v5535
        %v5585 = vadd.f32 %v5303, %v5538
        %v5586 = vadd.f32 %v5304, %v5541
        %v5587 = vadd.f32 %v5305, %v5544
        %v5588 = vadd.f32 %v5306, %v5547
        %v5589 = vadd.f32 %v5307, %v5550
        %v5590 = vadd.f32 %v5308, %v5553
        %v5591 = vadd.f32 %v5309, %v5556
        %v5592 = vadd.f32 %v5310, %v5559
        %v5593 = vld [vmem:[%s4] sm:$0x1]
        %v5595 = vperm.slane %v5593, 0
        %v5597 = vadd.f32 %v5561, %v5595
        %v5598 = vadd.f32 %v5562, %v5595
        %v5599 = vadd.f32 %v5563, %v5595
        %v5600 = vadd.f32 %v5564, %v5595
        %v5601 = vadd.f32 %v5565, %v5595
        %v5602 = vadd.f32 %v5566, %v5595
        %v5603 = vadd.f32 %v5567, %v5595
        %v5604 = vadd.f32 %v5568, %v5595
        %v5605 = vadd.f32 %v5569, %v5595
        %v5606 = vadd.f32 %v5570, %v5595
        %v5607 = vadd.f32 %v5571, %v5595
        %v5608 = vadd.f32 %v5572, %v5595
        %v5609 = vadd.f32 %v5573, %v5595
        %v5610 = vadd.f32 %v5574, %v5595
        %v5611 = vadd.f32 %v5575, %v5595
        %v5612 = vadd.f32 %v5576, %v5595
        %v5613 = vadd.f32 %v5577, %v5595
        %v5614 = vadd.f32 %v5578, %v5595
        %v5615 = vadd.f32 %v5579, %v5595
        %v5616 = vadd.f32 %v5580, %v5595
        %v5617 = vadd.f32 %v5581, %v5595
        %v5618 = vadd.f32 %v5582, %v5595
        %v5619 = vadd.f32 %v5583, %v5595
        %v5620 = vadd.f32 %v5584, %v5595
        %v5621 = vadd.f32 %v5585, %v5595
        %v5622 = vadd.f32 %v5586, %v5595
        %v5623 = vadd.f32 %v5587, %v5595
        %v5624 = vadd.f32 %v5588, %v5595
        %v5625 = vadd.f32 %v5589, %v5595
        %v5626 = vadd.f32 %v5590, %v5595
        %v5627 = vadd.f32 %v5591, %v5595
        %v5628 = vadd.f32 %v5592, %v5595
        %v5629 = vxor.u32 %v5597, 2147483648
        %v5630 = vxor.u32 %v5598, 2147483648
        %v5631 = vxor.u32 %v5599, 2147483648
        %v5632 = vxor.u32 %v5600, 2147483648
        %v5633 = vxor.u32 %v5601, 2147483648
        %v5634 = vxor.u32 %v5602, 2147483648
        %v5635 = vxor.u32 %v5603, 2147483648
        %v5636 = vxor.u32 %v5604, 2147483648
        %v5637 = vxor.u32 %v5605, 2147483648
        %v5638 = vxor.u32 %v5606, 2147483648
        %v5639 = vxor.u32 %v5607, 2147483648
        %v5640 = vxor.u32 %v5608, 2147483648
        %v5641 = vxor.u32 %v5609, 2147483648
        %v5642 = vxor.u32 %v5610, 2147483648
        %v5643 = vxor.u32 %v5611, 2147483648
        %v5644 = vxor.u32 %v5612, 2147483648
        %v5645 = vxor.u32 %v5613, 2147483648
        %v5646 = vxor.u32 %v5614, 2147483648
        %v5647 = vxor.u32 %v5615, 2147483648
        %v5648 = vxor.u32 %v5616, 2147483648
        %v5649 = vxor.u32 %v5617, 2147483648
        %v5650 = vxor.u32 %v5618, 2147483648
        %v5651 = vxor.u32 %v5619, 2147483648
        %v5652 = vxor.u32 %v5620, 2147483648
        %v5653 = vxor.u32 %v5621, 2147483648
        %v5654 = vxor.u32 %v5622, 2147483648
        %v5655 = vxor.u32 %v5623, 2147483648
        %v5656 = vxor.u32 %v5624, 2147483648
        %v5657 = vxor.u32 %v5625, 2147483648
        %v5658 = vxor.u32 %v5626, 2147483648
        %v5659 = vxor.u32 %v5627, 2147483648
        %v5660 = vxor.u32 %v5628, 2147483648
        %v5661 = vmul.f32 %v5629, 1.442695
        %v5662 = vpow.pop %v5661
        %v5663 = vmul.f32 %v5630, 1.442695
        %v5664 = vpow.pop %v5663
        %v5665 = vmul.f32 %v5631, 1.442695
        %v5666 = vpow.pop %v5665
        %v5667 = vmul.f32 %v5632, 1.442695
        %v5668 = vpow.pop %v5667
        %v5669 = vmul.f32 %v5633, 1.442695
        %v5670 = vpow.pop %v5669
        %v5671 = vmul.f32 %v5634, 1.442695
        %v5672 = vpow.pop %v5671
        %v5673 = vmul.f32 %v5635, 1.442695
        %v5674 = vpow.pop %v5673
        %v5675 = vmul.f32 %v5636, 1.442695
        %v5676 = vpow.pop %v5675
        %v5677 = vmul.f32 %v5637, 1.442695
        %v5678 = vpow.pop %v5677
        %v5679 = vmul.f32 %v5638, 1.442695
        %v5680 = vpow.pop %v5679
        %v5681 = vmul.f32 %v5639, 1.442695
        %v5682 = vpow.pop %v5681
        %v5683 = vmul.f32 %v5640, 1.442695
        %v5684 = vpow.pop %v5683
        %v5685 = vmul.f32 %v5641, 1.442695
        %v5686 = vpow.pop %v5685
        %v5687 = vmul.f32 %v5642, 1.442695
        %v5688 = vpow.pop %v5687
        %v5689 = vmul.f32 %v5643, 1.442695
        %v5690 = vpow.pop %v5689
        %v5691 = vmul.f32 %v5644, 1.442695
        %v5692 = vpow.pop %v5691
        %v5693 = vmul.f32 %v5645, 1.442695
        %v5694 = vpow.pop %v5693
        %v5695 = vmul.f32 %v5646, 1.442695
        %v5696 = vpow.pop %v5695
        %v5697 = vmul.f32 %v5647, 1.442695
        %v5698 = vpow.pop %v5697
        %v5699 = vmul.f32 %v5648, 1.442695
        %v5700 = vpow.pop %v5699
        %v5701 = vmul.f32 %v5649, 1.442695
        %v5702 = vpow.pop %v5701
        %v5703 = vmul.f32 %v5650, 1.442695
        %v5704 = vpow.pop %v5703
        %v5705 = vmul.f32 %v5651, 1.442695
        %v5706 = vpow.pop %v5705
        %v5707 = vmul.f32 %v5652, 1.442695
        %v5708 = vpow.pop %v5707
        %v5709 = vmul.f32 %v5653, 1.442695
        %v5710 = vpow.pop %v5709
        %v5711 = vmul.f32 %v5654, 1.442695
        %v5712 = vpow.pop %v5711
        %v5713 = vmul.f32 %v5655, 1.442695
        %v5714 = vpow.pop %v5713
        %v5715 = vmul.f32 %v5656, 1.442695
        %v5716 = vpow.pop %v5715
        %v5717 = vmul.f32 %v5657, 1.442695
        %v5718 = vpow.pop %v5717
        %v5719 = vmul.f32 %v5658, 1.442695
        %v5720 = vpow.pop %v5719
        %v5721 = vmul.f32 %v5659, 1.442695
        %v5722 = vpow.pop %v5721
        %v5723 = vmul.f32 %v5660, 1.442695
        %v5724 = vpow.pop %v5723
        %v5725 = vadd.f32 %v5662, 1.0
        %v5726 = vadd.f32 %v5664, 1.0
        %v5727 = vadd.f32 %v5666, 1.0
        %v5728 = vadd.f32 %v5668, 1.0
        %v5729 = vadd.f32 %v5670, 1.0
        %v5730 = vadd.f32 %v5672, 1.0
        %v5731 = vadd.f32 %v5674, 1.0
        %v5732 = vadd.f32 %v5676, 1.0
        %v5733 = vadd.f32 %v5678, 1.0
        %v5734 = vadd.f32 %v5680, 1.0
        %v5735 = vadd.f32 %v5682, 1.0
        %v5736 = vadd.f32 %v5684, 1.0
        %v5737 = vadd.f32 %v5686, 1.0
        %v5738 = vadd.f32 %v5688, 1.0
        %v5739 = vadd.f32 %v5690, 1.0
        %v5740 = vadd.f32 %v5692, 1.0
        %v5741 = vadd.f32 %v5694, 1.0
        %v5742 = vadd.f32 %v5696, 1.0
        %v5743 = vadd.f32 %v5698, 1.0
        %v5744 = vadd.f32 %v5700, 1.0
        %v5745 = vadd.f32 %v5702, 1.0
        %v5746 = vadd.f32 %v5704, 1.0
        %v5747 = vadd.f32 %v5706, 1.0
        %v5748 = vadd.f32 %v5708, 1.0
        %v5749 = vadd.f32 %v5710, 1.0
        %v5750 = vadd.f32 %v5712, 1.0
        %v5751 = vadd.f32 %v5714, 1.0
        %v5752 = vadd.f32 %v5716, 1.0
        %v5753 = vadd.f32 %v5718, 1.0
        %v5754 = vadd.f32 %v5720, 1.0
        %v5755 = vadd.f32 %v5722, 1.0
        %v5756 = vadd.f32 %v5724, 1.0
        %v5757 = vrcp.pop %v5725
        %v5758 = vmul.f32 %v5725, %v5757
        %v5759 = vsub.f32 1.0, %v5758
        %v5760 = vmul.f32 %v5757, %v5759
        %v5761 = vadd.f32 %v5757, %v5760
        %vm5762 = vweird.f32 %v5725
        %vm5763 = vweird.f32 %v5757
        %vm5764 = vmor %vm5762, %vm5763
        %v5765 = vsel %vm5764, %v5757, %v5761
        %v5766 = vand.u32 2147483647, %v5725
        %vm5767 = vcmp.eq.f32.partialorder %v5766, 8.507059e+37
        %v5768 = vand.u32 %v5725, 2147483648
        %v5769 = vor.u32 1.1754944e-38, %v5768
        %v5770 = vsel %vm5767, %v5769, %v5765
        %v5771 = vmul.f32 1.0, %v5770
        %v5772 = vrcp.pop %v5726
        %v5773 = vmul.f32 %v5726, %v5772
        %v5774 = vsub.f32 1.0, %v5773
        %v5775 = vmul.f32 %v5772, %v5774
        %v5776 = vadd.f32 %v5772, %v5775
        %vm5777 = vweird.f32 %v5726
        %vm5778 = vweird.f32 %v5772
        %vm5779 = vmor %vm5777, %vm5778
        %v5780 = vsel %vm5779, %v5772, %v5776
        %v5781 = vand.u32 2147483647, %v5726
        %vm5782 = vcmp.eq.f32.partialorder %v5781, 8.507059e+37
        %v5783 = vand.u32 %v5726, 2147483648
        %v5784 = vor.u32 1.1754944e-38, %v5783
        %v5785 = vsel %vm5782, %v5784, %v5780
        %v5786 = vmul.f32 1.0, %v5785
        %v5787 = vrcp.pop %v5727
        %v5788 = vmul.f32 %v5727, %v5787
        %v5789 = vsub.f32 1.0, %v5788
        %v5790 = vmul.f32 %v5787, %v5789
        %v5791 = vadd.f32 %v5787, %v5790
        %vm5792 = vweird.f32 %v5727
        %vm5793 = vweird.f32 %v5787
        %vm5794 = vmor %vm5792, %vm5793
        %v5795 = vsel %vm5794, %v5787, %v5791
        %v5796 = vand.u32 2147483647, %v5727
        %vm5797 = vcmp.eq.f32.partialorder %v5796, 8.507059e+37
        %v5798 = vand.u32 %v5727, 2147483648
        %v5799 = vor.u32 1.1754944e-38, %v5798
        %v5800 = vsel %vm5797, %v5799, %v5795
        %v5801 = vmul.f32 1.0, %v5800
        %v5802 = vrcp.pop %v5728
        %v5803 = vmul.f32 %v5728, %v5802
        %v5804 = vsub.f32 1.0, %v5803
        %v5805 = vmul.f32 %v5802, %v5804
        %v5806 = vadd.f32 %v5802, %v5805
        %vm5807 = vweird.f32 %v5728
        %vm5808 = vweird.f32 %v5802
        %vm5809 = vmor %vm5807, %vm5808
        %v5810 = vsel %vm5809, %v5802, %v5806
        %v5811 = vand.u32 2147483647, %v5728
        %vm5812 = vcmp.eq.f32.partialorder %v5811, 8.507059e+37
        %v5813 = vand.u32 %v5728, 2147483648
        %v5814 = vor.u32 1.1754944e-38, %v5813
        %v5815 = vsel %vm5812, %v5814, %v5810
        %v5816 = vmul.f32 1.0, %v5815
        %v5817 = vrcp.pop %v5729
        %v5818 = vmul.f32 %v5729, %v5817
        %v5819 = vsub.f32 1.0, %v5818
        %v5820 = vmul.f32 %v5817, %v5819
        %v5821 = vadd.f32 %v5817, %v5820
        %vm5822 = vweird.f32 %v5729
        %vm5823 = vweird.f32 %v5817
        %vm5824 = vmor %vm5822, %vm5823
        %v5825 = vsel %vm5824, %v5817, %v5821
        %v5826 = vand.u32 2147483647, %v5729
        %vm5827 = vcmp.eq.f32.partialorder %v5826, 8.507059e+37
        %v5828 = vand.u32 %v5729, 2147483648
        %v5829 = vor.u32 1.1754944e-38, %v5828
        %v5830 = vsel %vm5827, %v5829, %v5825
        %v5831 = vmul.f32 1.0, %v5830
        %v5832 = vrcp.pop %v5730
        %v5833 = vmul.f32 %v5730, %v5832
        %v5834 = vsub.f32 1.0, %v5833
        %v5835 = vmul.f32 %v5832, %v5834
        %v5836 = vadd.f32 %v5832, %v5835
        %vm5837 = vweird.f32 %v5730
        %vm5838 = vweird.f32 %v5832
        %vm5839 = vmor %vm5837, %vm5838
        %v5840 = vsel %vm5839, %v5832, %v5836
        %v5841 = vand.u32 2147483647, %v5730
        %vm5842 = vcmp.eq.f32.partialorder %v5841, 8.507059e+37
        %v5843 = vand.u32 %v5730, 2147483648
        %v5844 = vor.u32 1.1754944e-38, %v5843
        %v5845 = vsel %vm5842, %v5844, %v5840
        %v5846 = vmul.f32 1.0, %v5845
        %v5847 = vrcp.pop %v5731
        %v5848 = vmul.f32 %v5731, %v5847
        %v5849 = vsub.f32 1.0, %v5848
        %v5850 = vmul.f32 %v5847, %v5849
        %v5851 = vadd.f32 %v5847, %v5850
        %vm5852 = vweird.f32 %v5731
        %vm5853 = vweird.f32 %v5847
        %vm5854 = vmor %vm5852, %vm5853
        %v5855 = vsel %vm5854, %v5847, %v5851
        %v5856 = vand.u32 2147483647, %v5731
        %vm5857 = vcmp.eq.f32.partialorder %v5856, 8.507059e+37
        %v5858 = vand.u32 %v5731, 2147483648
        %v5859 = vor.u32 1.1754944e-38, %v5858
        %v5860 = vsel %vm5857, %v5859, %v5855
        %v5861 = vmul.f32 1.0, %v5860
        %v5862 = vrcp.pop %v5732
        %v5863 = vmul.f32 %v5732, %v5862
        %v5864 = vsub.f32 1.0, %v5863
        %v5865 = vmul.f32 %v5862, %v5864
        %v5866 = vadd.f32 %v5862, %v5865
        %vm5867 = vweird.f32 %v5732
        %vm5868 = vweird.f32 %v5862
        %vm5869 = vmor %vm5867, %vm5868
        %v5870 = vsel %vm5869, %v5862, %v5866
        %v5871 = vand.u32 2147483647, %v5732
        %vm5872 = vcmp.eq.f32.partialorder %v5871, 8.507059e+37
        %v5873 = vand.u32 %v5732, 2147483648
        %v5874 = vor.u32 1.1754944e-38, %v5873
        %v5875 = vsel %vm5872, %v5874, %v5870
        %v5876 = vmul.f32 1.0, %v5875
        %v5877 = vrcp.pop %v5733
        %v5878 = vmul.f32 %v5733, %v5877
        %v5879 = vsub.f32 1.0, %v5878
        %v5880 = vmul.f32 %v5877, %v5879
        %v5881 = vadd.f32 %v5877, %v5880
        %vm5882 = vweird.f32 %v5733
        %vm5883 = vweird.f32 %v5877
        %vm5884 = vmor %vm5882, %vm5883
        %v5885 = vsel %vm5884, %v5877, %v5881
        %v5886 = vand.u32 2147483647, %v5733
        %vm5887 = vcmp.eq.f32.partialorder %v5886, 8.507059e+37
        %v5888 = vand.u32 %v5733, 2147483648
        %v5889 = vor.u32 1.1754944e-38, %v5888
        %v5890 = vsel %vm5887, %v5889, %v5885
        %v5891 = vmul.f32 1.0, %v5890
        %v5892 = vrcp.pop %v5734
        %v5893 = vmul.f32 %v5734, %v5892
        %v5894 = vsub.f32 1.0, %v5893
        %v5895 = vmul.f32 %v5892, %v5894
        %v5896 = vadd.f32 %v5892, %v5895
        %vm5897 = vweird.f32 %v5734
        %vm5898 = vweird.f32 %v5892
        %vm5899 = vmor %vm5897, %vm5898
        %v5900 = vsel %vm5899, %v5892, %v5896
        %v5901 = vand.u32 2147483647, %v5734
        %vm5902 = vcmp.eq.f32.partialorder %v5901, 8.507059e+37
        %v5903 = vand.u32 %v5734, 2147483648
        %v5904 = vor.u32 1.1754944e-38, %v5903
        %v5905 = vsel %vm5902, %v5904, %v5900
        %v5906 = vmul.f32 1.0, %v5905
        %v5907 = vrcp.pop %v5735
        %v5908 = vmul.f32 %v5735, %v5907
        %v5909 = vsub.f32 1.0, %v5908
        %v5910 = vmul.f32 %v5907, %v5909
        %v5911 = vadd.f32 %v5907, %v5910
        %vm5912 = vweird.f32 %v5735
        %vm5913 = vweird.f32 %v5907
        %vm5914 = vmor %vm5912, %vm5913
        %v5915 = vsel %vm5914, %v5907, %v5911
        %v5916 = vand.u32 2147483647, %v5735
        %vm5917 = vcmp.eq.f32.partialorder %v5916, 8.507059e+37
        %v5918 = vand.u32 %v5735, 2147483648
        %v5919 = vor.u32 1.1754944e-38, %v5918
        %v5920 = vsel %vm5917, %v5919, %v5915
        %v5921 = vmul.f32 1.0, %v5920
        %v5922 = vrcp.pop %v5736
        %v5923 = vmul.f32 %v5736, %v5922
        %v5924 = vsub.f32 1.0, %v5923
        %v5925 = vmul.f32 %v5922, %v5924
        %v5926 = vadd.f32 %v5922, %v5925
        %vm5927 = vweird.f32 %v5736
        %vm5928 = vweird.f32 %v5922
        %vm5929 = vmor %vm5927, %vm5928
        %v5930 = vsel %vm5929, %v5922, %v5926
        %v5931 = vand.u32 2147483647, %v5736
        %vm5932 = vcmp.eq.f32.partialorder %v5931, 8.507059e+37
        %v5933 = vand.u32 %v5736, 2147483648
        %v5934 = vor.u32 1.1754944e-38, %v5933
        %v5935 = vsel %vm5932, %v5934, %v5930
        %v5936 = vmul.f32 1.0, %v5935
        %v5937 = vrcp.pop %v5737
        %v5938 = vmul.f32 %v5737, %v5937
        %v5939 = vsub.f32 1.0, %v5938
        %v5940 = vmul.f32 %v5937, %v5939
        %v5941 = vadd.f32 %v5937, %v5940
        %vm5942 = vweird.f32 %v5737
        %vm5943 = vweird.f32 %v5937
        %vm5944 = vmor %vm5942, %vm5943
        %v5945 = vsel %vm5944, %v5937, %v5941
        %v5946 = vand.u32 2147483647, %v5737
        %vm5947 = vcmp.eq.f32.partialorder %v5946, 8.507059e+37
        %v5948 = vand.u32 %v5737, 2147483648
        %v5949 = vor.u32 1.1754944e-38, %v5948
        %v5950 = vsel %vm5947, %v5949, %v5945
        %v5951 = vmul.f32 1.0, %v5950
        %v5952 = vrcp.pop %v5738
        %v5953 = vmul.f32 %v5738, %v5952
        %v5954 = vsub.f32 1.0, %v5953
        %v5955 = vmul.f32 %v5952, %v5954
        %v5956 = vadd.f32 %v5952, %v5955
        %vm5957 = vweird.f32 %v5738
        %vm5958 = vweird.f32 %v5952
        %vm5959 = vmor %vm5957, %vm5958
        %v5960 = vsel %vm5959, %v5952, %v5956
        %v5961 = vand.u32 2147483647, %v5738
        %vm5962 = vcmp.eq.f32.partialorder %v5961, 8.507059e+37
        %v5963 = vand.u32 %v5738, 2147483648
        %v5964 = vor.u32 1.1754944e-38, %v5963
        %v5965 = vsel %vm5962, %v5964, %v5960
        %v5966 = vmul.f32 1.0, %v5965
        %v5967 = vrcp.pop %v5739
        %v5968 = vmul.f32 %v5739, %v5967
        %v5969 = vsub.f32 1.0, %v5968
        %v5970 = vmul.f32 %v5967, %v5969
        %v5971 = vadd.f32 %v5967, %v5970
        %vm5972 = vweird.f32 %v5739
        %vm5973 = vweird.f32 %v5967
        %vm5974 = vmor %vm5972, %vm5973
        %v5975 = vsel %vm5974, %v5967, %v5971
        %v5976 = vand.u32 2147483647, %v5739
        %vm5977 = vcmp.eq.f32.partialorder %v5976, 8.507059e+37
        %v5978 = vand.u32 %v5739, 2147483648
        %v5979 = vor.u32 1.1754944e-38, %v5978
        %v5980 = vsel %vm5977, %v5979, %v5975
        %v5981 = vmul.f32 1.0, %v5980
        %v5982 = vrcp.pop %v5740
        %v5983 = vmul.f32 %v5740, %v5982
        %v5984 = vsub.f32 1.0, %v5983
        %v5985 = vmul.f32 %v5982, %v5984
        %v5986 = vadd.f32 %v5982, %v5985
        %vm5987 = vweird.f32 %v5740
        %vm5988 = vweird.f32 %v5982
        %vm5989 = vmor %vm5987, %vm5988
        %v5990 = vsel %vm5989, %v5982, %v5986
        %v5991 = vand.u32 2147483647, %v5740
        %vm5992 = vcmp.eq.f32.partialorder %v5991, 8.507059e+37
        %v5993 = vand.u32 %v5740, 2147483648
        %v5994 = vor.u32 1.1754944e-38, %v5993
        %v5995 = vsel %vm5992, %v5994, %v5990
        %v5996 = vmul.f32 1.0, %v5995
        %v5997 = vrcp.pop %v5741
        %v5998 = vmul.f32 %v5741, %v5997
        %v5999 = vsub.f32 1.0, %v5998
        %v6000 = vmul.f32 %v5997, %v5999
        %v6001 = vadd.f32 %v5997, %v6000
        %vm6002 = vweird.f32 %v5741
        %vm6003 = vweird.f32 %v5997
        %vm6004 = vmor %vm6002, %vm6003
        %v6005 = vsel %vm6004, %v5997, %v6001
        %v6006 = vand.u32 2147483647, %v5741
        %vm6007 = vcmp.eq.f32.partialorder %v6006, 8.507059e+37
        %v6008 = vand.u32 %v5741, 2147483648
        %v6009 = vor.u32 1.1754944e-38, %v6008
        %v6010 = vsel %vm6007, %v6009, %v6005
        %v6011 = vmul.f32 1.0, %v6010
        %v6012 = vrcp.pop %v5742
        %v6013 = vmul.f32 %v5742, %v6012
        %v6014 = vsub.f32 1.0, %v6013
        %v6015 = vmul.f32 %v6012, %v6014
        %v6016 = vadd.f32 %v6012, %v6015
        %vm6017 = vweird.f32 %v5742
        %vm6018 = vweird.f32 %v6012
        %vm6019 = vmor %vm6017, %vm6018
        %v6020 = vsel %vm6019, %v6012, %v6016
        %v6021 = vand.u32 2147483647, %v5742
        %vm6022 = vcmp.eq.f32.partialorder %v6021, 8.507059e+37
        %v6023 = vand.u32 %v5742, 2147483648
        %v6024 = vor.u32 1.1754944e-38, %v6023
        %v6025 = vsel %vm6022, %v6024, %v6020
        %v6026 = vmul.f32 1.0, %v6025
        %v6027 = vrcp.pop %v5743
        %v6028 = vmul.f32 %v5743, %v6027
        %v6029 = vsub.f32 1.0, %v6028
        %v6030 = vmul.f32 %v6027, %v6029
        %v6031 = vadd.f32 %v6027, %v6030
        %vm6032 = vweird.f32 %v5743
        %vm6033 = vweird.f32 %v6027
        %vm6034 = vmor %vm6032, %vm6033
        %v6035 = vsel %vm6034, %v6027, %v6031
        %v6036 = vand.u32 2147483647, %v5743
        %vm6037 = vcmp.eq.f32.partialorder %v6036, 8.507059e+37
        %v6038 = vand.u32 %v5743, 2147483648
        %v6039 = vor.u32 1.1754944e-38, %v6038
        %v6040 = vsel %vm6037, %v6039, %v6035
        %v6041 = vmul.f32 1.0, %v6040
        %v6042 = vrcp.pop %v5744
        %v6043 = vmul.f32 %v5744, %v6042
        %v6044 = vsub.f32 1.0, %v6043
        %v6045 = vmul.f32 %v6042, %v6044
        %v6046 = vadd.f32 %v6042, %v6045
        %vm6047 = vweird.f32 %v5744
        %vm6048 = vweird.f32 %v6042
        %vm6049 = vmor %vm6047, %vm6048
        %v6050 = vsel %vm6049, %v6042, %v6046
        %v6051 = vand.u32 2147483647, %v5744
        %vm6052 = vcmp.eq.f32.partialorder %v6051, 8.507059e+37
        %v6053 = vand.u32 %v5744, 2147483648
        %v6054 = vor.u32 1.1754944e-38, %v6053
        %v6055 = vsel %vm6052, %v6054, %v6050
        %v6056 = vmul.f32 1.0, %v6055
        %v6057 = vrcp.pop %v5745
        %v6058 = vmul.f32 %v5745, %v6057
        %v6059 = vsub.f32 1.0, %v6058
        %v6060 = vmul.f32 %v6057, %v6059
        %v6061 = vadd.f32 %v6057, %v6060
        %vm6062 = vweird.f32 %v5745
        %vm6063 = vweird.f32 %v6057
        %vm6064 = vmor %vm6062, %vm6063
        %v6065 = vsel %vm6064, %v6057, %v6061
        %v6066 = vand.u32 2147483647, %v5745
        %vm6067 = vcmp.eq.f32.partialorder %v6066, 8.507059e+37
        %v6068 = vand.u32 %v5745, 2147483648
        %v6069 = vor.u32 1.1754944e-38, %v6068
        %v6070 = vsel %vm6067, %v6069, %v6065
        %v6071 = vmul.f32 1.0, %v6070
        %v6072 = vrcp.pop %v5746
        %v6073 = vmul.f32 %v5746, %v6072
        %v6074 = vsub.f32 1.0, %v6073
        %v6075 = vmul.f32 %v6072, %v6074
        %v6076 = vadd.f32 %v6072, %v6075
        %vm6077 = vweird.f32 %v5746
        %vm6078 = vweird.f32 %v6072
        %vm6079 = vmor %vm6077, %vm6078
        %v6080 = vsel %vm6079, %v6072, %v6076
        %v6081 = vand.u32 2147483647, %v5746
        %vm6082 = vcmp.eq.f32.partialorder %v6081, 8.507059e+37
        %v6083 = vand.u32 %v5746, 2147483648
        %v6084 = vor.u32 1.1754944e-38, %v6083
        %v6085 = vsel %vm6082, %v6084, %v6080
        %v6086 = vmul.f32 1.0, %v6085
        %v6087 = vrcp.pop %v5747
        %v6088 = vmul.f32 %v5747, %v6087
        %v6089 = vsub.f32 1.0, %v6088
        %v6090 = vmul.f32 %v6087, %v6089
        %v6091 = vadd.f32 %v6087, %v6090
        %vm6092 = vweird.f32 %v5747
        %vm6093 = vweird.f32 %v6087
        %vm6094 = vmor %vm6092, %vm6093
        %v6095 = vsel %vm6094, %v6087, %v6091
        %v6096 = vand.u32 2147483647, %v5747
        %vm6097 = vcmp.eq.f32.partialorder %v6096, 8.507059e+37
        %v6098 = vand.u32 %v5747, 2147483648
        %v6099 = vor.u32 1.1754944e-38, %v6098
        %v6100 = vsel %vm6097, %v6099, %v6095
        %v6101 = vmul.f32 1.0, %v6100
        %v6102 = vrcp.pop %v5748
        %v6103 = vmul.f32 %v5748, %v6102
        %v6104 = vsub.f32 1.0, %v6103
        %v6105 = vmul.f32 %v6102, %v6104
        %v6106 = vadd.f32 %v6102, %v6105
        %vm6107 = vweird.f32 %v5748
        %vm6108 = vweird.f32 %v6102
        %vm6109 = vmor %vm6107, %vm6108
        %v6110 = vsel %vm6109, %v6102, %v6106
        %v6111 = vand.u32 2147483647, %v5748
        %vm6112 = vcmp.eq.f32.partialorder %v6111, 8.507059e+37
        %v6113 = vand.u32 %v5748, 2147483648
        %v6114 = vor.u32 1.1754944e-38, %v6113
        %v6115 = vsel %vm6112, %v6114, %v6110
        %v6116 = vmul.f32 1.0, %v6115
        %v6117 = vrcp.pop %v5749
        %v6118 = vmul.f32 %v5749, %v6117
        %v6119 = vsub.f32 1.0, %v6118
        %v6120 = vmul.f32 %v6117, %v6119
        %v6121 = vadd.f32 %v6117, %v6120
        %vm6122 = vweird.f32 %v5749
        %vm6123 = vweird.f32 %v6117
        %vm6124 = vmor %vm6122, %vm6123
        %v6125 = vsel %vm6124, %v6117, %v6121
        %v6126 = vand.u32 2147483647, %v5749
        %vm6127 = vcmp.eq.f32.partialorder %v6126, 8.507059e+37
        %v6128 = vand.u32 %v5749, 2147483648
        %v6129 = vor.u32 1.1754944e-38, %v6128
        %v6130 = vsel %vm6127, %v6129, %v6125
        %v6131 = vmul.f32 1.0, %v6130
        %v6132 = vrcp.pop %v5750
        %v6133 = vmul.f32 %v5750, %v6132
        %v6134 = vsub.f32 1.0, %v6133
        %v6135 = vmul.f32 %v6132, %v6134
        %v6136 = vadd.f32 %v6132, %v6135
        %vm6137 = vweird.f32 %v5750
        %vm6138 = vweird.f32 %v6132
        %vm6139 = vmor %vm6137, %vm6138
        %v6140 = vsel %vm6139, %v6132, %v6136
        %v6141 = vand.u32 2147483647, %v5750
        %vm6142 = vcmp.eq.f32.partialorder %v6141, 8.507059e+37
        %v6143 = vand.u32 %v5750, 2147483648
        %v6144 = vor.u32 1.1754944e-38, %v6143
        %v6145 = vsel %vm6142, %v6144, %v6140
        %v6146 = vmul.f32 1.0, %v6145
        %v6147 = vrcp.pop %v5751
        %v6148 = vmul.f32 %v5751, %v6147
        %v6149 = vsub.f32 1.0, %v6148
        %v6150 = vmul.f32 %v6147, %v6149
        %v6151 = vadd.f32 %v6147, %v6150
        %vm6152 = vweird.f32 %v5751
        %vm6153 = vweird.f32 %v6147
        %vm6154 = vmor %vm6152, %vm6153
        %v6155 = vsel %vm6154, %v6147, %v6151
        %v6156 = vand.u32 2147483647, %v5751
        %vm6157 = vcmp.eq.f32.partialorder %v6156, 8.507059e+37
        %v6158 = vand.u32 %v5751, 2147483648
        %v6159 = vor.u32 1.1754944e-38, %v6158
        %v6160 = vsel %vm6157, %v6159, %v6155
        %v6161 = vmul.f32 1.0, %v6160
        %v6162 = vrcp.pop %v5752
        %v6163 = vmul.f32 %v5752, %v6162
        %v6164 = vsub.f32 1.0, %v6163
        %v6165 = vmul.f32 %v6162, %v6164
        %v6166 = vadd.f32 %v6162, %v6165
        %vm6167 = vweird.f32 %v5752
        %vm6168 = vweird.f32 %v6162
        %vm6169 = vmor %vm6167, %vm6168
        %v6170 = vsel %vm6169, %v6162, %v6166
        %v6171 = vand.u32 2147483647, %v5752
        %vm6172 = vcmp.eq.f32.partialorder %v6171, 8.507059e+37
        %v6173 = vand.u32 %v5752, 2147483648
        %v6174 = vor.u32 1.1754944e-38, %v6173
        %v6175 = vsel %vm6172, %v6174, %v6170
        %v6176 = vmul.f32 1.0, %v6175
        %v6177 = vrcp.pop %v5753
        %v6178 = vmul.f32 %v5753, %v6177
        %v6179 = vsub.f32 1.0, %v6178
        %v6180 = vmul.f32 %v6177, %v6179
        %v6181 = vadd.f32 %v6177, %v6180
        %vm6182 = vweird.f32 %v5753
        %vm6183 = vweird.f32 %v6177
        %vm6184 = vmor %vm6182, %vm6183
        %v6185 = vsel %vm6184, %v6177, %v6181
        %v6186 = vand.u32 2147483647, %v5753
        %vm6187 = vcmp.eq.f32.partialorder %v6186, 8.507059e+37
        %v6188 = vand.u32 %v5753, 2147483648
        %v6189 = vor.u32 1.1754944e-38, %v6188
        %v6190 = vsel %vm6187, %v6189, %v6185
        %v6191 = vmul.f32 1.0, %v6190
        %v6192 = vrcp.pop %v5754
        %v6193 = vmul.f32 %v5754, %v6192
        %v6194 = vsub.f32 1.0, %v6193
        %v6195 = vmul.f32 %v6192, %v6194
        %v6196 = vadd.f32 %v6192, %v6195
        %vm6197 = vweird.f32 %v5754
        %vm6198 = vweird.f32 %v6192
        %vm6199 = vmor %vm6197, %vm6198
        %v6200 = vsel %vm6199, %v6192, %v6196
        %v6201 = vand.u32 2147483647, %v5754
        %vm6202 = vcmp.eq.f32.partialorder %v6201, 8.507059e+37
        %v6203 = vand.u32 %v5754, 2147483648
        %v6204 = vor.u32 1.1754944e-38, %v6203
        %v6205 = vsel %vm6202, %v6204, %v6200
        %v6206 = vmul.f32 1.0, %v6205
        %v6207 = vrcp.pop %v5755
        %v6208 = vmul.f32 %v5755, %v6207
        %v6209 = vsub.f32 1.0, %v6208
        %v6210 = vmul.f32 %v6207, %v6209
        %v6211 = vadd.f32 %v6207, %v6210
        %vm6212 = vweird.f32 %v5755
        %vm6213 = vweird.f32 %v6207
        %vm6214 = vmor %vm6212, %vm6213
        %v6215 = vsel %vm6214, %v6207, %v6211
        %v6216 = vand.u32 2147483647, %v5755
        %vm6217 = vcmp.eq.f32.partialorder %v6216, 8.507059e+37
        %v6218 = vand.u32 %v5755, 2147483648
        %v6219 = vor.u32 1.1754944e-38, %v6218
        %v6220 = vsel %vm6217, %v6219, %v6215
        %v6221 = vmul.f32 1.0, %v6220
        %v6222 = vrcp.pop %v5756
        %v6223 = vmul.f32 %v5756, %v6222
        %v6224 = vsub.f32 1.0, %v6223
        %v6225 = vmul.f32 %v6222, %v6224
        %v6226 = vadd.f32 %v6222, %v6225
        %vm6227 = vweird.f32 %v5756
        %vm6228 = vweird.f32 %v6222
        %vm6229 = vmor %vm6227, %vm6228
        %v6230 = vsel %vm6229, %v6222, %v6226
        %v6231 = vand.u32 2147483647, %v5756
        %vm6232 = vcmp.eq.f32.partialorder %v6231, 8.507059e+37
        %v6233 = vand.u32 %v5756, 2147483648
        %v6234 = vor.u32 1.1754944e-38, %v6233
        %v6235 = vsel %vm6232, %v6234, %v6230
        %v6236 = vmul.f32 1.0, %v6235
        %6269 = vrot.lane.b32.xlu0 %v489, 32
        %v6270 = vpop.permute.xlu0 %6269
        %6271 = vrot.lane.b32.xlu0 %v490, 32
        %v6272 = vpop.permute.xlu0 %6271
        %6273 = vrot.lane.b32.xlu0 %v491, 32
        %v6274 = vpop.permute.xlu0 %6273
        %6275 = vrot.lane.b32.xlu0 %v492, 32
        %v6276 = vpop.permute.xlu0 %6275
        %6277 = vrot.lane.b32.xlu0 %v493, 32
        %v6278 = vpop.permute.xlu0 %6277
        %6279 = vrot.lane.b32.xlu0 %v494, 32
        %v6280 = vpop.permute.xlu0 %6279
        %6281 = vrot.lane.b32.xlu0 %v495, 32
        %v6282 = vpop.permute.xlu0 %6281
        %6283 = vrot.lane.b32.xlu0 %v496, 32
        %v6284 = vpop.permute.xlu0 %6283
        %6285 = vrot.lane.b32.xlu0 %v497, 32
        %v6286 = vpop.permute.xlu0 %6285
        %6287 = vrot.lane.b32.xlu0 %v498, 32
        %v6288 = vpop.permute.xlu0 %6287
        %6289 = vrot.lane.b32.xlu0 %v499, 32
        %v6290 = vpop.permute.xlu0 %6289
        %6291 = vrot.lane.b32.xlu0 %v500, 32
        %v6292 = vpop.permute.xlu0 %6291
        %6293 = vrot.lane.b32.xlu0 %v501, 32
        %v6294 = vpop.permute.xlu0 %6293
        %6295 = vrot.lane.b32.xlu0 %v502, 32
        %v6296 = vpop.permute.xlu0 %6295
        %6297 = vrot.lane.b32.xlu0 %v503, 32
        %v6298 = vpop.permute.xlu0 %6297
        %6299 = vrot.lane.b32.xlu0 %v504, 32
        %v6300 = vpop.permute.xlu0 %6299
        %6301 = vrot.lane.b32.xlu0 %v505, 32
        %v6302 = vpop.permute.xlu0 %6301
        %6303 = vrot.lane.b32.xlu0 %v506, 32
        %v6304 = vpop.permute.xlu0 %6303
        %6305 = vrot.lane.b32.xlu0 %v507, 32
        %v6306 = vpop.permute.xlu0 %6305
        %6307 = vrot.lane.b32.xlu0 %v508, 32
        %v6308 = vpop.permute.xlu0 %6307
        %6309 = vrot.lane.b32.xlu0 %v509, 32
        %v6310 = vpop.permute.xlu0 %6309
        %6311 = vrot.lane.b32.xlu0 %v510, 32
        %v6312 = vpop.permute.xlu0 %6311
        %6313 = vrot.lane.b32.xlu0 %v511, 32
        %v6314 = vpop.permute.xlu0 %6313
        %6315 = vrot.lane.b32.xlu0 %v512, 32
        %v6316 = vpop.permute.xlu0 %6315
        %6317 = vrot.lane.b32.xlu0 %v513, 32
        %v6318 = vpop.permute.xlu0 %6317
        %6319 = vrot.lane.b32.xlu0 %v514, 32
        %v6320 = vpop.permute.xlu0 %6319
        %6321 = vrot.lane.b32.xlu0 %v515, 32
        %v6322 = vpop.permute.xlu0 %6321
        %6323 = vrot.lane.b32.xlu0 %v516, 32
        %v6324 = vpop.permute.xlu0 %6323
        %6325 = vrot.lane.b32.xlu0 %v517, 32
        %v6326 = vpop.permute.xlu0 %6325
        %6327 = vrot.lane.b32.xlu0 %v518, 32
        %v6328 = vpop.permute.xlu0 %6327
        %6329 = vrot.lane.b32.xlu0 %v519, 32
        %v6330 = vpop.permute.xlu0 %6329
        %6331 = vrot.lane.b32.xlu0 %v520, 32
        %v6332 = vpop.permute.xlu0 %6331
        %v6365 = vmul.f32 %v5771, %v6270
        %v6366 = vmul.f32 %v5786, %v6272
        %v6367 = vmul.f32 %v5801, %v6274
        %v6368 = vmul.f32 %v5816, %v6276
        %v6369 = vmul.f32 %v5831, %v6278
        %v6370 = vmul.f32 %v5846, %v6280
        %v6371 = vmul.f32 %v5861, %v6282
        %v6372 = vmul.f32 %v5876, %v6284
        %v6373 = vmul.f32 %v5891, %v6286
        %v6374 = vmul.f32 %v5906, %v6288
        %v6375 = vmul.f32 %v5921, %v6290
        %v6376 = vmul.f32 %v5936, %v6292
        %v6377 = vmul.f32 %v5951, %v6294
        %v6378 = vmul.f32 %v5966, %v6296
        %v6379 = vmul.f32 %v5981, %v6298
        %v6380 = vmul.f32 %v5996, %v6300
        %v6381 = vmul.f32 %v6011, %v6302
        %v6382 = vmul.f32 %v6026, %v6304
        %v6383 = vmul.f32 %v6041, %v6306
        %v6384 = vmul.f32 %v6056, %v6308
        %v6385 = vmul.f32 %v6071, %v6310
        %v6386 = vmul.f32 %v6086, %v6312
        %v6387 = vmul.f32 %v6101, %v6314
        %v6388 = vmul.f32 %v6116, %v6316
        %v6389 = vmul.f32 %v6131, %v6318
        %v6390 = vmul.f32 %v6146, %v6320
        %v6391 = vmul.f32 %v6161, %v6322
        %v6392 = vmul.f32 %v6176, %v6324
        %v6393 = vmul.f32 %v6191, %v6326
        %v6394 = vmul.f32 %v6206, %v6328
        %v6395 = vmul.f32 %v6221, %v6330
        %v6396 = vmul.f32 %v6236, %v6332
        %6429 = vrot.lane.b32.xlu0 %v6365, 96
        %v6430 = vpop.permute.xlu0 %6429
        %6431 = vrot.lane.b32.xlu0 %v6366, 96
        %v6432 = vpop.permute.xlu0 %6431
        %6433 = vrot.lane.b32.xlu0 %v6367, 96
        %v6434 = vpop.permute.xlu0 %6433
        %6435 = vrot.lane.b32.xlu0 %v6368, 96
        %v6436 = vpop.permute.xlu0 %6435
        %6437 = vrot.lane.b32.xlu0 %v6369, 96
        %v6438 = vpop.permute.xlu0 %6437
        %6439 = vrot.lane.b32.xlu0 %v6370, 96
        %v6440 = vpop.permute.xlu0 %6439
        %6441 = vrot.lane.b32.xlu0 %v6371, 96
        %v6442 = vpop.permute.xlu0 %6441
        %6443 = vrot.lane.b32.xlu0 %v6372, 96
        %v6444 = vpop.permute.xlu0 %6443
        %6445 = vrot.lane.b32.xlu0 %v6373, 96
        %v6446 = vpop.permute.xlu0 %6445
        %6447 = vrot.lane.b32.xlu0 %v6374, 96
        %v6448 = vpop.permute.xlu0 %6447
        %6449 = vrot.lane.b32.xlu0 %v6375, 96
        %v6450 = vpop.permute.xlu0 %6449
        %6451 = vrot.lane.b32.xlu0 %v6376, 96
        %v6452 = vpop.permute.xlu0 %6451
        %6453 = vrot.lane.b32.xlu0 %v6377, 96
        %v6454 = vpop.permute.xlu0 %6453
        %6455 = vrot.lane.b32.xlu0 %v6378, 96
        %v6456 = vpop.permute.xlu0 %6455
        %6457 = vrot.lane.b32.xlu0 %v6379, 96
        %v6458 = vpop.permute.xlu0 %6457
        %6459 = vrot.lane.b32.xlu0 %v6380, 96
        %v6460 = vpop.permute.xlu0 %6459
        %6461 = vrot.lane.b32.xlu0 %v6381, 96
        %v6462 = vpop.permute.xlu0 %6461
        %6463 = vrot.lane.b32.xlu0 %v6382, 96
        %v6464 = vpop.permute.xlu0 %6463
        %6465 = vrot.lane.b32.xlu0 %v6383, 96
        %v6466 = vpop.permute.xlu0 %6465
        %6467 = vrot.lane.b32.xlu0 %v6384, 96
        %v6468 = vpop.permute.xlu0 %6467
        %6469 = vrot.lane.b32.xlu0 %v6385, 96
        %v6470 = vpop.permute.xlu0 %6469
        %6471 = vrot.lane.b32.xlu0 %v6386, 96
        %v6472 = vpop.permute.xlu0 %6471
        %6473 = vrot.lane.b32.xlu0 %v6387, 96
        %v6474 = vpop.permute.xlu0 %6473
        %6475 = vrot.lane.b32.xlu0 %v6388, 96
        %v6476 = vpop.permute.xlu0 %6475
        %6477 = vrot.lane.b32.xlu0 %v6389, 96
        %v6478 = vpop.permute.xlu0 %6477
        %6479 = vrot.lane.b32.xlu0 %v6390, 96
        %v6480 = vpop.permute.xlu0 %6479
        %6481 = vrot.lane.b32.xlu0 %v6391, 96
        %v6482 = vpop.permute.xlu0 %6481
        %6483 = vrot.lane.b32.xlu0 %v6392, 96
        %v6484 = vpop.permute.xlu0 %6483
        %6485 = vrot.lane.b32.xlu0 %v6393, 96
        %v6486 = vpop.permute.xlu0 %6485
        %6487 = vrot.lane.b32.xlu0 %v6394, 96
        %v6488 = vpop.permute.xlu0 %6487
        %6489 = vrot.lane.b32.xlu0 %v6395, 96
        %v6490 = vpop.permute.xlu0 %6489
        %6491 = vrot.lane.b32.xlu0 %v6396, 96
        %v6492 = vpop.permute.xlu0 %6491
        %6525 = vst.msk [vmem:[%s456 + $0x1] sm:$0xff] %vm363, %v6430
        %6526 = vst.msk [vmem:[%s456 + $0x9] sm:$0xff] %vm363, %v6432
        %6527 = vst.msk [vmem:[%s456 + $0x19] sm:$0xff] %vm363, %v6434
        %6528 = vst.msk [vmem:[%s456 + $0x21] sm:$0xff] %vm363, %v6436
        %6529 = vst.msk [vmem:[%s456 + $0x31] sm:$0xff] %vm363, %v6438
        %6530 = vst.msk [vmem:[%s456 + $0x39] sm:$0xff] %vm363, %v6440
        %6531 = vst.msk [vmem:[%s456 + $0x49] sm:$0xff] %vm363, %v6442
        %6532 = vst.msk [vmem:[%s456 + $0x51] sm:$0xff] %vm363, %v6444
        %6533 = vst.msk [vmem:[%s456 + $0x61] sm:$0xff] %vm363, %v6446
        %6534 = vst.msk [vmem:[%s456 + $0x69] sm:$0xff] %vm363, %v6448
        %6535 = vst.msk [vmem:[%s456 + $0x79] sm:$0xff] %vm363, %v6450
        %6536 = vst.msk [vmem:[%s456 + $0x81] sm:$0xff] %vm363, %v6452
        %6537 = vst.msk [vmem:[%s456 + $0x91] sm:$0xff] %vm363, %v6454
        %6538 = vst.msk [vmem:[%s456 + $0x99] sm:$0xff] %vm363, %v6456
        %6539 = vst.msk [vmem:[%s456 + $0xa9] sm:$0xff] %vm363, %v6458
        %6540 = vst.msk [vmem:[%s456 + $0xb1] sm:$0xff] %vm363, %v6460
        %6541 = vst.msk [vmem:[%s456 + $0xc1] sm:$0xff] %vm363, %v6462
        %6542 = vst.msk [vmem:[%s456 + $0xc9] sm:$0xff] %vm363, %v6464
        %6543 = vst.msk [vmem:[%s456 + $0xd9] sm:$0xff] %vm363, %v6466
        %6544 = vst.msk [vmem:[%s456 + $0xe1] sm:$0xff] %vm363, %v6468
        %6545 = vst.msk [vmem:[%s456 + $0xf1] sm:$0xff] %vm363, %v6470
        %6546 = vst.msk [vmem:[%s456 + $0xf9] sm:$0xff] %vm363, %v6472
        %6547 = vst.msk [vmem:[%s456 + $0x109] sm:$0xff] %vm363, %v6474
        %6548 = vst.msk [vmem:[%s456 + $0x111] sm:$0xff] %vm363, %v6476
        %6549 = vst.msk [vmem:[%s456 + $0x121] sm:$0xff] %vm363, %v6478
        %6550 = vst.msk [vmem:[%s456 + $0x129] sm:$0xff] %vm363, %v6480
        %6551 = vst.msk [vmem:[%s456 + $0x139] sm:$0xff] %vm363, %v6482
        %6552 = vst.msk [vmem:[%s456 + $0x141] sm:$0xff] %vm363, %v6484
        %6553 = vst.msk [vmem:[%s456 + $0x151] sm:$0xff] %vm363, %v6486
        %6554 = vst.msk [vmem:[%s456 + $0x159] sm:$0xff] %vm363, %v6488
        %6555 = vst.msk [vmem:[%s456 + $0x169] sm:$0xff] %vm363, %v6490
        %6556 = vst.msk [vmem:[%s456 + $0x171] sm:$0xff] %vm363, %v6492
        %v6557 = vld [vmem:[#allocation4] sm:$0xff]
        %v6558 = vld [vmem:[#allocation4 + $0x8] sm:$0xff]
        %v6559 = vld [vmem:[#allocation4 + $0x18] sm:$0xff]
        %v6560 = vld [vmem:[#allocation4 + $0x20] sm:$0xff]
        %v6561 = vld [vmem:[#allocation4 + $0x30] sm:$0xff]
        %v6562 = vld [vmem:[#allocation4 + $0x38] sm:$0xff]
        %v6563 = vld [vmem:[#allocation4 + $0x48] sm:$0xff]
        %v6564 = vld [vmem:[#allocation4 + $0x50] sm:$0xff]
        %v6565 = vld [vmem:[#allocation4 + $0x60] sm:$0xff]
        %v6566 = vld [vmem:[#allocation4 + $0x68] sm:$0xff]
        %v6567 = vld [vmem:[#allocation4 + $0x78] sm:$0xff]
        %v6568 = vld [vmem:[#allocation4 + $0x80] sm:$0xff]
        %v6569 = vld [vmem:[#allocation4 + $0x90] sm:$0xff]
        %v6570 = vld [vmem:[#allocation4 + $0x98] sm:$0xff]
        %v6571 = vld [vmem:[#allocation4 + $0xa8] sm:$0xff]
        %v6572 = vld [vmem:[#allocation4 + $0xb0] sm:$0xff]
        %v6573 = vld [vmem:[#allocation4 + $0xc0] sm:$0xff]
        %v6574 = vld [vmem:[#allocation4 + $0xc8] sm:$0xff]
        %v6575 = vld [vmem:[#allocation4 + $0xd8] sm:$0xff]
        %v6576 = vld [vmem:[#allocation4 + $0xe0] sm:$0xff]
        %v6577 = vld [vmem:[#allocation4 + $0xf0] sm:$0xff]
        %v6578 = vld [vmem:[#allocation4 + $0xf8] sm:$0xff]
        %v6579 = vld [vmem:[#allocation4 + $0x108] sm:$0xff]
        %v6580 = vld [vmem:[#allocation4 + $0x110] sm:$0xff]
        %v6581 = vld [vmem:[#allocation4 + $0x120] sm:$0xff]
        %v6582 = vld [vmem:[#allocation4 + $0x128] sm:$0xff]
        %v6583 = vld [vmem:[#allocation4 + $0x138] sm:$0xff]
        %v6584 = vld [vmem:[#allocation4 + $0x140] sm:$0xff]
        %v6585 = vld [vmem:[#allocation4 + $0x150] sm:$0xff]
        %v6586 = vld [vmem:[#allocation4 + $0x158] sm:$0xff]
        %v6587 = vld [vmem:[#allocation4 + $0x168] sm:$0xff]
        %v6588 = vld [vmem:[#allocation4 + $0x170] sm:$0xff]
        %v6589 = vld [vmem:[#allocation8] sm:$0xff]
        %v6590 = vld [vmem:[#allocation8 + $0x8] sm:$0xff]
        %v6591 = vld [vmem:[#allocation8 + $0x10] sm:$0xff]
        %v6592 = vld [vmem:[#allocation8 + $0x18] sm:$0xff]
        %v6593 = vld [vmem:[#allocation3] sm:$0xff]
        %v6594 = vld [vmem:[#allocation3 + $0x8] sm:$0xff]
        %v6595 = vld [vmem:[#allocation3 + $0x18] sm:$0xff]
        %v6596 = vld [vmem:[#allocation3 + $0x20] sm:$0xff]
        %v6597 = vld [vmem:[#allocation3 + $0x30] sm:$0xff]
        %v6598 = vld [vmem:[#allocation3 + $0x38] sm:$0xff]
        %v6599 = vld [vmem:[#allocation3 + $0x48] sm:$0xff]
        %v6600 = vld [vmem:[#allocation3 + $0x50] sm:$0xff]
        %v6601 = vld [vmem:[#allocation3 + $0x60] sm:$0xff]
        %v6602 = vld [vmem:[#allocation3 + $0x68] sm:$0xff]
        %v6603 = vld [vmem:[#allocation3 + $0x78] sm:$0xff]
        %v6604 = vld [vmem:[#allocation3 + $0x80] sm:$0xff]
        %v6605 = vld [vmem:[#allocation3 + $0x90] sm:$0xff]
        %v6606 = vld [vmem:[#allocation3 + $0x98] sm:$0xff]
        %v6607 = vld [vmem:[#allocation3 + $0xa8] sm:$0xff]
        %v6608 = vld [vmem:[#allocation3 + $0xb0] sm:$0xff]
        %v6609 = vld [vmem:[#allocation3 + $0xc0] sm:$0xff]
        %v6610 = vld [vmem:[#allocation3 + $0xc8] sm:$0xff]
        %v6611 = vld [vmem:[#allocation3 + $0xd8] sm:$0xff]
        %v6612 = vld [vmem:[#allocation3 + $0xe0] sm:$0xff]
        %v6613 = vld [vmem:[#allocation3 + $0xf0] sm:$0xff]
        %v6614 = vld [vmem:[#allocation3 + $0xf8] sm:$0xff]
        %v6615 = vld [vmem:[#allocation3 + $0x108] sm:$0xff]
        %v6616 = vld [vmem:[#allocation3 + $0x110] sm:$0xff]
        %v6617 = vld [vmem:[#allocation3 + $0x120] sm:$0xff]
        %v6618 = vld [vmem:[#allocation3 + $0x128] sm:$0xff]
        %v6619 = vld [vmem:[#allocation3 + $0x138] sm:$0xff]
        %v6620 = vld [vmem:[#allocation3 + $0x140] sm:$0xff]
        %v6621 = vld [vmem:[#allocation3 + $0x150] sm:$0xff]
        %v6622 = vld [vmem:[#allocation3 + $0x158] sm:$0xff]
        %v6623 = vld [vmem:[#allocation3 + $0x168] sm:$0xff]
        %v6624 = vld [vmem:[#allocation3 + $0x170] sm:$0xff]
        %v6625 = vld [vmem:[%s6] sm:$0xff]
        %v6626 = vld [vmem:[%s6 + $0x8] sm:$0xff]
        %v6627 = vld [vmem:[%s6 + $0x10] sm:$0xff]
        %v6628 = vld [vmem:[%s6 + $0x18] sm:$0xff]
        %v6629 = vld [vmem:[%s6 + $0x20] sm:$0xff]
        %v6630 = vld [vmem:[%s6 + $0x28] sm:$0xff]
        %v6631 = vld [vmem:[%s6 + $0x30] sm:$0xff]
        %v6632 = vld [vmem:[%s6 + $0x38] sm:$0xff]
        %v6634 = vsel %vm406, %v6593, 0
        %v6637 = vsel %vm406, %v6594, 0
        %v6640 = vsel %vm406, %v6595, 0
        %v6643 = vsel %vm406, %v6596, 0
        %v6646 = vsel %vm406, %v6597, 0
        %v6649 = vsel %vm406, %v6598, 0
        %v6652 = vsel %vm406, %v6599, 0
        %v6655 = vsel %vm406, %v6600, 0
        %v6658 = vsel %vm406, %v6601, 0
        %v6661 = vsel %vm406, %v6602, 0
        %v6664 = vsel %vm406, %v6603, 0
        %v6667 = vsel %vm406, %v6604, 0
        %v6670 = vsel %vm406, %v6605, 0
        %v6673 = vsel %vm406, %v6606, 0
        %v6676 = vsel %vm406, %v6607, 0
        %v6679 = vsel %vm406, %v6608, 0
        %v6682 = vsel %vm406, %v6609, 0
        %v6685 = vsel %vm406, %v6610, 0
        %v6688 = vsel %vm406, %v6611, 0
        %v6691 = vsel %vm406, %v6612, 0
        %v6694 = vsel %vm406, %v6613, 0
        %v6697 = vsel %vm406, %v6614, 0
        %v6700 = vsel %vm406, %v6615, 0
        %v6703 = vsel %vm406, %v6616, 0
        %v6706 = vsel %vm406, %v6617, 0
        %v6709 = vsel %vm406, %v6618, 0
        %v6712 = vsel %vm406, %v6619, 0
        %v6715 = vsel %vm406, %v6620, 0
        %v6718 = vsel %vm406, %v6621, 0
        %v6721 = vsel %vm406, %v6622, 0
        %v6724 = vsel %vm406, %v6623, 0
        %v6727 = vsel %vm406, %v6624, 0
        %6729 = vmatpush.msra.mxu0 0.0
        %6730 = vmatpush.msra.mxu0 0.0
        %6731 = vmatpush.msra.mxu0 0.0
        %6732 = vmatpush.msra.mxu0 0.0
        %6733 = vmatpush.msra.mxu0 0.0
        %6734 = vmatpush.msra.mxu0 0.0
        %6735 = vmatpush.msra.mxu0 0.0
        %6736 = vmatpush.msra.mxu0 0.0
        %6737 = vmatpush.msra.mxu0 %v6632
        %6738 = vmatpush.msra.mxu0 %v6631
        %6739 = vmatpush.msra.mxu0 %v6630
        %6740 = vmatpush.msra.mxu0 %v6629
        %6741 = vmatpush.msra.mxu0 %v6628
        %6742 = vmatpush.msra.mxu0 %v6627
        %6743 = vmatpush.msra.mxu0 %v6626
        %6744 = vmatpush.msra.mxu0 %v6625
        %6745 = vmatmul.f32.gmra.mxu0 %v6634
        %v6746 = vpop.f32.mrf.mxu0
        %v6747 = vadd.f32 0.0, %v6746
        %6748 = vmatmul.f32.gmra.mxu0 %v6637
        %v6749 = vpop.f32.mrf.mxu0
        %v6750 = vadd.f32 0.0, %v6749
        %6751 = vmatmul.f32.gmra.mxu0 %v6640
        %v6752 = vpop.f32.mrf.mxu0
        %v6753 = vadd.f32 0.0, %v6752
        %6754 = vmatmul.f32.gmra.mxu0 %v6643
        %v6755 = vpop.f32.mrf.mxu0
        %v6756 = vadd.f32 0.0, %v6755
        %6757 = vmatmul.f32.gmra.mxu0 %v6646
        %v6758 = vpop.f32.mrf.mxu0
        %v6759 = vadd.f32 0.0, %v6758
        %6760 = vmatmul.f32.gmra.mxu0 %v6649
        %v6761 = vpop.f32.mrf.mxu0
        %v6762 = vadd.f32 0.0, %v6761
        %6763 = vmatmul.f32.gmra.mxu0 %v6652
        %v6764 = vpop.f32.mrf.mxu0
        %v6765 = vadd.f32 0.0, %v6764
        %6766 = vmatmul.f32.gmra.mxu0 %v6655
        %v6767 = vpop.f32.mrf.mxu0
        %v6768 = vadd.f32 0.0, %v6767
        %6769 = vmatmul.f32.gmra.mxu0 %v6658
        %v6770 = vpop.f32.mrf.mxu0
        %v6771 = vadd.f32 0.0, %v6770
        %6772 = vmatmul.f32.gmra.mxu0 %v6661
        %v6773 = vpop.f32.mrf.mxu0
        %v6774 = vadd.f32 0.0, %v6773
        %6775 = vmatmul.f32.gmra.mxu0 %v6664
        %v6776 = vpop.f32.mrf.mxu0
        %v6777 = vadd.f32 0.0, %v6776
        %6778 = vmatmul.f32.gmra.mxu0 %v6667
        %v6779 = vpop.f32.mrf.mxu0
        %v6780 = vadd.f32 0.0, %v6779
        %6781 = vmatmul.f32.gmra.mxu0 %v6670
        %v6782 = vpop.f32.mrf.mxu0
        %v6783 = vadd.f32 0.0, %v6782
        %6784 = vmatmul.f32.gmra.mxu0 %v6673
        %v6785 = vpop.f32.mrf.mxu0
        %v6786 = vadd.f32 0.0, %v6785
        %6787 = vmatmul.f32.gmra.mxu0 %v6676
        %v6788 = vpop.f32.mrf.mxu0
        %v6789 = vadd.f32 0.0, %v6788
        %6790 = vmatmul.f32.gmra.mxu0 %v6679
        %v6791 = vpop.f32.mrf.mxu0
        %v6792 = vadd.f32 0.0, %v6791
        %6793 = vmatmul.f32.gmra.mxu0 %v6682
        %v6794 = vpop.f32.mrf.mxu0
        %v6795 = vadd.f32 0.0, %v6794
        %6796 = vmatmul.f32.gmra.mxu0 %v6685
        %v6797 = vpop.f32.mrf.mxu0
        %v6798 = vadd.f32 0.0, %v6797
        %6799 = vmatmul.f32.gmra.mxu0 %v6688
        %v6800 = vpop.f32.mrf.mxu0
        %v6801 = vadd.f32 0.0, %v6800
        %6802 = vmatmul.f32.gmra.mxu0 %v6691
        %v6803 = vpop.f32.mrf.mxu0
        %v6804 = vadd.f32 0.0, %v6803
        %6805 = vmatmul.f32.gmra.mxu0 %v6694
        %v6806 = vpop.f32.mrf.mxu0
        %v6807 = vadd.f32 0.0, %v6806
        %6808 = vmatmul.f32.gmra.mxu0 %v6697
        %v6809 = vpop.f32.mrf.mxu0
        %v6810 = vadd.f32 0.0, %v6809
        %6811 = vmatmul.f32.gmra.mxu0 %v6700
        %v6812 = vpop.f32.mrf.mxu0
        %v6813 = vadd.f32 0.0, %v6812
        %6814 = vmatmul.f32.gmra.mxu0 %v6703
        %v6815 = vpop.f32.mrf.mxu0
        %v6816 = vadd.f32 0.0, %v6815
        %6817 = vmatmul.f32.gmra.mxu0 %v6706
        %v6818 = vpop.f32.mrf.mxu0
        %v6819 = vadd.f32 0.0, %v6818
        %6820 = vmatmul.f32.gmra.mxu0 %v6709
        %v6821 = vpop.f32.mrf.mxu0
        %v6822 = vadd.f32 0.0, %v6821
        %6823 = vmatmul.f32.gmra.mxu0 %v6712
        %v6824 = vpop.f32.mrf.mxu0
        %v6825 = vadd.f32 0.0, %v6824
        %6826 = vmatmul.f32.gmra.mxu0 %v6715
        %v6827 = vpop.f32.mrf.mxu0
        %v6828 = vadd.f32 0.0, %v6827
        %6829 = vmatmul.f32.gmra.mxu0 %v6718
        %v6830 = vpop.f32.mrf.mxu0
        %v6831 = vadd.f32 0.0, %v6830
        %6832 = vmatmul.f32.gmra.mxu0 %v6721
        %v6833 = vpop.f32.mrf.mxu0
        %v6834 = vadd.f32 0.0, %v6833
        %6835 = vmatmul.f32.gmra.mxu0 %v6724
        %v6836 = vpop.f32.mrf.mxu0
        %v6837 = vadd.f32 0.0, %v6836
        %6838 = vmatmul.f32.gmra.mxu0 %v6727
        %v6839 = vpop.f32.mrf.mxu0
        %v6840 = vadd.f32 0.0, %v6839
        %6841 = vdwg.mxu0
        %v6843 = vsel %vm363, %v6557, 0
        %v6846 = vsel %vm363, %v6558, 0
        %v6849 = vsel %vm363, %v6559, 0
        %v6852 = vsel %vm363, %v6560, 0
        %v6855 = vsel %vm363, %v6561, 0
        %v6858 = vsel %vm363, %v6562, 0
        %v6861 = vsel %vm363, %v6563, 0
        %v6864 = vsel %vm363, %v6564, 0
        %v6867 = vsel %vm363, %v6565, 0
        %v6870 = vsel %vm363, %v6566, 0
        %v6873 = vsel %vm363, %v6567, 0
        %v6876 = vsel %vm363, %v6568, 0
        %v6879 = vsel %vm363, %v6569, 0
        %v6882 = vsel %vm363, %v6570, 0
        %v6885 = vsel %vm363, %v6571, 0
        %v6888 = vsel %vm363, %v6572, 0
        %v6891 = vsel %vm363, %v6573, 0
        %v6894 = vsel %vm363, %v6574, 0
        %v6897 = vsel %vm363, %v6575, 0
        %v6900 = vsel %vm363, %v6576, 0
        %v6903 = vsel %vm363, %v6577, 0
        %v6906 = vsel %vm363, %v6578, 0
        %v6909 = vsel %vm363, %v6579, 0
        %v6912 = vsel %vm363, %v6580, 0
        %v6915 = vsel %vm363, %v6581, 0
        %v6918 = vsel %vm363, %v6582, 0
        %v6921 = vsel %vm363, %v6583, 0
        %v6924 = vsel %vm363, %v6584, 0
        %v6927 = vsel %vm363, %v6585, 0
        %v6930 = vsel %vm363, %v6586, 0
        %v6933 = vsel %vm363, %v6587, 0
        %v6936 = vsel %vm363, %v6588, 0
        %6938 = vmatpush.msra.mxu0 0.0
        %6939 = vmatpush.msra.mxu0 0.0
        %6940 = vmatpush.msra.mxu0 0.0
        %6941 = vmatpush.msra.mxu0 0.0
        %6942 = vmatpush.msra.mxu0 0.0
        %6943 = vmatpush.msra.mxu0 0.0
        %6944 = vmatpush.msra.mxu0 0.0
        %6945 = vmatpush.msra.mxu0 0.0
        %6946 = vmatpush.msra.mxu0 0.0
        %6947 = vmatpush.msra.mxu0 0.0
        %6948 = vmatpush.msra.mxu0 0.0
        %6949 = vmatpush.msra.mxu0 0.0
        %6950 = vmatpush.msra.mxu0 %v6592
        %6951 = vmatpush.msra.mxu0 %v6591
        %6952 = vmatpush.msra.mxu0 %v6590
        %6953 = vmatpush.msra.mxu0 %v6589
        %6954 = vmatmul.f32.gmra.mxu0 %v6843
        %v6955 = vpop.f32.mrf.mxu0
        %v6956 = vadd.f32 %v6747, %v6955
        %6957 = vmatmul.f32.gmra.mxu0 %v6846
        %v6958 = vpop.f32.mrf.mxu0
        %v6959 = vadd.f32 %v6750, %v6958
        %6960 = vmatmul.f32.gmra.mxu0 %v6849
        %v6961 = vpop.f32.mrf.mxu0
        %v6962 = vadd.f32 %v6753, %v6961
        %6963 = vmatmul.f32.gmra.mxu0 %v6852
        %v6964 = vpop.f32.mrf.mxu0
        %v6965 = vadd.f32 %v6756, %v6964
        %6966 = vmatmul.f32.gmra.mxu0 %v6855
        %v6967 = vpop.f32.mrf.mxu0
        %v6968 = vadd.f32 %v6759, %v6967
        %6969 = vmatmul.f32.gmra.mxu0 %v6858
        %v6970 = vpop.f32.mrf.mxu0
        %v6971 = vadd.f32 %v6762, %v6970
        %6972 = vmatmul.f32.gmra.mxu0 %v6861
        %v6973 = vpop.f32.mrf.mxu0
        %v6974 = vadd.f32 %v6765, %v6973
        %6975 = vmatmul.f32.gmra.mxu0 %v6864
        %v6976 = vpop.f32.mrf.mxu0
        %v6977 = vadd.f32 %v6768, %v6976
        %6978 = vmatmul.f32.gmra.mxu0 %v6867
        %v6979 = vpop.f32.mrf.mxu0
        %v6980 = vadd.f32 %v6771, %v6979
        %6981 = vmatmul.f32.gmra.mxu0 %v6870
        %v6982 = vpop.f32.mrf.mxu0
        %v6983 = vadd.f32 %v6774, %v6982
        %6984 = vmatmul.f32.gmra.mxu0 %v6873
        %v6985 = vpop.f32.mrf.mxu0
        %v6986 = vadd.f32 %v6777, %v6985
        %6987 = vmatmul.f32.gmra.mxu0 %v6876
        %v6988 = vpop.f32.mrf.mxu0
        %v6989 = vadd.f32 %v6780, %v6988
        %6990 = vmatmul.f32.gmra.mxu0 %v6879
        %v6991 = vpop.f32.mrf.mxu0
        %v6992 = vadd.f32 %v6783, %v6991
        %6993 = vmatmul.f32.gmra.mxu0 %v6882
        %v6994 = vpop.f32.mrf.mxu0
        %v6995 = vadd.f32 %v6786, %v6994
        %6996 = vmatmul.f32.gmra.mxu0 %v6885
        %v6997 = vpop.f32.mrf.mxu0
        %v6998 = vadd.f32 %v6789, %v6997
        %6999 = vmatmul.f32.gmra.mxu0 %v6888
        %v7000 = vpop.f32.mrf.mxu0
        %v7001 = vadd.f32 %v6792, %v7000
        %7002 = vmatmul.f32.gmra.mxu0 %v6891
        %v7003 = vpop.f32.mrf.mxu0
        %v7004 = vadd.f32 %v6795, %v7003
        %7005 = vmatmul.f32.gmra.mxu0 %v6894
        %v7006 = vpop.f32.mrf.mxu0
        %v7007 = vadd.f32 %v6798, %v7006
        %7008 = vmatmul.f32.gmra.mxu0 %v6897
        %v7009 = vpop.f32.mrf.mxu0
        %v7010 = vadd.f32 %v6801, %v7009
        %7011 = vmatmul.f32.gmra.mxu0 %v6900
        %v7012 = vpop.f32.mrf.mxu0
        %v7013 = vadd.f32 %v6804, %v7012
        %7014 = vmatmul.f32.gmra.mxu0 %v6903
        %v7015 = vpop.f32.mrf.mxu0
        %v7016 = vadd.f32 %v6807, %v7015
        %7017 = vmatmul.f32.gmra.mxu0 %v6906
        %v7018 = vpop.f32.mrf.mxu0
        %v7019 = vadd.f32 %v6810, %v7018
        %7020 = vmatmul.f32.gmra.mxu0 %v6909
        %v7021 = vpop.f32.mrf.mxu0
        %v7022 = vadd.f32 %v6813, %v7021
        %7023 = vmatmul.f32.gmra.mxu0 %v6912
        %v7024 = vpop.f32.mrf.mxu0
        %v7025 = vadd.f32 %v6816, %v7024
        %7026 = vmatmul.f32.gmra.mxu0 %v6915
        %v7027 = vpop.f32.mrf.mxu0
        %v7028 = vadd.f32 %v6819, %v7027
        %7029 = vmatmul.f32.gmra.mxu0 %v6918
        %v7030 = vpop.f32.mrf.mxu0
        %v7031 = vadd.f32 %v6822, %v7030
        %7032 = vmatmul.f32.gmra.mxu0 %v6921
        %v7033 = vpop.f32.mrf.mxu0
        %v7034 = vadd.f32 %v6825, %v7033
        %7035 = vmatmul.f32.gmra.mxu0 %v6924
        %v7036 = vpop.f32.mrf.mxu0
        %v7037 = vadd.f32 %v6828, %v7036
        %7038 = vmatmul.f32.gmra.mxu0 %v6927
        %v7039 = vpop.f32.mrf.mxu0
        %v7040 = vadd.f32 %v6831, %v7039
        %7041 = vmatmul.f32.gmra.mxu0 %v6930
        %v7042 = vpop.f32.mrf.mxu0
        %v7043 = vadd.f32 %v6834, %v7042
        %7044 = vmatmul.f32.gmra.mxu0 %v6933
        %v7045 = vpop.f32.mrf.mxu0
        %v7046 = vadd.f32 %v6837, %v7045
        %7047 = vmatmul.f32.gmra.mxu0 %v6936
        %v7048 = vpop.f32.mrf.mxu0
        %v7049 = vadd.f32 %v6840, %v7048
        %7050 = vdwg.mxu0
        %v7051 = vld [vmem:[#allocation4 + $0x1] sm:$0xff]
        %v7052 = vld [vmem:[#allocation4 + $0x9] sm:$0xff]
        %v7053 = vld [vmem:[#allocation4 + $0x19] sm:$0xff]
        %v7054 = vld [vmem:[#allocation4 + $0x21] sm:$0xff]
        %v7055 = vld [vmem:[#allocation4 + $0x31] sm:$0xff]
        %v7056 = vld [vmem:[#allocation4 + $0x39] sm:$0xff]
        %v7057 = vld [vmem:[#allocation4 + $0x49] sm:$0xff]
        %v7058 = vld [vmem:[#allocation4 + $0x51] sm:$0xff]
        %v7059 = vld [vmem:[#allocation4 + $0x61] sm:$0xff]
        %v7060 = vld [vmem:[#allocation4 + $0x69] sm:$0xff]
        %v7061 = vld [vmem:[#allocation4 + $0x79] sm:$0xff]
        %v7062 = vld [vmem:[#allocation4 + $0x81] sm:$0xff]
        %v7063 = vld [vmem:[#allocation4 + $0x91] sm:$0xff]
        %v7064 = vld [vmem:[#allocation4 + $0x99] sm:$0xff]
        %v7065 = vld [vmem:[#allocation4 + $0xa9] sm:$0xff]
        %v7066 = vld [vmem:[#allocation4 + $0xb1] sm:$0xff]
        %v7067 = vld [vmem:[#allocation4 + $0xc1] sm:$0xff]
        %v7068 = vld [vmem:[#allocation4 + $0xc9] sm:$0xff]
        %v7069 = vld [vmem:[#allocation4 + $0xd9] sm:$0xff]
        %v7070 = vld [vmem:[#allocation4 + $0xe1] sm:$0xff]
        %v7071 = vld [vmem:[#allocation4 + $0xf1] sm:$0xff]
        %v7072 = vld [vmem:[#allocation4 + $0xf9] sm:$0xff]
        %v7073 = vld [vmem:[#allocation4 + $0x109] sm:$0xff]
        %v7074 = vld [vmem:[#allocation4 + $0x111] sm:$0xff]
        %v7075 = vld [vmem:[#allocation4 + $0x121] sm:$0xff]
        %v7076 = vld [vmem:[#allocation4 + $0x129] sm:$0xff]
        %v7077 = vld [vmem:[#allocation4 + $0x139] sm:$0xff]
        %v7078 = vld [vmem:[#allocation4 + $0x141] sm:$0xff]
        %v7079 = vld [vmem:[#allocation4 + $0x151] sm:$0xff]
        %v7080 = vld [vmem:[#allocation4 + $0x159] sm:$0xff]
        %v7081 = vld [vmem:[#allocation4 + $0x169] sm:$0xff]
        %v7082 = vld [vmem:[#allocation4 + $0x171] sm:$0xff]
        %s7083 = scalar_lea.vmem [#allocation8], 32
        %v7084 = vld [vmem:[%s7083] sm:$0xff]
        %v7085 = vld [vmem:[%s7083 + $0x8] sm:$0xff]
        %v7086 = vld [vmem:[%s7083 + $0x10] sm:$0xff]
        %v7087 = vld [vmem:[%s7083 + $0x18] sm:$0xff]
        %v7089 = vsel %vm363, %v7051, 0
        %v7092 = vsel %vm363, %v7052, 0
        %v7095 = vsel %vm363, %v7053, 0
        %v7098 = vsel %vm363, %v7054, 0
        %v7101 = vsel %vm363, %v7055, 0
        %v7104 = vsel %vm363, %v7056, 0
        %v7107 = vsel %vm363, %v7057, 0
        %v7110 = vsel %vm363, %v7058, 0
        %v7113 = vsel %vm363, %v7059, 0
        %v7116 = vsel %vm363, %v7060, 0
        %v7119 = vsel %vm363, %v7061, 0
        %v7122 = vsel %vm363, %v7062, 0
        %v7125 = vsel %vm363, %v7063, 0
        %v7128 = vsel %vm363, %v7064, 0
        %v7131 = vsel %vm363, %v7065, 0
        %v7134 = vsel %vm363, %v7066, 0
        %v7137 = vsel %vm363, %v7067, 0
        %v7140 = vsel %vm363, %v7068, 0
        %v7143 = vsel %vm363, %v7069, 0
        %v7146 = vsel %vm363, %v7070, 0
        %v7149 = vsel %vm363, %v7071, 0
        %v7152 = vsel %vm363, %v7072, 0
        %v7155 = vsel %vm363, %v7073, 0
        %v7158 = vsel %vm363, %v7074, 0
        %v7161 = vsel %vm363, %v7075, 0
        %v7164 = vsel %vm363, %v7076, 0
        %v7167 = vsel %vm363, %v7077, 0
        %v7170 = vsel %vm363, %v7078, 0
        %v7173 = vsel %vm363, %v7079, 0
        %v7176 = vsel %vm363, %v7080, 0
        %v7179 = vsel %vm363, %v7081, 0
        %v7182 = vsel %vm363, %v7082, 0
        %7184 = vmatpush.msra.mxu0 0.0
        %7185 = vmatpush.msra.mxu0 0.0
        %7186 = vmatpush.msra.mxu0 0.0
        %7187 = vmatpush.msra.mxu0 0.0
        %7188 = vmatpush.msra.mxu0 0.0
        %7189 = vmatpush.msra.mxu0 0.0
        %7190 = vmatpush.msra.mxu0 0.0
        %7191 = vmatpush.msra.mxu0 0.0
        %7192 = vmatpush.msra.mxu0 0.0
        %7193 = vmatpush.msra.mxu0 0.0
        %7194 = vmatpush.msra.mxu0 0.0
        %7195 = vmatpush.msra.mxu0 0.0
        %7196 = vmatpush.msra.mxu0 %v7087
        %7197 = vmatpush.msra.mxu0 %v7086
        %7198 = vmatpush.msra.mxu0 %v7085
        %7199 = vmatpush.msra.mxu0 %v7084
        %7200 = vmatmul.f32.gmra.mxu0 %v7089
        %v7201 = vpop.f32.mrf.mxu0
        %v7202 = vadd.f32 0.0, %v7201
        %7203 = vmatmul.f32.gmra.mxu0 %v7092
        %v7204 = vpop.f32.mrf.mxu0
        %v7205 = vadd.f32 0.0, %v7204
        %7206 = vmatmul.f32.gmra.mxu0 %v7095
        %v7207 = vpop.f32.mrf.mxu0
        %v7208 = vadd.f32 0.0, %v7207
        %7209 = vmatmul.f32.gmra.mxu0 %v7098
        %v7210 = vpop.f32.mrf.mxu0
        %v7211 = vadd.f32 0.0, %v7210
        %7212 = vmatmul.f32.gmra.mxu0 %v7101
        %v7213 = vpop.f32.mrf.mxu0
        %v7214 = vadd.f32 0.0, %v7213
        %7215 = vmatmul.f32.gmra.mxu0 %v7104
        %v7216 = vpop.f32.mrf.mxu0
        %v7217 = vadd.f32 0.0, %v7216
        %7218 = vmatmul.f32.gmra.mxu0 %v7107
        %v7219 = vpop.f32.mrf.mxu0
        %v7220 = vadd.f32 0.0, %v7219
        %7221 = vmatmul.f32.gmra.mxu0 %v7110
        %v7222 = vpop.f32.mrf.mxu0
        %v7223 = vadd.f32 0.0, %v7222
        %7224 = vmatmul.f32.gmra.mxu0 %v7113
        %v7225 = vpop.f32.mrf.mxu0
        %v7226 = vadd.f32 0.0, %v7225
        %7227 = vmatmul.f32.gmra.mxu0 %v7116
        %v7228 = vpop.f32.mrf.mxu0
        %v7229 = vadd.f32 0.0, %v7228
        %7230 = vmatmul.f32.gmra.mxu0 %v7119
        %v7231 = vpop.f32.mrf.mxu0
        %v7232 = vadd.f32 0.0, %v7231
        %7233 = vmatmul.f32.gmra.mxu0 %v7122
        %v7234 = vpop.f32.mrf.mxu0
        %v7235 = vadd.f32 0.0, %v7234
        %7236 = vmatmul.f32.gmra.mxu0 %v7125
        %v7237 = vpop.f32.mrf.mxu0
        %v7238 = vadd.f32 0.0, %v7237
        %7239 = vmatmul.f32.gmra.mxu0 %v7128
        %v7240 = vpop.f32.mrf.mxu0
        %v7241 = vadd.f32 0.0, %v7240
        %7242 = vmatmul.f32.gmra.mxu0 %v7131
        %v7243 = vpop.f32.mrf.mxu0
        %v7244 = vadd.f32 0.0, %v7243
        %7245 = vmatmul.f32.gmra.mxu0 %v7134
        %v7246 = vpop.f32.mrf.mxu0
        %v7247 = vadd.f32 0.0, %v7246
        %7248 = vmatmul.f32.gmra.mxu0 %v7137
        %v7249 = vpop.f32.mrf.mxu0
        %v7250 = vadd.f32 0.0, %v7249
        %7251 = vmatmul.f32.gmra.mxu0 %v7140
        %v7252 = vpop.f32.mrf.mxu0
        %v7253 = vadd.f32 0.0, %v7252
        %7254 = vmatmul.f32.gmra.mxu0 %v7143
        %v7255 = vpop.f32.mrf.mxu0
        %v7256 = vadd.f32 0.0, %v7255
        %7257 = vmatmul.f32.gmra.mxu0 %v7146
        %v7258 = vpop.f32.mrf.mxu0
        %v7259 = vadd.f32 0.0, %v7258
        %7260 = vmatmul.f32.gmra.mxu0 %v7149
        %v7261 = vpop.f32.mrf.mxu0
        %v7262 = vadd.f32 0.0, %v7261
        %7263 = vmatmul.f32.gmra.mxu0 %v7152
        %v7264 = vpop.f32.mrf.mxu0
        %v7265 = vadd.f32 0.0, %v7264
        %7266 = vmatmul.f32.gmra.mxu0 %v7155
        %v7267 = vpop.f32.mrf.mxu0
        %v7268 = vadd.f32 0.0, %v7267
        %7269 = vmatmul.f32.gmra.mxu0 %v7158
        %v7270 = vpop.f32.mrf.mxu0
        %v7271 = vadd.f32 0.0, %v7270
        %7272 = vmatmul.f32.gmra.mxu0 %v7161
        %v7273 = vpop.f32.mrf.mxu0
        %v7274 = vadd.f32 0.0, %v7273
        %7275 = vmatmul.f32.gmra.mxu0 %v7164
        %v7276 = vpop.f32.mrf.mxu0
        %v7277 = vadd.f32 0.0, %v7276
        %7278 = vmatmul.f32.gmra.mxu0 %v7167
        %v7279 = vpop.f32.mrf.mxu0
        %v7280 = vadd.f32 0.0, %v7279
        %7281 = vmatmul.f32.gmra.mxu0 %v7170
        %v7282 = vpop.f32.mrf.mxu0
        %v7283 = vadd.f32 0.0, %v7282
        %7284 = vmatmul.f32.gmra.mxu0 %v7173
        %v7285 = vpop.f32.mrf.mxu0
        %v7286 = vadd.f32 0.0, %v7285
        %7287 = vmatmul.f32.gmra.mxu0 %v7176
        %v7288 = vpop.f32.mrf.mxu0
        %v7289 = vadd.f32 0.0, %v7288
        %7290 = vmatmul.f32.gmra.mxu0 %v7179
        %v7291 = vpop.f32.mrf.mxu0
        %v7292 = vadd.f32 0.0, %v7291
        %7293 = vmatmul.f32.gmra.mxu0 %v7182
        %v7294 = vpop.f32.mrf.mxu0
        %v7295 = vadd.f32 0.0, %v7294
        %7296 = vdwg.mxu0
        %v7297 = vadd.f32 %v6956, %v7202
        %v7298 = vadd.f32 %v6959, %v7205
        %v7299 = vadd.f32 %v6962, %v7208
        %v7300 = vadd.f32 %v6965, %v7211
        %v7301 = vadd.f32 %v6968, %v7214
        %v7302 = vadd.f32 %v6971, %v7217
        %v7303 = vadd.f32 %v6974, %v7220
        %v7304 = vadd.f32 %v6977, %v7223
        %v7305 = vadd.f32 %v6980, %v7226
        %v7306 = vadd.f32 %v6983, %v7229
        %v7307 = vadd.f32 %v6986, %v7232
        %v7308 = vadd.f32 %v6989, %v7235
        %v7309 = vadd.f32 %v6992, %v7238
        %v7310 = vadd.f32 %v6995, %v7241
        %v7311 = vadd.f32 %v6998, %v7244
        %v7312 = vadd.f32 %v7001, %v7247
        %v7313 = vadd.f32 %v7004, %v7250
        %v7314 = vadd.f32 %v7007, %v7253
        %v7315 = vadd.f32 %v7010, %v7256
        %v7316 = vadd.f32 %v7013, %v7259
        %v7317 = vadd.f32 %v7016, %v7262
        %v7318 = vadd.f32 %v7019, %v7265
        %v7319 = vadd.f32 %v7022, %v7268
        %v7320 = vadd.f32 %v7025, %v7271
        %v7321 = vadd.f32 %v7028, %v7274
        %v7322 = vadd.f32 %v7031, %v7277
        %v7323 = vadd.f32 %v7034, %v7280
        %v7324 = vadd.f32 %v7037, %v7283
        %v7325 = vadd.f32 %v7040, %v7286
        %v7326 = vadd.f32 %v7043, %v7289
        %v7327 = vadd.f32 %v7046, %v7292
        %v7328 = vadd.f32 %v7049, %v7295
        %v7329 = vld [vmem:[#allocation3 + $0x1] sm:$0xff]
        %v7330 = vld [vmem:[#allocation3 + $0x9] sm:$0xff]
        %v7331 = vld [vmem:[#allocation3 + $0x19] sm:$0xff]
        %v7332 = vld [vmem:[#allocation3 + $0x21] sm:$0xff]
        %v7333 = vld [vmem:[#allocation3 + $0x31] sm:$0xff]
        %v7334 = vld [vmem:[#allocation3 + $0x39] sm:$0xff]
        %v7335 = vld [vmem:[#allocation3 + $0x49] sm:$0xff]
        %v7336 = vld [vmem:[#allocation3 + $0x51] sm:$0xff]
        %v7337 = vld [vmem:[#allocation3 + $0x61] sm:$0xff]
        %v7338 = vld [vmem:[#allocation3 + $0x69] sm:$0xff]
        %v7339 = vld [vmem:[#allocation3 + $0x79] sm:$0xff]
        %v7340 = vld [vmem:[#allocation3 + $0x81] sm:$0xff]
        %v7341 = vld [vmem:[#allocation3 + $0x91] sm:$0xff]
        %v7342 = vld [vmem:[#allocation3 + $0x99] sm:$0xff]
        %v7343 = vld [vmem:[#allocation3 + $0xa9] sm:$0xff]
        %v7344 = vld [vmem:[#allocation3 + $0xb1] sm:$0xff]
        %v7345 = vld [vmem:[#allocation3 + $0xc1] sm:$0xff]
        %v7346 = vld [vmem:[#allocation3 + $0xc9] sm:$0xff]
        %v7347 = vld [vmem:[#allocation3 + $0xd9] sm:$0xff]
        %v7348 = vld [vmem:[#allocation3 + $0xe1] sm:$0xff]
        %v7349 = vld [vmem:[#allocation3 + $0xf1] sm:$0xff]
        %v7350 = vld [vmem:[#allocation3 + $0xf9] sm:$0xff]
        %v7351 = vld [vmem:[#allocation3 + $0x109] sm:$0xff]
        %v7352 = vld [vmem:[#allocation3 + $0x111] sm:$0xff]
        %v7353 = vld [vmem:[#allocation3 + $0x121] sm:$0xff]
        %v7354 = vld [vmem:[#allocation3 + $0x129] sm:$0xff]
        %v7355 = vld [vmem:[#allocation3 + $0x139] sm:$0xff]
        %v7356 = vld [vmem:[#allocation3 + $0x141] sm:$0xff]
        %v7357 = vld [vmem:[#allocation3 + $0x151] sm:$0xff]
        %v7358 = vld [vmem:[#allocation3 + $0x159] sm:$0xff]
        %v7359 = vld [vmem:[#allocation3 + $0x169] sm:$0xff]
        %v7360 = vld [vmem:[#allocation3 + $0x171] sm:$0xff]
        %s7361 = scalar_lea.vmem %s6, 64
        %v7362 = vld [vmem:[%s7361] sm:$0xff]
        %v7363 = vld [vmem:[%s7361 + $0x8] sm:$0xff]
        %v7364 = vld [vmem:[%s7361 + $0x10] sm:$0xff]
        %v7365 = vld [vmem:[%s7361 + $0x18] sm:$0xff]
        %v7366 = vld [vmem:[%s7361 + $0x20] sm:$0xff]
        %v7367 = vld [vmem:[%s7361 + $0x28] sm:$0xff]
        %v7368 = vld [vmem:[%s7361 + $0x30] sm:$0xff]
        %v7369 = vld [vmem:[%s7361 + $0x38] sm:$0xff]
        %v7371 = vsel %vm406, %v7329, 0
        %v7374 = vsel %vm406, %v7330, 0
        %v7377 = vsel %vm406, %v7331, 0
        %v7380 = vsel %vm406, %v7332, 0
        %v7383 = vsel %vm406, %v7333, 0
        %v7386 = vsel %vm406, %v7334, 0
        %v7389 = vsel %vm406, %v7335, 0
        %v7392 = vsel %vm406, %v7336, 0
        %v7395 = vsel %vm406, %v7337, 0
        %v7398 = vsel %vm406, %v7338, 0
        %v7401 = vsel %vm406, %v7339, 0
        %v7404 = vsel %vm406, %v7340, 0
        %v7407 = vsel %vm406, %v7341, 0
        %v7410 = vsel %vm406, %v7342, 0
        %v7413 = vsel %vm406, %v7343, 0
        %v7416 = vsel %vm406, %v7344, 0
        %v7419 = vsel %vm406, %v7345, 0
        %v7422 = vsel %vm406, %v7346, 0
        %v7425 = vsel %vm406, %v7347, 0
        %v7428 = vsel %vm406, %v7348, 0
        %v7431 = vsel %vm406, %v7349, 0
        %v7434 = vsel %vm406, %v7350, 0
        %v7437 = vsel %vm406, %v7351, 0
        %v7440 = vsel %vm406, %v7352, 0
        %v7443 = vsel %vm406, %v7353, 0
        %v7446 = vsel %vm406, %v7354, 0
        %v7449 = vsel %vm406, %v7355, 0
        %v7452 = vsel %vm406, %v7356, 0
        %v7455 = vsel %vm406, %v7357, 0
        %v7458 = vsel %vm406, %v7358, 0
        %v7461 = vsel %vm406, %v7359, 0
        %v7464 = vsel %vm406, %v7360, 0
        %7466 = vmatpush.msra.mxu0 0.0
        %7467 = vmatpush.msra.mxu0 0.0
        %7468 = vmatpush.msra.mxu0 0.0
        %7469 = vmatpush.msra.mxu0 0.0
        %7470 = vmatpush.msra.mxu0 0.0
        %7471 = vmatpush.msra.mxu0 0.0
        %7472 = vmatpush.msra.mxu0 0.0
        %7473 = vmatpush.msra.mxu0 0.0
        %7474 = vmatpush.msra.mxu0 %v7369
        %7475 = vmatpush.msra.mxu0 %v7368
        %7476 = vmatpush.msra.mxu0 %v7367
        %7477 = vmatpush.msra.mxu0 %v7366
        %7478 = vmatpush.msra.mxu0 %v7365
        %7479 = vmatpush.msra.mxu0 %v7364
        %7480 = vmatpush.msra.mxu0 %v7363
        %7481 = vmatpush.msra.mxu0 %v7362
        %7482 = vmatmul.f32.gmra.mxu0 %v7371
        %v7483 = vpop.f32.mrf.mxu0
        %v7484 = vadd.f32 0.0, %v7483
        %7485 = vmatmul.f32.gmra.mxu0 %v7374
        %v7486 = vpop.f32.mrf.mxu0
        %v7487 = vadd.f32 0.0, %v7486
        %7488 = vmatmul.f32.gmra.mxu0 %v7377
        %v7489 = vpop.f32.mrf.mxu0
        %v7490 = vadd.f32 0.0, %v7489
        %7491 = vmatmul.f32.gmra.mxu0 %v7380
        %v7492 = vpop.f32.mrf.mxu0
        %v7493 = vadd.f32 0.0, %v7492
        %7494 = vmatmul.f32.gmra.mxu0 %v7383
        %v7495 = vpop.f32.mrf.mxu0
        %v7496 = vadd.f32 0.0, %v7495
        %7497 = vmatmul.f32.gmra.mxu0 %v7386
        %v7498 = vpop.f32.mrf.mxu0
        %v7499 = vadd.f32 0.0, %v7498
        %7500 = vmatmul.f32.gmra.mxu0 %v7389
        %v7501 = vpop.f32.mrf.mxu0
        %v7502 = vadd.f32 0.0, %v7501
        %7503 = vmatmul.f32.gmra.mxu0 %v7392
        %v7504 = vpop.f32.mrf.mxu0
        %v7505 = vadd.f32 0.0, %v7504
        %7506 = vmatmul.f32.gmra.mxu0 %v7395
        %v7507 = vpop.f32.mrf.mxu0
        %v7508 = vadd.f32 0.0, %v7507
        %7509 = vmatmul.f32.gmra.mxu0 %v7398
        %v7510 = vpop.f32.mrf.mxu0
        %v7511 = vadd.f32 0.0, %v7510
        %7512 = vmatmul.f32.gmra.mxu0 %v7401
        %v7513 = vpop.f32.mrf.mxu0
        %v7514 = vadd.f32 0.0, %v7513
        %7515 = vmatmul.f32.gmra.mxu0 %v7404
        %v7516 = vpop.f32.mrf.mxu0
        %v7517 = vadd.f32 0.0, %v7516
        %7518 = vmatmul.f32.gmra.mxu0 %v7407
        %v7519 = vpop.f32.mrf.mxu0
        %v7520 = vadd.f32 0.0, %v7519
        %7521 = vmatmul.f32.gmra.mxu0 %v7410
        %v7522 = vpop.f32.mrf.mxu0
        %v7523 = vadd.f32 0.0, %v7522
        %7524 = vmatmul.f32.gmra.mxu0 %v7413
        %v7525 = vpop.f32.mrf.mxu0
        %v7526 = vadd.f32 0.0, %v7525
        %7527 = vmatmul.f32.gmra.mxu0 %v7416
        %v7528 = vpop.f32.mrf.mxu0
        %v7529 = vadd.f32 0.0, %v7528
        %7530 = vmatmul.f32.gmra.mxu0 %v7419
        %v7531 = vpop.f32.mrf.mxu0
        %v7532 = vadd.f32 0.0, %v7531
        %7533 = vmatmul.f32.gmra.mxu0 %v7422
        %v7534 = vpop.f32.mrf.mxu0
        %v7535 = vadd.f32 0.0, %v7534
        %7536 = vmatmul.f32.gmra.mxu0 %v7425
        %v7537 = vpop.f32.mrf.mxu0
        %v7538 = vadd.f32 0.0, %v7537
        %7539 = vmatmul.f32.gmra.mxu0 %v7428
        %v7540 = vpop.f32.mrf.mxu0
        %v7541 = vadd.f32 0.0, %v7540
        %7542 = vmatmul.f32.gmra.mxu0 %v7431
        %v7543 = vpop.f32.mrf.mxu0
        %v7544 = vadd.f32 0.0, %v7543
        %7545 = vmatmul.f32.gmra.mxu0 %v7434
        %v7546 = vpop.f32.mrf.mxu0
        %v7547 = vadd.f32 0.0, %v7546
        %7548 = vmatmul.f32.gmra.mxu0 %v7437
        %v7549 = vpop.f32.mrf.mxu0
        %v7550 = vadd.f32 0.0, %v7549
        %7551 = vmatmul.f32.gmra.mxu0 %v7440
        %v7552 = vpop.f32.mrf.mxu0
        %v7553 = vadd.f32 0.0, %v7552
        %7554 = vmatmul.f32.gmra.mxu0 %v7443
        %v7555 = vpop.f32.mrf.mxu0
        %v7556 = vadd.f32 0.0, %v7555
        %7557 = vmatmul.f32.gmra.mxu0 %v7446
        %v7558 = vpop.f32.mrf.mxu0
        %v7559 = vadd.f32 0.0, %v7558
        %7560 = vmatmul.f32.gmra.mxu0 %v7449
        %v7561 = vpop.f32.mrf.mxu0
        %v7562 = vadd.f32 0.0, %v7561
        %7563 = vmatmul.f32.gmra.mxu0 %v7452
        %v7564 = vpop.f32.mrf.mxu0
        %v7565 = vadd.f32 0.0, %v7564
        %7566 = vmatmul.f32.gmra.mxu0 %v7455
        %v7567 = vpop.f32.mrf.mxu0
        %v7568 = vadd.f32 0.0, %v7567
        %7569 = vmatmul.f32.gmra.mxu0 %v7458
        %v7570 = vpop.f32.mrf.mxu0
        %v7571 = vadd.f32 0.0, %v7570
        %7572 = vmatmul.f32.gmra.mxu0 %v7461
        %v7573 = vpop.f32.mrf.mxu0
        %v7574 = vadd.f32 0.0, %v7573
        %7575 = vmatmul.f32.gmra.mxu0 %v7464
        %v7576 = vpop.f32.mrf.mxu0
        %v7577 = vadd.f32 0.0, %v7576
        %7578 = vdwg.mxu0
        %v7579 = vadd.f32 %v7297, %v7484
        %v7580 = vadd.f32 %v7298, %v7487
        %v7581 = vadd.f32 %v7299, %v7490
        %v7582 = vadd.f32 %v7300, %v7493
        %v7583 = vadd.f32 %v7301, %v7496
        %v7584 = vadd.f32 %v7302, %v7499
        %v7585 = vadd.f32 %v7303, %v7502
        %v7586 = vadd.f32 %v7304, %v7505
        %v7587 = vadd.f32 %v7305, %v7508
        %v7588 = vadd.f32 %v7306, %v7511
        %v7589 = vadd.f32 %v7307, %v7514
        %v7590 = vadd.f32 %v7308, %v7517
        %v7591 = vadd.f32 %v7309, %v7520
        %v7592 = vadd.f32 %v7310, %v7523
        %v7593 = vadd.f32 %v7311, %v7526
        %v7594 = vadd.f32 %v7312, %v7529
        %v7595 = vadd.f32 %v7313, %v7532
        %v7596 = vadd.f32 %v7314, %v7535
        %v7597 = vadd.f32 %v7315, %v7538
        %v7598 = vadd.f32 %v7316, %v7541
        %v7599 = vadd.f32 %v7317, %v7544
        %v7600 = vadd.f32 %v7318, %v7547
        %v7601 = vadd.f32 %v7319, %v7550
        %v7602 = vadd.f32 %v7320, %v7553
        %v7603 = vadd.f32 %v7321, %v7556
        %v7604 = vadd.f32 %v7322, %v7559
        %v7605 = vadd.f32 %v7323, %v7562
        %v7606 = vadd.f32 %v7324, %v7565
        %v7607 = vadd.f32 %v7325, %v7568
        %v7608 = vadd.f32 %v7326, %v7571
        %v7609 = vadd.f32 %v7327, %v7574
        %v7610 = vadd.f32 %v7328, %v7577
        %v7611 = vld [vmem:[#allocation4 + $0x2] sm:$0xff]
        %v7612 = vld [vmem:[#allocation4 + $0xa] sm:$0xff]
        %v7613 = vld [vmem:[#allocation4 + $0x1a] sm:$0xff]
        %v7614 = vld [vmem:[#allocation4 + $0x22] sm:$0xff]
        %v7615 = vld [vmem:[#allocation4 + $0x32] sm:$0xff]
        %v7616 = vld [vmem:[#allocation4 + $0x3a] sm:$0xff]
        %v7617 = vld [vmem:[#allocation4 + $0x4a] sm:$0xff]
        %v7618 = vld [vmem:[#allocation4 + $0x52] sm:$0xff]
        %v7619 = vld [vmem:[#allocation4 + $0x62] sm:$0xff]
        %v7620 = vld [vmem:[#allocation4 + $0x6a] sm:$0xff]
        %v7621 = vld [vmem:[#allocation4 + $0x7a] sm:$0xff]
        %v7622 = vld [vmem:[#allocation4 + $0x82] sm:$0xff]
        %v7623 = vld [vmem:[#allocation4 + $0x92] sm:$0xff]
        %v7624 = vld [vmem:[#allocation4 + $0x9a] sm:$0xff]
        %v7625 = vld [vmem:[#allocation4 + $0xaa] sm:$0xff]
        %v7626 = vld [vmem:[#allocation4 + $0xb2] sm:$0xff]
        %v7627 = vld [vmem:[#allocation4 + $0xc2] sm:$0xff]
        %v7628 = vld [vmem:[#allocation4 + $0xca] sm:$0xff]
        %v7629 = vld [vmem:[#allocation4 + $0xda] sm:$0xff]
        %v7630 = vld [vmem:[#allocation4 + $0xe2] sm:$0xff]
        %v7631 = vld [vmem:[#allocation4 + $0xf2] sm:$0xff]
        %v7632 = vld [vmem:[#allocation4 + $0xfa] sm:$0xff]
        %v7633 = vld [vmem:[#allocation4 + $0x10a] sm:$0xff]
        %v7634 = vld [vmem:[#allocation4 + $0x112] sm:$0xff]
        %v7635 = vld [vmem:[#allocation4 + $0x122] sm:$0xff]
        %v7636 = vld [vmem:[#allocation4 + $0x12a] sm:$0xff]
        %v7637 = vld [vmem:[#allocation4 + $0x13a] sm:$0xff]
        %v7638 = vld [vmem:[#allocation4 + $0x142] sm:$0xff]
        %v7639 = vld [vmem:[#allocation4 + $0x152] sm:$0xff]
        %v7640 = vld [vmem:[#allocation4 + $0x15a] sm:$0xff]
        %v7641 = vld [vmem:[#allocation4 + $0x16a] sm:$0xff]
        %v7642 = vld [vmem:[#allocation4 + $0x172] sm:$0xff]
        %s7643 = scalar_lea.vmem [#allocation8], 64
        %v7644 = vld [vmem:[%s7643] sm:$0xff]
        %v7645 = vld [vmem:[%s7643 + $0x8] sm:$0xff]
        %v7646 = vld [vmem:[%s7643 + $0x10] sm:$0xff]
        %v7647 = vld [vmem:[%s7643 + $0x18] sm:$0xff]
        %v7649 = vsel %vm363, %v7611, 0
        %v7652 = vsel %vm363, %v7612, 0
        %v7655 = vsel %vm363, %v7613, 0
        %v7658 = vsel %vm363, %v7614, 0
        %v7661 = vsel %vm363, %v7615, 0
        %v7664 = vsel %vm363, %v7616, 0
        %v7667 = vsel %vm363, %v7617, 0
        %v7670 = vsel %vm363, %v7618, 0
        %v7673 = vsel %vm363, %v7619, 0
        %v7676 = vsel %vm363, %v7620, 0
        %v7679 = vsel %vm363, %v7621, 0
        %v7682 = vsel %vm363, %v7622, 0
        %v7685 = vsel %vm363, %v7623, 0
        %v7688 = vsel %vm363, %v7624, 0
        %v7691 = vsel %vm363, %v7625, 0
        %v7694 = vsel %vm363, %v7626, 0
        %v7697 = vsel %vm363, %v7627, 0
        %v7700 = vsel %vm363, %v7628, 0
        %v7703 = vsel %vm363, %v7629, 0
        %v7706 = vsel %vm363, %v7630, 0
        %v7709 = vsel %vm363, %v7631, 0
        %v7712 = vsel %vm363, %v7632, 0
        %v7715 = vsel %vm363, %v7633, 0
        %v7718 = vsel %vm363, %v7634, 0
        %v7721 = vsel %vm363, %v7635, 0
        %v7724 = vsel %vm363, %v7636, 0
        %v7727 = vsel %vm363, %v7637, 0
        %v7730 = vsel %vm363, %v7638, 0
        %v7733 = vsel %vm363, %v7639, 0
        %v7736 = vsel %vm363, %v7640, 0
        %v7739 = vsel %vm363, %v7641, 0
        %v7742 = vsel %vm363, %v7642, 0
        %7744 = vmatpush.msra.mxu0 0.0
        %7745 = vmatpush.msra.mxu0 0.0
        %7746 = vmatpush.msra.mxu0 0.0
        %7747 = vmatpush.msra.mxu0 0.0
        %7748 = vmatpush.msra.mxu0 0.0
        %7749 = vmatpush.msra.mxu0 0.0
        %7750 = vmatpush.msra.mxu0 0.0
        %7751 = vmatpush.msra.mxu0 0.0
        %7752 = vmatpush.msra.mxu0 0.0
        %7753 = vmatpush.msra.mxu0 0.0
        %7754 = vmatpush.msra.mxu0 0.0
        %7755 = vmatpush.msra.mxu0 0.0
        %7756 = vmatpush.msra.mxu0 %v7647
        %7757 = vmatpush.msra.mxu0 %v7646
        %7758 = vmatpush.msra.mxu0 %v7645
        %7759 = vmatpush.msra.mxu0 %v7644
        %7760 = vmatmul.f32.gmra.mxu0 %v7649
        %v7761 = vpop.f32.mrf.mxu0
        %v7762 = vadd.f32 0.0, %v7761
        %7763 = vmatmul.f32.gmra.mxu0 %v7652
        %v7764 = vpop.f32.mrf.mxu0
        %v7765 = vadd.f32 0.0, %v7764
        %7766 = vmatmul.f32.gmra.mxu0 %v7655
        %v7767 = vpop.f32.mrf.mxu0
        %v7768 = vadd.f32 0.0, %v7767
        %7769 = vmatmul.f32.gmra.mxu0 %v7658
        %v7770 = vpop.f32.mrf.mxu0
        %v7771 = vadd.f32 0.0, %v7770
        %7772 = vmatmul.f32.gmra.mxu0 %v7661
        %v7773 = vpop.f32.mrf.mxu0
        %v7774 = vadd.f32 0.0, %v7773
        %7775 = vmatmul.f32.gmra.mxu0 %v7664
        %v7776 = vpop.f32.mrf.mxu0
        %v7777 = vadd.f32 0.0, %v7776
        %7778 = vmatmul.f32.gmra.mxu0 %v7667
        %v7779 = vpop.f32.mrf.mxu0
        %v7780 = vadd.f32 0.0, %v7779
        %7781 = vmatmul.f32.gmra.mxu0 %v7670
        %v7782 = vpop.f32.mrf.mxu0
        %v7783 = vadd.f32 0.0, %v7782
        %7784 = vmatmul.f32.gmra.mxu0 %v7673
        %v7785 = vpop.f32.mrf.mxu0
        %v7786 = vadd.f32 0.0, %v7785
        %7787 = vmatmul.f32.gmra.mxu0 %v7676
        %v7788 = vpop.f32.mrf.mxu0
        %v7789 = vadd.f32 0.0, %v7788
        %7790 = vmatmul.f32.gmra.mxu0 %v7679
        %v7791 = vpop.f32.mrf.mxu0
        %v7792 = vadd.f32 0.0, %v7791
        %7793 = vmatmul.f32.gmra.mxu0 %v7682
        %v7794 = vpop.f32.mrf.mxu0
        %v7795 = vadd.f32 0.0, %v7794
        %7796 = vmatmul.f32.gmra.mxu0 %v7685
        %v7797 = vpop.f32.mrf.mxu0
        %v7798 = vadd.f32 0.0, %v7797
        %7799 = vmatmul.f32.gmra.mxu0 %v7688
        %v7800 = vpop.f32.mrf.mxu0
        %v7801 = vadd.f32 0.0, %v7800
        %7802 = vmatmul.f32.gmra.mxu0 %v7691
        %v7803 = vpop.f32.mrf.mxu0
        %v7804 = vadd.f32 0.0, %v7803
        %7805 = vmatmul.f32.gmra.mxu0 %v7694
        %v7806 = vpop.f32.mrf.mxu0
        %v7807 = vadd.f32 0.0, %v7806
        %7808 = vmatmul.f32.gmra.mxu0 %v7697
        %v7809 = vpop.f32.mrf.mxu0
        %v7810 = vadd.f32 0.0, %v7809
        %7811 = vmatmul.f32.gmra.mxu0 %v7700
        %v7812 = vpop.f32.mrf.mxu0
        %v7813 = vadd.f32 0.0, %v7812
        %7814 = vmatmul.f32.gmra.mxu0 %v7703
        %v7815 = vpop.f32.mrf.mxu0
        %v7816 = vadd.f32 0.0, %v7815
        %7817 = vmatmul.f32.gmra.mxu0 %v7706
        %v7818 = vpop.f32.mrf.mxu0
        %v7819 = vadd.f32 0.0, %v7818
        %7820 = vmatmul.f32.gmra.mxu0 %v7709
        %v7821 = vpop.f32.mrf.mxu0
        %v7822 = vadd.f32 0.0, %v7821
        %7823 = vmatmul.f32.gmra.mxu0 %v7712
        %v7824 = vpop.f32.mrf.mxu0
        %v7825 = vadd.f32 0.0, %v7824
        %7826 = vmatmul.f32.gmra.mxu0 %v7715
        %v7827 = vpop.f32.mrf.mxu0
        %v7828 = vadd.f32 0.0, %v7827
        %7829 = vmatmul.f32.gmra.mxu0 %v7718
        %v7830 = vpop.f32.mrf.mxu0
        %v7831 = vadd.f32 0.0, %v7830
        %7832 = vmatmul.f32.gmra.mxu0 %v7721
        %v7833 = vpop.f32.mrf.mxu0
        %v7834 = vadd.f32 0.0, %v7833
        %7835 = vmatmul.f32.gmra.mxu0 %v7724
        %v7836 = vpop.f32.mrf.mxu0
        %v7837 = vadd.f32 0.0, %v7836
        %7838 = vmatmul.f32.gmra.mxu0 %v7727
        %v7839 = vpop.f32.mrf.mxu0
        %v7840 = vadd.f32 0.0, %v7839
        %7841 = vmatmul.f32.gmra.mxu0 %v7730
        %v7842 = vpop.f32.mrf.mxu0
        %v7843 = vadd.f32 0.0, %v7842
        %7844 = vmatmul.f32.gmra.mxu0 %v7733
        %v7845 = vpop.f32.mrf.mxu0
        %v7846 = vadd.f32 0.0, %v7845
        %7847 = vmatmul.f32.gmra.mxu0 %v7736
        %v7848 = vpop.f32.mrf.mxu0
        %v7849 = vadd.f32 0.0, %v7848
        %7850 = vmatmul.f32.gmra.mxu0 %v7739
        %v7851 = vpop.f32.mrf.mxu0
        %v7852 = vadd.f32 0.0, %v7851
        %7853 = vmatmul.f32.gmra.mxu0 %v7742
        %v7854 = vpop.f32.mrf.mxu0
        %v7855 = vadd.f32 0.0, %v7854
        %7856 = vdwg.mxu0
        %v7857 = vadd.f32 %v7579, %v7762
        %v7858 = vadd.f32 %v7580, %v7765
        %v7859 = vadd.f32 %v7581, %v7768
        %v7860 = vadd.f32 %v7582, %v7771
        %v7861 = vadd.f32 %v7583, %v7774
        %v7862 = vadd.f32 %v7584, %v7777
        %v7863 = vadd.f32 %v7585, %v7780
        %v7864 = vadd.f32 %v7586, %v7783
        %v7865 = vadd.f32 %v7587, %v7786
        %v7866 = vadd.f32 %v7588, %v7789
        %v7867 = vadd.f32 %v7589, %v7792
        %v7868 = vadd.f32 %v7590, %v7795
        %v7869 = vadd.f32 %v7591, %v7798
        %v7870 = vadd.f32 %v7592, %v7801
        %v7871 = vadd.f32 %v7593, %v7804
        %v7872 = vadd.f32 %v7594, %v7807
        %v7873 = vadd.f32 %v7595, %v7810
        %v7874 = vadd.f32 %v7596, %v7813
        %v7875 = vadd.f32 %v7597, %v7816
        %v7876 = vadd.f32 %v7598, %v7819
        %v7877 = vadd.f32 %v7599, %v7822
        %v7878 = vadd.f32 %v7600, %v7825
        %v7879 = vadd.f32 %v7601, %v7828
        %v7880 = vadd.f32 %v7602, %v7831
        %v7881 = vadd.f32 %v7603, %v7834
        %v7882 = vadd.f32 %v7604, %v7837
        %v7883 = vadd.f32 %v7605, %v7840
        %v7884 = vadd.f32 %v7606, %v7843
        %v7885 = vadd.f32 %v7607, %v7846
        %v7886 = vadd.f32 %v7608, %v7849
        %v7887 = vadd.f32 %v7609, %v7852
        %v7888 = vadd.f32 %v7610, %v7855
        %v7889 = vld [vmem:[#allocation3 + $0x2] sm:$0xff]
        %v7890 = vld [vmem:[#allocation3 + $0xa] sm:$0xff]
        %v7891 = vld [vmem:[#allocation3 + $0x1a] sm:$0xff]
        %v7892 = vld [vmem:[#allocation3 + $0x22] sm:$0xff]
        %v7893 = vld [vmem:[#allocation3 + $0x32] sm:$0xff]
        %v7894 = vld [vmem:[#allocation3 + $0x3a] sm:$0xff]
        %v7895 = vld [vmem:[#allocation3 + $0x4a] sm:$0xff]
        %v7896 = vld [vmem:[#allocation3 + $0x52] sm:$0xff]
        %v7897 = vld [vmem:[#allocation3 + $0x62] sm:$0xff]
        %v7898 = vld [vmem:[#allocation3 + $0x6a] sm:$0xff]
        %v7899 = vld [vmem:[#allocation3 + $0x7a] sm:$0xff]
        %v7900 = vld [vmem:[#allocation3 + $0x82] sm:$0xff]
        %v7901 = vld [vmem:[#allocation3 + $0x92] sm:$0xff]
        %v7902 = vld [vmem:[#allocation3 + $0x9a] sm:$0xff]
        %v7903 = vld [vmem:[#allocation3 + $0xaa] sm:$0xff]
        %v7904 = vld [vmem:[#allocation3 + $0xb2] sm:$0xff]
        %v7905 = vld [vmem:[#allocation3 + $0xc2] sm:$0xff]
        %v7906 = vld [vmem:[#allocation3 + $0xca] sm:$0xff]
        %v7907 = vld [vmem:[#allocation3 + $0xda] sm:$0xff]
        %v7908 = vld [vmem:[#allocation3 + $0xe2] sm:$0xff]
        %v7909 = vld [vmem:[#allocation3 + $0xf2] sm:$0xff]
        %v7910 = vld [vmem:[#allocation3 + $0xfa] sm:$0xff]
        %v7911 = vld [vmem:[#allocation3 + $0x10a] sm:$0xff]
        %v7912 = vld [vmem:[#allocation3 + $0x112] sm:$0xff]
        %v7913 = vld [vmem:[#allocation3 + $0x122] sm:$0xff]
        %v7914 = vld [vmem:[#allocation3 + $0x12a] sm:$0xff]
        %v7915 = vld [vmem:[#allocation3 + $0x13a] sm:$0xff]
        %v7916 = vld [vmem:[#allocation3 + $0x142] sm:$0xff]
        %v7917 = vld [vmem:[#allocation3 + $0x152] sm:$0xff]
        %v7918 = vld [vmem:[#allocation3 + $0x15a] sm:$0xff]
        %v7919 = vld [vmem:[#allocation3 + $0x16a] sm:$0xff]
        %v7920 = vld [vmem:[#allocation3 + $0x172] sm:$0xff]
        %s7921 = scalar_lea.vmem %s6, 128
        %v7922 = vld [vmem:[%s7921] sm:$0xff]
        %v7923 = vld [vmem:[%s7921 + $0x8] sm:$0xff]
        %v7924 = vld [vmem:[%s7921 + $0x10] sm:$0xff]
        %v7925 = vld [vmem:[%s7921 + $0x18] sm:$0xff]
        %v7926 = vld [vmem:[%s7921 + $0x20] sm:$0xff]
        %v7927 = vld [vmem:[%s7921 + $0x28] sm:$0xff]
        %v7928 = vld [vmem:[%s7921 + $0x30] sm:$0xff]
        %v7929 = vld [vmem:[%s7921 + $0x38] sm:$0xff]
        %v7931 = vsel %vm406, %v7889, 0
        %v7934 = vsel %vm406, %v7890, 0
        %v7937 = vsel %vm406, %v7891, 0
        %v7940 = vsel %vm406, %v7892, 0
        %v7943 = vsel %vm406, %v7893, 0
        %v7946 = vsel %vm406, %v7894, 0
        %v7949 = vsel %vm406, %v7895, 0
        %v7952 = vsel %vm406, %v7896, 0
        %v7955 = vsel %vm406, %v7897, 0
        %v7958 = vsel %vm406, %v7898, 0
        %v7961 = vsel %vm406, %v7899, 0
        %v7964 = vsel %vm406, %v7900, 0
        %v7967 = vsel %vm406, %v7901, 0
        %v7970 = vsel %vm406, %v7902, 0
        %v7973 = vsel %vm406, %v7903, 0
        %v7976 = vsel %vm406, %v7904, 0
        %v7979 = vsel %vm406, %v7905, 0
        %v7982 = vsel %vm406, %v7906, 0
        %v7985 = vsel %vm406, %v7907, 0
        %v7988 = vsel %vm406, %v7908, 0
        %v7991 = vsel %vm406, %v7909, 0
        %v7994 = vsel %vm406, %v7910, 0
        %v7997 = vsel %vm406, %v7911, 0
        %v8000 = vsel %vm406, %v7912, 0
        %v8003 = vsel %vm406, %v7913, 0
        %v8006 = vsel %vm406, %v7914, 0
        %v8009 = vsel %vm406, %v7915, 0
        %v8012 = vsel %vm406, %v7916, 0
        %v8015 = vsel %vm406, %v7917, 0
        %v8018 = vsel %vm406, %v7918, 0
        %v8021 = vsel %vm406, %v7919, 0
        %v8024 = vsel %vm406, %v7920, 0
        %8026 = vmatpush.msra.mxu0 0.0
        %8027 = vmatpush.msra.mxu0 0.0
        %8028 = vmatpush.msra.mxu0 0.0
        %8029 = vmatpush.msra.mxu0 0.0
        %8030 = vmatpush.msra.mxu0 0.0
        %8031 = vmatpush.msra.mxu0 0.0
        %8032 = vmatpush.msra.mxu0 0.0
        %8033 = vmatpush.msra.mxu0 0.0
        %8034 = vmatpush.msra.mxu0 %v7929
        %8035 = vmatpush.msra.mxu0 %v7928
        %8036 = vmatpush.msra.mxu0 %v7927
        %8037 = vmatpush.msra.mxu0 %v7926
        %8038 = vmatpush.msra.mxu0 %v7925
        %8039 = vmatpush.msra.mxu0 %v7924
        %8040 = vmatpush.msra.mxu0 %v7923
        %8041 = vmatpush.msra.mxu0 %v7922
        %8042 = vmatmul.f32.gmra.mxu0 %v7931
        %v8043 = vpop.f32.mrf.mxu0
        %v8044 = vadd.f32 0.0, %v8043
        %8045 = vmatmul.f32.gmra.mxu0 %v7934
        %v8046 = vpop.f32.mrf.mxu0
        %v8047 = vadd.f32 0.0, %v8046
        %8048 = vmatmul.f32.gmra.mxu0 %v7937
        %v8049 = vpop.f32.mrf.mxu0
        %v8050 = vadd.f32 0.0, %v8049
        %8051 = vmatmul.f32.gmra.mxu0 %v7940
        %v8052 = vpop.f32.mrf.mxu0
        %v8053 = vadd.f32 0.0, %v8052
        %8054 = vmatmul.f32.gmra.mxu0 %v7943
        %v8055 = vpop.f32.mrf.mxu0
        %v8056 = vadd.f32 0.0, %v8055
        %8057 = vmatmul.f32.gmra.mxu0 %v7946
        %v8058 = vpop.f32.mrf.mxu0
        %v8059 = vadd.f32 0.0, %v8058
        %8060 = vmatmul.f32.gmra.mxu0 %v7949
        %v8061 = vpop.f32.mrf.mxu0
        %v8062 = vadd.f32 0.0, %v8061
        %8063 = vmatmul.f32.gmra.mxu0 %v7952
        %v8064 = vpop.f32.mrf.mxu0
        %v8065 = vadd.f32 0.0, %v8064
        %8066 = vmatmul.f32.gmra.mxu0 %v7955
        %v8067 = vpop.f32.mrf.mxu0
        %v8068 = vadd.f32 0.0, %v8067
        %8069 = vmatmul.f32.gmra.mxu0 %v7958
        %v8070 = vpop.f32.mrf.mxu0
        %v8071 = vadd.f32 0.0, %v8070
        %8072 = vmatmul.f32.gmra.mxu0 %v7961
        %v8073 = vpop.f32.mrf.mxu0
        %v8074 = vadd.f32 0.0, %v8073
        %8075 = vmatmul.f32.gmra.mxu0 %v7964
        %v8076 = vpop.f32.mrf.mxu0
        %v8077 = vadd.f32 0.0, %v8076
        %8078 = vmatmul.f32.gmra.mxu0 %v7967
        %v8079 = vpop.f32.mrf.mxu0
        %v8080 = vadd.f32 0.0, %v8079
        %8081 = vmatmul.f32.gmra.mxu0 %v7970
        %v8082 = vpop.f32.mrf.mxu0
        %v8083 = vadd.f32 0.0, %v8082
        %8084 = vmatmul.f32.gmra.mxu0 %v7973
        %v8085 = vpop.f32.mrf.mxu0
        %v8086 = vadd.f32 0.0, %v8085
        %8087 = vmatmul.f32.gmra.mxu0 %v7976
        %v8088 = vpop.f32.mrf.mxu0
        %v8089 = vadd.f32 0.0, %v8088
        %8090 = vmatmul.f32.gmra.mxu0 %v7979
        %v8091 = vpop.f32.mrf.mxu0
        %v8092 = vadd.f32 0.0, %v8091
        %8093 = vmatmul.f32.gmra.mxu0 %v7982
        %v8094 = vpop.f32.mrf.mxu0
        %v8095 = vadd.f32 0.0, %v8094
        %8096 = vmatmul.f32.gmra.mxu0 %v7985
        %v8097 = vpop.f32.mrf.mxu0
        %v8098 = vadd.f32 0.0, %v8097
        %8099 = vmatmul.f32.gmra.mxu0 %v7988
        %v8100 = vpop.f32.mrf.mxu0
        %v8101 = vadd.f32 0.0, %v8100
        %8102 = vmatmul.f32.gmra.mxu0 %v7991
        %v8103 = vpop.f32.mrf.mxu0
        %v8104 = vadd.f32 0.0, %v8103
        %8105 = vmatmul.f32.gmra.mxu0 %v7994
        %v8106 = vpop.f32.mrf.mxu0
        %v8107 = vadd.f32 0.0, %v8106
        %8108 = vmatmul.f32.gmra.mxu0 %v7997
        %v8109 = vpop.f32.mrf.mxu0
        %v8110 = vadd.f32 0.0, %v8109
        %8111 = vmatmul.f32.gmra.mxu0 %v8000
        %v8112 = vpop.f32.mrf.mxu0
        %v8113 = vadd.f32 0.0, %v8112
        %8114 = vmatmul.f32.gmra.mxu0 %v8003
        %v8115 = vpop.f32.mrf.mxu0
        %v8116 = vadd.f32 0.0, %v8115
        %8117 = vmatmul.f32.gmra.mxu0 %v8006
        %v8118 = vpop.f32.mrf.mxu0
        %v8119 = vadd.f32 0.0, %v8118
        %8120 = vmatmul.f32.gmra.mxu0 %v8009
        %v8121 = vpop.f32.mrf.mxu0
        %v8122 = vadd.f32 0.0, %v8121
        %8123 = vmatmul.f32.gmra.mxu0 %v8012
        %v8124 = vpop.f32.mrf.mxu0
        %v8125 = vadd.f32 0.0, %v8124
        %8126 = vmatmul.f32.gmra.mxu0 %v8015
        %v8127 = vpop.f32.mrf.mxu0
        %v8128 = vadd.f32 0.0, %v8127
        %8129 = vmatmul.f32.gmra.mxu0 %v8018
        %v8130 = vpop.f32.mrf.mxu0
        %v8131 = vadd.f32 0.0, %v8130
        %8132 = vmatmul.f32.gmra.mxu0 %v8021
        %v8133 = vpop.f32.mrf.mxu0
        %v8134 = vadd.f32 0.0, %v8133
        %8135 = vmatmul.f32.gmra.mxu0 %v8024
        %v8136 = vpop.f32.mrf.mxu0
        %v8137 = vadd.f32 0.0, %v8136
        %8138 = vdwg.mxu0
        %v8139 = vadd.f32 %v7857, %v8044
        %v8140 = vadd.f32 %v7858, %v8047
        %v8141 = vadd.f32 %v7859, %v8050
        %v8142 = vadd.f32 %v7860, %v8053
        %v8143 = vadd.f32 %v7861, %v8056
        %v8144 = vadd.f32 %v7862, %v8059
        %v8145 = vadd.f32 %v7863, %v8062
        %v8146 = vadd.f32 %v7864, %v8065
        %v8147 = vadd.f32 %v7865, %v8068
        %v8148 = vadd.f32 %v7866, %v8071
        %v8149 = vadd.f32 %v7867, %v8074
        %v8150 = vadd.f32 %v7868, %v8077
        %v8151 = vadd.f32 %v7869, %v8080
        %v8152 = vadd.f32 %v7870, %v8083
        %v8153 = vadd.f32 %v7871, %v8086
        %v8154 = vadd.f32 %v7872, %v8089
        %v8155 = vadd.f32 %v7873, %v8092
        %v8156 = vadd.f32 %v7874, %v8095
        %v8157 = vadd.f32 %v7875, %v8098
        %v8158 = vadd.f32 %v7876, %v8101
        %v8159 = vadd.f32 %v7877, %v8104
        %v8160 = vadd.f32 %v7878, %v8107
        %v8161 = vadd.f32 %v7879, %v8110
        %v8162 = vadd.f32 %v7880, %v8113
        %v8163 = vadd.f32 %v7881, %v8116
        %v8164 = vadd.f32 %v7882, %v8119
        %v8165 = vadd.f32 %v7883, %v8122
        %v8166 = vadd.f32 %v7884, %v8125
        %v8167 = vadd.f32 %v7885, %v8128
        %v8168 = vadd.f32 %v7886, %v8131
        %v8169 = vadd.f32 %v7887, %v8134
        %v8170 = vadd.f32 %v7888, %v8137
        %v8171 = vld [vmem:[%s456] sm:$0xff]
        %v8172 = vld [vmem:[%s456 + $0x8] sm:$0xff]
        %v8173 = vld [vmem:[%s456 + $0x18] sm:$0xff]
        %v8174 = vld [vmem:[%s456 + $0x20] sm:$0xff]
        %v8175 = vld [vmem:[%s456 + $0x30] sm:$0xff]
        %v8176 = vld [vmem:[%s456 + $0x38] sm:$0xff]
        %v8177 = vld [vmem:[%s456 + $0x48] sm:$0xff]
        %v8178 = vld [vmem:[%s456 + $0x50] sm:$0xff]
        %v8179 = vld [vmem:[%s456 + $0x60] sm:$0xff]
        %v8180 = vld [vmem:[%s456 + $0x68] sm:$0xff]
        %v8181 = vld [vmem:[%s456 + $0x78] sm:$0xff]
        %v8182 = vld [vmem:[%s456 + $0x80] sm:$0xff]
        %v8183 = vld [vmem:[%s456 + $0x90] sm:$0xff]
        %v8184 = vld [vmem:[%s456 + $0x98] sm:$0xff]
        %v8185 = vld [vmem:[%s456 + $0xa8] sm:$0xff]
        %v8186 = vld [vmem:[%s456 + $0xb0] sm:$0xff]
        %v8187 = vld [vmem:[%s456 + $0xc0] sm:$0xff]
        %v8188 = vld [vmem:[%s456 + $0xc8] sm:$0xff]
        %v8189 = vld [vmem:[%s456 + $0xd8] sm:$0xff]
        %v8190 = vld [vmem:[%s456 + $0xe0] sm:$0xff]
        %v8191 = vld [vmem:[%s456 + $0xf0] sm:$0xff]
        %v8192 = vld [vmem:[%s456 + $0xf8] sm:$0xff]
        %v8193 = vld [vmem:[%s456 + $0x108] sm:$0xff]
        %v8194 = vld [vmem:[%s456 + $0x110] sm:$0xff]
        %v8195 = vld [vmem:[%s456 + $0x120] sm:$0xff]
        %v8196 = vld [vmem:[%s456 + $0x128] sm:$0xff]
        %v8197 = vld [vmem:[%s456 + $0x138] sm:$0xff]
        %v8198 = vld [vmem:[%s456 + $0x140] sm:$0xff]
        %v8199 = vld [vmem:[%s456 + $0x150] sm:$0xff]
        %v8200 = vld [vmem:[%s456 + $0x158] sm:$0xff]
        %v8201 = vld [vmem:[%s456 + $0x168] sm:$0xff]
        %v8202 = vld [vmem:[%s456 + $0x170] sm:$0xff]
        %s8203 = scalar_lea.vmem [#allocation8], 96
        %v8204 = vld [vmem:[%s8203] sm:$0xff]
        %v8205 = vld [vmem:[%s8203 + $0x8] sm:$0xff]
        %v8206 = vld [vmem:[%s8203 + $0x10] sm:$0xff]
        %v8207 = vld [vmem:[%s8203 + $0x18] sm:$0xff]
        %v8209 = vsel %vm363, %v8171, 0
        %v8212 = vsel %vm363, %v8172, 0
        %v8215 = vsel %vm363, %v8173, 0
        %v8218 = vsel %vm363, %v8174, 0
        %v8221 = vsel %vm363, %v8175, 0
        %v8224 = vsel %vm363, %v8176, 0
        %v8227 = vsel %vm363, %v8177, 0
        %v8230 = vsel %vm363, %v8178, 0
        %v8233 = vsel %vm363, %v8179, 0
        %v8236 = vsel %vm363, %v8180, 0
        %v8239 = vsel %vm363, %v8181, 0
        %v8242 = vsel %vm363, %v8182, 0
        %v8245 = vsel %vm363, %v8183, 0
        %v8248 = vsel %vm363, %v8184, 0
        %v8251 = vsel %vm363, %v8185, 0
        %v8254 = vsel %vm363, %v8186, 0
        %v8257 = vsel %vm363, %v8187, 0
        %v8260 = vsel %vm363, %v8188, 0
        %v8263 = vsel %vm363, %v8189, 0
        %v8266 = vsel %vm363, %v8190, 0
        %v8269 = vsel %vm363, %v8191, 0
        %v8272 = vsel %vm363, %v8192, 0
        %v8275 = vsel %vm363, %v8193, 0
        %v8278 = vsel %vm363, %v8194, 0
        %v8281 = vsel %vm363, %v8195, 0
        %v8284 = vsel %vm363, %v8196, 0
        %v8287 = vsel %vm363, %v8197, 0
        %v8290 = vsel %vm363, %v8198, 0
        %v8293 = vsel %vm363, %v8199, 0
        %v8296 = vsel %vm363, %v8200, 0
        %v8299 = vsel %vm363, %v8201, 0
        %v8302 = vsel %vm363, %v8202, 0
        %8304 = vmatpush.msra.mxu0 0.0
        %8305 = vmatpush.msra.mxu0 0.0
        %8306 = vmatpush.msra.mxu0 0.0
        %8307 = vmatpush.msra.mxu0 0.0
        %8308 = vmatpush.msra.mxu0 0.0
        %8309 = vmatpush.msra.mxu0 0.0
        %8310 = vmatpush.msra.mxu0 0.0
        %8311 = vmatpush.msra.mxu0 0.0
        %8312 = vmatpush.msra.mxu0 0.0
        %8313 = vmatpush.msra.mxu0 0.0
        %8314 = vmatpush.msra.mxu0 0.0
        %8315 = vmatpush.msra.mxu0 0.0
        %8316 = vmatpush.msra.mxu0 %v8207
        %8317 = vmatpush.msra.mxu0 %v8206
        %8318 = vmatpush.msra.mxu0 %v8205
        %8319 = vmatpush.msra.mxu0 %v8204
        %8320 = vmatmul.f32.gmra.mxu0 %v8209
        %v8321 = vpop.f32.mrf.mxu0
        %v8322 = vadd.f32 0.0, %v8321
        %8323 = vmatmul.f32.gmra.mxu0 %v8212
        %v8324 = vpop.f32.mrf.mxu0
        %v8325 = vadd.f32 0.0, %v8324
        %8326 = vmatmul.f32.gmra.mxu0 %v8215
        %v8327 = vpop.f32.mrf.mxu0
        %v8328 = vadd.f32 0.0, %v8327
        %8329 = vmatmul.f32.gmra.mxu0 %v8218
        %v8330 = vpop.f32.mrf.mxu0
        %v8331 = vadd.f32 0.0, %v8330
        %8332 = vmatmul.f32.gmra.mxu0 %v8221
        %v8333 = vpop.f32.mrf.mxu0
        %v8334 = vadd.f32 0.0, %v8333
        %8335 = vmatmul.f32.gmra.mxu0 %v8224
        %v8336 = vpop.f32.mrf.mxu0
        %v8337 = vadd.f32 0.0, %v8336
        %8338 = vmatmul.f32.gmra.mxu0 %v8227
        %v8339 = vpop.f32.mrf.mxu0
        %v8340 = vadd.f32 0.0, %v8339
        %8341 = vmatmul.f32.gmra.mxu0 %v8230
        %v8342 = vpop.f32.mrf.mxu0
        %v8343 = vadd.f32 0.0, %v8342
        %8344 = vmatmul.f32.gmra.mxu0 %v8233
        %v8345 = vpop.f32.mrf.mxu0
        %v8346 = vadd.f32 0.0, %v8345
        %8347 = vmatmul.f32.gmra.mxu0 %v8236
        %v8348 = vpop.f32.mrf.mxu0
        %v8349 = vadd.f32 0.0, %v8348
        %8350 = vmatmul.f32.gmra.mxu0 %v8239
        %v8351 = vpop.f32.mrf.mxu0
        %v8352 = vadd.f32 0.0, %v8351
        %8353 = vmatmul.f32.gmra.mxu0 %v8242
        %v8354 = vpop.f32.mrf.mxu0
        %v8355 = vadd.f32 0.0, %v8354
        %8356 = vmatmul.f32.gmra.mxu0 %v8245
        %v8357 = vpop.f32.mrf.mxu0
        %v8358 = vadd.f32 0.0, %v8357
        %8359 = vmatmul.f32.gmra.mxu0 %v8248
        %v8360 = vpop.f32.mrf.mxu0
        %v8361 = vadd.f32 0.0, %v8360
        %8362 = vmatmul.f32.gmra.mxu0 %v8251
        %v8363 = vpop.f32.mrf.mxu0
        %v8364 = vadd.f32 0.0, %v8363
        %8365 = vmatmul.f32.gmra.mxu0 %v8254
        %v8366 = vpop.f32.mrf.mxu0
        %v8367 = vadd.f32 0.0, %v8366
        %8368 = vmatmul.f32.gmra.mxu0 %v8257
        %v8369 = vpop.f32.mrf.mxu0
        %v8370 = vadd.f32 0.0, %v8369
        %8371 = vmatmul.f32.gmra.mxu0 %v8260
        %v8372 = vpop.f32.mrf.mxu0
        %v8373 = vadd.f32 0.0, %v8372
        %8374 = vmatmul.f32.gmra.mxu0 %v8263
        %v8375 = vpop.f32.mrf.mxu0
        %v8376 = vadd.f32 0.0, %v8375
        %8377 = vmatmul.f32.gmra.mxu0 %v8266
        %v8378 = vpop.f32.mrf.mxu0
        %v8379 = vadd.f32 0.0, %v8378
        %8380 = vmatmul.f32.gmra.mxu0 %v8269
        %v8381 = vpop.f32.mrf.mxu0
        %v8382 = vadd.f32 0.0, %v8381
        %8383 = vmatmul.f32.gmra.mxu0 %v8272
        %v8384 = vpop.f32.mrf.mxu0
        %v8385 = vadd.f32 0.0, %v8384
        %8386 = vmatmul.f32.gmra.mxu0 %v8275
        %v8387 = vpop.f32.mrf.mxu0
        %v8388 = vadd.f32 0.0, %v8387
        %8389 = vmatmul.f32.gmra.mxu0 %v8278
        %v8390 = vpop.f32.mrf.mxu0
        %v8391 = vadd.f32 0.0, %v8390
        %8392 = vmatmul.f32.gmra.mxu0 %v8281
        %v8393 = vpop.f32.mrf.mxu0
        %v8394 = vadd.f32 0.0, %v8393
        %8395 = vmatmul.f32.gmra.mxu0 %v8284
        %v8396 = vpop.f32.mrf.mxu0
        %v8397 = vadd.f32 0.0, %v8396
        %8398 = vmatmul.f32.gmra.mxu0 %v8287
        %v8399 = vpop.f32.mrf.mxu0
        %v8400 = vadd.f32 0.0, %v8399
        %8401 = vmatmul.f32.gmra.mxu0 %v8290
        %v8402 = vpop.f32.mrf.mxu0
        %v8403 = vadd.f32 0.0, %v8402
        %8404 = vmatmul.f32.gmra.mxu0 %v8293
        %v8405 = vpop.f32.mrf.mxu0
        %v8406 = vadd.f32 0.0, %v8405
        %8407 = vmatmul.f32.gmra.mxu0 %v8296
        %v8408 = vpop.f32.mrf.mxu0
        %v8409 = vadd.f32 0.0, %v8408
        %8410 = vmatmul.f32.gmra.mxu0 %v8299
        %v8411 = vpop.f32.mrf.mxu0
        %v8412 = vadd.f32 0.0, %v8411
        %8413 = vmatmul.f32.gmra.mxu0 %v8302
        %v8414 = vpop.f32.mrf.mxu0
        %v8415 = vadd.f32 0.0, %v8414
        %8416 = vdwg.mxu0
        %v8417 = vadd.f32 %v8139, %v8322
        %v8418 = vadd.f32 %v8140, %v8325
        %v8419 = vadd.f32 %v8141, %v8328
        %v8420 = vadd.f32 %v8142, %v8331
        %v8421 = vadd.f32 %v8143, %v8334
        %v8422 = vadd.f32 %v8144, %v8337
        %v8423 = vadd.f32 %v8145, %v8340
        %v8424 = vadd.f32 %v8146, %v8343
        %v8425 = vadd.f32 %v8147, %v8346
        %v8426 = vadd.f32 %v8148, %v8349
        %v8427 = vadd.f32 %v8149, %v8352
        %v8428 = vadd.f32 %v8150, %v8355
        %v8429 = vadd.f32 %v8151, %v8358
        %v8430 = vadd.f32 %v8152, %v8361
        %v8431 = vadd.f32 %v8153, %v8364
        %v8432 = vadd.f32 %v8154, %v8367
        %v8433 = vadd.f32 %v8155, %v8370
        %v8434 = vadd.f32 %v8156, %v8373
        %v8435 = vadd.f32 %v8157, %v8376
        %v8436 = vadd.f32 %v8158, %v8379
        %v8437 = vadd.f32 %v8159, %v8382
        %v8438 = vadd.f32 %v8160, %v8385
        %v8439 = vadd.f32 %v8161, %v8388
        %v8440 = vadd.f32 %v8162, %v8391
        %v8441 = vadd.f32 %v8163, %v8394
        %v8442 = vadd.f32 %v8164, %v8397
        %v8443 = vadd.f32 %v8165, %v8400
        %v8444 = vadd.f32 %v8166, %v8403
        %v8445 = vadd.f32 %v8167, %v8406
        %v8446 = vadd.f32 %v8168, %v8409
        %v8447 = vadd.f32 %v8169, %v8412
        %v8448 = vadd.f32 %v8170, %v8415
        %v8449 = vld [vmem:[%s415] sm:$0xff]
        %v8450 = vld [vmem:[%s415 + $0x8] sm:$0xff]
        %v8451 = vld [vmem:[%s415 + $0x18] sm:$0xff]
        %v8452 = vld [vmem:[%s415 + $0x20] sm:$0xff]
        %v8453 = vld [vmem:[%s415 + $0x30] sm:$0xff]
        %v8454 = vld [vmem:[%s415 + $0x38] sm:$0xff]
        %v8455 = vld [vmem:[%s415 + $0x48] sm:$0xff]
        %v8456 = vld [vmem:[%s415 + $0x50] sm:$0xff]
        %v8457 = vld [vmem:[%s415 + $0x60] sm:$0xff]
        %v8458 = vld [vmem:[%s415 + $0x68] sm:$0xff]
        %v8459 = vld [vmem:[%s415 + $0x78] sm:$0xff]
        %v8460 = vld [vmem:[%s415 + $0x80] sm:$0xff]
        %v8461 = vld [vmem:[%s415 + $0x90] sm:$0xff]
        %v8462 = vld [vmem:[%s415 + $0x98] sm:$0xff]
        %v8463 = vld [vmem:[%s415 + $0xa8] sm:$0xff]
        %v8464 = vld [vmem:[%s415 + $0xb0] sm:$0xff]
        %v8465 = vld [vmem:[%s415 + $0xc0] sm:$0xff]
        %v8466 = vld [vmem:[%s415 + $0xc8] sm:$0xff]
        %v8467 = vld [vmem:[%s415 + $0xd8] sm:$0xff]
        %v8468 = vld [vmem:[%s415 + $0xe0] sm:$0xff]
        %v8469 = vld [vmem:[%s415 + $0xf0] sm:$0xff]
        %v8470 = vld [vmem:[%s415 + $0xf8] sm:$0xff]
        %v8471 = vld [vmem:[%s415 + $0x108] sm:$0xff]
        %v8472 = vld [vmem:[%s415 + $0x110] sm:$0xff]
        %v8473 = vld [vmem:[%s415 + $0x120] sm:$0xff]
        %v8474 = vld [vmem:[%s415 + $0x128] sm:$0xff]
        %v8475 = vld [vmem:[%s415 + $0x138] sm:$0xff]
        %v8476 = vld [vmem:[%s415 + $0x140] sm:$0xff]
        %v8477 = vld [vmem:[%s415 + $0x150] sm:$0xff]
        %v8478 = vld [vmem:[%s415 + $0x158] sm:$0xff]
        %v8479 = vld [vmem:[%s415 + $0x168] sm:$0xff]
        %v8480 = vld [vmem:[%s415 + $0x170] sm:$0xff]
        %s8481 = scalar_lea.vmem %s6, 192
        %v8482 = vld [vmem:[%s8481] sm:$0xff]
        %v8483 = vld [vmem:[%s8481 + $0x8] sm:$0xff]
        %v8484 = vld [vmem:[%s8481 + $0x10] sm:$0xff]
        %v8485 = vld [vmem:[%s8481 + $0x18] sm:$0xff]
        %v8486 = vld [vmem:[%s8481 + $0x20] sm:$0xff]
        %v8487 = vld [vmem:[%s8481 + $0x28] sm:$0xff]
        %v8488 = vld [vmem:[%s8481 + $0x30] sm:$0xff]
        %v8489 = vld [vmem:[%s8481 + $0x38] sm:$0xff]
        %v8491 = vsel %vm406, %v8449, 0
        %v8494 = vsel %vm406, %v8450, 0
        %v8497 = vsel %vm406, %v8451, 0
        %v8500 = vsel %vm406, %v8452, 0
        %v8503 = vsel %vm406, %v8453, 0
        %v8506 = vsel %vm406, %v8454, 0
        %v8509 = vsel %vm406, %v8455, 0
        %v8512 = vsel %vm406, %v8456, 0
        %v8515 = vsel %vm406, %v8457, 0
        %v8518 = vsel %vm406, %v8458, 0
        %v8521 = vsel %vm406, %v8459, 0
        %v8524 = vsel %vm406, %v8460, 0
        %v8527 = vsel %vm406, %v8461, 0
        %v8530 = vsel %vm406, %v8462, 0
        %v8533 = vsel %vm406, %v8463, 0
        %v8536 = vsel %vm406, %v8464, 0
        %v8539 = vsel %vm406, %v8465, 0
        %v8542 = vsel %vm406, %v8466, 0
        %v8545 = vsel %vm406, %v8467, 0
        %v8548 = vsel %vm406, %v8468, 0
        %v8551 = vsel %vm406, %v8469, 0
        %v8554 = vsel %vm406, %v8470, 0
        %v8557 = vsel %vm406, %v8471, 0
        %v8560 = vsel %vm406, %v8472, 0
        %v8563 = vsel %vm406, %v8473, 0
        %v8566 = vsel %vm406, %v8474, 0
        %v8569 = vsel %vm406, %v8475, 0
        %v8572 = vsel %vm406, %v8476, 0
        %v8575 = vsel %vm406, %v8477, 0
        %v8578 = vsel %vm406, %v8478, 0
        %v8581 = vsel %vm406, %v8479, 0
        %v8584 = vsel %vm406, %v8480, 0
        %8586 = vmatpush.msra.mxu0 0.0
        %8587 = vmatpush.msra.mxu0 0.0
        %8588 = vmatpush.msra.mxu0 0.0
        %8589 = vmatpush.msra.mxu0 0.0
        %8590 = vmatpush.msra.mxu0 0.0
        %8591 = vmatpush.msra.mxu0 0.0
        %8592 = vmatpush.msra.mxu0 0.0
        %8593 = vmatpush.msra.mxu0 0.0
        %8594 = vmatpush.msra.mxu0 %v8489
        %8595 = vmatpush.msra.mxu0 %v8488
        %8596 = vmatpush.msra.mxu0 %v8487
        %8597 = vmatpush.msra.mxu0 %v8486
        %8598 = vmatpush.msra.mxu0 %v8485
        %8599 = vmatpush.msra.mxu0 %v8484
        %8600 = vmatpush.msra.mxu0 %v8483
        %8601 = vmatpush.msra.mxu0 %v8482
        %8602 = vmatmul.f32.gmra.mxu0 %v8491
        %v8603 = vpop.f32.mrf.mxu0
        %v8604 = vadd.f32 0.0, %v8603
        %8605 = vmatmul.f32.gmra.mxu0 %v8494
        %v8606 = vpop.f32.mrf.mxu0
        %v8607 = vadd.f32 0.0, %v8606
        %8608 = vmatmul.f32.gmra.mxu0 %v8497
        %v8609 = vpop.f32.mrf.mxu0
        %v8610 = vadd.f32 0.0, %v8609
        %8611 = vmatmul.f32.gmra.mxu0 %v8500
        %v8612 = vpop.f32.mrf.mxu0
        %v8613 = vadd.f32 0.0, %v8612
        %8614 = vmatmul.f32.gmra.mxu0 %v8503
        %v8615 = vpop.f32.mrf.mxu0
        %v8616 = vadd.f32 0.0, %v8615
        %8617 = vmatmul.f32.gmra.mxu0 %v8506
        %v8618 = vpop.f32.mrf.mxu0
        %v8619 = vadd.f32 0.0, %v8618
        %8620 = vmatmul.f32.gmra.mxu0 %v8509
        %v8621 = vpop.f32.mrf.mxu0
        %v8622 = vadd.f32 0.0, %v8621
        %8623 = vmatmul.f32.gmra.mxu0 %v8512
        %v8624 = vpop.f32.mrf.mxu0
        %v8625 = vadd.f32 0.0, %v8624
        %8626 = vmatmul.f32.gmra.mxu0 %v8515
        %v8627 = vpop.f32.mrf.mxu0
        %v8628 = vadd.f32 0.0, %v8627
        %8629 = vmatmul.f32.gmra.mxu0 %v8518
        %v8630 = vpop.f32.mrf.mxu0
        %v8631 = vadd.f32 0.0, %v8630
        %8632 = vmatmul.f32.gmra.mxu0 %v8521
        %v8633 = vpop.f32.mrf.mxu0
        %v8634 = vadd.f32 0.0, %v8633
        %8635 = vmatmul.f32.gmra.mxu0 %v8524
        %v8636 = vpop.f32.mrf.mxu0
        %v8637 = vadd.f32 0.0, %v8636
        %8638 = vmatmul.f32.gmra.mxu0 %v8527
        %v8639 = vpop.f32.mrf.mxu0
        %v8640 = vadd.f32 0.0, %v8639
        %8641 = vmatmul.f32.gmra.mxu0 %v8530
        %v8642 = vpop.f32.mrf.mxu0
        %v8643 = vadd.f32 0.0, %v8642
        %8644 = vmatmul.f32.gmra.mxu0 %v8533
        %v8645 = vpop.f32.mrf.mxu0
        %v8646 = vadd.f32 0.0, %v8645
        %8647 = vmatmul.f32.gmra.mxu0 %v8536
        %v8648 = vpop.f32.mrf.mxu0
        %v8649 = vadd.f32 0.0, %v8648
        %8650 = vmatmul.f32.gmra.mxu0 %v8539
        %v8651 = vpop.f32.mrf.mxu0
        %v8652 = vadd.f32 0.0, %v8651
        %8653 = vmatmul.f32.gmra.mxu0 %v8542
        %v8654 = vpop.f32.mrf.mxu0
        %v8655 = vadd.f32 0.0, %v8654
        %8656 = vmatmul.f32.gmra.mxu0 %v8545
        %v8657 = vpop.f32.mrf.mxu0
        %v8658 = vadd.f32 0.0, %v8657
        %8659 = vmatmul.f32.gmra.mxu0 %v8548
        %v8660 = vpop.f32.mrf.mxu0
        %v8661 = vadd.f32 0.0, %v8660
        %8662 = vmatmul.f32.gmra.mxu0 %v8551
        %v8663 = vpop.f32.mrf.mxu0
        %v8664 = vadd.f32 0.0, %v8663
        %8665 = vmatmul.f32.gmra.mxu0 %v8554
        %v8666 = vpop.f32.mrf.mxu0
        %v8667 = vadd.f32 0.0, %v8666
        %8668 = vmatmul.f32.gmra.mxu0 %v8557
        %v8669 = vpop.f32.mrf.mxu0
        %v8670 = vadd.f32 0.0, %v8669
        %8671 = vmatmul.f32.gmra.mxu0 %v8560
        %v8672 = vpop.f32.mrf.mxu0
        %v8673 = vadd.f32 0.0, %v8672
        %8674 = vmatmul.f32.gmra.mxu0 %v8563
        %v8675 = vpop.f32.mrf.mxu0
        %v8676 = vadd.f32 0.0, %v8675
        %8677 = vmatmul.f32.gmra.mxu0 %v8566
        %v8678 = vpop.f32.mrf.mxu0
        %v8679 = vadd.f32 0.0, %v8678
        %8680 = vmatmul.f32.gmra.mxu0 %v8569
        %v8681 = vpop.f32.mrf.mxu0
        %v8682 = vadd.f32 0.0, %v8681
        %8683 = vmatmul.f32.gmra.mxu0 %v8572
        %v8684 = vpop.f32.mrf.mxu0
        %v8685 = vadd.f32 0.0, %v8684
        %8686 = vmatmul.f32.gmra.mxu0 %v8575
        %v8687 = vpop.f32.mrf.mxu0
        %v8688 = vadd.f32 0.0, %v8687
        %8689 = vmatmul.f32.gmra.mxu0 %v8578
        %v8690 = vpop.f32.mrf.mxu0
        %v8691 = vadd.f32 0.0, %v8690
        %8692 = vmatmul.f32.gmra.mxu0 %v8581
        %v8693 = vpop.f32.mrf.mxu0
        %v8694 = vadd.f32 0.0, %v8693
        %8695 = vmatmul.f32.gmra.mxu0 %v8584
        %v8696 = vpop.f32.mrf.mxu0
        %v8697 = vadd.f32 0.0, %v8696
        %8698 = vdwg.mxu0
        %v8699 = vadd.f32 %v8417, %v8604
        %v8700 = vadd.f32 %v8418, %v8607
        %v8701 = vadd.f32 %v8419, %v8610
        %v8702 = vadd.f32 %v8420, %v8613
        %v8703 = vadd.f32 %v8421, %v8616
        %v8704 = vadd.f32 %v8422, %v8619
        %v8705 = vadd.f32 %v8423, %v8622
        %v8706 = vadd.f32 %v8424, %v8625
        %v8707 = vadd.f32 %v8425, %v8628
        %v8708 = vadd.f32 %v8426, %v8631
        %v8709 = vadd.f32 %v8427, %v8634
        %v8710 = vadd.f32 %v8428, %v8637
        %v8711 = vadd.f32 %v8429, %v8640
        %v8712 = vadd.f32 %v8430, %v8643
        %v8713 = vadd.f32 %v8431, %v8646
        %v8714 = vadd.f32 %v8432, %v8649
        %v8715 = vadd.f32 %v8433, %v8652
        %v8716 = vadd.f32 %v8434, %v8655
        %v8717 = vadd.f32 %v8435, %v8658
        %v8718 = vadd.f32 %v8436, %v8661
        %v8719 = vadd.f32 %v8437, %v8664
        %v8720 = vadd.f32 %v8438, %v8667
        %v8721 = vadd.f32 %v8439, %v8670
        %v8722 = vadd.f32 %v8440, %v8673
        %v8723 = vadd.f32 %v8441, %v8676
        %v8724 = vadd.f32 %v8442, %v8679
        %v8725 = vadd.f32 %v8443, %v8682
        %v8726 = vadd.f32 %v8444, %v8685
        %v8727 = vadd.f32 %v8445, %v8688
        %v8728 = vadd.f32 %v8446, %v8691
        %v8729 = vadd.f32 %v8447, %v8694
        %v8730 = vadd.f32 %v8448, %v8697
        %v8731 = vld [vmem:[%s456 + $0x1] sm:$0xff]
        %v8732 = vld [vmem:[%s456 + $0x9] sm:$0xff]
        %v8733 = vld [vmem:[%s456 + $0x19] sm:$0xff]
        %v8734 = vld [vmem:[%s456 + $0x21] sm:$0xff]
        %v8735 = vld [vmem:[%s456 + $0x31] sm:$0xff]
        %v8736 = vld [vmem:[%s456 + $0x39] sm:$0xff]
        %v8737 = vld [vmem:[%s456 + $0x49] sm:$0xff]
        %v8738 = vld [vmem:[%s456 + $0x51] sm:$0xff]
        %v8739 = vld [vmem:[%s456 + $0x61] sm:$0xff]
        %v8740 = vld [vmem:[%s456 + $0x69] sm:$0xff]
        %v8741 = vld [vmem:[%s456 + $0x79] sm:$0xff]
        %v8742 = vld [vmem:[%s456 + $0x81] sm:$0xff]
        %v8743 = vld [vmem:[%s456 + $0x91] sm:$0xff]
        %v8744 = vld [vmem:[%s456 + $0x99] sm:$0xff]
        %v8745 = vld [vmem:[%s456 + $0xa9] sm:$0xff]
        %v8746 = vld [vmem:[%s456 + $0xb1] sm:$0xff]
        %v8747 = vld [vmem:[%s456 + $0xc1] sm:$0xff]
        %v8748 = vld [vmem:[%s456 + $0xc9] sm:$0xff]
        %v8749 = vld [vmem:[%s456 + $0xd9] sm:$0xff]
        %v8750 = vld [vmem:[%s456 + $0xe1] sm:$0xff]
        %v8751 = vld [vmem:[%s456 + $0xf1] sm:$0xff]
        %v8752 = vld [vmem:[%s456 + $0xf9] sm:$0xff]
        %v8753 = vld [vmem:[%s456 + $0x109] sm:$0xff]
        %v8754 = vld [vmem:[%s456 + $0x111] sm:$0xff]
        %v8755 = vld [vmem:[%s456 + $0x121] sm:$0xff]
        %v8756 = vld [vmem:[%s456 + $0x129] sm:$0xff]
        %v8757 = vld [vmem:[%s456 + $0x139] sm:$0xff]
        %v8758 = vld [vmem:[%s456 + $0x141] sm:$0xff]
        %v8759 = vld [vmem:[%s456 + $0x151] sm:$0xff]
        %v8760 = vld [vmem:[%s456 + $0x159] sm:$0xff]
        %v8761 = vld [vmem:[%s456 + $0x169] sm:$0xff]
        %v8762 = vld [vmem:[%s456 + $0x171] sm:$0xff]
        %s8763 = scalar_lea.vmem [#allocation8], 128
        %v8764 = vld [vmem:[%s8763] sm:$0xff]
        %v8765 = vld [vmem:[%s8763 + $0x8] sm:$0xff]
        %v8766 = vld [vmem:[%s8763 + $0x10] sm:$0xff]
        %v8767 = vld [vmem:[%s8763 + $0x18] sm:$0xff]
        %v8769 = vsel %vm363, %v8731, 0
        %v8772 = vsel %vm363, %v8732, 0
        %v8775 = vsel %vm363, %v8733, 0
        %v8778 = vsel %vm363, %v8734, 0
        %v8781 = vsel %vm363, %v8735, 0
        %v8784 = vsel %vm363, %v8736, 0
        %v8787 = vsel %vm363, %v8737, 0
        %v8790 = vsel %vm363, %v8738, 0
        %v8793 = vsel %vm363, %v8739, 0
        %v8796 = vsel %vm363, %v8740, 0
        %v8799 = vsel %vm363, %v8741, 0
        %v8802 = vsel %vm363, %v8742, 0
        %v8805 = vsel %vm363, %v8743, 0
        %v8808 = vsel %vm363, %v8744, 0
        %v8811 = vsel %vm363, %v8745, 0
        %v8814 = vsel %vm363, %v8746, 0
        %v8817 = vsel %vm363, %v8747, 0
        %v8820 = vsel %vm363, %v8748, 0
        %v8823 = vsel %vm363, %v8749, 0
        %v8826 = vsel %vm363, %v8750, 0
        %v8829 = vsel %vm363, %v8751, 0
        %v8832 = vsel %vm363, %v8752, 0
        %v8835 = vsel %vm363, %v8753, 0
        %v8838 = vsel %vm363, %v8754, 0
        %v8841 = vsel %vm363, %v8755, 0
        %v8844 = vsel %vm363, %v8756, 0
        %v8847 = vsel %vm363, %v8757, 0
        %v8850 = vsel %vm363, %v8758, 0
        %v8853 = vsel %vm363, %v8759, 0
        %v8856 = vsel %vm363, %v8760, 0
        %v8859 = vsel %vm363, %v8761, 0
        %v8862 = vsel %vm363, %v8762, 0
        %8864 = vmatpush.msra.mxu0 0.0
        %8865 = vmatpush.msra.mxu0 0.0
        %8866 = vmatpush.msra.mxu0 0.0
        %8867 = vmatpush.msra.mxu0 0.0
        %8868 = vmatpush.msra.mxu0 0.0
        %8869 = vmatpush.msra.mxu0 0.0
        %8870 = vmatpush.msra.mxu0 0.0
        %8871 = vmatpush.msra.mxu0 0.0
        %8872 = vmatpush.msra.mxu0 0.0
        %8873 = vmatpush.msra.mxu0 0.0
        %8874 = vmatpush.msra.mxu0 0.0
        %8875 = vmatpush.msra.mxu0 0.0
        %8876 = vmatpush.msra.mxu0 %v8767
        %8877 = vmatpush.msra.mxu0 %v8766
        %8878 = vmatpush.msra.mxu0 %v8765
        %8879 = vmatpush.msra.mxu0 %v8764
        %8880 = vmatmul.f32.gmra.mxu0 %v8769
        %v8881 = vpop.f32.mrf.mxu0
        %v8882 = vadd.f32 0.0, %v8881
        %8883 = vmatmul.f32.gmra.mxu0 %v8772
        %v8884 = vpop.f32.mrf.mxu0
        %v8885 = vadd.f32 0.0, %v8884
        %8886 = vmatmul.f32.gmra.mxu0 %v8775
        %v8887 = vpop.f32.mrf.mxu0
        %v8888 = vadd.f32 0.0, %v8887
        %8889 = vmatmul.f32.gmra.mxu0 %v8778
        %v8890 = vpop.f32.mrf.mxu0
        %v8891 = vadd.f32 0.0, %v8890
        %8892 = vmatmul.f32.gmra.mxu0 %v8781
        %v8893 = vpop.f32.mrf.mxu0
        %v8894 = vadd.f32 0.0, %v8893
        %8895 = vmatmul.f32.gmra.mxu0 %v8784
        %v8896 = vpop.f32.mrf.mxu0
        %v8897 = vadd.f32 0.0, %v8896
        %8898 = vmatmul.f32.gmra.mxu0 %v8787
        %v8899 = vpop.f32.mrf.mxu0
        %v8900 = vadd.f32 0.0, %v8899
        %8901 = vmatmul.f32.gmra.mxu0 %v8790
        %v8902 = vpop.f32.mrf.mxu0
        %v8903 = vadd.f32 0.0, %v8902
        %8904 = vmatmul.f32.gmra.mxu0 %v8793
        %v8905 = vpop.f32.mrf.mxu0
        %v8906 = vadd.f32 0.0, %v8905
        %8907 = vmatmul.f32.gmra.mxu0 %v8796
        %v8908 = vpop.f32.mrf.mxu0
        %v8909 = vadd.f32 0.0, %v8908
        %8910 = vmatmul.f32.gmra.mxu0 %v8799
        %v8911 = vpop.f32.mrf.mxu0
        %v8912 = vadd.f32 0.0, %v8911
        %8913 = vmatmul.f32.gmra.mxu0 %v8802
        %v8914 = vpop.f32.mrf.mxu0
        %v8915 = vadd.f32 0.0, %v8914
        %8916 = vmatmul.f32.gmra.mxu0 %v8805
        %v8917 = vpop.f32.mrf.mxu0
        %v8918 = vadd.f32 0.0, %v8917
        %8919 = vmatmul.f32.gmra.mxu0 %v8808
        %v8920 = vpop.f32.mrf.mxu0
        %v8921 = vadd.f32 0.0, %v8920
        %8922 = vmatmul.f32.gmra.mxu0 %v8811
        %v8923 = vpop.f32.mrf.mxu0
        %v8924 = vadd.f32 0.0, %v8923
        %8925 = vmatmul.f32.gmra.mxu0 %v8814
        %v8926 = vpop.f32.mrf.mxu0
        %v8927 = vadd.f32 0.0, %v8926
        %8928 = vmatmul.f32.gmra.mxu0 %v8817
        %v8929 = vpop.f32.mrf.mxu0
        %v8930 = vadd.f32 0.0, %v8929
        %8931 = vmatmul.f32.gmra.mxu0 %v8820
        %v8932 = vpop.f32.mrf.mxu0
        %v8933 = vadd.f32 0.0, %v8932
        %8934 = vmatmul.f32.gmra.mxu0 %v8823
        %v8935 = vpop.f32.mrf.mxu0
        %v8936 = vadd.f32 0.0, %v8935
        %8937 = vmatmul.f32.gmra.mxu0 %v8826
        %v8938 = vpop.f32.mrf.mxu0
        %v8939 = vadd.f32 0.0, %v8938
        %8940 = vmatmul.f32.gmra.mxu0 %v8829
        %v8941 = vpop.f32.mrf.mxu0
        %v8942 = vadd.f32 0.0, %v8941
        %8943 = vmatmul.f32.gmra.mxu0 %v8832
        %v8944 = vpop.f32.mrf.mxu0
        %v8945 = vadd.f32 0.0, %v8944
        %8946 = vmatmul.f32.gmra.mxu0 %v8835
        %v8947 = vpop.f32.mrf.mxu0
        %v8948 = vadd.f32 0.0, %v8947
        %8949 = vmatmul.f32.gmra.mxu0 %v8838
        %v8950 = vpop.f32.mrf.mxu0
        %v8951 = vadd.f32 0.0, %v8950
        %8952 = vmatmul.f32.gmra.mxu0 %v8841
        %v8953 = vpop.f32.mrf.mxu0
        %v8954 = vadd.f32 0.0, %v8953
        %8955 = vmatmul.f32.gmra.mxu0 %v8844
        %v8956 = vpop.f32.mrf.mxu0
        %v8957 = vadd.f32 0.0, %v8956
        %8958 = vmatmul.f32.gmra.mxu0 %v8847
        %v8959 = vpop.f32.mrf.mxu0
        %v8960 = vadd.f32 0.0, %v8959
        %8961 = vmatmul.f32.gmra.mxu0 %v8850
        %v8962 = vpop.f32.mrf.mxu0
        %v8963 = vadd.f32 0.0, %v8962
        %8964 = vmatmul.f32.gmra.mxu0 %v8853
        %v8965 = vpop.f32.mrf.mxu0
        %v8966 = vadd.f32 0.0, %v8965
        %8967 = vmatmul.f32.gmra.mxu0 %v8856
        %v8968 = vpop.f32.mrf.mxu0
        %v8969 = vadd.f32 0.0, %v8968
        %8970 = vmatmul.f32.gmra.mxu0 %v8859
        %v8971 = vpop.f32.mrf.mxu0
        %v8972 = vadd.f32 0.0, %v8971
        %8973 = vmatmul.f32.gmra.mxu0 %v8862
        %v8974 = vpop.f32.mrf.mxu0
        %v8975 = vadd.f32 0.0, %v8974
        %8976 = vdwg.mxu0
        %v8977 = vadd.f32 %v8699, %v8882
        %v8978 = vadd.f32 %v8700, %v8885
        %v8979 = vadd.f32 %v8701, %v8888
        %v8980 = vadd.f32 %v8702, %v8891
        %v8981 = vadd.f32 %v8703, %v8894
        %v8982 = vadd.f32 %v8704, %v8897
        %v8983 = vadd.f32 %v8705, %v8900
        %v8984 = vadd.f32 %v8706, %v8903
        %v8985 = vadd.f32 %v8707, %v8906
        %v8986 = vadd.f32 %v8708, %v8909
        %v8987 = vadd.f32 %v8709, %v8912
        %v8988 = vadd.f32 %v8710, %v8915
        %v8989 = vadd.f32 %v8711, %v8918
        %v8990 = vadd.f32 %v8712, %v8921
        %v8991 = vadd.f32 %v8713, %v8924
        %v8992 = vadd.f32 %v8714, %v8927
        %v8993 = vadd.f32 %v8715, %v8930
        %v8994 = vadd.f32 %v8716, %v8933
        %v8995 = vadd.f32 %v8717, %v8936
        %v8996 = vadd.f32 %v8718, %v8939
        %v8997 = vadd.f32 %v8719, %v8942
        %v8998 = vadd.f32 %v8720, %v8945
        %v8999 = vadd.f32 %v8721, %v8948
        %v9000 = vadd.f32 %v8722, %v8951
        %v9001 = vadd.f32 %v8723, %v8954
        %v9002 = vadd.f32 %v8724, %v8957
        %v9003 = vadd.f32 %v8725, %v8960
        %v9004 = vadd.f32 %v8726, %v8963
        %v9005 = vadd.f32 %v8727, %v8966
        %v9006 = vadd.f32 %v8728, %v8969
        %v9007 = vadd.f32 %v8729, %v8972
        %v9008 = vadd.f32 %v8730, %v8975
        %v9009 = vld [vmem:[%s415 + $0x1] sm:$0xff]
        %v9010 = vld [vmem:[%s415 + $0x9] sm:$0xff]
        %v9011 = vld [vmem:[%s415 + $0x19] sm:$0xff]
        %v9012 = vld [vmem:[%s415 + $0x21] sm:$0xff]
        %v9013 = vld [vmem:[%s415 + $0x31] sm:$0xff]
        %v9014 = vld [vmem:[%s415 + $0x39] sm:$0xff]
        %v9015 = vld [vmem:[%s415 + $0x49] sm:$0xff]
        %v9016 = vld [vmem:[%s415 + $0x51] sm:$0xff]
        %v9017 = vld [vmem:[%s415 + $0x61] sm:$0xff]
        %v9018 = vld [vmem:[%s415 + $0x69] sm:$0xff]
        %v9019 = vld [vmem:[%s415 + $0x79] sm:$0xff]
        %v9020 = vld [vmem:[%s415 + $0x81] sm:$0xff]
        %v9021 = vld [vmem:[%s415 + $0x91] sm:$0xff]
        %v9022 = vld [vmem:[%s415 + $0x99] sm:$0xff]
        %v9023 = vld [vmem:[%s415 + $0xa9] sm:$0xff]
        %v9024 = vld [vmem:[%s415 + $0xb1] sm:$0xff]
        %v9025 = vld [vmem:[%s415 + $0xc1] sm:$0xff]
        %v9026 = vld [vmem:[%s415 + $0xc9] sm:$0xff]
        %v9027 = vld [vmem:[%s415 + $0xd9] sm:$0xff]
        %v9028 = vld [vmem:[%s415 + $0xe1] sm:$0xff]
        %v9029 = vld [vmem:[%s415 + $0xf1] sm:$0xff]
        %v9030 = vld [vmem:[%s415 + $0xf9] sm:$0xff]
        %v9031 = vld [vmem:[%s415 + $0x109] sm:$0xff]
        %v9032 = vld [vmem:[%s415 + $0x111] sm:$0xff]
        %v9033 = vld [vmem:[%s415 + $0x121] sm:$0xff]
        %v9034 = vld [vmem:[%s415 + $0x129] sm:$0xff]
        %v9035 = vld [vmem:[%s415 + $0x139] sm:$0xff]
        %v9036 = vld [vmem:[%s415 + $0x141] sm:$0xff]
        %v9037 = vld [vmem:[%s415 + $0x151] sm:$0xff]
        %v9038 = vld [vmem:[%s415 + $0x159] sm:$0xff]
        %v9039 = vld [vmem:[%s415 + $0x169] sm:$0xff]
        %v9040 = vld [vmem:[%s415 + $0x171] sm:$0xff]
        %s9041 = scalar_lea.vmem %s6, 256
        %v9042 = vld [vmem:[%s9041] sm:$0xff]
        %v9043 = vld [vmem:[%s9041 + $0x8] sm:$0xff]
        %v9044 = vld [vmem:[%s9041 + $0x10] sm:$0xff]
        %v9045 = vld [vmem:[%s9041 + $0x18] sm:$0xff]
        %v9046 = vld [vmem:[%s9041 + $0x20] sm:$0xff]
        %v9047 = vld [vmem:[%s9041 + $0x28] sm:$0xff]
        %v9048 = vld [vmem:[%s9041 + $0x30] sm:$0xff]
        %v9049 = vld [vmem:[%s9041 + $0x38] sm:$0xff]
        %v9051 = vsel %vm406, %v9009, 0
        %v9054 = vsel %vm406, %v9010, 0
        %v9057 = vsel %vm406, %v9011, 0
        %v9060 = vsel %vm406, %v9012, 0
        %v9063 = vsel %vm406, %v9013, 0
        %v9066 = vsel %vm406, %v9014, 0
        %v9069 = vsel %vm406, %v9015, 0
        %v9072 = vsel %vm406, %v9016, 0
        %v9075 = vsel %vm406, %v9017, 0
        %v9078 = vsel %vm406, %v9018, 0
        %v9081 = vsel %vm406, %v9019, 0
        %v9084 = vsel %vm406, %v9020, 0
        %v9087 = vsel %vm406, %v9021, 0
        %v9090 = vsel %vm406, %v9022, 0
        %v9093 = vsel %vm406, %v9023, 0
        %v9096 = vsel %vm406, %v9024, 0
        %v9099 = vsel %vm406, %v9025, 0
        %v9102 = vsel %vm406, %v9026, 0
        %v9105 = vsel %vm406, %v9027, 0
        %v9108 = vsel %vm406, %v9028, 0
        %v9111 = vsel %vm406, %v9029, 0
        %v9114 = vsel %vm406, %v9030, 0
        %v9117 = vsel %vm406, %v9031, 0
        %v9120 = vsel %vm406, %v9032, 0
        %v9123 = vsel %vm406, %v9033, 0
        %v9126 = vsel %vm406, %v9034, 0
        %v9129 = vsel %vm406, %v9035, 0
        %v9132 = vsel %vm406, %v9036, 0
        %v9135 = vsel %vm406, %v9037, 0
        %v9138 = vsel %vm406, %v9038, 0
        %v9141 = vsel %vm406, %v9039, 0
        %v9144 = vsel %vm406, %v9040, 0
        %9146 = vmatpush.msra.mxu0 0.0
        %9147 = vmatpush.msra.mxu0 0.0
        %9148 = vmatpush.msra.mxu0 0.0
        %9149 = vmatpush.msra.mxu0 0.0
        %9150 = vmatpush.msra.mxu0 0.0
        %9151 = vmatpush.msra.mxu0 0.0
        %9152 = vmatpush.msra.mxu0 0.0
        %9153 = vmatpush.msra.mxu0 0.0
        %9154 = vmatpush.msra.mxu0 %v9049
        %9155 = vmatpush.msra.mxu0 %v9048
        %9156 = vmatpush.msra.mxu0 %v9047
        %9157 = vmatpush.msra.mxu0 %v9046
        %9158 = vmatpush.msra.mxu0 %v9045
        %9159 = vmatpush.msra.mxu0 %v9044
        %9160 = vmatpush.msra.mxu0 %v9043
        %9161 = vmatpush.msra.mxu0 %v9042
        %9162 = vmatmul.f32.gmra.mxu0 %v9051
        %v9163 = vpop.f32.mrf.mxu0
        %v9164 = vadd.f32 0.0, %v9163
        %9165 = vmatmul.f32.gmra.mxu0 %v9054
        %v9166 = vpop.f32.mrf.mxu0
        %v9167 = vadd.f32 0.0, %v9166
        %9168 = vmatmul.f32.gmra.mxu0 %v9057
        %v9169 = vpop.f32.mrf.mxu0
        %v9170 = vadd.f32 0.0, %v9169
        %9171 = vmatmul.f32.gmra.mxu0 %v9060
        %v9172 = vpop.f32.mrf.mxu0
        %v9173 = vadd.f32 0.0, %v9172
        %9174 = vmatmul.f32.gmra.mxu0 %v9063
        %v9175 = vpop.f32.mrf.mxu0
        %v9176 = vadd.f32 0.0, %v9175
        %9177 = vmatmul.f32.gmra.mxu0 %v9066
        %v9178 = vpop.f32.mrf.mxu0
        %v9179 = vadd.f32 0.0, %v9178
        %9180 = vmatmul.f32.gmra.mxu0 %v9069
        %v9181 = vpop.f32.mrf.mxu0
        %v9182 = vadd.f32 0.0, %v9181
        %9183 = vmatmul.f32.gmra.mxu0 %v9072
        %v9184 = vpop.f32.mrf.mxu0
        %v9185 = vadd.f32 0.0, %v9184
        %9186 = vmatmul.f32.gmra.mxu0 %v9075
        %v9187 = vpop.f32.mrf.mxu0
        %v9188 = vadd.f32 0.0, %v9187
        %9189 = vmatmul.f32.gmra.mxu0 %v9078
        %v9190 = vpop.f32.mrf.mxu0
        %v9191 = vadd.f32 0.0, %v9190
        %9192 = vmatmul.f32.gmra.mxu0 %v9081
        %v9193 = vpop.f32.mrf.mxu0
        %v9194 = vadd.f32 0.0, %v9193
        %9195 = vmatmul.f32.gmra.mxu0 %v9084
        %v9196 = vpop.f32.mrf.mxu0
        %v9197 = vadd.f32 0.0, %v9196
        %9198 = vmatmul.f32.gmra.mxu0 %v9087
        %v9199 = vpop.f32.mrf.mxu0
        %v9200 = vadd.f32 0.0, %v9199
        %9201 = vmatmul.f32.gmra.mxu0 %v9090
        %v9202 = vpop.f32.mrf.mxu0
        %v9203 = vadd.f32 0.0, %v9202
        %9204 = vmatmul.f32.gmra.mxu0 %v9093
        %v9205 = vpop.f32.mrf.mxu0
        %v9206 = vadd.f32 0.0, %v9205
        %9207 = vmatmul.f32.gmra.mxu0 %v9096
        %v9208 = vpop.f32.mrf.mxu0
        %v9209 = vadd.f32 0.0, %v9208
        %9210 = vmatmul.f32.gmra.mxu0 %v9099
        %v9211 = vpop.f32.mrf.mxu0
        %v9212 = vadd.f32 0.0, %v9211
        %9213 = vmatmul.f32.gmra.mxu0 %v9102
        %v9214 = vpop.f32.mrf.mxu0
        %v9215 = vadd.f32 0.0, %v9214
        %9216 = vmatmul.f32.gmra.mxu0 %v9105
        %v9217 = vpop.f32.mrf.mxu0
        %v9218 = vadd.f32 0.0, %v9217
        %9219 = vmatmul.f32.gmra.mxu0 %v9108
        %v9220 = vpop.f32.mrf.mxu0
        %v9221 = vadd.f32 0.0, %v9220
        %9222 = vmatmul.f32.gmra.mxu0 %v9111
        %v9223 = vpop.f32.mrf.mxu0
        %v9224 = vadd.f32 0.0, %v9223
        %9225 = vmatmul.f32.gmra.mxu0 %v9114
        %v9226 = vpop.f32.mrf.mxu0
        %v9227 = vadd.f32 0.0, %v9226
        %9228 = vmatmul.f32.gmra.mxu0 %v9117
        %v9229 = vpop.f32.mrf.mxu0
        %v9230 = vadd.f32 0.0, %v9229
        %9231 = vmatmul.f32.gmra.mxu0 %v9120
        %v9232 = vpop.f32.mrf.mxu0
        %v9233 = vadd.f32 0.0, %v9232
        %9234 = vmatmul.f32.gmra.mxu0 %v9123
        %v9235 = vpop.f32.mrf.mxu0
        %v9236 = vadd.f32 0.0, %v9235
        %9237 = vmatmul.f32.gmra.mxu0 %v9126
        %v9238 = vpop.f32.mrf.mxu0
        %v9239 = vadd.f32 0.0, %v9238
        %9240 = vmatmul.f32.gmra.mxu0 %v9129
        %v9241 = vpop.f32.mrf.mxu0
        %v9242 = vadd.f32 0.0, %v9241
        %9243 = vmatmul.f32.gmra.mxu0 %v9132
        %v9244 = vpop.f32.mrf.mxu0
        %v9245 = vadd.f32 0.0, %v9244
        %9246 = vmatmul.f32.gmra.mxu0 %v9135
        %v9247 = vpop.f32.mrf.mxu0
        %v9248 = vadd.f32 0.0, %v9247
        %9249 = vmatmul.f32.gmra.mxu0 %v9138
        %v9250 = vpop.f32.mrf.mxu0
        %v9251 = vadd.f32 0.0, %v9250
        %9252 = vmatmul.f32.gmra.mxu0 %v9141
        %v9253 = vpop.f32.mrf.mxu0
        %v9254 = vadd.f32 0.0, %v9253
        %9255 = vmatmul.f32.gmra.mxu0 %v9144
        %v9256 = vpop.f32.mrf.mxu0
        %v9257 = vadd.f32 0.0, %v9256
        %9258 = vdwg.mxu0
        %v9259 = vadd.f32 %v8977, %v9164
        %v9260 = vadd.f32 %v8978, %v9167
        %v9261 = vadd.f32 %v8979, %v9170
        %v9262 = vadd.f32 %v8980, %v9173
        %v9263 = vadd.f32 %v8981, %v9176
        %v9264 = vadd.f32 %v8982, %v9179
        %v9265 = vadd.f32 %v8983, %v9182
        %v9266 = vadd.f32 %v8984, %v9185
        %v9267 = vadd.f32 %v8985, %v9188
        %v9268 = vadd.f32 %v8986, %v9191
        %v9269 = vadd.f32 %v8987, %v9194
        %v9270 = vadd.f32 %v8988, %v9197
        %v9271 = vadd.f32 %v8989, %v9200
        %v9272 = vadd.f32 %v8990, %v9203
        %v9273 = vadd.f32 %v8991, %v9206
        %v9274 = vadd.f32 %v8992, %v9209
        %v9275 = vadd.f32 %v8993, %v9212
        %v9276 = vadd.f32 %v8994, %v9215
        %v9277 = vadd.f32 %v8995, %v9218
        %v9278 = vadd.f32 %v8996, %v9221
        %v9279 = vadd.f32 %v8997, %v9224
        %v9280 = vadd.f32 %v8998, %v9227
        %v9281 = vadd.f32 %v8999, %v9230
        %v9282 = vadd.f32 %v9000, %v9233
        %v9283 = vadd.f32 %v9001, %v9236
        %v9284 = vadd.f32 %v9002, %v9239
        %v9285 = vadd.f32 %v9003, %v9242
        %v9286 = vadd.f32 %v9004, %v9245
        %v9287 = vadd.f32 %v9005, %v9248
        %v9288 = vadd.f32 %v9006, %v9251
        %v9289 = vadd.f32 %v9007, %v9254
        %v9290 = vadd.f32 %v9008, %v9257
        %v9291 = vld [vmem:[%s456 + $0x2] sm:$0xff]
        %v9292 = vld [vmem:[%s456 + $0xa] sm:$0xff]
        %v9293 = vld [vmem:[%s456 + $0x1a] sm:$0xff]
        %v9294 = vld [vmem:[%s456 + $0x22] sm:$0xff]
        %v9295 = vld [vmem:[%s456 + $0x32] sm:$0xff]
        %v9296 = vld [vmem:[%s456 + $0x3a] sm:$0xff]
        %v9297 = vld [vmem:[%s456 + $0x4a] sm:$0xff]
        %v9298 = vld [vmem:[%s456 + $0x52] sm:$0xff]
        %v9299 = vld [vmem:[%s456 + $0x62] sm:$0xff]
        %v9300 = vld [vmem:[%s456 + $0x6a] sm:$0xff]
        %v9301 = vld [vmem:[%s456 + $0x7a] sm:$0xff]
        %v9302 = vld [vmem:[%s456 + $0x82] sm:$0xff]
        %v9303 = vld [vmem:[%s456 + $0x92] sm:$0xff]
        %v9304 = vld [vmem:[%s456 + $0x9a] sm:$0xff]
        %v9305 = vld [vmem:[%s456 + $0xaa] sm:$0xff]
        %v9306 = vld [vmem:[%s456 + $0xb2] sm:$0xff]
        %v9307 = vld [vmem:[%s456 + $0xc2] sm:$0xff]
        %v9308 = vld [vmem:[%s456 + $0xca] sm:$0xff]
        %v9309 = vld [vmem:[%s456 + $0xda] sm:$0xff]
        %v9310 = vld [vmem:[%s456 + $0xe2] sm:$0xff]
        %v9311 = vld [vmem:[%s456 + $0xf2] sm:$0xff]
        %v9312 = vld [vmem:[%s456 + $0xfa] sm:$0xff]
        %v9313 = vld [vmem:[%s456 + $0x10a] sm:$0xff]
        %v9314 = vld [vmem:[%s456 + $0x112] sm:$0xff]
        %v9315 = vld [vmem:[%s456 + $0x122] sm:$0xff]
        %v9316 = vld [vmem:[%s456 + $0x12a] sm:$0xff]
        %v9317 = vld [vmem:[%s456 + $0x13a] sm:$0xff]
        %v9318 = vld [vmem:[%s456 + $0x142] sm:$0xff]
        %v9319 = vld [vmem:[%s456 + $0x152] sm:$0xff]
        %v9320 = vld [vmem:[%s456 + $0x15a] sm:$0xff]
        %v9321 = vld [vmem:[%s456 + $0x16a] sm:$0xff]
        %v9322 = vld [vmem:[%s456 + $0x172] sm:$0xff]
        %s9323 = scalar_lea.vmem [#allocation8], 160
        %v9324 = vld [vmem:[%s9323] sm:$0xff]
        %v9325 = vld [vmem:[%s9323 + $0x8] sm:$0xff]
        %v9326 = vld [vmem:[%s9323 + $0x10] sm:$0xff]
        %v9327 = vld [vmem:[%s9323 + $0x18] sm:$0xff]
        %v9329 = vsel %vm363, %v9291, 0
        %v9332 = vsel %vm363, %v9292, 0
        %v9335 = vsel %vm363, %v9293, 0
        %v9338 = vsel %vm363, %v9294, 0
        %v9341 = vsel %vm363, %v9295, 0
        %v9344 = vsel %vm363, %v9296, 0
        %v9347 = vsel %vm363, %v9297, 0
        %v9350 = vsel %vm363, %v9298, 0
        %v9353 = vsel %vm363, %v9299, 0
        %v9356 = vsel %vm363, %v9300, 0
        %v9359 = vsel %vm363, %v9301, 0
        %v9362 = vsel %vm363, %v9302, 0
        %v9365 = vsel %vm363, %v9303, 0
        %v9368 = vsel %vm363, %v9304, 0
        %v9371 = vsel %vm363, %v9305, 0
        %v9374 = vsel %vm363, %v9306, 0
        %v9377 = vsel %vm363, %v9307, 0
        %v9380 = vsel %vm363, %v9308, 0
        %v9383 = vsel %vm363, %v9309, 0
        %v9386 = vsel %vm363, %v9310, 0
        %v9389 = vsel %vm363, %v9311, 0
        %v9392 = vsel %vm363, %v9312, 0
        %v9395 = vsel %vm363, %v9313, 0
        %v9398 = vsel %vm363, %v9314, 0
        %v9401 = vsel %vm363, %v9315, 0
        %v9404 = vsel %vm363, %v9316, 0
        %v9407 = vsel %vm363, %v9317, 0
        %v9410 = vsel %vm363, %v9318, 0
        %v9413 = vsel %vm363, %v9319, 0
        %v9416 = vsel %vm363, %v9320, 0
        %v9419 = vsel %vm363, %v9321, 0
        %v9422 = vsel %vm363, %v9322, 0
        %9424 = vmatpush.msra.mxu0 0.0
        %9425 = vmatpush.msra.mxu0 0.0
        %9426 = vmatpush.msra.mxu0 0.0
        %9427 = vmatpush.msra.mxu0 0.0
        %9428 = vmatpush.msra.mxu0 0.0
        %9429 = vmatpush.msra.mxu0 0.0
        %9430 = vmatpush.msra.mxu0 0.0
        %9431 = vmatpush.msra.mxu0 0.0
        %9432 = vmatpush.msra.mxu0 0.0
        %9433 = vmatpush.msra.mxu0 0.0
        %9434 = vmatpush.msra.mxu0 0.0
        %9435 = vmatpush.msra.mxu0 0.0
        %9436 = vmatpush.msra.mxu0 %v9327
        %9437 = vmatpush.msra.mxu0 %v9326
        %9438 = vmatpush.msra.mxu0 %v9325
        %9439 = vmatpush.msra.mxu0 %v9324
        %9440 = vmatmul.f32.gmra.mxu0 %v9329
        %v9441 = vpop.f32.mrf.mxu0
        %v9442 = vadd.f32 0.0, %v9441
        %9443 = vmatmul.f32.gmra.mxu0 %v9332
        %v9444 = vpop.f32.mrf.mxu0
        %v9445 = vadd.f32 0.0, %v9444
        %9446 = vmatmul.f32.gmra.mxu0 %v9335
        %v9447 = vpop.f32.mrf.mxu0
        %v9448 = vadd.f32 0.0, %v9447
        %9449 = vmatmul.f32.gmra.mxu0 %v9338
        %v9450 = vpop.f32.mrf.mxu0
        %v9451 = vadd.f32 0.0, %v9450
        %9452 = vmatmul.f32.gmra.mxu0 %v9341
        %v9453 = vpop.f32.mrf.mxu0
        %v9454 = vadd.f32 0.0, %v9453
        %9455 = vmatmul.f32.gmra.mxu0 %v9344
        %v9456 = vpop.f32.mrf.mxu0
        %v9457 = vadd.f32 0.0, %v9456
        %9458 = vmatmul.f32.gmra.mxu0 %v9347
        %v9459 = vpop.f32.mrf.mxu0
        %v9460 = vadd.f32 0.0, %v9459
        %9461 = vmatmul.f32.gmra.mxu0 %v9350
        %v9462 = vpop.f32.mrf.mxu0
        %v9463 = vadd.f32 0.0, %v9462
        %9464 = vmatmul.f32.gmra.mxu0 %v9353
        %v9465 = vpop.f32.mrf.mxu0
        %v9466 = vadd.f32 0.0, %v9465
        %9467 = vmatmul.f32.gmra.mxu0 %v9356
        %v9468 = vpop.f32.mrf.mxu0
        %v9469 = vadd.f32 0.0, %v9468
        %9470 = vmatmul.f32.gmra.mxu0 %v9359
        %v9471 = vpop.f32.mrf.mxu0
        %v9472 = vadd.f32 0.0, %v9471
        %9473 = vmatmul.f32.gmra.mxu0 %v9362
        %v9474 = vpop.f32.mrf.mxu0
        %v9475 = vadd.f32 0.0, %v9474
        %9476 = vmatmul.f32.gmra.mxu0 %v9365
        %v9477 = vpop.f32.mrf.mxu0
        %v9478 = vadd.f32 0.0, %v9477
        %9479 = vmatmul.f32.gmra.mxu0 %v9368
        %v9480 = vpop.f32.mrf.mxu0
        %v9481 = vadd.f32 0.0, %v9480
        %9482 = vmatmul.f32.gmra.mxu0 %v9371
        %v9483 = vpop.f32.mrf.mxu0
        %v9484 = vadd.f32 0.0, %v9483
        %9485 = vmatmul.f32.gmra.mxu0 %v9374
        %v9486 = vpop.f32.mrf.mxu0
        %v9487 = vadd.f32 0.0, %v9486
        %9488 = vmatmul.f32.gmra.mxu0 %v9377
        %v9489 = vpop.f32.mrf.mxu0
        %v9490 = vadd.f32 0.0, %v9489
        %9491 = vmatmul.f32.gmra.mxu0 %v9380
        %v9492 = vpop.f32.mrf.mxu0
        %v9493 = vadd.f32 0.0, %v9492
        %9494 = vmatmul.f32.gmra.mxu0 %v9383
        %v9495 = vpop.f32.mrf.mxu0
        %v9496 = vadd.f32 0.0, %v9495
        %9497 = vmatmul.f32.gmra.mxu0 %v9386
        %v9498 = vpop.f32.mrf.mxu0
        %v9499 = vadd.f32 0.0, %v9498
        %9500 = vmatmul.f32.gmra.mxu0 %v9389
        %v9501 = vpop.f32.mrf.mxu0
        %v9502 = vadd.f32 0.0, %v9501
        %9503 = vmatmul.f32.gmra.mxu0 %v9392
        %v9504 = vpop.f32.mrf.mxu0
        %v9505 = vadd.f32 0.0, %v9504
        %9506 = vmatmul.f32.gmra.mxu0 %v9395
        %v9507 = vpop.f32.mrf.mxu0
        %v9508 = vadd.f32 0.0, %v9507
        %9509 = vmatmul.f32.gmra.mxu0 %v9398
        %v9510 = vpop.f32.mrf.mxu0
        %v9511 = vadd.f32 0.0, %v9510
        %9512 = vmatmul.f32.gmra.mxu0 %v9401
        %v9513 = vpop.f32.mrf.mxu0
        %v9514 = vadd.f32 0.0, %v9513
        %9515 = vmatmul.f32.gmra.mxu0 %v9404
        %v9516 = vpop.f32.mrf.mxu0
        %v9517 = vadd.f32 0.0, %v9516
        %9518 = vmatmul.f32.gmra.mxu0 %v9407
        %v9519 = vpop.f32.mrf.mxu0
        %v9520 = vadd.f32 0.0, %v9519
        %9521 = vmatmul.f32.gmra.mxu0 %v9410
        %v9522 = vpop.f32.mrf.mxu0
        %v9523 = vadd.f32 0.0, %v9522
        %9524 = vmatmul.f32.gmra.mxu0 %v9413
        %v9525 = vpop.f32.mrf.mxu0
        %v9526 = vadd.f32 0.0, %v9525
        %9527 = vmatmul.f32.gmra.mxu0 %v9416
        %v9528 = vpop.f32.mrf.mxu0
        %v9529 = vadd.f32 0.0, %v9528
        %9530 = vmatmul.f32.gmra.mxu0 %v9419
        %v9531 = vpop.f32.mrf.mxu0
        %v9532 = vadd.f32 0.0, %v9531
        %9533 = vmatmul.f32.gmra.mxu0 %v9422
        %v9534 = vpop.f32.mrf.mxu0
        %v9535 = vadd.f32 0.0, %v9534
        %9536 = vdwg.mxu0
        %v9537 = vadd.f32 %v9259, %v9442
        %v9538 = vadd.f32 %v9260, %v9445
        %v9539 = vadd.f32 %v9261, %v9448
        %v9540 = vadd.f32 %v9262, %v9451
        %v9541 = vadd.f32 %v9263, %v9454
        %v9542 = vadd.f32 %v9264, %v9457
        %v9543 = vadd.f32 %v9265, %v9460
        %v9544 = vadd.f32 %v9266, %v9463
        %v9545 = vadd.f32 %v9267, %v9466
        %v9546 = vadd.f32 %v9268, %v9469
        %v9547 = vadd.f32 %v9269, %v9472
        %v9548 = vadd.f32 %v9270, %v9475
        %v9549 = vadd.f32 %v9271, %v9478
        %v9550 = vadd.f32 %v9272, %v9481
        %v9551 = vadd.f32 %v9273, %v9484
        %v9552 = vadd.f32 %v9274, %v9487
        %v9553 = vadd.f32 %v9275, %v9490
        %v9554 = vadd.f32 %v9276, %v9493
        %v9555 = vadd.f32 %v9277, %v9496
        %v9556 = vadd.f32 %v9278, %v9499
        %v9557 = vadd.f32 %v9279, %v9502
        %v9558 = vadd.f32 %v9280, %v9505
        %v9559 = vadd.f32 %v9281, %v9508
        %v9560 = vadd.f32 %v9282, %v9511
        %v9561 = vadd.f32 %v9283, %v9514
        %v9562 = vadd.f32 %v9284, %v9517
        %v9563 = vadd.f32 %v9285, %v9520
        %v9564 = vadd.f32 %v9286, %v9523
        %v9565 = vadd.f32 %v9287, %v9526
        %v9566 = vadd.f32 %v9288, %v9529
        %v9567 = vadd.f32 %v9289, %v9532
        %v9568 = vadd.f32 %v9290, %v9535
        %v9569 = vld [vmem:[%s415 + $0x2] sm:$0xff]
        %v9570 = vld [vmem:[%s415 + $0xa] sm:$0xff]
        %v9571 = vld [vmem:[%s415 + $0x1a] sm:$0xff]
        %v9572 = vld [vmem:[%s415 + $0x22] sm:$0xff]
        %v9573 = vld [vmem:[%s415 + $0x32] sm:$0xff]
        %v9574 = vld [vmem:[%s415 + $0x3a] sm:$0xff]
        %v9575 = vld [vmem:[%s415 + $0x4a] sm:$0xff]
        %v9576 = vld [vmem:[%s415 + $0x52] sm:$0xff]
        %v9577 = vld [vmem:[%s415 + $0x62] sm:$0xff]
        %v9578 = vld [vmem:[%s415 + $0x6a] sm:$0xff]
        %v9579 = vld [vmem:[%s415 + $0x7a] sm:$0xff]
        %v9580 = vld [vmem:[%s415 + $0x82] sm:$0xff]
        %v9581 = vld [vmem:[%s415 + $0x92] sm:$0xff]
        %v9582 = vld [vmem:[%s415 + $0x9a] sm:$0xff]
        %v9583 = vld [vmem:[%s415 + $0xaa] sm:$0xff]
        %v9584 = vld [vmem:[%s415 + $0xb2] sm:$0xff]
        %v9585 = vld [vmem:[%s415 + $0xc2] sm:$0xff]
        %v9586 = vld [vmem:[%s415 + $0xca] sm:$0xff]
        %v9587 = vld [vmem:[%s415 + $0xda] sm:$0xff]
        %v9588 = vld [vmem:[%s415 + $0xe2] sm:$0xff]
        %v9589 = vld [vmem:[%s415 + $0xf2] sm:$0xff]
        %v9590 = vld [vmem:[%s415 + $0xfa] sm:$0xff]
        %v9591 = vld [vmem:[%s415 + $0x10a] sm:$0xff]
        %v9592 = vld [vmem:[%s415 + $0x112] sm:$0xff]
        %v9593 = vld [vmem:[%s415 + $0x122] sm:$0xff]
        %v9594 = vld [vmem:[%s415 + $0x12a] sm:$0xff]
        %v9595 = vld [vmem:[%s415 + $0x13a] sm:$0xff]
        %v9596 = vld [vmem:[%s415 + $0x142] sm:$0xff]
        %v9597 = vld [vmem:[%s415 + $0x152] sm:$0xff]
        %v9598 = vld [vmem:[%s415 + $0x15a] sm:$0xff]
        %v9599 = vld [vmem:[%s415 + $0x16a] sm:$0xff]
        %v9600 = vld [vmem:[%s415 + $0x172] sm:$0xff]
        %s9601 = scalar_lea.vmem %s6, 320
        %v9602 = vld [vmem:[%s9601] sm:$0xff]
        %v9603 = vld [vmem:[%s9601 + $0x8] sm:$0xff]
        %v9604 = vld [vmem:[%s9601 + $0x10] sm:$0xff]
        %v9605 = vld [vmem:[%s9601 + $0x18] sm:$0xff]
        %v9606 = vld [vmem:[%s9601 + $0x20] sm:$0xff]
        %v9607 = vld [vmem:[%s9601 + $0x28] sm:$0xff]
        %v9608 = vld [vmem:[%s9601 + $0x30] sm:$0xff]
        %v9609 = vld [vmem:[%s9601 + $0x38] sm:$0xff]
        %v9611 = vsel %vm406, %v9569, 0
        %v9614 = vsel %vm406, %v9570, 0
        %v9617 = vsel %vm406, %v9571, 0
        %v9620 = vsel %vm406, %v9572, 0
        %v9623 = vsel %vm406, %v9573, 0
        %v9626 = vsel %vm406, %v9574, 0
        %v9629 = vsel %vm406, %v9575, 0
        %v9632 = vsel %vm406, %v9576, 0
        %v9635 = vsel %vm406, %v9577, 0
        %v9638 = vsel %vm406, %v9578, 0
        %v9641 = vsel %vm406, %v9579, 0
        %v9644 = vsel %vm406, %v9580, 0
        %v9647 = vsel %vm406, %v9581, 0
        %v9650 = vsel %vm406, %v9582, 0
        %v9653 = vsel %vm406, %v9583, 0
        %v9656 = vsel %vm406, %v9584, 0
        %v9659 = vsel %vm406, %v9585, 0
        %v9662 = vsel %vm406, %v9586, 0
        %v9665 = vsel %vm406, %v9587, 0
        %v9668 = vsel %vm406, %v9588, 0
        %v9671 = vsel %vm406, %v9589, 0
        %v9674 = vsel %vm406, %v9590, 0
        %v9677 = vsel %vm406, %v9591, 0
        %v9680 = vsel %vm406, %v9592, 0
        %v9683 = vsel %vm406, %v9593, 0
        %v9686 = vsel %vm406, %v9594, 0
        %v9689 = vsel %vm406, %v9595, 0
        %v9692 = vsel %vm406, %v9596, 0
        %v9695 = vsel %vm406, %v9597, 0
        %v9698 = vsel %vm406, %v9598, 0
        %v9701 = vsel %vm406, %v9599, 0
        %v9704 = vsel %vm406, %v9600, 0
        %9706 = vmatpush.msra.mxu0 0.0
        %9707 = vmatpush.msra.mxu0 0.0
        %9708 = vmatpush.msra.mxu0 0.0
        %9709 = vmatpush.msra.mxu0 0.0
        %9710 = vmatpush.msra.mxu0 0.0
        %9711 = vmatpush.msra.mxu0 0.0
        %9712 = vmatpush.msra.mxu0 0.0
        %9713 = vmatpush.msra.mxu0 0.0
        %9714 = vmatpush.msra.mxu0 %v9609
        %9715 = vmatpush.msra.mxu0 %v9608
        %9716 = vmatpush.msra.mxu0 %v9607
        %9717 = vmatpush.msra.mxu0 %v9606
        %9718 = vmatpush.msra.mxu0 %v9605
        %9719 = vmatpush.msra.mxu0 %v9604
        %9720 = vmatpush.msra.mxu0 %v9603
        %9721 = vmatpush.msra.mxu0 %v9602
        %9722 = vmatmul.f32.gmra.mxu0 %v9611
        %v9723 = vpop.f32.mrf.mxu0
        %v9724 = vadd.f32 0.0, %v9723
        %9725 = vmatmul.f32.gmra.mxu0 %v9614
        %v9726 = vpop.f32.mrf.mxu0
        %v9727 = vadd.f32 0.0, %v9726
        %9728 = vmatmul.f32.gmra.mxu0 %v9617
        %v9729 = vpop.f32.mrf.mxu0
        %v9730 = vadd.f32 0.0, %v9729
        %9731 = vmatmul.f32.gmra.mxu0 %v9620
        %v9732 = vpop.f32.mrf.mxu0
        %v9733 = vadd.f32 0.0, %v9732
        %9734 = vmatmul.f32.gmra.mxu0 %v9623
        %v9735 = vpop.f32.mrf.mxu0
        %v9736 = vadd.f32 0.0, %v9735
        %9737 = vmatmul.f32.gmra.mxu0 %v9626
        %v9738 = vpop.f32.mrf.mxu0
        %v9739 = vadd.f32 0.0, %v9738
        %9740 = vmatmul.f32.gmra.mxu0 %v9629
        %v9741 = vpop.f32.mrf.mxu0
        %v9742 = vadd.f32 0.0, %v9741
        %9743 = vmatmul.f32.gmra.mxu0 %v9632
        %v9744 = vpop.f32.mrf.mxu0
        %v9745 = vadd.f32 0.0, %v9744
        %9746 = vmatmul.f32.gmra.mxu0 %v9635
        %v9747 = vpop.f32.mrf.mxu0
        %v9748 = vadd.f32 0.0, %v9747
        %9749 = vmatmul.f32.gmra.mxu0 %v9638
        %v9750 = vpop.f32.mrf.mxu0
        %v9751 = vadd.f32 0.0, %v9750
        %9752 = vmatmul.f32.gmra.mxu0 %v9641
        %v9753 = vpop.f32.mrf.mxu0
        %v9754 = vadd.f32 0.0, %v9753
        %9755 = vmatmul.f32.gmra.mxu0 %v9644
        %v9756 = vpop.f32.mrf.mxu0
        %v9757 = vadd.f32 0.0, %v9756
        %9758 = vmatmul.f32.gmra.mxu0 %v9647
        %v9759 = vpop.f32.mrf.mxu0
        %v9760 = vadd.f32 0.0, %v9759
        %9761 = vmatmul.f32.gmra.mxu0 %v9650
        %v9762 = vpop.f32.mrf.mxu0
        %v9763 = vadd.f32 0.0, %v9762
        %9764 = vmatmul.f32.gmra.mxu0 %v9653
        %v9765 = vpop.f32.mrf.mxu0
        %v9766 = vadd.f32 0.0, %v9765
        %9767 = vmatmul.f32.gmra.mxu0 %v9656
        %v9768 = vpop.f32.mrf.mxu0
        %v9769 = vadd.f32 0.0, %v9768
        %9770 = vmatmul.f32.gmra.mxu0 %v9659
        %v9771 = vpop.f32.mrf.mxu0
        %v9772 = vadd.f32 0.0, %v9771
        %9773 = vmatmul.f32.gmra.mxu0 %v9662
        %v9774 = vpop.f32.mrf.mxu0
        %v9775 = vadd.f32 0.0, %v9774
        %9776 = vmatmul.f32.gmra.mxu0 %v9665
        %v9777 = vpop.f32.mrf.mxu0
        %v9778 = vadd.f32 0.0, %v9777
        %9779 = vmatmul.f32.gmra.mxu0 %v9668
        %v9780 = vpop.f32.mrf.mxu0
        %v9781 = vadd.f32 0.0, %v9780
        %9782 = vmatmul.f32.gmra.mxu0 %v9671
        %v9783 = vpop.f32.mrf.mxu0
        %v9784 = vadd.f32 0.0, %v9783
        %9785 = vmatmul.f32.gmra.mxu0 %v9674
        %v9786 = vpop.f32.mrf.mxu0
        %v9787 = vadd.f32 0.0, %v9786
        %9788 = vmatmul.f32.gmra.mxu0 %v9677
        %v9789 = vpop.f32.mrf.mxu0
        %v9790 = vadd.f32 0.0, %v9789
        %9791 = vmatmul.f32.gmra.mxu0 %v9680
        %v9792 = vpop.f32.mrf.mxu0
        %v9793 = vadd.f32 0.0, %v9792
        %9794 = vmatmul.f32.gmra.mxu0 %v9683
        %v9795 = vpop.f32.mrf.mxu0
        %v9796 = vadd.f32 0.0, %v9795
        %9797 = vmatmul.f32.gmra.mxu0 %v9686
        %v9798 = vpop.f32.mrf.mxu0
        %v9799 = vadd.f32 0.0, %v9798
        %9800 = vmatmul.f32.gmra.mxu0 %v9689
        %v9801 = vpop.f32.mrf.mxu0
        %v9802 = vadd.f32 0.0, %v9801
        %9803 = vmatmul.f32.gmra.mxu0 %v9692
        %v9804 = vpop.f32.mrf.mxu0
        %v9805 = vadd.f32 0.0, %v9804
        %9806 = vmatmul.f32.gmra.mxu0 %v9695
        %v9807 = vpop.f32.mrf.mxu0
        %v9808 = vadd.f32 0.0, %v9807
        %9809 = vmatmul.f32.gmra.mxu0 %v9698
        %v9810 = vpop.f32.mrf.mxu0
        %v9811 = vadd.f32 0.0, %v9810
        %9812 = vmatmul.f32.gmra.mxu0 %v9701
        %v9813 = vpop.f32.mrf.mxu0
        %v9814 = vadd.f32 0.0, %v9813
        %9815 = vmatmul.f32.gmra.mxu0 %v9704
        %v9816 = vpop.f32.mrf.mxu0
        %v9817 = vadd.f32 0.0, %v9816
        %9818 = vdwg.mxu0
        %v9819 = vadd.f32 %v9537, %v9724
        %v9820 = vadd.f32 %v9538, %v9727
        %v9821 = vadd.f32 %v9539, %v9730
        %v9822 = vadd.f32 %v9540, %v9733
        %v9823 = vadd.f32 %v9541, %v9736
        %v9824 = vadd.f32 %v9542, %v9739
        %v9825 = vadd.f32 %v9543, %v9742
        %v9826 = vadd.f32 %v9544, %v9745
        %v9827 = vadd.f32 %v9545, %v9748
        %v9828 = vadd.f32 %v9546, %v9751
        %v9829 = vadd.f32 %v9547, %v9754
        %v9830 = vadd.f32 %v9548, %v9757
        %v9831 = vadd.f32 %v9549, %v9760
        %v9832 = vadd.f32 %v9550, %v9763
        %v9833 = vadd.f32 %v9551, %v9766
        %v9834 = vadd.f32 %v9552, %v9769
        %v9835 = vadd.f32 %v9553, %v9772
        %v9836 = vadd.f32 %v9554, %v9775
        %v9837 = vadd.f32 %v9555, %v9778
        %v9838 = vadd.f32 %v9556, %v9781
        %v9839 = vadd.f32 %v9557, %v9784
        %v9840 = vadd.f32 %v9558, %v9787
        %v9841 = vadd.f32 %v9559, %v9790
        %v9842 = vadd.f32 %v9560, %v9793
        %v9843 = vadd.f32 %v9561, %v9796
        %v9844 = vadd.f32 %v9562, %v9799
        %v9845 = vadd.f32 %v9563, %v9802
        %v9846 = vadd.f32 %v9564, %v9805
        %v9847 = vadd.f32 %v9565, %v9808
        %v9848 = vadd.f32 %v9566, %v9811
        %v9849 = vadd.f32 %v9567, %v9814
        %v9850 = vadd.f32 %v9568, %v9817
        %s9851 = scalar_lea.vmem [#allocation4], 48
        %v9852 = vld [vmem:[%s9851] sm:$0xff]
        %v9853 = vld [vmem:[%s9851 + $0x8] sm:$0xff]
        %v9854 = vld [vmem:[%s9851 + $0x18] sm:$0xff]
        %v9855 = vld [vmem:[%s9851 + $0x20] sm:$0xff]
        %v9856 = vld [vmem:[%s9851 + $0x30] sm:$0xff]
        %v9857 = vld [vmem:[%s9851 + $0x38] sm:$0xff]
        %v9858 = vld [vmem:[%s9851 + $0x48] sm:$0xff]
        %v9859 = vld [vmem:[%s9851 + $0x50] sm:$0xff]
        %v9860 = vld [vmem:[%s9851 + $0x60] sm:$0xff]
        %v9861 = vld [vmem:[%s9851 + $0x68] sm:$0xff]
        %v9862 = vld [vmem:[%s9851 + $0x78] sm:$0xff]
        %v9863 = vld [vmem:[%s9851 + $0x80] sm:$0xff]
        %v9864 = vld [vmem:[%s9851 + $0x90] sm:$0xff]
        %v9865 = vld [vmem:[%s9851 + $0x98] sm:$0xff]
        %v9866 = vld [vmem:[%s9851 + $0xa8] sm:$0xff]
        %v9867 = vld [vmem:[%s9851 + $0xb0] sm:$0xff]
        %v9868 = vld [vmem:[%s9851 + $0xc0] sm:$0xff]
        %v9869 = vld [vmem:[%s9851 + $0xc8] sm:$0xff]
        %v9870 = vld [vmem:[%s9851 + $0xd8] sm:$0xff]
        %v9871 = vld [vmem:[%s9851 + $0xe0] sm:$0xff]
        %v9872 = vld [vmem:[%s9851 + $0xf0] sm:$0xff]
        %v9873 = vld [vmem:[%s9851 + $0xf8] sm:$0xff]
        %v9874 = vld [vmem:[%s9851 + $0x108] sm:$0xff]
        %v9875 = vld [vmem:[%s9851 + $0x110] sm:$0xff]
        %v9876 = vld [vmem:[%s9851 + $0x120] sm:$0xff]
        %v9877 = vld [vmem:[%s9851 + $0x128] sm:$0xff]
        %v9878 = vld [vmem:[%s9851 + $0x138] sm:$0xff]
        %v9879 = vld [vmem:[%s9851 + $0x140] sm:$0xff]
        %v9880 = vld [vmem:[%s9851 + $0x150] sm:$0xff]
        %v9881 = vld [vmem:[%s9851 + $0x158] sm:$0xff]
        %v9882 = vld [vmem:[%s9851 + $0x168] sm:$0xff]
        %v9883 = vld [vmem:[%s9851 + $0x170] sm:$0xff]
        %s9884 = scalar_lea.vmem [#allocation8], 192
        %v9885 = vld [vmem:[%s9884] sm:$0xff]
        %v9886 = vld [vmem:[%s9884 + $0x8] sm:$0xff]
        %v9887 = vld [vmem:[%s9884 + $0x10] sm:$0xff]
        %v9888 = vld [vmem:[%s9884 + $0x18] sm:$0xff]
        %v9890 = vsel %vm363, %v9852, 0
        %v9893 = vsel %vm363, %v9853, 0
        %v9896 = vsel %vm363, %v9854, 0
        %v9899 = vsel %vm363, %v9855, 0
        %v9902 = vsel %vm363, %v9856, 0
        %v9905 = vsel %vm363, %v9857, 0
        %v9908 = vsel %vm363, %v9858, 0
        %v9911 = vsel %vm363, %v9859, 0
        %v9914 = vsel %vm363, %v9860, 0
        %v9917 = vsel %vm363, %v9861, 0
        %v9920 = vsel %vm363, %v9862, 0
        %v9923 = vsel %vm363, %v9863, 0
        %v9926 = vsel %vm363, %v9864, 0
        %v9929 = vsel %vm363, %v9865, 0
        %v9932 = vsel %vm363, %v9866, 0
        %v9935 = vsel %vm363, %v9867, 0
        %v9938 = vsel %vm363, %v9868, 0
        %v9941 = vsel %vm363, %v9869, 0
        %v9944 = vsel %vm363, %v9870, 0
        %v9947 = vsel %vm363, %v9871, 0
        %v9950 = vsel %vm363, %v9872, 0
        %v9953 = vsel %vm363, %v9873, 0
        %v9956 = vsel %vm363, %v9874, 0
        %v9959 = vsel %vm363, %v9875, 0
        %v9962 = vsel %vm363, %v9876, 0
        %v9965 = vsel %vm363, %v9877, 0
        %v9968 = vsel %vm363, %v9878, 0
        %v9971 = vsel %vm363, %v9879, 0
        %v9974 = vsel %vm363, %v9880, 0
        %v9977 = vsel %vm363, %v9881, 0
        %v9980 = vsel %vm363, %v9882, 0
        %v9983 = vsel %vm363, %v9883, 0
        %9985 = vmatpush.msra.mxu0 0.0
        %9986 = vmatpush.msra.mxu0 0.0
        %9987 = vmatpush.msra.mxu0 0.0
        %9988 = vmatpush.msra.mxu0 0.0
        %9989 = vmatpush.msra.mxu0 0.0
        %9990 = vmatpush.msra.mxu0 0.0
        %9991 = vmatpush.msra.mxu0 0.0
        %9992 = vmatpush.msra.mxu0 0.0
        %9993 = vmatpush.msra.mxu0 0.0
        %9994 = vmatpush.msra.mxu0 0.0
        %9995 = vmatpush.msra.mxu0 0.0
        %9996 = vmatpush.msra.mxu0 0.0
        %9997 = vmatpush.msra.mxu0 %v9888
        %9998 = vmatpush.msra.mxu0 %v9887
        %9999 = vmatpush.msra.mxu0 %v9886
        %10000 = vmatpush.msra.mxu0 %v9885
        %10001 = vmatmul.f32.gmra.mxu0 %v9890
        %v10002 = vpop.f32.mrf.mxu0
        %v10003 = vadd.f32 0.0, %v10002
        %10004 = vmatmul.f32.gmra.mxu0 %v9893
        %v10005 = vpop.f32.mrf.mxu0
        %v10006 = vadd.f32 0.0, %v10005
        %10007 = vmatmul.f32.gmra.mxu0 %v9896
        %v10008 = vpop.f32.mrf.mxu0
        %v10009 = vadd.f32 0.0, %v10008
        %10010 = vmatmul.f32.gmra.mxu0 %v9899
        %v10011 = vpop.f32.mrf.mxu0
        %v10012 = vadd.f32 0.0, %v10011
        %10013 = vmatmul.f32.gmra.mxu0 %v9902
        %v10014 = vpop.f32.mrf.mxu0
        %v10015 = vadd.f32 0.0, %v10014
        %10016 = vmatmul.f32.gmra.mxu0 %v9905
        %v10017 = vpop.f32.mrf.mxu0
        %v10018 = vadd.f32 0.0, %v10017
        %10019 = vmatmul.f32.gmra.mxu0 %v9908
        %v10020 = vpop.f32.mrf.mxu0
        %v10021 = vadd.f32 0.0, %v10020
        %10022 = vmatmul.f32.gmra.mxu0 %v9911
        %v10023 = vpop.f32.mrf.mxu0
        %v10024 = vadd.f32 0.0, %v10023
        %10025 = vmatmul.f32.gmra.mxu0 %v9914
        %v10026 = vpop.f32.mrf.mxu0
        %v10027 = vadd.f32 0.0, %v10026
        %10028 = vmatmul.f32.gmra.mxu0 %v9917
        %v10029 = vpop.f32.mrf.mxu0
        %v10030 = vadd.f32 0.0, %v10029
        %10031 = vmatmul.f32.gmra.mxu0 %v9920
        %v10032 = vpop.f32.mrf.mxu0
        %v10033 = vadd.f32 0.0, %v10032
        %10034 = vmatmul.f32.gmra.mxu0 %v9923
        %v10035 = vpop.f32.mrf.mxu0
        %v10036 = vadd.f32 0.0, %v10035
        %10037 = vmatmul.f32.gmra.mxu0 %v9926
        %v10038 = vpop.f32.mrf.mxu0
        %v10039 = vadd.f32 0.0, %v10038
        %10040 = vmatmul.f32.gmra.mxu0 %v9929
        %v10041 = vpop.f32.mrf.mxu0
        %v10042 = vadd.f32 0.0, %v10041
        %10043 = vmatmul.f32.gmra.mxu0 %v9932
        %v10044 = vpop.f32.mrf.mxu0
        %v10045 = vadd.f32 0.0, %v10044
        %10046 = vmatmul.f32.gmra.mxu0 %v9935
        %v10047 = vpop.f32.mrf.mxu0
        %v10048 = vadd.f32 0.0, %v10047
        %10049 = vmatmul.f32.gmra.mxu0 %v9938
        %v10050 = vpop.f32.mrf.mxu0
        %v10051 = vadd.f32 0.0, %v10050
        %10052 = vmatmul.f32.gmra.mxu0 %v9941
        %v10053 = vpop.f32.mrf.mxu0
        %v10054 = vadd.f32 0.0, %v10053
        %10055 = vmatmul.f32.gmra.mxu0 %v9944
        %v10056 = vpop.f32.mrf.mxu0
        %v10057 = vadd.f32 0.0, %v10056
        %10058 = vmatmul.f32.gmra.mxu0 %v9947
        %v10059 = vpop.f32.mrf.mxu0
        %v10060 = vadd.f32 0.0, %v10059
        %10061 = vmatmul.f32.gmra.mxu0 %v9950
        %v10062 = vpop.f32.mrf.mxu0
        %v10063 = vadd.f32 0.0, %v10062
        %10064 = vmatmul.f32.gmra.mxu0 %v9953
        %v10065 = vpop.f32.mrf.mxu0
        %v10066 = vadd.f32 0.0, %v10065
        %10067 = vmatmul.f32.gmra.mxu0 %v9956
        %v10068 = vpop.f32.mrf.mxu0
        %v10069 = vadd.f32 0.0, %v10068
        %10070 = vmatmul.f32.gmra.mxu0 %v9959
        %v10071 = vpop.f32.mrf.mxu0
        %v10072 = vadd.f32 0.0, %v10071
        %10073 = vmatmul.f32.gmra.mxu0 %v9962
        %v10074 = vpop.f32.mrf.mxu0
        %v10075 = vadd.f32 0.0, %v10074
        %10076 = vmatmul.f32.gmra.mxu0 %v9965
        %v10077 = vpop.f32.mrf.mxu0
        %v10078 = vadd.f32 0.0, %v10077
        %10079 = vmatmul.f32.gmra.mxu0 %v9968
        %v10080 = vpop.f32.mrf.mxu0
        %v10081 = vadd.f32 0.0, %v10080
        %10082 = vmatmul.f32.gmra.mxu0 %v9971
        %v10083 = vpop.f32.mrf.mxu0
        %v10084 = vadd.f32 0.0, %v10083
        %10085 = vmatmul.f32.gmra.mxu0 %v9974
        %v10086 = vpop.f32.mrf.mxu0
        %v10087 = vadd.f32 0.0, %v10086
        %10088 = vmatmul.f32.gmra.mxu0 %v9977
        %v10089 = vpop.f32.mrf.mxu0
        %v10090 = vadd.f32 0.0, %v10089
        %10091 = vmatmul.f32.gmra.mxu0 %v9980
        %v10092 = vpop.f32.mrf.mxu0
        %v10093 = vadd.f32 0.0, %v10092
        %10094 = vmatmul.f32.gmra.mxu0 %v9983
        %v10095 = vpop.f32.mrf.mxu0
        %v10096 = vadd.f32 0.0, %v10095
        %10097 = vdwg.mxu0
        %v10098 = vadd.f32 %v9819, %v10003
        %v10099 = vadd.f32 %v9820, %v10006
        %v10100 = vadd.f32 %v9821, %v10009
        %v10101 = vadd.f32 %v9822, %v10012
        %v10102 = vadd.f32 %v9823, %v10015
        %v10103 = vadd.f32 %v9824, %v10018
        %v10104 = vadd.f32 %v9825, %v10021
        %v10105 = vadd.f32 %v9826, %v10024
        %v10106 = vadd.f32 %v9827, %v10027
        %v10107 = vadd.f32 %v9828, %v10030
        %v10108 = vadd.f32 %v9829, %v10033
        %v10109 = vadd.f32 %v9830, %v10036
        %v10110 = vadd.f32 %v9831, %v10039
        %v10111 = vadd.f32 %v9832, %v10042
        %v10112 = vadd.f32 %v9833, %v10045
        %v10113 = vadd.f32 %v9834, %v10048
        %v10114 = vadd.f32 %v9835, %v10051
        %v10115 = vadd.f32 %v9836, %v10054
        %v10116 = vadd.f32 %v9837, %v10057
        %v10117 = vadd.f32 %v9838, %v10060
        %v10118 = vadd.f32 %v9839, %v10063
        %v10119 = vadd.f32 %v9840, %v10066
        %v10120 = vadd.f32 %v9841, %v10069
        %v10121 = vadd.f32 %v9842, %v10072
        %v10122 = vadd.f32 %v9843, %v10075
        %v10123 = vadd.f32 %v9844, %v10078
        %v10124 = vadd.f32 %v9845, %v10081
        %v10125 = vadd.f32 %v9846, %v10084
        %v10126 = vadd.f32 %v9847, %v10087
        %v10127 = vadd.f32 %v9848, %v10090
        %v10128 = vadd.f32 %v9849, %v10093
        %v10129 = vadd.f32 %v9850, %v10096
        %v10130 = vld [vmem:[%s4190] sm:$0xff]
        %v10131 = vld [vmem:[%s4190 + $0x8] sm:$0xff]
        %v10132 = vld [vmem:[%s4190 + $0x18] sm:$0xff]
        %v10133 = vld [vmem:[%s4190 + $0x20] sm:$0xff]
        %v10134 = vld [vmem:[%s4190 + $0x30] sm:$0xff]
        %v10135 = vld [vmem:[%s4190 + $0x38] sm:$0xff]
        %v10136 = vld [vmem:[%s4190 + $0x48] sm:$0xff]
        %v10137 = vld [vmem:[%s4190 + $0x50] sm:$0xff]
        %v10138 = vld [vmem:[%s4190 + $0x60] sm:$0xff]
        %v10139 = vld [vmem:[%s4190 + $0x68] sm:$0xff]
        %v10140 = vld [vmem:[%s4190 + $0x78] sm:$0xff]
        %v10141 = vld [vmem:[%s4190 + $0x80] sm:$0xff]
        %v10142 = vld [vmem:[%s4190 + $0x90] sm:$0xff]
        %v10143 = vld [vmem:[%s4190 + $0x98] sm:$0xff]
        %v10144 = vld [vmem:[%s4190 + $0xa8] sm:$0xff]
        %v10145 = vld [vmem:[%s4190 + $0xb0] sm:$0xff]
        %v10146 = vld [vmem:[%s4190 + $0xc0] sm:$0xff]
        %v10147 = vld [vmem:[%s4190 + $0xc8] sm:$0xff]
        %v10148 = vld [vmem:[%s4190 + $0xd8] sm:$0xff]
        %v10149 = vld [vmem:[%s4190 + $0xe0] sm:$0xff]
        %v10150 = vld [vmem:[%s4190 + $0xf0] sm:$0xff]
        %v10151 = vld [vmem:[%s4190 + $0xf8] sm:$0xff]
        %v10152 = vld [vmem:[%s4190 + $0x108] sm:$0xff]
        %v10153 = vld [vmem:[%s4190 + $0x110] sm:$0xff]
        %v10154 = vld [vmem:[%s4190 + $0x120] sm:$0xff]
        %v10155 = vld [vmem:[%s4190 + $0x128] sm:$0xff]
        %v10156 = vld [vmem:[%s4190 + $0x138] sm:$0xff]
        %v10157 = vld [vmem:[%s4190 + $0x140] sm:$0xff]
        %v10158 = vld [vmem:[%s4190 + $0x150] sm:$0xff]
        %v10159 = vld [vmem:[%s4190 + $0x158] sm:$0xff]
        %v10160 = vld [vmem:[%s4190 + $0x168] sm:$0xff]
        %v10161 = vld [vmem:[%s4190 + $0x170] sm:$0xff]
        %s10162 = scalar_lea.vmem %s6, 384
        %v10163 = vld [vmem:[%s10162] sm:$0xff]
        %v10164 = vld [vmem:[%s10162 + $0x8] sm:$0xff]
        %v10165 = vld [vmem:[%s10162 + $0x10] sm:$0xff]
        %v10166 = vld [vmem:[%s10162 + $0x18] sm:$0xff]
        %v10167 = vld [vmem:[%s10162 + $0x20] sm:$0xff]
        %v10168 = vld [vmem:[%s10162 + $0x28] sm:$0xff]
        %v10169 = vld [vmem:[%s10162 + $0x30] sm:$0xff]
        %v10170 = vld [vmem:[%s10162 + $0x38] sm:$0xff]
        %v10172 = vsel %vm406, %v10130, 0
        %v10175 = vsel %vm406, %v10131, 0
        %v10178 = vsel %vm406, %v10132, 0
        %v10181 = vsel %vm406, %v10133, 0
        %v10184 = vsel %vm406, %v10134, 0
        %v10187 = vsel %vm406, %v10135, 0
        %v10190 = vsel %vm406, %v10136, 0
        %v10193 = vsel %vm406, %v10137, 0
        %v10196 = vsel %vm406, %v10138, 0
        %v10199 = vsel %vm406, %v10139, 0
        %v10202 = vsel %vm406, %v10140, 0
        %v10205 = vsel %vm406, %v10141, 0
        %v10208 = vsel %vm406, %v10142, 0
        %v10211 = vsel %vm406, %v10143, 0
        %v10214 = vsel %vm406, %v10144, 0
        %v10217 = vsel %vm406, %v10145, 0
        %v10220 = vsel %vm406, %v10146, 0
        %v10223 = vsel %vm406, %v10147, 0
        %v10226 = vsel %vm406, %v10148, 0
        %v10229 = vsel %vm406, %v10149, 0
        %v10232 = vsel %vm406, %v10150, 0
        %v10235 = vsel %vm406, %v10151, 0
        %v10238 = vsel %vm406, %v10152, 0
        %v10241 = vsel %vm406, %v10153, 0
        %v10244 = vsel %vm406, %v10154, 0
        %v10247 = vsel %vm406, %v10155, 0
        %v10250 = vsel %vm406, %v10156, 0
        %v10253 = vsel %vm406, %v10157, 0
        %v10256 = vsel %vm406, %v10158, 0
        %v10259 = vsel %vm406, %v10159, 0
        %v10262 = vsel %vm406, %v10160, 0
        %v10265 = vsel %vm406, %v10161, 0
        %10267 = vmatpush.msra.mxu0 0.0
        %10268 = vmatpush.msra.mxu0 0.0
        %10269 = vmatpush.msra.mxu0 0.0
        %10270 = vmatpush.msra.mxu0 0.0
        %10271 = vmatpush.msra.mxu0 0.0
        %10272 = vmatpush.msra.mxu0 0.0
        %10273 = vmatpush.msra.mxu0 0.0
        %10274 = vmatpush.msra.mxu0 0.0
        %10275 = vmatpush.msra.mxu0 %v10170
        %10276 = vmatpush.msra.mxu0 %v10169
        %10277 = vmatpush.msra.mxu0 %v10168
        %10278 = vmatpush.msra.mxu0 %v10167
        %10279 = vmatpush.msra.mxu0 %v10166
        %10280 = vmatpush.msra.mxu0 %v10165
        %10281 = vmatpush.msra.mxu0 %v10164
        %10282 = vmatpush.msra.mxu0 %v10163
        %10283 = vmatmul.f32.gmra.mxu0 %v10172
        %v10284 = vpop.f32.mrf.mxu0
        %v10285 = vadd.f32 0.0, %v10284
        %10286 = vmatmul.f32.gmra.mxu0 %v10175
        %v10287 = vpop.f32.mrf.mxu0
        %v10288 = vadd.f32 0.0, %v10287
        %10289 = vmatmul.f32.gmra.mxu0 %v10178
        %v10290 = vpop.f32.mrf.mxu0
        %v10291 = vadd.f32 0.0, %v10290
        %10292 = vmatmul.f32.gmra.mxu0 %v10181
        %v10293 = vpop.f32.mrf.mxu0
        %v10294 = vadd.f32 0.0, %v10293
        %10295 = vmatmul.f32.gmra.mxu0 %v10184
        %v10296 = vpop.f32.mrf.mxu0
        %v10297 = vadd.f32 0.0, %v10296
        %10298 = vmatmul.f32.gmra.mxu0 %v10187
        %v10299 = vpop.f32.mrf.mxu0
        %v10300 = vadd.f32 0.0, %v10299
        %10301 = vmatmul.f32.gmra.mxu0 %v10190
        %v10302 = vpop.f32.mrf.mxu0
        %v10303 = vadd.f32 0.0, %v10302
        %10304 = vmatmul.f32.gmra.mxu0 %v10193
        %v10305 = vpop.f32.mrf.mxu0
        %v10306 = vadd.f32 0.0, %v10305
        %10307 = vmatmul.f32.gmra.mxu0 %v10196
        %v10308 = vpop.f32.mrf.mxu0
        %v10309 = vadd.f32 0.0, %v10308
        %10310 = vmatmul.f32.gmra.mxu0 %v10199
        %v10311 = vpop.f32.mrf.mxu0
        %v10312 = vadd.f32 0.0, %v10311
        %10313 = vmatmul.f32.gmra.mxu0 %v10202
        %v10314 = vpop.f32.mrf.mxu0
        %v10315 = vadd.f32 0.0, %v10314
        %10316 = vmatmul.f32.gmra.mxu0 %v10205
        %v10317 = vpop.f32.mrf.mxu0
        %v10318 = vadd.f32 0.0, %v10317
        %10319 = vmatmul.f32.gmra.mxu0 %v10208
        %v10320 = vpop.f32.mrf.mxu0
        %v10321 = vadd.f32 0.0, %v10320
        %10322 = vmatmul.f32.gmra.mxu0 %v10211
        %v10323 = vpop.f32.mrf.mxu0
        %v10324 = vadd.f32 0.0, %v10323
        %10325 = vmatmul.f32.gmra.mxu0 %v10214
        %v10326 = vpop.f32.mrf.mxu0
        %v10327 = vadd.f32 0.0, %v10326
        %10328 = vmatmul.f32.gmra.mxu0 %v10217
        %v10329 = vpop.f32.mrf.mxu0
        %v10330 = vadd.f32 0.0, %v10329
        %10331 = vmatmul.f32.gmra.mxu0 %v10220
        %v10332 = vpop.f32.mrf.mxu0
        %v10333 = vadd.f32 0.0, %v10332
        %10334 = vmatmul.f32.gmra.mxu0 %v10223
        %v10335 = vpop.f32.mrf.mxu0
        %v10336 = vadd.f32 0.0, %v10335
        %10337 = vmatmul.f32.gmra.mxu0 %v10226
        %v10338 = vpop.f32.mrf.mxu0
        %v10339 = vadd.f32 0.0, %v10338
        %10340 = vmatmul.f32.gmra.mxu0 %v10229
        %v10341 = vpop.f32.mrf.mxu0
        %v10342 = vadd.f32 0.0, %v10341
        %10343 = vmatmul.f32.gmra.mxu0 %v10232
        %v10344 = vpop.f32.mrf.mxu0
        %v10345 = vadd.f32 0.0, %v10344
        %10346 = vmatmul.f32.gmra.mxu0 %v10235
        %v10347 = vpop.f32.mrf.mxu0
        %v10348 = vadd.f32 0.0, %v10347
        %10349 = vmatmul.f32.gmra.mxu0 %v10238
        %v10350 = vpop.f32.mrf.mxu0
        %v10351 = vadd.f32 0.0, %v10350
        %10352 = vmatmul.f32.gmra.mxu0 %v10241
        %v10353 = vpop.f32.mrf.mxu0
        %v10354 = vadd.f32 0.0, %v10353
        %10355 = vmatmul.f32.gmra.mxu0 %v10244
        %v10356 = vpop.f32.mrf.mxu0
        %v10357 = vadd.f32 0.0, %v10356
        %10358 = vmatmul.f32.gmra.mxu0 %v10247
        %v10359 = vpop.f32.mrf.mxu0
        %v10360 = vadd.f32 0.0, %v10359
        %10361 = vmatmul.f32.gmra.mxu0 %v10250
        %v10362 = vpop.f32.mrf.mxu0
        %v10363 = vadd.f32 0.0, %v10362
        %10364 = vmatmul.f32.gmra.mxu0 %v10253
        %v10365 = vpop.f32.mrf.mxu0
        %v10366 = vadd.f32 0.0, %v10365
        %10367 = vmatmul.f32.gmra.mxu0 %v10256
        %v10368 = vpop.f32.mrf.mxu0
        %v10369 = vadd.f32 0.0, %v10368
        %10370 = vmatmul.f32.gmra.mxu0 %v10259
        %v10371 = vpop.f32.mrf.mxu0
        %v10372 = vadd.f32 0.0, %v10371
        %10373 = vmatmul.f32.gmra.mxu0 %v10262
        %v10374 = vpop.f32.mrf.mxu0
        %v10375 = vadd.f32 0.0, %v10374
        %10376 = vmatmul.f32.gmra.mxu0 %v10265
        %v10377 = vpop.f32.mrf.mxu0
        %v10378 = vadd.f32 0.0, %v10377
        %10379 = vdwg.mxu0
        %v10380 = vadd.f32 %v10098, %v10285
        %v10381 = vadd.f32 %v10099, %v10288
        %v10382 = vadd.f32 %v10100, %v10291
        %v10383 = vadd.f32 %v10101, %v10294
        %v10384 = vadd.f32 %v10102, %v10297
        %v10385 = vadd.f32 %v10103, %v10300
        %v10386 = vadd.f32 %v10104, %v10303
        %v10387 = vadd.f32 %v10105, %v10306
        %v10388 = vadd.f32 %v10106, %v10309
        %v10389 = vadd.f32 %v10107, %v10312
        %v10390 = vadd.f32 %v10108, %v10315
        %v10391 = vadd.f32 %v10109, %v10318
        %v10392 = vadd.f32 %v10110, %v10321
        %v10393 = vadd.f32 %v10111, %v10324
        %v10394 = vadd.f32 %v10112, %v10327
        %v10395 = vadd.f32 %v10113, %v10330
        %v10396 = vadd.f32 %v10114, %v10333
        %v10397 = vadd.f32 %v10115, %v10336
        %v10398 = vadd.f32 %v10116, %v10339
        %v10399 = vadd.f32 %v10117, %v10342
        %v10400 = vadd.f32 %v10118, %v10345
        %v10401 = vadd.f32 %v10119, %v10348
        %v10402 = vadd.f32 %v10120, %v10351
        %v10403 = vadd.f32 %v10121, %v10354
        %v10404 = vadd.f32 %v10122, %v10357
        %v10405 = vadd.f32 %v10123, %v10360
        %v10406 = vadd.f32 %v10124, %v10363
        %v10407 = vadd.f32 %v10125, %v10366
        %v10408 = vadd.f32 %v10126, %v10369
        %v10409 = vadd.f32 %v10127, %v10372
        %v10410 = vadd.f32 %v10128, %v10375
        %v10411 = vadd.f32 %v10129, %v10378
        %v10412 = vld [vmem:[%s9851 + $0x1] sm:$0xff]
        %v10413 = vld [vmem:[%s9851 + $0x9] sm:$0xff]
        %v10414 = vld [vmem:[%s9851 + $0x19] sm:$0xff]
        %v10415 = vld [vmem:[%s9851 + $0x21] sm:$0xff]
        %v10416 = vld [vmem:[%s9851 + $0x31] sm:$0xff]
        %v10417 = vld [vmem:[%s9851 + $0x39] sm:$0xff]
        %v10418 = vld [vmem:[%s9851 + $0x49] sm:$0xff]
        %v10419 = vld [vmem:[%s9851 + $0x51] sm:$0xff]
        %v10420 = vld [vmem:[%s9851 + $0x61] sm:$0xff]
        %v10421 = vld [vmem:[%s9851 + $0x69] sm:$0xff]
        %v10422 = vld [vmem:[%s9851 + $0x79] sm:$0xff]
        %v10423 = vld [vmem:[%s9851 + $0x81] sm:$0xff]
        %v10424 = vld [vmem:[%s9851 + $0x91] sm:$0xff]
        %v10425 = vld [vmem:[%s9851 + $0x99] sm:$0xff]
        %v10426 = vld [vmem:[%s9851 + $0xa9] sm:$0xff]
        %v10427 = vld [vmem:[%s9851 + $0xb1] sm:$0xff]
        %v10428 = vld [vmem:[%s9851 + $0xc1] sm:$0xff]
        %v10429 = vld [vmem:[%s9851 + $0xc9] sm:$0xff]
        %v10430 = vld [vmem:[%s9851 + $0xd9] sm:$0xff]
        %v10431 = vld [vmem:[%s9851 + $0xe1] sm:$0xff]
        %v10432 = vld [vmem:[%s9851 + $0xf1] sm:$0xff]
        %v10433 = vld [vmem:[%s9851 + $0xf9] sm:$0xff]
        %v10434 = vld [vmem:[%s9851 + $0x109] sm:$0xff]
        %v10435 = vld [vmem:[%s9851 + $0x111] sm:$0xff]
        %v10436 = vld [vmem:[%s9851 + $0x121] sm:$0xff]
        %v10437 = vld [vmem:[%s9851 + $0x129] sm:$0xff]
        %v10438 = vld [vmem:[%s9851 + $0x139] sm:$0xff]
        %v10439 = vld [vmem:[%s9851 + $0x141] sm:$0xff]
        %v10440 = vld [vmem:[%s9851 + $0x151] sm:$0xff]
        %v10441 = vld [vmem:[%s9851 + $0x159] sm:$0xff]
        %v10442 = vld [vmem:[%s9851 + $0x169] sm:$0xff]
        %v10443 = vld [vmem:[%s9851 + $0x171] sm:$0xff]
        %s10444 = scalar_lea.vmem [#allocation8], 224
        %v10445 = vld [vmem:[%s10444] sm:$0xff]
        %v10446 = vld [vmem:[%s10444 + $0x8] sm:$0xff]
        %v10447 = vld [vmem:[%s10444 + $0x10] sm:$0xff]
        %v10448 = vld [vmem:[%s10444 + $0x18] sm:$0xff]
        %v10450 = vsel %vm363, %v10412, 0
        %v10453 = vsel %vm363, %v10413, 0
        %v10456 = vsel %vm363, %v10414, 0
        %v10459 = vsel %vm363, %v10415, 0
        %v10462 = vsel %vm363, %v10416, 0
        %v10465 = vsel %vm363, %v10417, 0
        %v10468 = vsel %vm363, %v10418, 0
        %v10471 = vsel %vm363, %v10419, 0
        %v10474 = vsel %vm363, %v10420, 0
        %v10477 = vsel %vm363, %v10421, 0
        %v10480 = vsel %vm363, %v10422, 0
        %v10483 = vsel %vm363, %v10423, 0
        %v10486 = vsel %vm363, %v10424, 0
        %v10489 = vsel %vm363, %v10425, 0
        %v10492 = vsel %vm363, %v10426, 0
        %v10495 = vsel %vm363, %v10427, 0
        %v10498 = vsel %vm363, %v10428, 0
        %v10501 = vsel %vm363, %v10429, 0
        %v10504 = vsel %vm363, %v10430, 0
        %v10507 = vsel %vm363, %v10431, 0
        %v10510 = vsel %vm363, %v10432, 0
        %v10513 = vsel %vm363, %v10433, 0
        %v10516 = vsel %vm363, %v10434, 0
        %v10519 = vsel %vm363, %v10435, 0
        %v10522 = vsel %vm363, %v10436, 0
        %v10525 = vsel %vm363, %v10437, 0
        %v10528 = vsel %vm363, %v10438, 0
        %v10531 = vsel %vm363, %v10439, 0
        %v10534 = vsel %vm363, %v10440, 0
        %v10537 = vsel %vm363, %v10441, 0
        %v10540 = vsel %vm363, %v10442, 0
        %v10543 = vsel %vm363, %v10443, 0
        %10545 = vmatpush.msra.mxu0 0.0
        %10546 = vmatpush.msra.mxu0 0.0
        %10547 = vmatpush.msra.mxu0 0.0
        %10548 = vmatpush.msra.mxu0 0.0
        %10549 = vmatpush.msra.mxu0 0.0
        %10550 = vmatpush.msra.mxu0 0.0
        %10551 = vmatpush.msra.mxu0 0.0
        %10552 = vmatpush.msra.mxu0 0.0
        %10553 = vmatpush.msra.mxu0 0.0
        %10554 = vmatpush.msra.mxu0 0.0
        %10555 = vmatpush.msra.mxu0 0.0
        %10556 = vmatpush.msra.mxu0 0.0
        %10557 = vmatpush.msra.mxu0 %v10448
        %10558 = vmatpush.msra.mxu0 %v10447
        %10559 = vmatpush.msra.mxu0 %v10446
        %10560 = vmatpush.msra.mxu0 %v10445
        %10561 = vmatmul.f32.gmra.mxu0 %v10450
        %v10562 = vpop.f32.mrf.mxu0
        %v10563 = vadd.f32 0.0, %v10562
        %10564 = vmatmul.f32.gmra.mxu0 %v10453
        %v10565 = vpop.f32.mrf.mxu0
        %v10566 = vadd.f32 0.0, %v10565
        %10567 = vmatmul.f32.gmra.mxu0 %v10456
        %v10568 = vpop.f32.mrf.mxu0
        %v10569 = vadd.f32 0.0, %v10568
        %10570 = vmatmul.f32.gmra.mxu0 %v10459
        %v10571 = vpop.f32.mrf.mxu0
        %v10572 = vadd.f32 0.0, %v10571
        %10573 = vmatmul.f32.gmra.mxu0 %v10462
        %v10574 = vpop.f32.mrf.mxu0
        %v10575 = vadd.f32 0.0, %v10574
        %10576 = vmatmul.f32.gmra.mxu0 %v10465
        %v10577 = vpop.f32.mrf.mxu0
        %v10578 = vadd.f32 0.0, %v10577
        %10579 = vmatmul.f32.gmra.mxu0 %v10468
        %v10580 = vpop.f32.mrf.mxu0
        %v10581 = vadd.f32 0.0, %v10580
        %10582 = vmatmul.f32.gmra.mxu0 %v10471
        %v10583 = vpop.f32.mrf.mxu0
        %v10584 = vadd.f32 0.0, %v10583
        %10585 = vmatmul.f32.gmra.mxu0 %v10474
        %v10586 = vpop.f32.mrf.mxu0
        %v10587 = vadd.f32 0.0, %v10586
        %10588 = vmatmul.f32.gmra.mxu0 %v10477
        %v10589 = vpop.f32.mrf.mxu0
        %v10590 = vadd.f32 0.0, %v10589
        %10591 = vmatmul.f32.gmra.mxu0 %v10480
        %v10592 = vpop.f32.mrf.mxu0
        %v10593 = vadd.f32 0.0, %v10592
        %10594 = vmatmul.f32.gmra.mxu0 %v10483
        %v10595 = vpop.f32.mrf.mxu0
        %v10596 = vadd.f32 0.0, %v10595
        %10597 = vmatmul.f32.gmra.mxu0 %v10486
        %v10598 = vpop.f32.mrf.mxu0
        %v10599 = vadd.f32 0.0, %v10598
        %10600 = vmatmul.f32.gmra.mxu0 %v10489
        %v10601 = vpop.f32.mrf.mxu0
        %v10602 = vadd.f32 0.0, %v10601
        %10603 = vmatmul.f32.gmra.mxu0 %v10492
        %v10604 = vpop.f32.mrf.mxu0
        %v10605 = vadd.f32 0.0, %v10604
        %10606 = vmatmul.f32.gmra.mxu0 %v10495
        %v10607 = vpop.f32.mrf.mxu0
        %v10608 = vadd.f32 0.0, %v10607
        %10609 = vmatmul.f32.gmra.mxu0 %v10498
        %v10610 = vpop.f32.mrf.mxu0
        %v10611 = vadd.f32 0.0, %v10610
        %10612 = vmatmul.f32.gmra.mxu0 %v10501
        %v10613 = vpop.f32.mrf.mxu0
        %v10614 = vadd.f32 0.0, %v10613
        %10615 = vmatmul.f32.gmra.mxu0 %v10504
        %v10616 = vpop.f32.mrf.mxu0
        %v10617 = vadd.f32 0.0, %v10616
        %10618 = vmatmul.f32.gmra.mxu0 %v10507
        %v10619 = vpop.f32.mrf.mxu0
        %v10620 = vadd.f32 0.0, %v10619
        %10621 = vmatmul.f32.gmra.mxu0 %v10510
        %v10622 = vpop.f32.mrf.mxu0
        %v10623 = vadd.f32 0.0, %v10622
        %10624 = vmatmul.f32.gmra.mxu0 %v10513
        %v10625 = vpop.f32.mrf.mxu0
        %v10626 = vadd.f32 0.0, %v10625
        %10627 = vmatmul.f32.gmra.mxu0 %v10516
        %v10628 = vpop.f32.mrf.mxu0
        %v10629 = vadd.f32 0.0, %v10628
        %10630 = vmatmul.f32.gmra.mxu0 %v10519
        %v10631 = vpop.f32.mrf.mxu0
        %v10632 = vadd.f32 0.0, %v10631
        %10633 = vmatmul.f32.gmra.mxu0 %v10522
        %v10634 = vpop.f32.mrf.mxu0
        %v10635 = vadd.f32 0.0, %v10634
        %10636 = vmatmul.f32.gmra.mxu0 %v10525
        %v10637 = vpop.f32.mrf.mxu0
        %v10638 = vadd.f32 0.0, %v10637
        %10639 = vmatmul.f32.gmra.mxu0 %v10528
        %v10640 = vpop.f32.mrf.mxu0
        %v10641 = vadd.f32 0.0, %v10640
        %10642 = vmatmul.f32.gmra.mxu0 %v10531
        %v10643 = vpop.f32.mrf.mxu0
        %v10644 = vadd.f32 0.0, %v10643
        %10645 = vmatmul.f32.gmra.mxu0 %v10534
        %v10646 = vpop.f32.mrf.mxu0
        %v10647 = vadd.f32 0.0, %v10646
        %10648 = vmatmul.f32.gmra.mxu0 %v10537
        %v10649 = vpop.f32.mrf.mxu0
        %v10650 = vadd.f32 0.0, %v10649
        %10651 = vmatmul.f32.gmra.mxu0 %v10540
        %v10652 = vpop.f32.mrf.mxu0
        %v10653 = vadd.f32 0.0, %v10652
        %10654 = vmatmul.f32.gmra.mxu0 %v10543
        %v10655 = vpop.f32.mrf.mxu0
        %v10656 = vadd.f32 0.0, %v10655
        %10657 = vdwg.mxu0
        %v10658 = vadd.f32 %v10380, %v10563
        %v10659 = vadd.f32 %v10381, %v10566
        %v10660 = vadd.f32 %v10382, %v10569
        %v10661 = vadd.f32 %v10383, %v10572
        %v10662 = vadd.f32 %v10384, %v10575
        %v10663 = vadd.f32 %v10385, %v10578
        %v10664 = vadd.f32 %v10386, %v10581
        %v10665 = vadd.f32 %v10387, %v10584
        %v10666 = vadd.f32 %v10388, %v10587
        %v10667 = vadd.f32 %v10389, %v10590
        %v10668 = vadd.f32 %v10390, %v10593
        %v10669 = vadd.f32 %v10391, %v10596
        %v10670 = vadd.f32 %v10392, %v10599
        %v10671 = vadd.f32 %v10393, %v10602
        %v10672 = vadd.f32 %v10394, %v10605
        %v10673 = vadd.f32 %v10395, %v10608
        %v10674 = vadd.f32 %v10396, %v10611
        %v10675 = vadd.f32 %v10397, %v10614
        %v10676 = vadd.f32 %v10398, %v10617
        %v10677 = vadd.f32 %v10399, %v10620
        %v10678 = vadd.f32 %v10400, %v10623
        %v10679 = vadd.f32 %v10401, %v10626
        %v10680 = vadd.f32 %v10402, %v10629
        %v10681 = vadd.f32 %v10403, %v10632
        %v10682 = vadd.f32 %v10404, %v10635
        %v10683 = vadd.f32 %v10405, %v10638
        %v10684 = vadd.f32 %v10406, %v10641
        %v10685 = vadd.f32 %v10407, %v10644
        %v10686 = vadd.f32 %v10408, %v10647
        %v10687 = vadd.f32 %v10409, %v10650
        %v10688 = vadd.f32 %v10410, %v10653
        %v10689 = vadd.f32 %v10411, %v10656
        %v10690 = vld [vmem:[%s4190 + $0x1] sm:$0xff]
        %v10691 = vld [vmem:[%s4190 + $0x9] sm:$0xff]
        %v10692 = vld [vmem:[%s4190 + $0x19] sm:$0xff]
        %v10693 = vld [vmem:[%s4190 + $0x21] sm:$0xff]
        %v10694 = vld [vmem:[%s4190 + $0x31] sm:$0xff]
        %v10695 = vld [vmem:[%s4190 + $0x39] sm:$0xff]
        %v10696 = vld [vmem:[%s4190 + $0x49] sm:$0xff]
        %v10697 = vld [vmem:[%s4190 + $0x51] sm:$0xff]
        %v10698 = vld [vmem:[%s4190 + $0x61] sm:$0xff]
        %v10699 = vld [vmem:[%s4190 + $0x69] sm:$0xff]
        %v10700 = vld [vmem:[%s4190 + $0x79] sm:$0xff]
        %v10701 = vld [vmem:[%s4190 + $0x81] sm:$0xff]
        %v10702 = vld [vmem:[%s4190 + $0x91] sm:$0xff]
        %v10703 = vld [vmem:[%s4190 + $0x99] sm:$0xff]
        %v10704 = vld [vmem:[%s4190 + $0xa9] sm:$0xff]
        %v10705 = vld [vmem:[%s4190 + $0xb1] sm:$0xff]
        %v10706 = vld [vmem:[%s4190 + $0xc1] sm:$0xff]
        %v10707 = vld [vmem:[%s4190 + $0xc9] sm:$0xff]
        %v10708 = vld [vmem:[%s4190 + $0xd9] sm:$0xff]
        %v10709 = vld [vmem:[%s4190 + $0xe1] sm:$0xff]
        %v10710 = vld [vmem:[%s4190 + $0xf1] sm:$0xff]
        %v10711 = vld [vmem:[%s4190 + $0xf9] sm:$0xff]
        %v10712 = vld [vmem:[%s4190 + $0x109] sm:$0xff]
        %v10713 = vld [vmem:[%s4190 + $0x111] sm:$0xff]
        %v10714 = vld [vmem:[%s4190 + $0x121] sm:$0xff]
        %v10715 = vld [vmem:[%s4190 + $0x129] sm:$0xff]
        %v10716 = vld [vmem:[%s4190 + $0x139] sm:$0xff]
        %v10717 = vld [vmem:[%s4190 + $0x141] sm:$0xff]
        %v10718 = vld [vmem:[%s4190 + $0x151] sm:$0xff]
        %v10719 = vld [vmem:[%s4190 + $0x159] sm:$0xff]
        %v10720 = vld [vmem:[%s4190 + $0x169] sm:$0xff]
        %v10721 = vld [vmem:[%s4190 + $0x171] sm:$0xff]
        %s10722 = scalar_lea.vmem %s6, 448
        %v10723 = vld [vmem:[%s10722] sm:$0xff]
        %v10724 = vld [vmem:[%s10722 + $0x8] sm:$0xff]
        %v10725 = vld [vmem:[%s10722 + $0x10] sm:$0xff]
        %v10726 = vld [vmem:[%s10722 + $0x18] sm:$0xff]
        %v10727 = vld [vmem:[%s10722 + $0x20] sm:$0xff]
        %v10728 = vld [vmem:[%s10722 + $0x28] sm:$0xff]
        %v10729 = vld [vmem:[%s10722 + $0x30] sm:$0xff]
        %v10730 = vld [vmem:[%s10722 + $0x38] sm:$0xff]
        %v10732 = vsel %vm406, %v10690, 0
        %v10735 = vsel %vm406, %v10691, 0
        %v10738 = vsel %vm406, %v10692, 0
        %v10741 = vsel %vm406, %v10693, 0
        %v10744 = vsel %vm406, %v10694, 0
        %v10747 = vsel %vm406, %v10695, 0
        %v10750 = vsel %vm406, %v10696, 0
        %v10753 = vsel %vm406, %v10697, 0
        %v10756 = vsel %vm406, %v10698, 0
        %v10759 = vsel %vm406, %v10699, 0
        %v10762 = vsel %vm406, %v10700, 0
        %v10765 = vsel %vm406, %v10701, 0
        %v10768 = vsel %vm406, %v10702, 0
        %v10771 = vsel %vm406, %v10703, 0
        %v10774 = vsel %vm406, %v10704, 0
        %v10777 = vsel %vm406, %v10705, 0
        %v10780 = vsel %vm406, %v10706, 0
        %v10783 = vsel %vm406, %v10707, 0
        %v10786 = vsel %vm406, %v10708, 0
        %v10789 = vsel %vm406, %v10709, 0
        %v10792 = vsel %vm406, %v10710, 0
        %v10795 = vsel %vm406, %v10711, 0
        %v10798 = vsel %vm406, %v10712, 0
        %v10801 = vsel %vm406, %v10713, 0
        %v10804 = vsel %vm406, %v10714, 0
        %v10807 = vsel %vm406, %v10715, 0
        %v10810 = vsel %vm406, %v10716, 0
        %v10813 = vsel %vm406, %v10717, 0
        %v10816 = vsel %vm406, %v10718, 0
        %v10819 = vsel %vm406, %v10719, 0
        %v10822 = vsel %vm406, %v10720, 0
        %v10825 = vsel %vm406, %v10721, 0
        %10827 = vmatpush.msra.mxu0 0.0
        %10828 = vmatpush.msra.mxu0 0.0
        %10829 = vmatpush.msra.mxu0 0.0
        %10830 = vmatpush.msra.mxu0 0.0
        %10831 = vmatpush.msra.mxu0 0.0
        %10832 = vmatpush.msra.mxu0 0.0
        %10833 = vmatpush.msra.mxu0 0.0
        %10834 = vmatpush.msra.mxu0 0.0
        %10835 = vmatpush.msra.mxu0 %v10730
        %10836 = vmatpush.msra.mxu0 %v10729
        %10837 = vmatpush.msra.mxu0 %v10728
        %10838 = vmatpush.msra.mxu0 %v10727
        %10839 = vmatpush.msra.mxu0 %v10726
        %10840 = vmatpush.msra.mxu0 %v10725
        %10841 = vmatpush.msra.mxu0 %v10724
        %10842 = vmatpush.msra.mxu0 %v10723
        %10843 = vmatmul.f32.gmra.mxu0 %v10732
        %v10844 = vpop.f32.mrf.mxu0
        %v10845 = vadd.f32 0.0, %v10844
        %10846 = vmatmul.f32.gmra.mxu0 %v10735
        %v10847 = vpop.f32.mrf.mxu0
        %v10848 = vadd.f32 0.0, %v10847
        %10849 = vmatmul.f32.gmra.mxu0 %v10738
        %v10850 = vpop.f32.mrf.mxu0
        %v10851 = vadd.f32 0.0, %v10850
        %10852 = vmatmul.f32.gmra.mxu0 %v10741
        %v10853 = vpop.f32.mrf.mxu0
        %v10854 = vadd.f32 0.0, %v10853
        %10855 = vmatmul.f32.gmra.mxu0 %v10744
        %v10856 = vpop.f32.mrf.mxu0
        %v10857 = vadd.f32 0.0, %v10856
        %10858 = vmatmul.f32.gmra.mxu0 %v10747
        %v10859 = vpop.f32.mrf.mxu0
        %v10860 = vadd.f32 0.0, %v10859
        %10861 = vmatmul.f32.gmra.mxu0 %v10750
        %v10862 = vpop.f32.mrf.mxu0
        %v10863 = vadd.f32 0.0, %v10862
        %10864 = vmatmul.f32.gmra.mxu0 %v10753
        %v10865 = vpop.f32.mrf.mxu0
        %v10866 = vadd.f32 0.0, %v10865
        %10867 = vmatmul.f32.gmra.mxu0 %v10756
        %v10868 = vpop.f32.mrf.mxu0
        %v10869 = vadd.f32 0.0, %v10868
        %10870 = vmatmul.f32.gmra.mxu0 %v10759
        %v10871 = vpop.f32.mrf.mxu0
        %v10872 = vadd.f32 0.0, %v10871
        %10873 = vmatmul.f32.gmra.mxu0 %v10762
        %v10874 = vpop.f32.mrf.mxu0
        %v10875 = vadd.f32 0.0, %v10874
        %10876 = vmatmul.f32.gmra.mxu0 %v10765
        %v10877 = vpop.f32.mrf.mxu0
        %v10878 = vadd.f32 0.0, %v10877
        %10879 = vmatmul.f32.gmra.mxu0 %v10768
        %v10880 = vpop.f32.mrf.mxu0
        %v10881 = vadd.f32 0.0, %v10880
        %10882 = vmatmul.f32.gmra.mxu0 %v10771
        %v10883 = vpop.f32.mrf.mxu0
        %v10884 = vadd.f32 0.0, %v10883
        %10885 = vmatmul.f32.gmra.mxu0 %v10774
        %v10886 = vpop.f32.mrf.mxu0
        %v10887 = vadd.f32 0.0, %v10886
        %10888 = vmatmul.f32.gmra.mxu0 %v10777
        %v10889 = vpop.f32.mrf.mxu0
        %v10890 = vadd.f32 0.0, %v10889
        %10891 = vmatmul.f32.gmra.mxu0 %v10780
        %v10892 = vpop.f32.mrf.mxu0
        %v10893 = vadd.f32 0.0, %v10892
        %10894 = vmatmul.f32.gmra.mxu0 %v10783
        %v10895 = vpop.f32.mrf.mxu0
        %v10896 = vadd.f32 0.0, %v10895
        %10897 = vmatmul.f32.gmra.mxu0 %v10786
        %v10898 = vpop.f32.mrf.mxu0
        %v10899 = vadd.f32 0.0, %v10898
        %10900 = vmatmul.f32.gmra.mxu0 %v10789
        %v10901 = vpop.f32.mrf.mxu0
        %v10902 = vadd.f32 0.0, %v10901
        %10903 = vmatmul.f32.gmra.mxu0 %v10792
        %v10904 = vpop.f32.mrf.mxu0
        %v10905 = vadd.f32 0.0, %v10904
        %10906 = vmatmul.f32.gmra.mxu0 %v10795
        %v10907 = vpop.f32.mrf.mxu0
        %v10908 = vadd.f32 0.0, %v10907
        %10909 = vmatmul.f32.gmra.mxu0 %v10798
        %v10910 = vpop.f32.mrf.mxu0
        %v10911 = vadd.f32 0.0, %v10910
        %10912 = vmatmul.f32.gmra.mxu0 %v10801
        %v10913 = vpop.f32.mrf.mxu0
        %v10914 = vadd.f32 0.0, %v10913
        %10915 = vmatmul.f32.gmra.mxu0 %v10804
        %v10916 = vpop.f32.mrf.mxu0
        %v10917 = vadd.f32 0.0, %v10916
        %10918 = vmatmul.f32.gmra.mxu0 %v10807
        %v10919 = vpop.f32.mrf.mxu0
        %v10920 = vadd.f32 0.0, %v10919
        %10921 = vmatmul.f32.gmra.mxu0 %v10810
        %v10922 = vpop.f32.mrf.mxu0
        %v10923 = vadd.f32 0.0, %v10922
        %10924 = vmatmul.f32.gmra.mxu0 %v10813
        %v10925 = vpop.f32.mrf.mxu0
        %v10926 = vadd.f32 0.0, %v10925
        %10927 = vmatmul.f32.gmra.mxu0 %v10816
        %v10928 = vpop.f32.mrf.mxu0
        %v10929 = vadd.f32 0.0, %v10928
        %10930 = vmatmul.f32.gmra.mxu0 %v10819
        %v10931 = vpop.f32.mrf.mxu0
        %v10932 = vadd.f32 0.0, %v10931
        %10933 = vmatmul.f32.gmra.mxu0 %v10822
        %v10934 = vpop.f32.mrf.mxu0
        %v10935 = vadd.f32 0.0, %v10934
        %10936 = vmatmul.f32.gmra.mxu0 %v10825
        %v10937 = vpop.f32.mrf.mxu0
        %v10938 = vadd.f32 0.0, %v10937
        %10939 = vdwg.mxu0
        %v10940 = vadd.f32 %v10658, %v10845
        %v10941 = vadd.f32 %v10659, %v10848
        %v10942 = vadd.f32 %v10660, %v10851
        %v10943 = vadd.f32 %v10661, %v10854
        %v10944 = vadd.f32 %v10662, %v10857
        %v10945 = vadd.f32 %v10663, %v10860
        %v10946 = vadd.f32 %v10664, %v10863
        %v10947 = vadd.f32 %v10665, %v10866
        %v10948 = vadd.f32 %v10666, %v10869
        %v10949 = vadd.f32 %v10667, %v10872
        %v10950 = vadd.f32 %v10668, %v10875
        %v10951 = vadd.f32 %v10669, %v10878
        %v10952 = vadd.f32 %v10670, %v10881
        %v10953 = vadd.f32 %v10671, %v10884
        %v10954 = vadd.f32 %v10672, %v10887
        %v10955 = vadd.f32 %v10673, %v10890
        %v10956 = vadd.f32 %v10674, %v10893
        %v10957 = vadd.f32 %v10675, %v10896
        %v10958 = vadd.f32 %v10676, %v10899
        %v10959 = vadd.f32 %v10677, %v10902
        %v10960 = vadd.f32 %v10678, %v10905
        %v10961 = vadd.f32 %v10679, %v10908
        %v10962 = vadd.f32 %v10680, %v10911
        %v10963 = vadd.f32 %v10681, %v10914
        %v10964 = vadd.f32 %v10682, %v10917
        %v10965 = vadd.f32 %v10683, %v10920
        %v10966 = vadd.f32 %v10684, %v10923
        %v10967 = vadd.f32 %v10685, %v10926
        %v10968 = vadd.f32 %v10686, %v10929
        %v10969 = vadd.f32 %v10687, %v10932
        %v10970 = vadd.f32 %v10688, %v10935
        %v10971 = vadd.f32 %v10689, %v10938
        %v10972 = vld [vmem:[%s9851 + $0x2] sm:$0xff]
        %v10973 = vld [vmem:[%s9851 + $0xa] sm:$0xff]
        %v10974 = vld [vmem:[%s9851 + $0x1a] sm:$0xff]
        %v10975 = vld [vmem:[%s9851 + $0x22] sm:$0xff]
        %v10976 = vld [vmem:[%s9851 + $0x32] sm:$0xff]
        %v10977 = vld [vmem:[%s9851 + $0x3a] sm:$0xff]
        %v10978 = vld [vmem:[%s9851 + $0x4a] sm:$0xff]
        %v10979 = vld [vmem:[%s9851 + $0x52] sm:$0xff]
        %v10980 = vld [vmem:[%s9851 + $0x62] sm:$0xff]
        %v10981 = vld [vmem:[%s9851 + $0x6a] sm:$0xff]
        %v10982 = vld [vmem:[%s9851 + $0x7a] sm:$0xff]
        %v10983 = vld [vmem:[%s9851 + $0x82] sm:$0xff]
        %v10984 = vld [vmem:[%s9851 + $0x92] sm:$0xff]
        %v10985 = vld [vmem:[%s9851 + $0x9a] sm:$0xff]
        %v10986 = vld [vmem:[%s9851 + $0xaa] sm:$0xff]
        %v10987 = vld [vmem:[%s9851 + $0xb2] sm:$0xff]
        %v10988 = vld [vmem:[%s9851 + $0xc2] sm:$0xff]
        %v10989 = vld [vmem:[%s9851 + $0xca] sm:$0xff]
        %v10990 = vld [vmem:[%s9851 + $0xda] sm:$0xff]
        %v10991 = vld [vmem:[%s9851 + $0xe2] sm:$0xff]
        %v10992 = vld [vmem:[%s9851 + $0xf2] sm:$0xff]
        %v10993 = vld [vmem:[%s9851 + $0xfa] sm:$0xff]
        %v10994 = vld [vmem:[%s9851 + $0x10a] sm:$0xff]
        %v10995 = vld [vmem:[%s9851 + $0x112] sm:$0xff]
        %v10996 = vld [vmem:[%s9851 + $0x122] sm:$0xff]
        %v10997 = vld [vmem:[%s9851 + $0x12a] sm:$0xff]
        %v10998 = vld [vmem:[%s9851 + $0x13a] sm:$0xff]
        %v10999 = vld [vmem:[%s9851 + $0x142] sm:$0xff]
        %v11000 = vld [vmem:[%s9851 + $0x152] sm:$0xff]
        %v11001 = vld [vmem:[%s9851 + $0x15a] sm:$0xff]
        %v11002 = vld [vmem:[%s9851 + $0x16a] sm:$0xff]
        %v11003 = vld [vmem:[%s9851 + $0x172] sm:$0xff]
        %s11004 = scalar_lea.vmem [#allocation8], 256
        %v11005 = vld [vmem:[%s11004] sm:$0xff]
        %v11006 = vld [vmem:[%s11004 + $0x8] sm:$0xff]
        %v11007 = vld [vmem:[%s11004 + $0x10] sm:$0xff]
        %v11008 = vld [vmem:[%s11004 + $0x18] sm:$0xff]
        %v11010 = vsel %vm363, %v10972, 0
        %v11013 = vsel %vm363, %v10973, 0
        %v11016 = vsel %vm363, %v10974, 0
        %v11019 = vsel %vm363, %v10975, 0
        %v11022 = vsel %vm363, %v10976, 0
        %v11025 = vsel %vm363, %v10977, 0
        %v11028 = vsel %vm363, %v10978, 0
        %v11031 = vsel %vm363, %v10979, 0
        %v11034 = vsel %vm363, %v10980, 0
        %v11037 = vsel %vm363, %v10981, 0
        %v11040 = vsel %vm363, %v10982, 0
        %v11043 = vsel %vm363, %v10983, 0
        %v11046 = vsel %vm363, %v10984, 0
        %v11049 = vsel %vm363, %v10985, 0
        %v11052 = vsel %vm363, %v10986, 0
        %v11055 = vsel %vm363, %v10987, 0
        %v11058 = vsel %vm363, %v10988, 0
        %v11061 = vsel %vm363, %v10989, 0
        %v11064 = vsel %vm363, %v10990, 0
        %v11067 = vsel %vm363, %v10991, 0
        %v11070 = vsel %vm363, %v10992, 0
        %v11073 = vsel %vm363, %v10993, 0
        %v11076 = vsel %vm363, %v10994, 0
        %v11079 = vsel %vm363, %v10995, 0
        %v11082 = vsel %vm363, %v10996, 0
        %v11085 = vsel %vm363, %v10997, 0
        %v11088 = vsel %vm363, %v10998, 0
        %v11091 = vsel %vm363, %v10999, 0
        %v11094 = vsel %vm363, %v11000, 0
        %v11097 = vsel %vm363, %v11001, 0
        %v11100 = vsel %vm363, %v11002, 0
        %v11103 = vsel %vm363, %v11003, 0
        %11105 = vmatpush.msra.mxu0 0.0
        %11106 = vmatpush.msra.mxu0 0.0
        %11107 = vmatpush.msra.mxu0 0.0
        %11108 = vmatpush.msra.mxu0 0.0
        %11109 = vmatpush.msra.mxu0 0.0
        %11110 = vmatpush.msra.mxu0 0.0
        %11111 = vmatpush.msra.mxu0 0.0
        %11112 = vmatpush.msra.mxu0 0.0
        %11113 = vmatpush.msra.mxu0 0.0
        %11114 = vmatpush.msra.mxu0 0.0
        %11115 = vmatpush.msra.mxu0 0.0
        %11116 = vmatpush.msra.mxu0 0.0
        %11117 = vmatpush.msra.mxu0 %v11008
        %11118 = vmatpush.msra.mxu0 %v11007
        %11119 = vmatpush.msra.mxu0 %v11006
        %11120 = vmatpush.msra.mxu0 %v11005
        %11121 = vmatmul.f32.gmra.mxu0 %v11010
        %v11122 = vpop.f32.mrf.mxu0
        %v11123 = vadd.f32 0.0, %v11122
        %11124 = vmatmul.f32.gmra.mxu0 %v11013
        %v11125 = vpop.f32.mrf.mxu0
        %v11126 = vadd.f32 0.0, %v11125
        %11127 = vmatmul.f32.gmra.mxu0 %v11016
        %v11128 = vpop.f32.mrf.mxu0
        %v11129 = vadd.f32 0.0, %v11128
        %11130 = vmatmul.f32.gmra.mxu0 %v11019
        %v11131 = vpop.f32.mrf.mxu0
        %v11132 = vadd.f32 0.0, %v11131
        %11133 = vmatmul.f32.gmra.mxu0 %v11022
        %v11134 = vpop.f32.mrf.mxu0
        %v11135 = vadd.f32 0.0, %v11134
        %11136 = vmatmul.f32.gmra.mxu0 %v11025
        %v11137 = vpop.f32.mrf.mxu0
        %v11138 = vadd.f32 0.0, %v11137
        %11139 = vmatmul.f32.gmra.mxu0 %v11028
        %v11140 = vpop.f32.mrf.mxu0
        %v11141 = vadd.f32 0.0, %v11140
        %11142 = vmatmul.f32.gmra.mxu0 %v11031
        %v11143 = vpop.f32.mrf.mxu0
        %v11144 = vadd.f32 0.0, %v11143
        %11145 = vmatmul.f32.gmra.mxu0 %v11034
        %v11146 = vpop.f32.mrf.mxu0
        %v11147 = vadd.f32 0.0, %v11146
        %11148 = vmatmul.f32.gmra.mxu0 %v11037
        %v11149 = vpop.f32.mrf.mxu0
        %v11150 = vadd.f32 0.0, %v11149
        %11151 = vmatmul.f32.gmra.mxu0 %v11040
        %v11152 = vpop.f32.mrf.mxu0
        %v11153 = vadd.f32 0.0, %v11152
        %11154 = vmatmul.f32.gmra.mxu0 %v11043
        %v11155 = vpop.f32.mrf.mxu0
        %v11156 = vadd.f32 0.0, %v11155
        %11157 = vmatmul.f32.gmra.mxu0 %v11046
        %v11158 = vpop.f32.mrf.mxu0
        %v11159 = vadd.f32 0.0, %v11158
        %11160 = vmatmul.f32.gmra.mxu0 %v11049
        %v11161 = vpop.f32.mrf.mxu0
        %v11162 = vadd.f32 0.0, %v11161
        %11163 = vmatmul.f32.gmra.mxu0 %v11052
        %v11164 = vpop.f32.mrf.mxu0
        %v11165 = vadd.f32 0.0, %v11164
        %11166 = vmatmul.f32.gmra.mxu0 %v11055
        %v11167 = vpop.f32.mrf.mxu0
        %v11168 = vadd.f32 0.0, %v11167
        %11169 = vmatmul.f32.gmra.mxu0 %v11058
        %v11170 = vpop.f32.mrf.mxu0
        %v11171 = vadd.f32 0.0, %v11170
        %11172 = vmatmul.f32.gmra.mxu0 %v11061
        %v11173 = vpop.f32.mrf.mxu0
        %v11174 = vadd.f32 0.0, %v11173
        %11175 = vmatmul.f32.gmra.mxu0 %v11064
        %v11176 = vpop.f32.mrf.mxu0
        %v11177 = vadd.f32 0.0, %v11176
        %11178 = vmatmul.f32.gmra.mxu0 %v11067
        %v11179 = vpop.f32.mrf.mxu0
        %v11180 = vadd.f32 0.0, %v11179
        %11181 = vmatmul.f32.gmra.mxu0 %v11070
        %v11182 = vpop.f32.mrf.mxu0
        %v11183 = vadd.f32 0.0, %v11182
        %11184 = vmatmul.f32.gmra.mxu0 %v11073
        %v11185 = vpop.f32.mrf.mxu0
        %v11186 = vadd.f32 0.0, %v11185
        %11187 = vmatmul.f32.gmra.mxu0 %v11076
        %v11188 = vpop.f32.mrf.mxu0
        %v11189 = vadd.f32 0.0, %v11188
        %11190 = vmatmul.f32.gmra.mxu0 %v11079
        %v11191 = vpop.f32.mrf.mxu0
        %v11192 = vadd.f32 0.0, %v11191
        %11193 = vmatmul.f32.gmra.mxu0 %v11082
        %v11194 = vpop.f32.mrf.mxu0
        %v11195 = vadd.f32 0.0, %v11194
        %11196 = vmatmul.f32.gmra.mxu0 %v11085
        %v11197 = vpop.f32.mrf.mxu0
        %v11198 = vadd.f32 0.0, %v11197
        %11199 = vmatmul.f32.gmra.mxu0 %v11088
        %v11200 = vpop.f32.mrf.mxu0
        %v11201 = vadd.f32 0.0, %v11200
        %11202 = vmatmul.f32.gmra.mxu0 %v11091
        %v11203 = vpop.f32.mrf.mxu0
        %v11204 = vadd.f32 0.0, %v11203
        %11205 = vmatmul.f32.gmra.mxu0 %v11094
        %v11206 = vpop.f32.mrf.mxu0
        %v11207 = vadd.f32 0.0, %v11206
        %11208 = vmatmul.f32.gmra.mxu0 %v11097
        %v11209 = vpop.f32.mrf.mxu0
        %v11210 = vadd.f32 0.0, %v11209
        %11211 = vmatmul.f32.gmra.mxu0 %v11100
        %v11212 = vpop.f32.mrf.mxu0
        %v11213 = vadd.f32 0.0, %v11212
        %11214 = vmatmul.f32.gmra.mxu0 %v11103
        %v11215 = vpop.f32.mrf.mxu0
        %v11216 = vadd.f32 0.0, %v11215
        %11217 = vdwg.mxu0
        %v11218 = vadd.f32 %v10940, %v11123
        %v11219 = vadd.f32 %v10941, %v11126
        %v11220 = vadd.f32 %v10942, %v11129
        %v11221 = vadd.f32 %v10943, %v11132
        %v11222 = vadd.f32 %v10944, %v11135
        %v11223 = vadd.f32 %v10945, %v11138
        %v11224 = vadd.f32 %v10946, %v11141
        %v11225 = vadd.f32 %v10947, %v11144
        %v11226 = vadd.f32 %v10948, %v11147
        %v11227 = vadd.f32 %v10949, %v11150
        %v11228 = vadd.f32 %v10950, %v11153
        %v11229 = vadd.f32 %v10951, %v11156
        %v11230 = vadd.f32 %v10952, %v11159
        %v11231 = vadd.f32 %v10953, %v11162
        %v11232 = vadd.f32 %v10954, %v11165
        %v11233 = vadd.f32 %v10955, %v11168
        %v11234 = vadd.f32 %v10956, %v11171
        %v11235 = vadd.f32 %v10957, %v11174
        %v11236 = vadd.f32 %v10958, %v11177
        %v11237 = vadd.f32 %v10959, %v11180
        %v11238 = vadd.f32 %v10960, %v11183
        %v11239 = vadd.f32 %v10961, %v11186
        %v11240 = vadd.f32 %v10962, %v11189
        %v11241 = vadd.f32 %v10963, %v11192
        %v11242 = vadd.f32 %v10964, %v11195
        %v11243 = vadd.f32 %v10965, %v11198
        %v11244 = vadd.f32 %v10966, %v11201
        %v11245 = vadd.f32 %v10967, %v11204
        %v11246 = vadd.f32 %v10968, %v11207
        %v11247 = vadd.f32 %v10969, %v11210
        %v11248 = vadd.f32 %v10970, %v11213
        %v11249 = vadd.f32 %v10971, %v11216
        %v11250 = vld [vmem:[%s4190 + $0x2] sm:$0xff]
        %v11251 = vld [vmem:[%s4190 + $0xa] sm:$0xff]
        %v11252 = vld [vmem:[%s4190 + $0x1a] sm:$0xff]
        %v11253 = vld [vmem:[%s4190 + $0x22] sm:$0xff]
        %v11254 = vld [vmem:[%s4190 + $0x32] sm:$0xff]
        %v11255 = vld [vmem:[%s4190 + $0x3a] sm:$0xff]
        %v11256 = vld [vmem:[%s4190 + $0x4a] sm:$0xff]
        %v11257 = vld [vmem:[%s4190 + $0x52] sm:$0xff]
        %v11258 = vld [vmem:[%s4190 + $0x62] sm:$0xff]
        %v11259 = vld [vmem:[%s4190 + $0x6a] sm:$0xff]
        %v11260 = vld [vmem:[%s4190 + $0x7a] sm:$0xff]
        %v11261 = vld [vmem:[%s4190 + $0x82] sm:$0xff]
        %v11262 = vld [vmem:[%s4190 + $0x92] sm:$0xff]
        %v11263 = vld [vmem:[%s4190 + $0x9a] sm:$0xff]
        %v11264 = vld [vmem:[%s4190 + $0xaa] sm:$0xff]
        %v11265 = vld [vmem:[%s4190 + $0xb2] sm:$0xff]
        %v11266 = vld [vmem:[%s4190 + $0xc2] sm:$0xff]
        %v11267 = vld [vmem:[%s4190 + $0xca] sm:$0xff]
        %v11268 = vld [vmem:[%s4190 + $0xda] sm:$0xff]
        %v11269 = vld [vmem:[%s4190 + $0xe2] sm:$0xff]
        %v11270 = vld [vmem:[%s4190 + $0xf2] sm:$0xff]
        %v11271 = vld [vmem:[%s4190 + $0xfa] sm:$0xff]
        %v11272 = vld [vmem:[%s4190 + $0x10a] sm:$0xff]
        %v11273 = vld [vmem:[%s4190 + $0x112] sm:$0xff]
        %v11274 = vld [vmem:[%s4190 + $0x122] sm:$0xff]
        %v11275 = vld [vmem:[%s4190 + $0x12a] sm:$0xff]
        %v11276 = vld [vmem:[%s4190 + $0x13a] sm:$0xff]
        %v11277 = vld [vmem:[%s4190 + $0x142] sm:$0xff]
        %v11278 = vld [vmem:[%s4190 + $0x152] sm:$0xff]
        %v11279 = vld [vmem:[%s4190 + $0x15a] sm:$0xff]
        %v11280 = vld [vmem:[%s4190 + $0x16a] sm:$0xff]
        %v11281 = vld [vmem:[%s4190 + $0x172] sm:$0xff]
        %s11282 = scalar_lea.vmem %s6, 512
        %v11283 = vld [vmem:[%s11282] sm:$0xff]
        %v11284 = vld [vmem:[%s11282 + $0x8] sm:$0xff]
        %v11285 = vld [vmem:[%s11282 + $0x10] sm:$0xff]
        %v11286 = vld [vmem:[%s11282 + $0x18] sm:$0xff]
        %v11287 = vld [vmem:[%s11282 + $0x20] sm:$0xff]
        %v11288 = vld [vmem:[%s11282 + $0x28] sm:$0xff]
        %v11289 = vld [vmem:[%s11282 + $0x30] sm:$0xff]
        %v11290 = vld [vmem:[%s11282 + $0x38] sm:$0xff]
        %v11292 = vsel %vm406, %v11250, 0
        %v11295 = vsel %vm406, %v11251, 0
        %v11298 = vsel %vm406, %v11252, 0
        %v11301 = vsel %vm406, %v11253, 0
        %v11304 = vsel %vm406, %v11254, 0
        %v11307 = vsel %vm406, %v11255, 0
        %v11310 = vsel %vm406, %v11256, 0
        %v11313 = vsel %vm406, %v11257, 0
        %v11316 = vsel %vm406, %v11258, 0
        %v11319 = vsel %vm406, %v11259, 0
        %v11322 = vsel %vm406, %v11260, 0
        %v11325 = vsel %vm406, %v11261, 0
        %v11328 = vsel %vm406, %v11262, 0
        %v11331 = vsel %vm406, %v11263, 0
        %v11334 = vsel %vm406, %v11264, 0
        %v11337 = vsel %vm406, %v11265, 0
        %v11340 = vsel %vm406, %v11266, 0
        %v11343 = vsel %vm406, %v11267, 0
        %v11346 = vsel %vm406, %v11268, 0
        %v11349 = vsel %vm406, %v11269, 0
        %v11352 = vsel %vm406, %v11270, 0
        %v11355 = vsel %vm406, %v11271, 0
        %v11358 = vsel %vm406, %v11272, 0
        %v11361 = vsel %vm406, %v11273, 0
        %v11364 = vsel %vm406, %v11274, 0
        %v11367 = vsel %vm406, %v11275, 0
        %v11370 = vsel %vm406, %v11276, 0
        %v11373 = vsel %vm406, %v11277, 0
        %v11376 = vsel %vm406, %v11278, 0
        %v11379 = vsel %vm406, %v11279, 0
        %v11382 = vsel %vm406, %v11280, 0
        %v11385 = vsel %vm406, %v11281, 0
        %11387 = vmatpush.msra.mxu0 0.0
        %11388 = vmatpush.msra.mxu0 0.0
        %11389 = vmatpush.msra.mxu0 0.0
        %11390 = vmatpush.msra.mxu0 0.0
        %11391 = vmatpush.msra.mxu0 0.0
        %11392 = vmatpush.msra.mxu0 0.0
        %11393 = vmatpush.msra.mxu0 0.0
        %11394 = vmatpush.msra.mxu0 0.0
        %11395 = vmatpush.msra.mxu0 %v11290
        %11396 = vmatpush.msra.mxu0 %v11289
        %11397 = vmatpush.msra.mxu0 %v11288
        %11398 = vmatpush.msra.mxu0 %v11287
        %11399 = vmatpush.msra.mxu0 %v11286
        %11400 = vmatpush.msra.mxu0 %v11285
        %11401 = vmatpush.msra.mxu0 %v11284
        %11402 = vmatpush.msra.mxu0 %v11283
        %11403 = vmatmul.f32.gmra.mxu0 %v11292
        %v11404 = vpop.f32.mrf.mxu0
        %v11405 = vadd.f32 0.0, %v11404
        %11406 = vmatmul.f32.gmra.mxu0 %v11295
        %v11407 = vpop.f32.mrf.mxu0
        %v11408 = vadd.f32 0.0, %v11407
        %11409 = vmatmul.f32.gmra.mxu0 %v11298
        %v11410 = vpop.f32.mrf.mxu0
        %v11411 = vadd.f32 0.0, %v11410
        %11412 = vmatmul.f32.gmra.mxu0 %v11301
        %v11413 = vpop.f32.mrf.mxu0
        %v11414 = vadd.f32 0.0, %v11413
        %11415 = vmatmul.f32.gmra.mxu0 %v11304
        %v11416 = vpop.f32.mrf.mxu0
        %v11417 = vadd.f32 0.0, %v11416
        %11418 = vmatmul.f32.gmra.mxu0 %v11307
        %v11419 = vpop.f32.mrf.mxu0
        %v11420 = vadd.f32 0.0, %v11419
        %11421 = vmatmul.f32.gmra.mxu0 %v11310
        %v11422 = vpop.f32.mrf.mxu0
        %v11423 = vadd.f32 0.0, %v11422
        %11424 = vmatmul.f32.gmra.mxu0 %v11313
        %v11425 = vpop.f32.mrf.mxu0
        %v11426 = vadd.f32 0.0, %v11425
        %11427 = vmatmul.f32.gmra.mxu0 %v11316
        %v11428 = vpop.f32.mrf.mxu0
        %v11429 = vadd.f32 0.0, %v11428
        %11430 = vmatmul.f32.gmra.mxu0 %v11319
        %v11431 = vpop.f32.mrf.mxu0
        %v11432 = vadd.f32 0.0, %v11431
        %11433 = vmatmul.f32.gmra.mxu0 %v11322
        %v11434 = vpop.f32.mrf.mxu0
        %v11435 = vadd.f32 0.0, %v11434
        %11436 = vmatmul.f32.gmra.mxu0 %v11325
        %v11437 = vpop.f32.mrf.mxu0
        %v11438 = vadd.f32 0.0, %v11437
        %11439 = vmatmul.f32.gmra.mxu0 %v11328
        %v11440 = vpop.f32.mrf.mxu0
        %v11441 = vadd.f32 0.0, %v11440
        %11442 = vmatmul.f32.gmra.mxu0 %v11331
        %v11443 = vpop.f32.mrf.mxu0
        %v11444 = vadd.f32 0.0, %v11443
        %11445 = vmatmul.f32.gmra.mxu0 %v11334
        %v11446 = vpop.f32.mrf.mxu0
        %v11447 = vadd.f32 0.0, %v11446
        %11448 = vmatmul.f32.gmra.mxu0 %v11337
        %v11449 = vpop.f32.mrf.mxu0
        %v11450 = vadd.f32 0.0, %v11449
        %11451 = vmatmul.f32.gmra.mxu0 %v11340
        %v11452 = vpop.f32.mrf.mxu0
        %v11453 = vadd.f32 0.0, %v11452
        %11454 = vmatmul.f32.gmra.mxu0 %v11343
        %v11455 = vpop.f32.mrf.mxu0
        %v11456 = vadd.f32 0.0, %v11455
        %11457 = vmatmul.f32.gmra.mxu0 %v11346
        %v11458 = vpop.f32.mrf.mxu0
        %v11459 = vadd.f32 0.0, %v11458
        %11460 = vmatmul.f32.gmra.mxu0 %v11349
        %v11461 = vpop.f32.mrf.mxu0
        %v11462 = vadd.f32 0.0, %v11461
        %11463 = vmatmul.f32.gmra.mxu0 %v11352
        %v11464 = vpop.f32.mrf.mxu0
        %v11465 = vadd.f32 0.0, %v11464
        %11466 = vmatmul.f32.gmra.mxu0 %v11355
        %v11467 = vpop.f32.mrf.mxu0
        %v11468 = vadd.f32 0.0, %v11467
        %11469 = vmatmul.f32.gmra.mxu0 %v11358
        %v11470 = vpop.f32.mrf.mxu0
        %v11471 = vadd.f32 0.0, %v11470
        %11472 = vmatmul.f32.gmra.mxu0 %v11361
        %v11473 = vpop.f32.mrf.mxu0
        %v11474 = vadd.f32 0.0, %v11473
        %11475 = vmatmul.f32.gmra.mxu0 %v11364
        %v11476 = vpop.f32.mrf.mxu0
        %v11477 = vadd.f32 0.0, %v11476
        %11478 = vmatmul.f32.gmra.mxu0 %v11367
        %v11479 = vpop.f32.mrf.mxu0
        %v11480 = vadd.f32 0.0, %v11479
        %11481 = vmatmul.f32.gmra.mxu0 %v11370
        %v11482 = vpop.f32.mrf.mxu0
        %v11483 = vadd.f32 0.0, %v11482
        %11484 = vmatmul.f32.gmra.mxu0 %v11373
        %v11485 = vpop.f32.mrf.mxu0
        %v11486 = vadd.f32 0.0, %v11485
        %11487 = vmatmul.f32.gmra.mxu0 %v11376
        %v11488 = vpop.f32.mrf.mxu0
        %v11489 = vadd.f32 0.0, %v11488
        %11490 = vmatmul.f32.gmra.mxu0 %v11379
        %v11491 = vpop.f32.mrf.mxu0
        %v11492 = vadd.f32 0.0, %v11491
        %11493 = vmatmul.f32.gmra.mxu0 %v11382
        %v11494 = vpop.f32.mrf.mxu0
        %v11495 = vadd.f32 0.0, %v11494
        %11496 = vmatmul.f32.gmra.mxu0 %v11385
        %v11497 = vpop.f32.mrf.mxu0
        %v11498 = vadd.f32 0.0, %v11497
        %11499 = vdwg.mxu0
        %v11500 = vadd.f32 %v11218, %v11405
        %v11501 = vadd.f32 %v11219, %v11408
        %v11502 = vadd.f32 %v11220, %v11411
        %v11503 = vadd.f32 %v11221, %v11414
        %v11504 = vadd.f32 %v11222, %v11417
        %v11505 = vadd.f32 %v11223, %v11420
        %v11506 = vadd.f32 %v11224, %v11423
        %v11507 = vadd.f32 %v11225, %v11426
        %v11508 = vadd.f32 %v11226, %v11429
        %v11509 = vadd.f32 %v11227, %v11432
        %v11510 = vadd.f32 %v11228, %v11435
        %v11511 = vadd.f32 %v11229, %v11438
        %v11512 = vadd.f32 %v11230, %v11441
        %v11513 = vadd.f32 %v11231, %v11444
        %v11514 = vadd.f32 %v11232, %v11447
        %v11515 = vadd.f32 %v11233, %v11450
        %v11516 = vadd.f32 %v11234, %v11453
        %v11517 = vadd.f32 %v11235, %v11456
        %v11518 = vadd.f32 %v11236, %v11459
        %v11519 = vadd.f32 %v11237, %v11462
        %v11520 = vadd.f32 %v11238, %v11465
        %v11521 = vadd.f32 %v11239, %v11468
        %v11522 = vadd.f32 %v11240, %v11471
        %v11523 = vadd.f32 %v11241, %v11474
        %v11524 = vadd.f32 %v11242, %v11477
        %v11525 = vadd.f32 %v11243, %v11480
        %v11526 = vadd.f32 %v11244, %v11483
        %v11527 = vadd.f32 %v11245, %v11486
        %v11528 = vadd.f32 %v11246, %v11489
        %v11529 = vadd.f32 %v11247, %v11492
        %v11530 = vadd.f32 %v11248, %v11495
        %v11531 = vadd.f32 %v11249, %v11498
        %v11532 = vld [vmem:[%s7] sm:$0x1]
        %v11534 = vperm.slane %v11532, 0
        %v11536 = vadd.f32 %v11500, %v11534
        %v11537 = vadd.f32 %v11501, %v11534
        %v11538 = vadd.f32 %v11502, %v11534
        %v11539 = vadd.f32 %v11503, %v11534
        %v11540 = vadd.f32 %v11504, %v11534
        %v11541 = vadd.f32 %v11505, %v11534
        %v11542 = vadd.f32 %v11506, %v11534
        %v11543 = vadd.f32 %v11507, %v11534
        %v11544 = vadd.f32 %v11508, %v11534
        %v11545 = vadd.f32 %v11509, %v11534
        %v11546 = vadd.f32 %v11510, %v11534
        %v11547 = vadd.f32 %v11511, %v11534
        %v11548 = vadd.f32 %v11512, %v11534
        %v11549 = vadd.f32 %v11513, %v11534
        %v11550 = vadd.f32 %v11514, %v11534
        %v11551 = vadd.f32 %v11515, %v11534
        %v11552 = vadd.f32 %v11516, %v11534
        %v11553 = vadd.f32 %v11517, %v11534
        %v11554 = vadd.f32 %v11518, %v11534
        %v11555 = vadd.f32 %v11519, %v11534
        %v11556 = vadd.f32 %v11520, %v11534
        %v11557 = vadd.f32 %v11521, %v11534
        %v11558 = vadd.f32 %v11522, %v11534
        %v11559 = vadd.f32 %v11523, %v11534
        %v11560 = vadd.f32 %v11524, %v11534
        %v11561 = vadd.f32 %v11525, %v11534
        %v11562 = vadd.f32 %v11526, %v11534
        %v11563 = vadd.f32 %v11527, %v11534
        %v11564 = vadd.f32 %v11528, %v11534
        %v11565 = vadd.f32 %v11529, %v11534
        %v11566 = vadd.f32 %v11530, %v11534
        %v11567 = vadd.f32 %v11531, %v11534
        %v11568 = vtanh.pop %v11536
        %v11569 = vtanh.pop %v11537
        %v11570 = vtanh.pop %v11538
        %v11571 = vtanh.pop %v11539
        %v11572 = vtanh.pop %v11540
        %v11573 = vtanh.pop %v11541
        %v11574 = vtanh.pop %v11542
        %v11575 = vtanh.pop %v11543
        %v11576 = vtanh.pop %v11544
        %v11577 = vtanh.pop %v11545
        %v11578 = vtanh.pop %v11546
        %v11579 = vtanh.pop %v11547
        %v11580 = vtanh.pop %v11548
        %v11581 = vtanh.pop %v11549
        %v11582 = vtanh.pop %v11550
        %v11583 = vtanh.pop %v11551
        %v11584 = vtanh.pop %v11552
        %v11585 = vtanh.pop %v11553
        %v11586 = vtanh.pop %v11554
        %v11587 = vtanh.pop %v11555
        %v11588 = vtanh.pop %v11556
        %v11589 = vtanh.pop %v11557
        %v11590 = vtanh.pop %v11558
        %v11591 = vtanh.pop %v11559
        %v11592 = vtanh.pop %v11560
        %v11593 = vtanh.pop %v11561
        %v11594 = vtanh.pop %v11562
        %v11595 = vtanh.pop %v11563
        %v11596 = vtanh.pop %v11564
        %v11597 = vtanh.pop %v11565
        %v11598 = vtanh.pop %v11566
        %v11599 = vtanh.pop %v11567
        %v11600 = vsub.f32 1.0, %v5771
        %v11601 = vsub.f32 1.0, %v5786
        %v11602 = vsub.f32 1.0, %v5801
        %v11603 = vsub.f32 1.0, %v5816
        %v11604 = vsub.f32 1.0, %v5831
        %v11605 = vsub.f32 1.0, %v5846
        %v11606 = vsub.f32 1.0, %v5861
        %v11607 = vsub.f32 1.0, %v5876
        %v11608 = vsub.f32 1.0, %v5891
        %v11609 = vsub.f32 1.0, %v5906
        %v11610 = vsub.f32 1.0, %v5921
        %v11611 = vsub.f32 1.0, %v5936
        %v11612 = vsub.f32 1.0, %v5951
        %v11613 = vsub.f32 1.0, %v5966
        %v11614 = vsub.f32 1.0, %v5981
        %v11615 = vsub.f32 1.0, %v5996
        %v11616 = vsub.f32 1.0, %v6011
        %v11617 = vsub.f32 1.0, %v6026
        %v11618 = vsub.f32 1.0, %v6041
        %v11619 = vsub.f32 1.0, %v6056
        %v11620 = vsub.f32 1.0, %v6071
        %v11621 = vsub.f32 1.0, %v6086
        %v11622 = vsub.f32 1.0, %v6101
        %v11623 = vsub.f32 1.0, %v6116
        %v11624 = vsub.f32 1.0, %v6131
        %v11625 = vsub.f32 1.0, %v6146
        %v11626 = vsub.f32 1.0, %v6161
        %v11627 = vsub.f32 1.0, %v6176
        %v11628 = vsub.f32 1.0, %v6191
        %v11629 = vsub.f32 1.0, %v6206
        %v11630 = vsub.f32 1.0, %v6221
        %v11631 = vsub.f32 1.0, %v6236
        %v11632 = vmul.f32 %v11600, %v489
        %v11633 = vmul.f32 %v11601, %v490
        %v11634 = vmul.f32 %v11602, %v491
        %v11635 = vmul.f32 %v11603, %v492
        %v11636 = vmul.f32 %v11604, %v493
        %v11637 = vmul.f32 %v11605, %v494
        %v11638 = vmul.f32 %v11606, %v495
        %v11639 = vmul.f32 %v11607, %v496
        %v11640 = vmul.f32 %v11608, %v497
        %v11641 = vmul.f32 %v11609, %v498
        %v11642 = vmul.f32 %v11610, %v499
        %v11643 = vmul.f32 %v11611, %v500
        %v11644 = vmul.f32 %v11612, %v501
        %v11645 = vmul.f32 %v11613, %v502
        %v11646 = vmul.f32 %v11614, %v503
        %v11647 = vmul.f32 %v11615, %v504
        %v11648 = vmul.f32 %v11616, %v505
        %v11649 = vmul.f32 %v11617, %v506
        %v11650 = vmul.f32 %v11618, %v507
        %v11651 = vmul.f32 %v11619, %v508
        %v11652 = vmul.f32 %v11620, %v509
        %v11653 = vmul.f32 %v11621, %v510
        %v11654 = vmul.f32 %v11622, %v511
        %v11655 = vmul.f32 %v11623, %v512
        %v11656 = vmul.f32 %v11624, %v513
        %v11657 = vmul.f32 %v11625, %v514
        %v11658 = vmul.f32 %v11626, %v515
        %v11659 = vmul.f32 %v11627, %v516
        %v11660 = vmul.f32 %v11628, %v517
        %v11661 = vmul.f32 %v11629, %v518
        %v11662 = vmul.f32 %v11630, %v519
        %v11663 = vmul.f32 %v11631, %v520
        %v11664 = vmul.f32 %v5771, %v11568
        %v11665 = vmul.f32 %v5786, %v11569
        %v11666 = vmul.f32 %v5801, %v11570
        %v11667 = vmul.f32 %v5816, %v11571
        %v11668 = vmul.f32 %v5831, %v11572
        %v11669 = vmul.f32 %v5846, %v11573
        %v11670 = vmul.f32 %v5861, %v11574
        %v11671 = vmul.f32 %v5876, %v11575
        %v11672 = vmul.f32 %v5891, %v11576
        %v11673 = vmul.f32 %v5906, %v11577
        %v11674 = vmul.f32 %v5921, %v11578
        %v11675 = vmul.f32 %v5936, %v11579
        %v11676 = vmul.f32 %v5951, %v11580
        %v11677 = vmul.f32 %v5966, %v11581
        %v11678 = vmul.f32 %v5981, %v11582
        %v11679 = vmul.f32 %v5996, %v11583
        %v11680 = vmul.f32 %v6011, %v11584
        %v11681 = vmul.f32 %v6026, %v11585
        %v11682 = vmul.f32 %v6041, %v11586
        %v11683 = vmul.f32 %v6056, %v11587
        %v11684 = vmul.f32 %v6071, %v11588
        %v11685 = vmul.f32 %v6086, %v11589
        %v11686 = vmul.f32 %v6101, %v11590
        %v11687 = vmul.f32 %v6116, %v11591
        %v11688 = vmul.f32 %v6131, %v11592
        %v11689 = vmul.f32 %v6146, %v11593
        %v11690 = vmul.f32 %v6161, %v11594
        %v11691 = vmul.f32 %v6176, %v11595
        %v11692 = vmul.f32 %v6191, %v11596
        %v11693 = vmul.f32 %v6206, %v11597
        %v11694 = vmul.f32 %v6221, %v11598
        %v11695 = vmul.f32 %v6236, %v11599
        %v11696 = vadd.f32 %v11632, %v11664
        %v11697 = vadd.f32 %v11633, %v11665
        %v11698 = vadd.f32 %v11634, %v11666
        %v11699 = vadd.f32 %v11635, %v11667
        %v11700 = vadd.f32 %v11636, %v11668
        %v11701 = vadd.f32 %v11637, %v11669
        %v11702 = vadd.f32 %v11638, %v11670
        %v11703 = vadd.f32 %v11639, %v11671
        %v11704 = vadd.f32 %v11640, %v11672
        %v11705 = vadd.f32 %v11641, %v11673
        %v11706 = vadd.f32 %v11642, %v11674
        %v11707 = vadd.f32 %v11643, %v11675
        %v11708 = vadd.f32 %v11644, %v11676
        %v11709 = vadd.f32 %v11645, %v11677
        %v11710 = vadd.f32 %v11646, %v11678
        %v11711 = vadd.f32 %v11647, %v11679
        %v11712 = vadd.f32 %v11648, %v11680
        %v11713 = vadd.f32 %v11649, %v11681
        %v11714 = vadd.f32 %v11650, %v11682
        %v11715 = vadd.f32 %v11651, %v11683
        %v11716 = vadd.f32 %v11652, %v11684
        %v11717 = vadd.f32 %v11653, %v11685
        %v11718 = vadd.f32 %v11654, %v11686
        %v11719 = vadd.f32 %v11655, %v11687
        %v11720 = vadd.f32 %v11656, %v11688
        %v11721 = vadd.f32 %v11657, %v11689
        %v11722 = vadd.f32 %v11658, %v11690
        %v11723 = vadd.f32 %v11659, %v11691
        %v11724 = vadd.f32 %v11660, %v11692
        %v11725 = vadd.f32 %v11661, %v11693
        %v11726 = vadd.f32 %v11662, %v11694
        %v11727 = vadd.f32 %v11663, %v11695
        %11728 = vst.msk [vmem:[%s357] sm:$0xff] %vm363, %v11696
        %11729 = vst.msk [vmem:[%s357 + $0x8] sm:$0xff] %vm363, %v11697
        %11730 = vst.msk [vmem:[%s357 + $0x10] sm:$0xff] %vm363, %v11698
        %11731 = vst.msk [vmem:[%s357 + $0x18] sm:$0xff] %vm363, %v11699
        %11732 = vst.msk [vmem:[%s357 + $0x20] sm:$0xff] %vm363, %v11700
        %11733 = vst.msk [vmem:[%s357 + $0x28] sm:$0xff] %vm363, %v11701
        %11734 = vst.msk [vmem:[%s357 + $0x30] sm:$0xff] %vm363, %v11702
        %11735 = vst.msk [vmem:[%s357 + $0x38] sm:$0xff] %vm363, %v11703
        %11736 = vst.msk [vmem:[%s357 + $0x40] sm:$0xff] %vm363, %v11704
        %11737 = vst.msk [vmem:[%s357 + $0x48] sm:$0xff] %vm363, %v11705
        %11738 = vst.msk [vmem:[%s357 + $0x50] sm:$0xff] %vm363, %v11706
        %11739 = vst.msk [vmem:[%s357 + $0x58] sm:$0xff] %vm363, %v11707
        %11740 = vst.msk [vmem:[%s357 + $0x60] sm:$0xff] %vm363, %v11708
        %11741 = vst.msk [vmem:[%s357 + $0x68] sm:$0xff] %vm363, %v11709
        %11742 = vst.msk [vmem:[%s357 + $0x70] sm:$0xff] %vm363, %v11710
        %11743 = vst.msk [vmem:[%s357 + $0x78] sm:$0xff] %vm363, %v11711
        %11744 = vst.msk [vmem:[%s357 + $0x80] sm:$0xff] %vm363, %v11712
        %11745 = vst.msk [vmem:[%s357 + $0x88] sm:$0xff] %vm363, %v11713
        %11746 = vst.msk [vmem:[%s357 + $0x90] sm:$0xff] %vm363, %v11714
        %11747 = vst.msk [vmem:[%s357 + $0x98] sm:$0xff] %vm363, %v11715
        %11748 = vst.msk [vmem:[%s357 + $0xa0] sm:$0xff] %vm363, %v11716
        %11749 = vst.msk [vmem:[%s357 + $0xa8] sm:$0xff] %vm363, %v11717
        %11750 = vst.msk [vmem:[%s357 + $0xb0] sm:$0xff] %vm363, %v11718
        %11751 = vst.msk [vmem:[%s357 + $0xb8] sm:$0xff] %vm363, %v11719
        %11752 = vst.msk [vmem:[%s357 + $0xc0] sm:$0xff] %vm363, %v11720
        %11753 = vst.msk [vmem:[%s357 + $0xc8] sm:$0xff] %vm363, %v11721
        %11754 = vst.msk [vmem:[%s357 + $0xd0] sm:$0xff] %vm363, %v11722
        %11755 = vst.msk [vmem:[%s357 + $0xd8] sm:$0xff] %vm363, %v11723
        %11756 = vst.msk [vmem:[%s357 + $0xe0] sm:$0xff] %vm363, %v11724
        %11757 = vst.msk [vmem:[%s357 + $0xe8] sm:$0xff] %vm363, %v11725
        %11758 = vst.msk [vmem:[%s357 + $0xf0] sm:$0xff] %vm363, %v11726
        %11759 = vst.msk [vmem:[%s357 + $0xf8] sm:$0xff] %vm363, %v11727
        %s11760 = sand.u32 %s212, 1
        %s11761 = scalar_lea.sflag [#allocation7], %s11760
        %s11762 = sand.u32 %s212, 1
        %s11763 = smul.addr %s11762, 256
        %s11764 = scalar_lea.vmem [#allocation10], %s11763
        // Predicated region
        $region61: #{conv_gru.1} parent=51 // pred_check
          %p11765 = pneg %p222
        $region62: #{conv_gru.1} parent=51 // pred_check_branch
          %11767 = sbr.rel (%p11765) target = $region64
        $region63: #{conv_gru.1} parent=51 // pred_region
          %11769 = vsyncadd %s11761, 0
          %s11770 = smul.addr %s26, 32
          %s11771 = smul.addr %s11770, 8
          %s11772 = scalar_lea.hbm %s8, %s11771
          %s11773 = sshll.u32 %s11764, 4
          %s11774 = int_to_ptr.vmem [resolvable:$true] %s11773
          %s11775 = sshll.u32 %s11772, 4
          %s11776 = int_to_ptr.hbm [resolvable:$true] %s11775
          %11781 = dma.vmem_to_hbm [thread:$0]  %s11774, 4096, %s11776, %s11761, 128, 128, 8
        $region64: #{conv_gru.1} parent=51 // pred_fallthru
          _
      $region52: #{conv_gru.1} parent=5 // pred_fallthru
        _
      %p11782 = scmp.le.s32.totalorder 2, %s21
      // Predicated region
      $region65: #{conv_gru.1} parent=5 // pred_check
        %p11783 = pneg %p11782
      $region66: #{conv_gru.1} parent=5 // pred_check_branch
        %11785 = sbr.rel (%p11783) target = $region68
      $region67: #{conv_gru.1} parent=5 // pred_region
        %s11786 = ssub.s32 %s21, 2
        // Predicated region
        $region69: #{conv_gru.1} parent=67 // pred_check
          %p11787 = pneg %p228
        $region70: #{conv_gru.1} parent=67 // pred_check_branch
          %11789 = sbr.rel (%p11787) target = $region72
        $region71: #{conv_gru.1} parent=67 // pred_region
          %s11790 = sand.u32 %s213, 1
          %s11791 = scalar_lea.sflag [#allocation7], %s11790
          %s11792 = sand.u32 %s213, 1
          %s11793 = smul.addr %s11792, 256
          %s11794 = scalar_lea.vmem [#allocation10], %s11793
          %11796 = dma.done %s11791, 4096
        $region72: #{conv_gru.1} parent=67 // pred_fallthru
          _
      $region68: #{conv_gru.1} parent=5 // pred_fallthru
        _
    $region6: #{conv_gru.1} parent=1 // loop_footer
      %s25 = sadd.s32 1, %s21
    $region7: #{conv_gru.1} parent=1 // loop_footer_branch
      %20 = sbr.rel target = $region3
    $region8: #{conv_gru.1} parent=1 // loop_exit
      _
    %11797 = vsyncpa [#allocation6], 1
    %s11798 = scalar_lea.sflag [#allocation6], 1
    %11799 = vsyncpa %s11798, 1
    %11800 = vsyncpa [#allocation9], 1
    %11801 = vsyncpa [#allocation7], 1
    %s11802 = scalar_lea.sflag [#allocation7], 1
    %11803 = vsyncpa %s11802, 1

</llo_original>
